<compile_context>
chip_gen: v6e
topology: v6e:2x2x1
jax: 0.10.0
libtpu: 0.0.40
codegen_flags: <defaults>
</compile_context>

<pallas_src>
import functools

import jax
import jax.numpy as jnp
from jax.experimental import pallas as pl
from jax.experimental.pallas import tpu as pltpu


# ---------------------------------------------------------------------------
# Per-generation configuration
# ---------------------------------------------------------------------------
@functools.lru_cache(maxsize=1)
def _tpu_config():
    """(vmem_limit_bytes, exp_dtype, row_tile_target) derived from the chip."""
    gen = 6
    try:
        kind = jax.devices()[0].device_kind.lower()
        for g in (7, 6, 5, 4):
            if f"v{g}" in kind:
                gen = g
                break
    except Exception:
        pass
    if gen >= 7:
        # v7x: 64 MiB per TC physical -> leave headroom for compiler scratch.
        return 56 * 1024 * 1024, jnp.bfloat16, 256
    if gen == 6:
        # v6e: 128 MiB physical VMEM; bf16 EUP available.
        return 100 * 1024 * 1024, jnp.bfloat16, 512
    # v5e and older: no bf16 EUP/VPU path -> f32 exp; large tiles (HBM-bound).
    return 100 * 1024 * 1024, jnp.float32, 512


def _pick_tile(n, target, mult):
    """Largest multiple of `mult` <= target that divides n; fallback: full dim."""
    if n % mult != 0 or n <= mult:
        return n
    t = min(n, max(mult, (target // mult) * mult))
    while t >= mult:
        if n % t == 0:
            return t
        t -= mult
    return n


# ---------------------------------------------------------------------------
# GAT layer, phase 1: batched per-head projection + attention scores
# ---------------------------------------------------------------------------
def _gat_proj_kernel(x_ref, w_ref, bd_dst_ref, bd_src_ref,
                     xh_ref, adst_ref, asrc_ref,
                     *, num_heads, fout, apply_relu):
    x = x_ref[...]                                          # (tm, Fin) bf16
    if apply_relu:
        # ReLU(dropout(prev layer)) fused into this layer's input (eval mode)
        x = jnp.maximum(x, jnp.zeros_like(x))
    # one batched matmul for all heads: (tm, Fin) @ (Fin, H*Fout), f32 accumulate
    xh_all = jnp.dot(x, w_ref[...], preferred_element_type=jnp.float32)
    xh_bf = xh_all.astype(jnp.bfloat16)
    # per-node attention scores for all heads via block-diagonal MXU matmuls
    # (full-block stores; no single-lane masked stores or XLU reductions)
    adst_ref[...] = jnp.dot(xh_bf, bd_dst_ref[...],
                            preferred_element_type=jnp.float32)   # (tm, H)
    asrc_ref[...] = jnp.dot(xh_bf, bd_src_ref[...],
                            preferred_element_type=jnp.float32)   # (tm, H)
    for h in range(num_heads):                              # H small -> static unroll
        xh_ref[h] = xh_bf[:, h * fout:(h + 1) * fout]       # (tm, Fout) per head


# ---------------------------------------------------------------------------
# GAT layer, phase 2: (dst-row, src-block) tiled online-softmax attention
# ---------------------------------------------------------------------------
def _gat_attn_kernel(adj_ref, xh_ref, asrc_ref, adst_ref, bias_ref, out_ref,
                     m_sc, l_sc, acc_sc, *, num_heads, exp_dtype):
    k = pl.program_id(1)

    @pl.when(k == 0)
    def _init():
        # -1e30 (not -inf) so exp(m_prev - m_new) stays finite for empty blocks
        m_sc[...] = jnp.full_like(m_sc, -1e30)
        l_sc[...] = jnp.zeros_like(l_sc)
        acc_sc[...] = jnp.zeros_like(acc_sc)

    # additive mask bias: 0 on edges, -1e30 off; computed once per tile, not per head
    neg = (adj_ref[...].astype(jnp.float32) - 1.0) * 1e30   # (tm, tk)
    a_dst = adst_ref[...]                                   # (tm, H) f32
    a_src = asrc_ref[...]                                   # (H, tk) f32

    for h in range(num_heads):                              # static unroll
        e = a_dst[:, h:h + 1] + a_src[h:h + 1, :]           # (tm, tk)
        e = jnp.maximum(e, 0.2 * e)                         # LeakyReLU(0.2)
        e = e + neg                                         # masked (max stays masked)
        m_prev = m_sc[h]                                    # (tm, 1)
        m_new = jnp.maximum(m_prev, jnp.max(e, axis=-1, keepdims=True))
        alpha = jnp.exp(m_prev - m_new)                     # f32 rescale factor
        p = jnp.exp((e - m_new).astype(exp_dtype))          # bf16 EUP on v6e/v7x
        l_sc[h] = alpha * l_sc[h] + jnp.sum(p, axis=-1, keepdims=True,
                                            dtype=jnp.float32)
        acc_sc[h] = alpha * acc_sc[h] + jnp.dot(
            p.astype(jnp.bfloat16), xh_ref[h],
            preferred_element_type=jnp.float32)             # (tm, Fout) bf16 MXU
        m_sc[h] = m_new

    @pl.when(k == pl.num_programs(1) - 1)
    def _finalize():
        acc = jnp.zeros(out_ref.shape, jnp.float32)
        for h in range(num_heads):
            inv = pl.reciprocal(jnp.maximum(l_sc[h], 1e-30), approx=True)  # EUP
            acc = acc + acc_sc[h] * inv
        out_ref[...] = acc * (1.0 / num_heads) + bias_ref[...]


def _head_block_diag(att):
    """(H, Fout) -> block-diagonal (H*Fout, H); column h carries att[h]."""
    H, Fout = att.shape
    bd = jnp.zeros((H * Fout, H), jnp.float32)
    for h in range(H):
        bd = bd.at[h * Fout:(h + 1) * Fout, h].set(att[h])
    return bd.astype(jnp.bfloat16)


def gat_layer(x_bf, adj_i8, w, att_src, att_dst, bias, *,
              apply_relu=False, tile_m=None, tile_k=None):
    """PyG GATConv (concat=False -> mean over heads + bias) on a dense int8 adj."""
    N, Fin = x_bf.shape
    H, _, Fout = w.shape
    vmem_limit, exp_dtype, row_target = _tpu_config()

    tm = tile_m or _pick_tile(N, row_target, 32)   # int8 adj sublane tile = 32
    tk = tile_k or _pick_tile(N, 512, 128)         # lane tile = 128
    assert N % tm == 0 and N % tk == 0, "N must be divisible by the tiles"
    assert (tm % 32 == 0 or tm == N) and (tk % 128 == 0 or tk == N), \
        "tile_m % 32 / tile_k % 128 required for the int8 adjacency layout"

    # pack per-head weights into one (Fin, H*Fout) bf16 matrix for a single matmul
    w_all = jnp.transpose(w, (1, 0, 2)).reshape(Fin, H * Fout).astype(jnp.bfloat16)
    bd_dst = _head_block_diag(att_dst)
    bd_src = _head_block_diag(att_src)
    bias2 = bias.reshape(1, Fout).astype(jnp.float32)

    # phase 1: projections + per-node attention scores (computed once per layer)
    xh, a_dst, a_src_nh = pl.pallas_call(
        functools.partial(_gat_proj_kernel, num_heads=H, fout=Fout,
                          apply_relu=apply_relu),
        grid=(N // tm,),
        in_specs=[pl.BlockSpec((tm, Fin), lambda i: (i, 0)),
                  pl.BlockSpec((Fin, H * Fout), lambda i: (0, 0)),
                  pl.BlockSpec((H * Fout, H), lambda i: (0, 0)),
                  pl.BlockSpec((H * Fout, H), lambda i: (0, 0))],
        out_specs=[pl.BlockSpec((H, tm, Fout), lambda i: (0, i, 0)),
                   pl.BlockSpec((tm, H), lambda i: (i, 0)),
                   pl.BlockSpec((tm, H), lambda i: (i, 0))],
        out_shape=[jax.ShapeDtypeStruct((H, N, Fout), jnp.bfloat16),
                   jax.ShapeDtypeStruct((N, H), jnp.float32),
                   jax.ShapeDtypeStruct((N, H), jnp.float32)],
        compiler_params=pltpu.CompilerParams(
            dimension_semantics=("parallel",), vmem_limit_bytes=vmem_limit),
    )(x_bf, w_all, bd_dst, bd_src)

    # tiny XLA transpose so phase 2 reads per-head src scores as sublane rows
    a_src = a_src_nh.T                                      # (H, N)

    # phase 2: adjacency-bound attention, online softmax over src blocks
    out = pl.pallas_call(
        functools.partial(_gat_attn_kernel, num_heads=H, exp_dtype=exp_dtype),
        grid=(N // tm, N // tk),
        in_specs=[pl.BlockSpec((tm, tk), lambda i, k: (i, k)),         # adj int8
                  pl.BlockSpec((H, tk, Fout), lambda i, k: (0, k, 0)),  # xh bf16
                  pl.BlockSpec((H, tk), lambda i, k: (0, k)),          # a_src
                  pl.BlockSpec((tm, H), lambda i, k: (i, 0)),          # a_dst
                  pl.BlockSpec((1, Fout), lambda i, k: (0, 0))],       # bias
        out_specs=pl.BlockSpec((tm, Fout), lambda i, k: (i, 0)),
        out_shape=jax.ShapeDtypeStruct((N, Fout), jnp.float32),
        scratch_shapes=[pltpu.VMEM((H, tm, 1), jnp.float32),    # running max
                        pltpu.VMEM((H, tm, 1), jnp.float32),    # running denom
                        pltpu.VMEM((H, tm, Fout), jnp.float32)],  # running acc
        compiler_params=pltpu.CompilerParams(
            dimension_semantics=("parallel", "arbitrary"),
            vmem_limit_bytes=vmem_limit),
    )(adj_i8, xh, a_src, a_dst, bias2)
    return out


# ---------------------------------------------------------------------------
# Fusion head: view scores -> 3-way softmax mixing -> log_softmax
# ---------------------------------------------------------------------------
def _fusion_kernel(hcat_ref, wbd_ref, bcat_ref, aggbd_ref, out_ref, *, num_classes):
    C = num_classes
    hcat = hcat_ref[...]                                    # (tm, 3C) f32
    t = jnp.tanh(jnp.dot(hcat, wbd_ref[...],
                         preferred_element_type=jnp.float32) + bcat_ref[...])
    a = jnp.dot(t, aggbd_ref[...], preferred_element_type=jnp.float32)  # (tm, 3)
    m = jnp.max(a, axis=-1, keepdims=True)
    e = jnp.exp(a - m)
    wmix = e * pl.reciprocal(jnp.sum(e, axis=-1, keepdims=True), approx=True)
    h = (wmix[:, 0:1] * hcat[:, 0:C]
         + wmix[:, 1:2] * hcat[:, C:2 * C]
         + wmix[:, 2:3] * hcat[:, 2 * C:3 * C])
    mh = jnp.max(h, axis=-1, keepdims=True)
    lse = jnp.log(jnp.sum(jnp.exp(h - mh), axis=-1, keepdims=True)) + mh
    out_ref[...] = h - lse


def fusion(h1, h2, h3, lin1, lin2, lin3, agg_w, *, tile_m=None):
    N, C = h1.shape
    vmem_limit, _, row_target = _tpu_config()
    tm = tile_m or _pick_tile(N, row_target, 8)
    assert N % tm == 0

    hcat = jnp.concatenate([h1, h2, h3], axis=1)            # (N, 3C) lane-denser

    wbd = jnp.zeros((3 * C, 3 * C), jnp.float32)
    bcat = []
    for v, (wv, bv) in enumerate((lin1, lin2, lin3)):
        wbd = wbd.at[v * C:(v + 1) * C, v * C:(v + 1) * C].set(wv)
        bcat.append(bv)
    bcat = jnp.concatenate(bcat).reshape(1, 3 * C)
    aggbd = jnp.zeros((3 * C, 3), jnp.float32)
    for v in range(3):
        aggbd = aggbd.at[v * C:(v + 1) * C, v].set(agg_w[:, 0])

    return pl.pallas_call(
        functools.partial(_fusion_kernel, num_classes=C),
        grid=(N // tm,),
        in_specs=[pl.BlockSpec((tm, 3 * C), lambda i: (i, 0)),
                  pl.BlockSpec((3 * C, 3 * C), lambda i: (0, 0)),
                  pl.BlockSpec((1, 3 * C), lambda i: (0, 0)),
                  pl.BlockSpec((3 * C, 3), lambda i: (0, 0))],
        out_specs=pl.BlockSpec((tm, C), lambda i: (i, 0)),
        out_shape=jax.ShapeDtypeStruct((N, C), jnp.float32),
        compiler_params=pltpu.CompilerParams(
            dimension_semantics=("parallel",), vmem_limit_bytes=vmem_limit),
    )(hcat, wbd, bcat, aggbd)


# ---------------------------------------------------------------------------
# Parameter init (deterministic, synthetic) and full forward
# ---------------------------------------------------------------------------
def init_params(key, num_features, num_hidden, num_classes, num_heads):
    keys = jax.random.split(key, 32)
    ki = iter(range(32))

    def nrm(shape):
        return 0.1 * jax.random.normal(keys[next(ki)], shape, jnp.float32)

    def gat_params(fin, fout):
        return (nrm((num_heads, fin, fout)),   # W per head, stored (in, out)
                nrm((num_heads, fout)),        # att_src
                nrm((num_heads, fout)),        # att_dst
                nrm((fout,)))                  # bias (concat=False)

    return {
        "gat1": gat_params(num_features, num_hidden),
        "gat2": gat_params(num_hidden, num_classes),
        "gat3": gat_params(num_features, num_hidden),
        "gat4": gat_params(num_hidden, num_classes),
        "gat5": gat_params(num_features, num_hidden),
        "gat6": gat_params(num_hidden, num_classes),
        # torch Linear stores (out,in); we store (in,out) directly for x @ W
        "lin1": (nrm((num_classes, num_classes)), nrm((num_classes,))),
        "lin2": (nrm((num_classes, num_classes)), nrm((num_classes,))),
        "lin3": (nrm((num_classes, num_classes)), nrm((num_classes,))),
        "agg": nrm((num_classes, 1)),          # discriminative_agg (no bias)
    }


def ugcn_forward(x, adj1, adj2, adj_knn, params, *, tile_m=None, tile_k=None):
    x_bf = x.astype(jnp.bfloat16)              # bf16 node features into phase 1

    def two_layers(adj, pa, pb):
        h = gat_layer(x_bf, adj, *pa, tile_m=tile_m, tile_k=tile_k)
        h = gat_layer(h.astype(jnp.bfloat16), adj, *pb, apply_relu=True,
                      tile_m=tile_m, tile_k=tile_k)
        return h

    h1 = two_layers(adj1, params["gat1"], params["gat2"])       # original edges
    h2 = two_layers(adj2, params["gat3"], params["gat4"])       # 2-hop edges
    h3 = two_layers(adj_knn, params["gat5"], params["gat6"])    # cosine-kNN edges
    return fusion(h1, h2, h3, params["lin1"], params["lin2"], params["lin3"],
                  params["agg"], tile_m=tile_m)


def build_graphs(key_graph, x, num_knn):
    """Setup glue: dense int8 adjacencies (with self loops) for the 3 views."""
    N = x.shape[0]
    eye = jnp.eye(N, dtype=jnp.float32)

    # random directed edge set E[src, dst] + self loops (add_self_loops)
    E = (jax.random.uniform(key_graph, (N, N)) < 0.08).astype(jnp.float32)
    E = jnp.maximum(E, eye)

    # 2-hop: entries of A@A with multiplicity >= 2, plus self loops
    E2 = ((E @ E) >= 2.0).astype(jnp.float32)
    E2 = jnp.maximum(E2, eye)

    # kNN on cosine similarity, self excluded (sklearn kneighbors semantics)
    xn = x / (jnp.linalg.norm(x, axis=1, keepdims=True) + 1e-12)
    cos = xn @ xn.T - 2.0 * eye
    nbrs = jnp.argsort(-cos, axis=1)[:, :num_knn]
    rows = jnp.repeat(jnp.arange(N), num_knn)
    E_knn = jnp.zeros((N, N), jnp.float32).at[rows, nbrs.reshape(-1)].set(1.0)
    E_knn = jnp.maximum(E_knn, eye)                         # GATConv adds self loops

    # message-passing convention adj[dst, src]; int8 halves the O(N^2) HBM stream
    return (E.T.astype(jnp.int8), E2.T.astype(jnp.int8), E_knn.T.astype(jnp.int8))


# ---------------------------------------------------------------------------
# Pure-JAX f32 reference (validates bf16 / approx-reciprocal numerics)
# ---------------------------------------------------------------------------
def _gat_ref(x, adj, w, att_src, att_dst, bias, apply_relu=False):
    if apply_relu:
        x = jnp.maximum(x, 0.0)
    H = w.shape[0]
    mask = adj.astype(jnp.float32) > 0
    acc = 0.0
    for h in range(H):
        xh = x @ w[h]
        e = (xh @ att_dst[h])[:, None] + (xh @ att_src[h])[None, :]
        e = jnp.where(e > 0, e, 0.2 * e)
        e = jnp.where(mask, e, -jnp.inf)
        p = jax.nn.softmax(e, axis=-1)
        acc = acc + p @ xh
    return acc / H + bias[None, :]


def ugcn_reference(x, adj1, adj2, adj_knn, params):
    h1 = _gat_ref(x, adj1, *params["gat1"])
    h1 = _gat_ref(h1, adj1, *params["gat2"], apply_relu=True)
    h2 = _gat_ref(x, adj2, *params["gat3"])
    h2 = _gat_ref(h2, adj2, *params["gat4"], apply_relu=True)
    h3 = _gat_ref(x, adj_knn, *params["gat5"])
    h3 = _gat_ref(h3, adj_knn, *params["gat6"], apply_relu=True)

    def sc(h, wb):
        w, b = wb
        return jnp.tanh(h @ w + b) @ params["agg"]

    a = jnp.concatenate([sc(h1, params["lin1"]),
                         sc(h2, params["lin2"]),
                         sc(h3, params["lin3"])], axis=1)
    a = jax.nn.softmax(a, axis=1)
    h = a[:, 0:1] * h1 + a[:, 1:2] * h2 + a[:, 2:3] * h3
    return jax.nn.log_softmax(h, axis=1)


if __name__ == "__main__":
    # small, module-consistent shapes (N chosen so both grid axes are exercised)
    N = 256                 # nodes
    num_features = 16
    num_hidden = 32
    num_classes = 8
    num_heads = 2
    number_knn_neighbor = 4
    tile_m = 128            # 2x2 phase-2 grid at N=256
    tile_k = 128

    key = jax.random.PRNGKey(0)
    k_graph, k_x, k_params = jax.random.split(key, 3)

    x = jax.random.normal(k_x, (N, num_features), jnp.float32)
    adj1, adj2, adj_knn = build_graphs(k_graph, x, number_knn_neighbor)
    params = init_params(k_params, num_features, num_hidden, num_classes, num_heads)

    fwd = jax.jit(functools.partial(ugcn_forward, tile_m=tile_m, tile_k=tile_k))
    out = jax.block_until_ready(fwd(x, adj1, adj2, adj_knn, params))

    assert out.shape == (N, num_classes)
    assert bool(jnp.all(jnp.isfinite(out)))
    # rows of log_softmax exponentiate-sum to 1
    assert bool(jnp.allclose(jnp.sum(jnp.exp(out), axis=1), 1.0, atol=1e-4))

    # validate bf16 / online-softmax / approx-reciprocal numerics vs f32 reference
    ref = ugcn_reference(x, adj1, adj2, adj_knn, params)
    err = float(jnp.max(jnp.abs(out - ref)))
    assert err < 0.15, f"mismatch vs f32 reference: {err}"

    print("KERNEL_OK")
</pallas_src>

<mosaic_0001>
module attributes {stable_mosaic.version = 11 : i64} {
  func.func @_gat_proj_kernel(%arg0: i32, %arg1: memref<128x16xbf16, #tpu.memory_space<vmem>>, %arg2: memref<16x64xbf16, #tpu.memory_space<vmem>>, %arg3: memref<64x2xbf16, #tpu.memory_space<vmem>>, %arg4: memref<64x2xbf16, #tpu.memory_space<vmem>>, %arg5: memref<2x128x32xbf16, #tpu.memory_space<vmem>>, %arg6: memref<128x2xf32, #tpu.memory_space<vmem>>, %arg7: memref<128x2xf32, #tpu.memory_space<vmem>>) attributes {dimension_semantics = [#tpu.dimension_semantics<parallel>], iteration_bounds = array<i64: 2>, scalar_prefetch = 0 : i64, scratch_operands = 0 : i64, tpu.core_type = #tpu.core_type<tc>, window_params = [{transform_indices = @transform_0, window_bounds = array<i64: 128, 16>}, {pipeline_mode = #tpu.pipeline_mode<synchronous>, transform_indices = @transform_1, window_bounds = array<i64: 16, 64>}, {pipeline_mode = #tpu.pipeline_mode<synchronous>, transform_indices = @transform_2, window_bounds = array<i64: 64, 2>}, {pipeline_mode = #tpu.pipeline_mode<synchronous>, transform_indices = @transform_3, window_bounds = array<i64: 64, 2>}, {transform_indices = @transform_4, window_bounds = array<i64: 2, 128, 32>}, {transform_indices = @transform_5, window_bounds = array<i64: 128, 2>}, {transform_indices = @transform_6, window_bounds = array<i64: 128, 2>}]} {
    %c0 = arith.constant 0 : index
    %c0_0 = arith.constant 0 : index
    %0 = vector.load %arg1[%c0, %c0_0] : memref<128x16xbf16, #tpu.memory_space<vmem>>, vector<128x16xbf16>
    %c0_1 = arith.constant 0 : index
    %c0_2 = arith.constant 0 : index
    %1 = vector.load %arg2[%c0_1, %c0_2] : memref<16x64xbf16, #tpu.memory_space<vmem>>, vector<16x64xbf16>
    %cst = arith.constant dense<0.000000e+00> : vector<128x64xf32>
    %2 = tpu.matmul %0, %1, %cst {dimension_numbers = #tpu.dot_dimension_numbers<[1], [0], [0], [1], [0, 0, 1, 1], [], []>} : vector<128x16xbf16>, vector<16x64xbf16>, vector<128x64xf32> -> vector<128x64xf32>
    %3 = arith.truncf %2 : vector<128x64xf32> to vector<128x64xbf16>
    %c0_3 = arith.constant 0 : index
    %c0_4 = arith.constant 0 : index
    %4 = vector.load %arg3[%c0_3, %c0_4] : memref<64x2xbf16, #tpu.memory_space<vmem>>, vector<64x2xbf16>
    %cst_5 = arith.constant dense<0.000000e+00> : vector<128x2xf32>
    %5 = tpu.matmul %3, %4, %cst_5 {dimension_numbers = #tpu.dot_dimension_numbers<[1], [0], [0], [1], [0, 0, 1, 1], [], []>} : vector<128x64xbf16>, vector<64x2xbf16>, vector<128x2xf32> -> vector<128x2xf32>
    %c0_6 = arith.constant 0 : index
    %c0_7 = arith.constant 0 : index
    %6 = vector.load %arg6[%c0_6, %c0_7] : memref<128x2xf32, #tpu.memory_space<vmem>>, vector<128x2xf32>
    tpu.vector_store %arg6[%c0_6, %c0_7], %5 {strides = array<i32>} : memref<128x2xf32, #tpu.memory_space<vmem>>, vector<128x2xf32>,
    %c0_8 = arith.constant 0 : index
    %c0_9 = arith.constant 0 : index
    %7 = vector.load %arg4[%c0_8, %c0_9] : memref<64x2xbf16, #tpu.memory_space<vmem>>, vector<64x2xbf16>
    %cst_10 = arith.constant dense<0.000000e+00> : vector<128x2xf32>
    %8 = tpu.matmul %3, %7, %cst_10 {dimension_numbers = #tpu.dot_dimension_numbers<[1], [0], [0], [1], [0, 0, 1, 1], [], []>} : vector<128x64xbf16>, vector<64x2xbf16>, vector<128x2xf32> -> vector<128x2xf32>
    %c0_11 = arith.constant 0 : index
    %c0_12 = arith.constant 0 : index
    %9 = vector.load %arg7[%c0_11, %c0_12] : memref<128x2xf32, #tpu.memory_space<vmem>>, vector<128x2xf32>
    tpu.vector_store %arg7[%c0_11, %c0_12], %8 {strides = array<i32>} : memref<128x2xf32, #tpu.memory_space<vmem>>, vector<128x2xf32>,
    %10 = vector.extract_strided_slice %3 {offsets = [0, 0], sizes = [128, 32], strides = [1, 1]} : vector<128x64xbf16> to vector<128x32xbf16>
    %c0_13 = arith.constant 0 : index
    %c0_14 = arith.constant 0 : index
    %c0_15 = arith.constant 0 : index
    %11 = vector.load %arg5[%c0_13, %c0_14, %c0_15] : memref<2x128x32xbf16, #tpu.memory_space<vmem>>, vector<1x128x32xbf16>
    %12 = vector.shape_cast %11 : vector<1x128x32xbf16> to vector<128x32xbf16>
    %13 = vector.shape_cast %10 : vector<128x32xbf16> to vector<1x128x32xbf16>
    tpu.vector_store %arg5[%c0_13, %c0_14, %c0_15], %13 {strides = array<i32>} : memref<2x128x32xbf16, #tpu.memory_space<vmem>>, vector<1x128x32xbf16>,
    %14 = vector.extract_strided_slice %3 {offsets = [0, 32], sizes = [128, 32], strides = [1, 1]} : vector<128x64xbf16> to vector<128x32xbf16>
    %c1 = arith.constant 1 : index
    %c0_16 = arith.constant 0 : index
    %c0_17 = arith.constant 0 : index
    %15 = vector.load %arg5[%c1, %c0_16, %c0_17] : memref<2x128x32xbf16, #tpu.memory_space<vmem>>, vector<1x128x32xbf16>
    %16 = vector.shape_cast %15 : vector<1x128x32xbf16> to vector<128x32xbf16>
    %17 = vector.shape_cast %14 : vector<128x32xbf16> to vector<1x128x32xbf16>
    tpu.vector_store %arg5[%c1, %c0_16, %c0_17], %17 {strides = array<i32>} : memref<2x128x32xbf16, #tpu.memory_space<vmem>>, vector<1x128x32xbf16>,
    return
  }
  func.func @transform_0(%arg0: i32) -> (i32, i32) {
    %c0_i32 = arith.constant 0 : i32
    %c0_i32_0 = arith.constant 0 : i32
    return %arg0, %c0_i32 : i32, i32
  }
  func.func @transform_1(%arg0: i32) -> (i32, i32) {
    %c0_i32 = arith.constant 0 : i32
    %c0_i32_0 = arith.constant 0 : i32
    %c0_i32_1 = arith.constant 0 : i32
    return %c0_i32, %c0_i32_0 : i32, i32
  }
  func.func @transform_2(%arg0: i32) -> (i32, i32) {
    %c0_i32 = arith.constant 0 : i32
    %c0_i32_0 = arith.constant 0 : i32
    %c0_i32_1 = arith.constant 0 : i32
    return %c0_i32, %c0_i32_0 : i32, i32
  }
  func.func @transform_3(%arg0: i32) -> (i32, i32) {
    %c0_i32 = arith.constant 0 : i32
    %c0_i32_0 = arith.constant 0 : i32
    %c0_i32_1 = arith.constant 0 : i32
    return %c0_i32, %c0_i32_0 : i32, i32
  }
  func.func @transform_4(%arg0: i32) -> (i32, i32, i32) {
    %c0_i32 = arith.constant 0 : i32
    %c0_i32_0 = arith.constant 0 : i32
    %c0_i32_1 = arith.constant 0 : i32
    return %c0_i32, %arg0, %c0_i32_0 : i32, i32, i32
  }
  func.func @transform_5(%arg0: i32) -> (i32, i32) {
    %c0_i32 = arith.constant 0 : i32
    %c0_i32_0 = arith.constant 0 : i32
    return %arg0, %c0_i32 : i32, i32
  }
  func.func @transform_6(%arg0: i32) -> (i32, i32) {
    %c0_i32 = arith.constant 0 : i32
    %c0_i32_0 = arith.constant 0 : i32
    return %arg0, %c0_i32 : i32, i32
  }
}

module attributes {stable_mosaic.version = 11 : i64} {
  func.func @_gat_attn_kernel(%arg0: i32, %arg1: i32, %arg2: memref<128x128xi8, #tpu.memory_space<vmem>>, %arg3: memref<2x128x32xbf16, #tpu.memory_space<vmem>>, %arg4: memref<2x128xf32, #tpu.memory_space<vmem>>, %arg5: memref<128x2xf32, #tpu.memory_space<vmem>>, %arg6: memref<1x32xf32, #tpu.memory_space<vmem>>, %arg7: memref<128x32xf32, #tpu.memory_space<vmem>>, %arg8: memref<2x128x1xf32, #tpu.memory_space<vmem>>, %arg9: memref<2x128x1xf32, #tpu.memory_space<vmem>>, %arg10: memref<2x128x32xf32, #tpu.memory_space<vmem>>) attributes {dimension_semantics = [#tpu.dimension_semantics<parallel>, #tpu.dimension_semantics<arbitrary>], iteration_bounds = array<i64: 2, 2>, scalar_prefetch = 0 : i64, scratch_operands = 3 : i64, tpu.core_type = #tpu.core_type<tc>, window_params = [{transform_indices = @transform_0, window_bounds = array<i64: 128, 128>}, {transform_indices = @transform_1, window_bounds = array<i64: 2, 128, 32>}, {transform_indices = @transform_2, window_bounds = array<i64: 2, 128>}, {transform_indices = @transform_3, window_bounds = array<i64: 128, 2>}, {pipeline_mode = #tpu.pipeline_mode<synchronous>, transform_indices = @transform_4, window_bounds = array<i64: 1, 32>}, {transform_indices = @transform_5, window_bounds = array<i64: 128, 32>}]} {
    %c0_i32 = arith.constant 0 : i32
    %0 = arith.cmpi eq, %arg1, %c0_i32 : i32
    %1 = arith.extui %0 : i1 to i32
    %c0_i32_0 = arith.constant 0 : i32
    %2 = arith.cmpi ne, %1, %c0_i32_0 : i32
    scf.if %2 {
      %cst_57 = arith.constant -1.000000e+30 : f32
      %102 = vector.broadcast %cst_57 : f32 to vector<2x128x1xf32>
      %c0_58 = arith.constant 0 : index
      %c0_59 = arith.constant 0 : index
      %c0_60 = arith.constant 0 : index
      %103 = vector.load %arg8[%c0_58, %c0_59, %c0_60] : memref<2x128x1xf32, #tpu.memory_space<vmem>>, vector<2x128x1xf32>
      tpu.vector_store %arg8[%c0_58, %c0_59, %c0_60], %102 {strides = array<i32>} : memref<2x128x1xf32, #tpu.memory_space<vmem>>, vector<2x128x1xf32>,
      %cst_61 = arith.constant 0.000000e+00 : f32
      %104 = vector.broadcast %cst_61 : f32 to vector<2x128x1xf32>
      %c0_62 = arith.constant 0 : index
      %c0_63 = arith.constant 0 : index
      %c0_64 = arith.constant 0 : index
      %105 = vector.load %arg9[%c0_62, %c0_63, %c0_64] : memref<2x128x1xf32, #tpu.memory_space<vmem>>, vector<2x128x1xf32>
      tpu.vector_store %arg9[%c0_62, %c0_63, %c0_64], %104 {strides = array<i32>} : memref<2x128x1xf32, #tpu.memory_space<vmem>>, vector<2x128x1xf32>,
      %cst_65 = arith.constant 0.000000e+00 : f32
      %106 = vector.broadcast %cst_65 : f32 to vector<2x128x32xf32>
      %c0_66 = arith.constant 0 : index
      %c0_67 = arith.constant 0 : index
      %c0_68 = arith.constant 0 : index
      %107 = vector.load %arg10[%c0_66, %c0_67, %c0_68] : memref<2x128x32xf32, #tpu.memory_space<vmem>>, vector<2x128x32xf32>
      tpu.vector_store %arg10[%c0_66, %c0_67, %c0_68], %106 {strides = array<i32>} : memref<2x128x32xf32, #tpu.memory_space<vmem>>, vector<2x128x32xf32>,
    } else {
    }
    %c0 = arith.constant 0 : index
    %c0_1 = arith.constant 0 : index
    %3 = vector.load %arg2[%c0, %c0_1] : memref<128x128xi8, #tpu.memory_space<vmem>>, vector<128x128xi8>
    %4 = arith.sitofp %3 : vector<128x128xi8> to vector<128x128xf32>
    %cst = arith.constant 1.000000e+00 : f32
    %5 = vector.broadcast %cst : f32 to vector<128x128xf32>
    %6 = arith.subf %4, %5 : vector<128x128xf32>
    %cst_2 = arith.constant 1.000000e+30 : f32
    %7 = vector.broadcast %cst_2 : f32 to vector<128x128xf32>
    %8 = arith.mulf %6, %7 : vector<128x128xf32>
    %c0_3 = arith.constant 0 : index
    %c0_4 = arith.constant 0 : index
    %9 = vector.load %arg5[%c0_3, %c0_4] : memref<128x2xf32, #tpu.memory_space<vmem>>, vector<128x2xf32>
    %c0_5 = arith.constant 0 : index
    %c0_6 = arith.constant 0 : index
    %10 = vector.load %arg4[%c0_5, %c0_6] : memref<2x128xf32, #tpu.memory_space<vmem>>, vector<2x128xf32>
    %11 = vector.extract_strided_slice %9 {offsets = [0, 0], sizes = [128, 1], strides = [1, 1]} : vector<128x2xf32> to vector<128x1xf32>
    %12 = vector.extract_strided_slice %10 {offsets = [0, 0], sizes = [1, 128], strides = [1, 1]} : vector<2x128xf32> to vector<1x128xf32>
    %13 = vector.broadcast %11 : vector<128x1xf32> to vector<128x128xf32>
    %14 = vector.broadcast %12 : vector<1x128xf32> to vector<128x128xf32>
    %15 = arith.addf %13, %14 : vector<128x128xf32>
    %cst_7 = arith.constant 2.000000e-01 : f32
    %16 = vector.broadcast %cst_7 : f32 to vector<128x128xf32>
    %17 = arith.mulf %16, %15 : vector<128x128xf32>
    %18 = arith.maximumf %15, %17 : vector<128x128xf32>
    %19 = arith.addf %18, %8 : vector<128x128xf32>
    %c0_8 = arith.constant 0 : index
    %c0_9 = arith.constant 0 : index
    %c0_10 = arith.constant 0 : index
    %20 = vector.load %arg8[%c0_8, %c0_9, %c0_10] : memref<2x128x1xf32, #tpu.memory_space<vmem>>, vector<1x128x1xf32>
    %21 = vector.shape_cast %20 : vector<1x128x1xf32> to vector<128x1xf32>
    %cst_11 = arith.constant dense<0xFF800000> : vector<128xf32>
    %22 = vector.multi_reduction <maximumf>, %19, %cst_11 [1] : vector<128x128xf32> to vector<128xf32>
    %23 = vector.shape_cast %22 : vector<128xf32> to vector<128x1xf32>
    %24 = arith.maximumf %21, %23 : vector<128x1xf32>
    %25 = arith.subf %21, %24 : vector<128x1xf32>
    %26 = math.exp %25 : vector<128x1xf32>
    %27 = vector.broadcast %24 : vector<128x1xf32> to vector<128x128xf32>
    %28 = arith.subf %19, %27 : vector<128x128xf32>
    %29 = arith.truncf %28 : vector<128x128xf32> to vector<128x128xbf16>
    %30 = math.exp %29 : vector<128x128xbf16>
    %c0_12 = arith.constant 0 : index
    %c0_13 = arith.constant 0 : index
    %c0_14 = arith.constant 0 : index
    %31 = vector.load %arg9[%c0_12, %c0_13, %c0_14] : memref<2x128x1xf32, #tpu.memory_space<vmem>>, vector<1x128x1xf32>
    %32 = vector.shape_cast %31 : vector<1x128x1xf32> to vector<128x1xf32>
    %33 = arith.mulf %26, %32 : vector<128x1xf32>
    %34 = arith.extf %30 : vector<128x128xbf16> to vector<128x128xf32>
    %cst_15 = arith.constant dense<0.000000e+00> : vector<128xf32>
    %35 = vector.multi_reduction <add>, %34, %cst_15 [1] : vector<128x128xf32> to vector<128xf32>
    %36 = vector.shape_cast %35 : vector<128xf32> to vector<128x1xf32>
    %37 = arith.addf %33, %36 : vector<128x1xf32>
    %c0_16 = arith.constant 0 : index
    %c0_17 = arith.constant 0 : index
    %c0_18 = arith.constant 0 : index
    %38 = vector.load %arg9[%c0_16, %c0_17, %c0_18] : memref<2x128x1xf32, #tpu.memory_space<vmem>>, vector<1x128x1xf32>
    %39 = vector.shape_cast %38 : vector<1x128x1xf32> to vector<128x1xf32>
    %40 = vector.shape_cast %37 : vector<128x1xf32> to vector<1x128x1xf32>
    tpu.vector_store %arg9[%c0_16, %c0_17, %c0_18], %40 {strides = array<i32>} : memref<2x128x1xf32, #tpu.memory_space<vmem>>, vector<1x128x1xf32>,
    %c0_19 = arith.constant 0 : index
    %c0_20 = arith.constant 0 : index
    %c0_21 = arith.constant 0 : index
    %41 = vector.load %arg10[%c0_19, %c0_20, %c0_21] : memref<2x128x32xf32, #tpu.memory_space<vmem>>, vector<1x128x32xf32>
    %42 = vector.shape_cast %41 : vector<1x128x32xf32> to vector<128x32xf32>
    %43 = vector.broadcast %26 : vector<128x1xf32> to vector<128x32xf32>
    %44 = arith.mulf %43, %42 : vector<128x32xf32>
    %c0_22 = arith.constant 0 : index
    %c0_23 = arith.constant 0 : index
    %c0_24 = arith.constant 0 : index
    %45 = vector.load %arg3[%c0_22, %c0_23, %c0_24] : memref<2x128x32xbf16, #tpu.memory_space<vmem>>, vector<1x128x32xbf16>
    %46 = vector.shape_cast %45 : vector<1x128x32xbf16> to vector<128x32xbf16>
    %cst_25 = arith.constant dense<0.000000e+00> : vector<128x32xf32>
    %47 = tpu.matmul %30, %46, %cst_25 {dimension_numbers = #tpu.dot_dimension_numbers<[1], [0], [0], [1], [0, 0, 1, 1], [], []>} : vector<128x128xbf16>, vector<128x32xbf16>, vector<128x32xf32> -> vector<128x32xf32>
    %48 = arith.addf %44, %47 : vector<128x32xf32>
    %c0_26 = arith.constant 0 : index
    %c0_27 = arith.constant 0 : index
    %c0_28 = arith.constant 0 : index
    %49 = vector.load %arg10[%c0_26, %c0_27, %c0_28] : memref<2x128x32xf32, #tpu.memory_space<vmem>>, vector<1x128x32xf32>
    %50 = vector.shape_cast %49 : vector<1x128x32xf32> to vector<128x32xf32>
    %51 = vector.shape_cast %48 : vector<128x32xf32> to vector<1x128x32xf32>
    tpu.vector_store %arg10[%c0_26, %c0_27, %c0_28], %51 {strides = array<i32>} : memref<2x128x32xf32, #tpu.memory_space<vmem>>, vector<1x128x32xf32>,
    %c0_29 = arith.constant 0 : index
    %c0_30 = arith.constant 0 : index
    %c0_31 = arith.constant 0 : index
    %52 = vector.load %arg8[%c0_29, %c0_30, %c0_31] : memref<2x128x1xf32, #tpu.memory_space<vmem>>, vector<1x128x1xf32>
    %53 = vector.shape_cast %52 : vector<1x128x1xf32> to vector<128x1xf32>
    %54 = vector.shape_cast %24 : vector<128x1xf32> to vector<1x128x1xf32>
    tpu.vector_store %arg8[%c0_29, %c0_30, %c0_31], %54 {strides = array<i32>} : memref<2x128x1xf32, #tpu.memory_space<vmem>>, vector<1x128x1xf32>,
    %55 = vector.extract_strided_slice %9 {offsets = [0, 1], sizes = [128, 1], strides = [1, 1]} : vector<128x2xf32> to vector<128x1xf32>
    %56 = vector.extract_strided_slice %10 {offsets = [1, 0], sizes = [1, 128], strides = [1, 1]} : vector<2x128xf32> to vector<1x128xf32>
    %57 = vector.broadcast %55 : vector<128x1xf32> to vector<128x128xf32>
    %58 = vector.broadcast %56 : vector<1x128xf32> to vector<128x128xf32>
    %59 = arith.addf %57, %58 : vector<128x128xf32>
    %cst_32 = arith.constant 2.000000e-01 : f32
    %60 = vector.broadcast %cst_32 : f32 to vector<128x128xf32>
    %61 = arith.mulf %60, %59 : vector<128x128xf32>
    %62 = arith.maximumf %59, %61 : vector<128x128xf32>
    %63 = arith.addf %62, %8 : vector<128x128xf32>
    %c1 = arith.constant 1 : index
    %c0_33 = arith.constant 0 : index
    %c0_34 = arith.constant 0 : index
    %64 = vector.load %arg8[%c1, %c0_33, %c0_34] : memref<2x128x1xf32, #tpu.memory_space<vmem>>, vector<1x128x1xf32>
    %65 = vector.shape_cast %64 : vector<1x128x1xf32> to vector<128x1xf32>
    %cst_35 = arith.constant dense<0xFF800000> : vector<128xf32>
    %66 = vector.multi_reduction <maximumf>, %63, %cst_35 [1] : vector<128x128xf32> to vector<128xf32>
    %67 = vector.shape_cast %66 : vector<128xf32> to vector<128x1xf32>
    %68 = arith.maximumf %65, %67 : vector<128x1xf32>
    %69 = arith.subf %65, %68 : vector<128x1xf32>
    %70 = math.exp %69 : vector<128x1xf32>
    %71 = vector.broadcast %68 : vector<128x1xf32> to vector<128x128xf32>
    %72 = arith.subf %63, %71 : vector<128x128xf32>
    %73 = arith.truncf %72 : vector<128x128xf32> to vector<128x128xbf16>
    %74 = math.exp %73 : vector<128x128xbf16>
    %c1_36 = arith.constant 1 : index
    %c0_37 = arith.constant 0 : index
    %c0_38 = arith.constant 0 : index
    %75 = vector.load %arg9[%c1_36, %c0_37, %c0_38] : memref<2x128x1xf32, #tpu.memory_space<vmem>>, vector<1x128x1xf32>
    %76 = vector.shape_cast %75 : vector<1x128x1xf32> to vector<128x1xf32>
    %77 = arith.mulf %70, %76 : vector<128x1xf32>
    %78 = arith.extf %74 : vector<128x128xbf16> to vector<128x128xf32>
    %cst_39 = arith.constant dense<0.000000e+00> : vector<128xf32>
    %79 = vector.multi_reduction <add>, %78, %cst_39 [1] : vector<128x128xf32> to vector<128xf32>
    %80 = vector.shape_cast %79 : vector<128xf32> to vector<128x1xf32>
    %81 = arith.addf %77, %80 : vector<128x1xf32>
    %c1_40 = arith.constant 1 : index
    %c0_41 = arith.constant 0 : index
    %c0_42 = arith.constant 0 : index
    %82 = vector.load %arg9[%c1_40, %c0_41, %c0_42] : memref<2x128x1xf32, #tpu.memory_space<vmem>>, vector<1x128x1xf32>
    %83 = vector.shape_cast %82 : vector<1x128x1xf32> to vector<128x1xf32>
    %84 = vector.shape_cast %81 : vector<128x1xf32> to vector<1x128x1xf32>
    tpu.vector_store %arg9[%c1_40, %c0_41, %c0_42], %84 {strides = array<i32>} : memref<2x128x1xf32, #tpu.memory_space<vmem>>, vector<1x128x1xf32>,
    %c1_43 = arith.constant 1 : index
    %c0_44 = arith.constant 0 : index
    %c0_45 = arith.constant 0 : index
    %85 = vector.load %arg10[%c1_43, %c0_44, %c0_45] : memref<2x128x32xf32, #tpu.memory_space<vmem>>, vector<1x128x32xf32>
    %86 = vector.shape_cast %85 : vector<1x128x32xf32> to vector<128x32xf32>
    %87 = vector.broadcast %70 : vector<128x1xf32> to vector<128x32xf32>
    %88 = arith.mulf %87, %86 : vector<128x32xf32>
    %c1_46 = arith.constant 1 : index
    %c0_47 = arith.constant 0 : index
    %c0_48 = arith.constant 0 : index
    %89 = vector.load %arg3[%c1_46, %c0_47, %c0_48] : memref<2x128x32xbf16, #tpu.memory_space<vmem>>, vector<1x128x32xbf16>
    %90 = vector.shape_cast %89 : vector<1x128x32xbf16> to vector<128x32xbf16>
    %cst_49 = arith.constant dense<0.000000e+00> : vector<128x32xf32>
    %91 = tpu.matmul %74, %90, %cst_49 {dimension_numbers = #tpu.dot_dimension_numbers<[1], [0], [0], [1], [0, 0, 1, 1], [], []>} : vector<128x128xbf16>, vector<128x32xbf16>, vector<128x32xf32> -> vector<128x32xf32>
    %92 = arith.addf %88, %91 : vector<128x32xf32>
    %c1_50 = arith.constant 1 : index
    %c0_51 = arith.constant 0 : index
    %c0_52 = arith.constant 0 : index
    %93 = vector.load %arg10[%c1_50, %c0_51, %c0_52] : memref<2x128x32xf32, #tpu.memory_space<vmem>>, vector<1x128x32xf32>
    %94 = vector.shape_cast %93 : vector<1x128x32xf32> to vector<128x32xf32>
    %95 = vector.shape_cast %92 : vector<128x32xf32> to vector<1x128x32xf32>
    tpu.vector_store %arg10[%c1_50, %c0_51, %c0_52], %95 {strides = array<i32>} : memref<2x128x32xf32, #tpu.memory_space<vmem>>, vector<1x128x32xf32>,
    %c1_53 = arith.constant 1 : index
    %c0_54 = arith.constant 0 : index
    %c0_55 = arith.constant 0 : index
    %96 = vector.load %arg8[%c1_53, %c0_54, %c0_55] : memref<2x128x1xf32, #tpu.memory_space<vmem>>, vector<1x128x1xf32>
    %97 = vector.shape_cast %96 : vector<1x128x1xf32> to vector<128x1xf32>
    %98 = vector.shape_cast %68 : vector<128x1xf32> to vector<1x128x1xf32>
    tpu.vector_store %arg8[%c1_53, %c0_54, %c0_55], %98 {strides = array<i32>} : memref<2x128x1xf32, #tpu.memory_space<vmem>>, vector<1x128x1xf32>,
    %c1_i32 = arith.constant 1 : i32
    %99 = arith.cmpi eq, %arg1, %c1_i32 : i32
    %100 = arith.extui %99 : i1 to i32
    %c0_i32_56 = arith.constant 0 : i32
    %101 = arith.cmpi ne, %100, %c0_i32_56 : i32
    scf.if %101 {
      %cst_57 = arith.constant 0.000000e+00 : f32
      %102 = vector.broadcast %cst_57 : f32 to vector<128x32xf32>
      %c0_58 = arith.constant 0 : index
      %c0_59 = arith.constant 0 : index
      %c0_60 = arith.constant 0 : index
      %103 = vector.load %arg9[%c0_58, %c0_59, %c0_60] : memref<2x128x1xf32, #tpu.memory_space<vmem>>, vector<1x128x1xf32>
      %104 = vector.shape_cast %103 : vector<1x128x1xf32> to vector<128x1xf32>
      %cst_61 = arith.constant 1.000000e-30 : f32
      %105 = vector.broadcast %cst_61 : f32 to vector<128x1xf32>
      %106 = arith.maximumf %104, %105 : vector<128x1xf32>
      %107 = tpu.reciprocal %106 {approx = true} : vector<128x1xf32> -> vector<128x1xf32>
      %c0_62 = arith.constant 0 : index
      %c0_63 = arith.constant 0 : index
      %c0_64 = arith.constant 0 : index
      %108 = vector.load %arg10[%c0_62, %c0_63, %c0_64] : memref<2x128x32xf32, #tpu.memory_space<vmem>>, vector<1x128x32xf32>
      %109 = vector.shape_cast %108 : vector<1x128x32xf32> to vector<128x32xf32>
      %110 = vector.broadcast %107 : vector<128x1xf32> to vector<128x32xf32>
      %111 = arith.mulf %109, %110 : vector<128x32xf32>
      %112 = arith.addf %102, %111 : vector<128x32xf32>
      %c1_65 = arith.constant 1 : index
      %c0_66 = arith.constant 0 : index
      %c0_67 = arith.constant 0 : index
      %113 = vector.load %arg9[%c1_65, %c0_66, %c0_67] : memref<2x128x1xf32, #tpu.memory_space<vmem>>, vector<1x128x1xf32>
      %114 = vector.shape_cast %113 : vector<1x128x1xf32> to vector<128x1xf32>
      %cst_68 = arith.constant 1.000000e-30 : f32
      %115 = vector.broadcast %cst_68 : f32 to vector<128x1xf32>
      %116 = arith.maximumf %114, %115 : vector<128x1xf32>
      %117 = tpu.reciprocal %116 {approx = true} : vector<128x1xf32> -> vector<128x1xf32>
      %c1_69 = arith.constant 1 : index
      %c0_70 = arith.constant 0 : index
      %c0_71 = arith.constant 0 : index
      %118 = vector.load %arg10[%c1_69, %c0_70, %c0_71] : memref<2x128x32xf32, #tpu.memory_space<vmem>>, vector<1x128x32xf32>
      %119 = vector.shape_cast %118 : vector<1x128x32xf32> to vector<128x32xf32>
      %120 = vector.broadcast %117 : vector<128x1xf32> to vector<128x32xf32>
      %121 = arith.mulf %119, %120 : vector<128x32xf32>
      %122 = arith.addf %112, %121 : vector<128x32xf32>
      %cst_72 = arith.constant 5.000000e-01 : f32
      %123 = vector.broadcast %cst_72 : f32 to vector<128x32xf32>
      %124 = arith.mulf %122, %123 : vector<128x32xf32>
      %c0_73 = arith.constant 0 : index
      %c0_74 = arith.constant 0 : index
      %125 = vector.load %arg6[%c0_73, %c0_74] : memref<1x32xf32, #tpu.memory_space<vmem>>, vector<1x32xf32>
      %126 = vector.broadcast %125 : vector<1x32xf32> to vector<128x32xf32>
      %127 = arith.addf %124, %126 : vector<128x32xf32>
      %c0_75 = arith.constant 0 : index
      %c0_76 = arith.constant 0 : index
      %128 = vector.load %arg7[%c0_75, %c0_76] : memref<128x32xf32, #tpu.memory_space<vmem>>, vector<128x32xf32>
      tpu.vector_store %arg7[%c0_75, %c0_76], %127 {strides = array<i32>} : memref<128x32xf32, #tpu.memory_space<vmem>>, vector<128x32xf32>,
    } else {
    }
    return
  }
  func.func @transform_0(%arg0: i32, %arg1: i32) -> (i32, i32) {
    %c0_i32 = arith.constant 0 : i32
    return %arg0, %arg1 : i32, i32
  }
  func.func @transform_1(%arg0: i32, %arg1: i32) -> (i32, i32, i32) {
    %c0_i32 = arith.constant 0 : i32
    %c0_i32_0 = arith.constant 0 : i32
    %c0_i32_1 = arith.constant 0 : i32
    return %c0_i32, %arg1, %c0_i32_0 : i32, i32, i32
  }
  func.func @transform_2(%arg0: i32, %arg1: i32) -> (i32, i32) {
    %c0_i32 = arith.constant 0 : i32
    %c0_i32_0 = arith.constant 0 : i32
    return %c0_i32, %arg1 : i32, i32
  }
  func.func @transform_3(%arg0: i32, %arg1: i32) -> (i32, i32) {
    %c0_i32 = arith.constant 0 : i32
    %c0_i32_0 = arith.constant 0 : i32
    return %arg0, %c0_i32 : i32, i32
  }
  func.func @transform_4(%arg0: i32, %arg1: i32) -> (i32, i32) {
    %c0_i32 = arith.constant 0 : i32
    %c0_i32_0 = arith.constant 0 : i32
    %c0_i32_1 = arith.constant 0 : i32
    return %c0_i32, %c0_i32_0 : i32, i32
  }
  func.func @transform_5(%arg0: i32, %arg1: i32) -> (i32, i32) {
    %c0_i32 = arith.constant 0 : i32
    %c0_i32_0 = arith.constant 0 : i32
    return %arg0, %c0_i32 : i32, i32
  }
}

module attributes {stable_mosaic.version = 11 : i64} {
  func.func @_gat_proj_kernel(%arg0: i32, %arg1: memref<128x32xbf16, #tpu.memory_space<vmem>>, %arg2: memref<32x16xbf16, #tpu.memory_space<vmem>>, %arg3: memref<16x2xbf16, #tpu.memory_space<vmem>>, %arg4: memref<16x2xbf16, #tpu.memory_space<vmem>>, %arg5: memref<2x128x8xbf16, #tpu.memory_space<vmem>>, %arg6: memref<128x2xf32, #tpu.memory_space<vmem>>, %arg7: memref<128x2xf32, #tpu.memory_space<vmem>>) attributes {dimension_semantics = [#tpu.dimension_semantics<parallel>], iteration_bounds = array<i64: 2>, scalar_prefetch = 0 : i64, scratch_operands = 0 : i64, tpu.core_type = #tpu.core_type<tc>, window_params = [{transform_indices = @transform_0, window_bounds = array<i64: 128, 32>}, {pipeline_mode = #tpu.pipeline_mode<synchronous>, transform_indices = @transform_1, window_bounds = array<i64: 32, 16>}, {pipeline_mode = #tpu.pipeline_mode<synchronous>, transform_indices = @transform_2, window_bounds = array<i64: 16, 2>}, {pipeline_mode = #tpu.pipeline_mode<synchronous>, transform_indices = @transform_3, window_bounds = array<i64: 16, 2>}, {transform_indices = @transform_4, window_bounds = array<i64: 2, 128, 8>}, {transform_indices = @transform_5, window_bounds = array<i64: 128, 2>}, {transform_indices = @transform_6, window_bounds = array<i64: 128, 2>}]} {
    %c0 = arith.constant 0 : index
    %c0_0 = arith.constant 0 : index
    %0 = vector.load %arg1[%c0, %c0_0] : memref<128x32xbf16, #tpu.memory_space<vmem>>, vector<128x32xbf16>
    %cst = arith.constant 0.000000e+00 : bf16
    %1 = vector.broadcast %cst : bf16 to vector<128x32xbf16>
    %2 = arith.maximumf %0, %1 : vector<128x32xbf16>
    %c0_1 = arith.constant 0 : index
    %c0_2 = arith.constant 0 : index
    %3 = vector.load %arg2[%c0_1, %c0_2] : memref<32x16xbf16, #tpu.memory_space<vmem>>, vector<32x16xbf16>
    %cst_3 = arith.constant dense<0.000000e+00> : vector<128x16xf32>
    %4 = tpu.matmul %2, %3, %cst_3 {dimension_numbers = #tpu.dot_dimension_numbers<[1], [0], [0], [1], [0, 0, 1, 1], [], []>} : vector<128x32xbf16>, vector<32x16xbf16>, vector<128x16xf32> -> vector<128x16xf32>
    %5 = arith.truncf %4 : vector<128x16xf32> to vector<128x16xbf16>
    %c0_4 = arith.constant 0 : index
    %c0_5 = arith.constant 0 : index
    %6 = vector.load %arg3[%c0_4, %c0_5] : memref<16x2xbf16, #tpu.memory_space<vmem>>, vector<16x2xbf16>
    %cst_6 = arith.constant dense<0.000000e+00> : vector<128x2xf32>
    %7 = tpu.matmul %5, %6, %cst_6 {dimension_numbers = #tpu.dot_dimension_numbers<[1], [0], [0], [1], [0, 0, 1, 1], [], []>} : vector<128x16xbf16>, vector<16x2xbf16>, vector<128x2xf32> -> vector<128x2xf32>
    %c0_7 = arith.constant 0 : index
    %c0_8 = arith.constant 0 : index
    %8 = vector.load %arg6[%c0_7, %c0_8] : memref<128x2xf32, #tpu.memory_space<vmem>>, vector<128x2xf32>
    tpu.vector_store %arg6[%c0_7, %c0_8], %7 {strides = array<i32>} : memref<128x2xf32, #tpu.memory_space<vmem>>, vector<128x2xf32>,
    %c0_9 = arith.constant 0 : index
    %c0_10 = arith.constant 0 : index
    %9 = vector.load %arg4[%c0_9, %c0_10] : memref<16x2xbf16, #tpu.memory_space<vmem>>, vector<16x2xbf16>
    %cst_11 = arith.constant dense<0.000000e+00> : vector<128x2xf32>
    %10 = tpu.matmul %5, %9, %cst_11 {dimension_numbers = #tpu.dot_dimension_numbers<[1], [0], [0], [1], [0, 0, 1, 1], [], []>} : vector<128x16xbf16>, vector<16x2xbf16>, vector<128x2xf32> -> vector<128x2xf32>
    %c0_12 = arith.constant 0 : index
    %c0_13 = arith.constant 0 : index
    %11 = vector.load %arg7[%c0_12, %c0_13] : memref<128x2xf32, #tpu.memory_space<vmem>>, vector<128x2xf32>
    tpu.vector_store %arg7[%c0_12, %c0_13], %10 {strides = array<i32>} : memref<128x2xf32, #tpu.memory_space<vmem>>, vector<128x2xf32>,
    %12 = vector.extract_strided_slice %5 {offsets = [0, 0], sizes = [128, 8], strides = [1, 1]} : vector<128x16xbf16> to vector<128x8xbf16>
    %c0_14 = arith.constant 0 : index
    %c0_15 = arith.constant 0 : index
    %c0_16 = arith.constant 0 : index
    %13 = vector.load %arg5[%c0_14, %c0_15, %c0_16] : memref<2x128x8xbf16, #tpu.memory_space<vmem>>, vector<1x128x8xbf16>
    %14 = vector.shape_cast %13 : vector<1x128x8xbf16> to vector<128x8xbf16>
    %15 = vector.shape_cast %12 : vector<128x8xbf16> to vector<1x128x8xbf16>
    tpu.vector_store %arg5[%c0_14, %c0_15, %c0_16], %15 {strides = array<i32>} : memref<2x128x8xbf16, #tpu.memory_space<vmem>>, vector<1x128x8xbf16>,
    %16 = vector.extract_strided_slice %5 {offsets = [0, 8], sizes = [128, 8], strides = [1, 1]} : vector<128x16xbf16> to vector<128x8xbf16>
    %c1 = arith.constant 1 : index
    %c0_17 = arith.constant 0 : index
    %c0_18 = arith.constant 0 : index
    %17 = vector.load %arg5[%c1, %c0_17, %c0_18] : memref<2x128x8xbf16, #tpu.memory_space<vmem>>, vector<1x128x8xbf16>
    %18 = vector.shape_cast %17 : vector<1x128x8xbf16> to vector<128x8xbf16>
    %19 = vector.shape_cast %16 : vector<128x8xbf16> to vector<1x128x8xbf16>
    tpu.vector_store %arg5[%c1, %c0_17, %c0_18], %19 {strides = array<i32>} : memref<2x128x8xbf16, #tpu.memory_space<vmem>>, vector<1x128x8xbf16>,
    return
  }
  func.func @transform_0(%arg0: i32) -> (i32, i32) {
    %c0_i32 = arith.constant 0 : i32
    %c0_i32_0 = arith.constant 0 : i32
    return %arg0, %c0_i32 : i32, i32
  }
  func.func @transform_1(%arg0: i32) -> (i32, i32) {
    %c0_i32 = arith.constant 0 : i32
    %c0_i32_0 = arith.constant 0 : i32
    %c0_i32_1 = arith.constant 0 : i32
    return %c0_i32, %c0_i32_0 : i32, i32
  }
  func.func @transform_2(%arg0: i32) -> (i32, i32) {
    %c0_i32 = arith.constant 0 : i32
    %c0_i32_0 = arith.constant 0 : i32
    %c0_i32_1 = arith.constant 0 : i32
    return %c0_i32, %c0_i32_0 : i32, i32
  }
  func.func @transform_3(%arg0: i32) -> (i32, i32) {
    %c0_i32 = arith.constant 0 : i32
    %c0_i32_0 = arith.constant 0 : i32
    %c0_i32_1 = arith.constant 0 : i32
    return %c0_i32, %c0_i32_0 : i32, i32
  }
  func.func @transform_4(%arg0: i32) -> (i32, i32, i32) {
    %c0_i32 = arith.constant 0 : i32
    %c0_i32_0 = arith.constant 0 : i32
    %c0_i32_1 = arith.constant 0 : i32
    return %c0_i32, %arg0, %c0_i32_0 : i32, i32, i32
  }
  func.func @transform_5(%arg0: i32) -> (i32, i32) {
    %c0_i32 = arith.constant 0 : i32
    %c0_i32_0 = arith.constant 0 : i32
    return %arg0, %c0_i32 : i32, i32
  }
  func.func @transform_6(%arg0: i32) -> (i32, i32) {
    %c0_i32 = arith.constant 0 : i32
    %c0_i32_0 = arith.constant 0 : i32
    return %arg0, %c0_i32 : i32, i32
  }
}

module attributes {stable_mosaic.version = 11 : i64} {
  func.func @_gat_attn_kernel(%arg0: i32, %arg1: i32, %arg2: memref<128x128xi8, #tpu.memory_space<vmem>>, %arg3: memref<2x128x8xbf16, #tpu.memory_space<vmem>>, %arg4: memref<2x128xf32, #tpu.memory_space<vmem>>, %arg5: memref<128x2xf32, #tpu.memory_space<vmem>>, %arg6: memref<1x8xf32, #tpu.memory_space<vmem>>, %arg7: memref<128x8xf32, #tpu.memory_space<vmem>>, %arg8: memref<2x128x1xf32, #tpu.memory_space<vmem>>, %arg9: memref<2x128x1xf32, #tpu.memory_space<vmem>>, %arg10: memref<2x128x8xf32, #tpu.memory_space<vmem>>) attributes {dimension_semantics = [#tpu.dimension_semantics<parallel>, #tpu.dimension_semantics<arbitrary>], iteration_bounds = array<i64: 2, 2>, scalar_prefetch = 0 : i64, scratch_operands = 3 : i64, tpu.core_type = #tpu.core_type<tc>, window_params = [{transform_indices = @transform_0, window_bounds = array<i64: 128, 128>}, {transform_indices = @transform_1, window_bounds = array<i64: 2, 128, 8>}, {transform_indices = @transform_2, window_bounds = array<i64: 2, 128>}, {transform_indices = @transform_3, window_bounds = array<i64: 128, 2>}, {pipeline_mode = #tpu.pipeline_mode<synchronous>, transform_indices = @transform_4, window_bounds = array<i64: 1, 8>}, {transform_indices = @transform_5, window_bounds = array<i64: 128, 8>}]} {
    %c0_i32 = arith.constant 0 : i32
    %0 = arith.cmpi eq, %arg1, %c0_i32 : i32
    %1 = arith.extui %0 : i1 to i32
    %c0_i32_0 = arith.constant 0 : i32
    %2 = arith.cmpi ne, %1, %c0_i32_0 : i32
    scf.if %2 {
      %cst_57 = arith.constant -1.000000e+30 : f32
      %102 = vector.broadcast %cst_57 : f32 to vector<2x128x1xf32>
      %c0_58 = arith.constant 0 : index
      %c0_59 = arith.constant 0 : index
      %c0_60 = arith.constant 0 : index
      %103 = vector.load %arg8[%c0_58, %c0_59, %c0_60] : memref<2x128x1xf32, #tpu.memory_space<vmem>>, vector<2x128x1xf32>
      tpu.vector_store %arg8[%c0_58, %c0_59, %c0_60], %102 {strides = array<i32>} : memref<2x128x1xf32, #tpu.memory_space<vmem>>, vector<2x128x1xf32>,
      %cst_61 = arith.constant 0.000000e+00 : f32
      %104 = vector.broadcast %cst_61 : f32 to vector<2x128x1xf32>
      %c0_62 = arith.constant 0 : index
      %c0_63 = arith.constant 0 : index
      %c0_64 = arith.constant 0 : index
      %105 = vector.load %arg9[%c0_62, %c0_63, %c0_64] : memref<2x128x1xf32, #tpu.memory_space<vmem>>, vector<2x128x1xf32>
      tpu.vector_store %arg9[%c0_62, %c0_63, %c0_64], %104 {strides = array<i32>} : memref<2x128x1xf32, #tpu.memory_space<vmem>>, vector<2x128x1xf32>,
      %cst_65 = arith.constant 0.000000e+00 : f32
      %106 = vector.broadcast %cst_65 : f32 to vector<2x128x8xf32>
      %c0_66 = arith.constant 0 : index
      %c0_67 = arith.constant 0 : index
      %c0_68 = arith.constant 0 : index
      %107 = vector.load %arg10[%c0_66, %c0_67, %c0_68] : memref<2x128x8xf32, #tpu.memory_space<vmem>>, vector<2x128x8xf32>
      tpu.vector_store %arg10[%c0_66, %c0_67, %c0_68], %106 {strides = array<i32>} : memref<2x128x8xf32, #tpu.memory_space<vmem>>, vector<2x128x8xf32>,
    } else {
    }
    %c0 = arith.constant 0 : index
    %c0_1 = arith.constant 0 : index
    %3 = vector.load %arg2[%c0, %c0_1] : memref<128x128xi8, #tpu.memory_space<vmem>>, vector<128x128xi8>
    %4 = arith.sitofp %3 : vector<128x128xi8> to vector<128x128xf32>
    %cst = arith.constant 1.000000e+00 : f32
    %5 = vector.broadcast %cst : f32 to vector<128x128xf32>
    %6 = arith.subf %4, %5 : vector<128x128xf32>
    %cst_2 = arith.constant 1.000000e+30 : f32
    %7 = vector.broadcast %cst_2 : f32 to vector<128x128xf32>
    %8 = arith.mulf %6, %7 : vector<128x128xf32>
    %c0_3 = arith.constant 0 : index
    %c0_4 = arith.constant 0 : index
    %9 = vector.load %arg5[%c0_3, %c0_4] : memref<128x2xf32, #tpu.memory_space<vmem>>, vector<128x2xf32>
    %c0_5 = arith.constant 0 : index
    %c0_6 = arith.constant 0 : index
    %10 = vector.load %arg4[%c0_5, %c0_6] : memref<2x128xf32, #tpu.memory_space<vmem>>, vector<2x128xf32>
    %11 = vector.extract_strided_slice %9 {offsets = [0, 0], sizes = [128, 1], strides = [1, 1]} : vector<128x2xf32> to vector<128x1xf32>
    %12 = vector.extract_strided_slice %10 {offsets = [0, 0], sizes = [1, 128], strides = [1, 1]} : vector<2x128xf32> to vector<1x128xf32>
    %13 = vector.broadcast %11 : vector<128x1xf32> to vector<128x128xf32>
    %14 = vector.broadcast %12 : vector<1x128xf32> to vector<128x128xf32>
    %15 = arith.addf %13, %14 : vector<128x128xf32>
    %cst_7 = arith.constant 2.000000e-01 : f32
    %16 = vector.broadcast %cst_7 : f32 to vector<128x128xf32>
    %17 = arith.mulf %16, %15 : vector<128x128xf32>
    %18 = arith.maximumf %15, %17 : vector<128x128xf32>
    %19 = arith.addf %18, %8 : vector<128x128xf32>
    %c0_8 = arith.constant 0 : index
    %c0_9 = arith.constant 0 : index
    %c0_10 = arith.constant 0 : index
    %20 = vector.load %arg8[%c0_8, %c0_9, %c0_10] : memref<2x128x1xf32, #tpu.memory_space<vmem>>, vector<1x128x1xf32>
    %21 = vector.shape_cast %20 : vector<1x128x1xf32> to vector<128x1xf32>
    %cst_11 = arith.constant dense<0xFF800000> : vector<128xf32>
    %22 = vector.multi_reduction <maximumf>, %19, %cst_11 [1] : vector<128x128xf32> to vector<128xf32>
    %23 = vector.shape_cast %22 : vector<128xf32> to vector<128x1xf32>
    %24 = arith.maximumf %21, %23 : vector<128x1xf32>
    %25 = arith.subf %21, %24 : vector<128x1xf32>
    %26 = math.exp %25 : vector<128x1xf32>
    %27 = vector.broadcast %24 : vector<128x1xf32> to vector<128x128xf32>
    %28 = arith.subf %19, %27 : vector<128x128xf32>
    %29 = arith.truncf %28 : vector<128x128xf32> to vector<128x128xbf16>
    %30 = math.exp %29 : vector<128x128xbf16>
    %c0_12 = arith.constant 0 : index
    %c0_13 = arith.constant 0 : index
    %c0_14 = arith.constant 0 : index
    %31 = vector.load %arg9[%c0_12, %c0_13, %c0_14] : memref<2x128x1xf32, #tpu.memory_space<vmem>>, vector<1x128x1xf32>
    %32 = vector.shape_cast %31 : vector<1x128x1xf32> to vector<128x1xf32>
    %33 = arith.mulf %26, %32 : vector<128x1xf32>
    %34 = arith.extf %30 : vector<128x128xbf16> to vector<128x128xf32>
    %cst_15 = arith.constant dense<0.000000e+00> : vector<128xf32>
    %35 = vector.multi_reduction <add>, %34, %cst_15 [1] : vector<128x128xf32> to vector<128xf32>
    %36 = vector.shape_cast %35 : vector<128xf32> to vector<128x1xf32>
    %37 = arith.addf %33, %36 : vector<128x1xf32>
    %c0_16 = arith.constant 0 : index
    %c0_17 = arith.constant 0 : index
    %c0_18 = arith.constant 0 : index
    %38 = vector.load %arg9[%c0_16, %c0_17, %c0_18] : memref<2x128x1xf32, #tpu.memory_space<vmem>>, vector<1x128x1xf32>
    %39 = vector.shape_cast %38 : vector<1x128x1xf32> to vector<128x1xf32>
    %40 = vector.shape_cast %37 : vector<128x1xf32> to vector<1x128x1xf32>
    tpu.vector_store %arg9[%c0_16, %c0_17, %c0_18], %40 {strides = array<i32>} : memref<2x128x1xf32, #tpu.memory_space<vmem>>, vector<1x128x1xf32>,
    %c0_19 = arith.constant 0 : index
    %c0_20 = arith.constant 0 : index
    %c0_21 = arith.constant 0 : index
    %41 = vector.load %arg10[%c0_19, %c0_20, %c0_21] : memref<2x128x8xf32, #tpu.memory_space<vmem>>, vector<1x128x8xf32>
    %42 = vector.shape_cast %41 : vector<1x128x8xf32> to vector<128x8xf32>
    %43 = vector.broadcast %26 : vector<128x1xf32> to vector<128x8xf32>
    %44 = arith.mulf %43, %42 : vector<128x8xf32>
    %c0_22 = arith.constant 0 : index
    %c0_23 = arith.constant 0 : index
    %c0_24 = arith.constant 0 : index
    %45 = vector.load %arg3[%c0_22, %c0_23, %c0_24] : memref<2x128x8xbf16, #tpu.memory_space<vmem>>, vector<1x128x8xbf16>
    %46 = vector.shape_cast %45 : vector<1x128x8xbf16> to vector<128x8xbf16>
    %cst_25 = arith.constant dense<0.000000e+00> : vector<128x8xf32>
    %47 = tpu.matmul %30, %46, %cst_25 {dimension_numbers = #tpu.dot_dimension_numbers<[1], [0], [0], [1], [0, 0, 1, 1], [], []>} : vector<128x128xbf16>, vector<128x8xbf16>, vector<128x8xf32> -> vector<128x8xf32>
    %48 = arith.addf %44, %47 : vector<128x8xf32>
    %c0_26 = arith.constant 0 : index
    %c0_27 = arith.constant 0 : index
    %c0_28 = arith.constant 0 : index
    %49 = vector.load %arg10[%c0_26, %c0_27, %c0_28] : memref<2x128x8xf32, #tpu.memory_space<vmem>>, vector<1x128x8xf32>
    %50 = vector.shape_cast %49 : vector<1x128x8xf32> to vector<128x8xf32>
    %51 = vector.shape_cast %48 : vector<128x8xf32> to vector<1x128x8xf32>
    tpu.vector_store %arg10[%c0_26, %c0_27, %c0_28], %51 {strides = array<i32>} : memref<2x128x8xf32, #tpu.memory_space<vmem>>, vector<1x128x8xf32>,
    %c0_29 = arith.constant 0 : index
    %c0_30 = arith.constant 0 : index
    %c0_31 = arith.constant 0 : index
    %52 = vector.load %arg8[%c0_29, %c0_30, %c0_31] : memref<2x128x1xf32, #tpu.memory_space<vmem>>, vector<1x128x1xf32>
    %53 = vector.shape_cast %52 : vector<1x128x1xf32> to vector<128x1xf32>
    %54 = vector.shape_cast %24 : vector<128x1xf32> to vector<1x128x1xf32>
    tpu.vector_store %arg8[%c0_29, %c0_30, %c0_31], %54 {strides = array<i32>} : memref<2x128x1xf32, #tpu.memory_space<vmem>>, vector<1x128x1xf32>,
    %55 = vector.extract_strided_slice %9 {offsets = [0, 1], sizes = [128, 1], strides = [1, 1]} : vector<128x2xf32> to vector<128x1xf32>
    %56 = vector.extract_strided_slice %10 {offsets = [1, 0], sizes = [1, 128], strides = [1, 1]} : vector<2x128xf32> to vector<1x128xf32>
    %57 = vector.broadcast %55 : vector<128x1xf32> to vector<128x128xf32>
    %58 = vector.broadcast %56 : vector<1x128xf32> to vector<128x128xf32>
    %59 = arith.addf %57, %58 : vector<128x128xf32>
    %cst_32 = arith.constant 2.000000e-01 : f32
    %60 = vector.broadcast %cst_32 : f32 to vector<128x128xf32>
    %61 = arith.mulf %60, %59 : vector<128x128xf32>
    %62 = arith.maximumf %59, %61 : vector<128x128xf32>
    %63 = arith.addf %62, %8 : vector<128x128xf32>
    %c1 = arith.constant 1 : index
    %c0_33 = arith.constant 0 : index
    %c0_34 = arith.constant 0 : index
    %64 = vector.load %arg8[%c1, %c0_33, %c0_34] : memref<2x128x1xf32, #tpu.memory_space<vmem>>, vector<1x128x1xf32>
    %65 = vector.shape_cast %64 : vector<1x128x1xf32> to vector<128x1xf32>
    %cst_35 = arith.constant dense<0xFF800000> : vector<128xf32>
    %66 = vector.multi_reduction <maximumf>, %63, %cst_35 [1] : vector<128x128xf32> to vector<128xf32>
    %67 = vector.shape_cast %66 : vector<128xf32> to vector<128x1xf32>
    %68 = arith.maximumf %65, %67 : vector<128x1xf32>
    %69 = arith.subf %65, %68 : vector<128x1xf32>
    %70 = math.exp %69 : vector<128x1xf32>
    %71 = vector.broadcast %68 : vector<128x1xf32> to vector<128x128xf32>
    %72 = arith.subf %63, %71 : vector<128x128xf32>
    %73 = arith.truncf %72 : vector<128x128xf32> to vector<128x128xbf16>
    %74 = math.exp %73 : vector<128x128xbf16>
    %c1_36 = arith.constant 1 : index
    %c0_37 = arith.constant 0 : index
    %c0_38 = arith.constant 0 : index
    %75 = vector.load %arg9[%c1_36, %c0_37, %c0_38] : memref<2x128x1xf32, #tpu.memory_space<vmem>>, vector<1x128x1xf32>
    %76 = vector.shape_cast %75 : vector<1x128x1xf32> to vector<128x1xf32>
    %77 = arith.mulf %70, %76 : vector<128x1xf32>
    %78 = arith.extf %74 : vector<128x128xbf16> to vector<128x128xf32>
    %cst_39 = arith.constant dense<0.000000e+00> : vector<128xf32>
    %79 = vector.multi_reduction <add>, %78, %cst_39 [1] : vector<128x128xf32> to vector<128xf32>
    %80 = vector.shape_cast %79 : vector<128xf32> to vector<128x1xf32>
    %81 = arith.addf %77, %80 : vector<128x1xf32>
    %c1_40 = arith.constant 1 : index
    %c0_41 = arith.constant 0 : index
    %c0_42 = arith.constant 0 : index
    %82 = vector.load %arg9[%c1_40, %c0_41, %c0_42] : memref<2x128x1xf32, #tpu.memory_space<vmem>>, vector<1x128x1xf32>
    %83 = vector.shape_cast %82 : vector<1x128x1xf32> to vector<128x1xf32>
    %84 = vector.shape_cast %81 : vector<128x1xf32> to vector<1x128x1xf32>
    tpu.vector_store %arg9[%c1_40, %c0_41, %c0_42], %84 {strides = array<i32>} : memref<2x128x1xf32, #tpu.memory_space<vmem>>, vector<1x128x1xf32>,
    %c1_43 = arith.constant 1 : index
    %c0_44 = arith.constant 0 : index
    %c0_45 = arith.constant 0 : index
    %85 = vector.load %arg10[%c1_43, %c0_44, %c0_45] : memref<2x128x8xf32, #tpu.memory_space<vmem>>, vector<1x128x8xf32>
    %86 = vector.shape_cast %85 : vector<1x128x8xf32> to vector<128x8xf32>
    %87 = vector.broadcast %70 : vector<128x1xf32> to vector<128x8xf32>
    %88 = arith.mulf %87, %86 : vector<128x8xf32>
    %c1_46 = arith.constant 1 : index
    %c0_47 = arith.constant 0 : index
    %c0_48 = arith.constant 0 : index
    %89 = vector.load %arg3[%c1_46, %c0_47, %c0_48] : memref<2x128x8xbf16, #tpu.memory_space<vmem>>, vector<1x128x8xbf16>
    %90 = vector.shape_cast %89 : vector<1x128x8xbf16> to vector<128x8xbf16>
    %cst_49 = arith.constant dense<0.000000e+00> : vector<128x8xf32>
    %91 = tpu.matmul %74, %90, %cst_49 {dimension_numbers = #tpu.dot_dimension_numbers<[1], [0], [0], [1], [0, 0, 1, 1], [], []>} : vector<128x128xbf16>, vector<128x8xbf16>, vector<128x8xf32> -> vector<128x8xf32>
    %92 = arith.addf %88, %91 : vector<128x8xf32>
    %c1_50 = arith.constant 1 : index
    %c0_51 = arith.constant 0 : index
    %c0_52 = arith.constant 0 : index
    %93 = vector.load %arg10[%c1_50, %c0_51, %c0_52] : memref<2x128x8xf32, #tpu.memory_space<vmem>>, vector<1x128x8xf32>
    %94 = vector.shape_cast %93 : vector<1x128x8xf32> to vector<128x8xf32>
    %95 = vector.shape_cast %92 : vector<128x8xf32> to vector<1x128x8xf32>
    tpu.vector_store %arg10[%c1_50, %c0_51, %c0_52], %95 {strides = array<i32>} : memref<2x128x8xf32, #tpu.memory_space<vmem>>, vector<1x128x8xf32>,
    %c1_53 = arith.constant 1 : index
    %c0_54 = arith.constant 0 : index
    %c0_55 = arith.constant 0 : index
    %96 = vector.load %arg8[%c1_53, %c0_54, %c0_55] : memref<2x128x1xf32, #tpu.memory_space<vmem>>, vector<1x128x1xf32>
    %97 = vector.shape_cast %96 : vector<1x128x1xf32> to vector<128x1xf32>
    %98 = vector.shape_cast %68 : vector<128x1xf32> to vector<1x128x1xf32>
    tpu.vector_store %arg8[%c1_53, %c0_54, %c0_55], %98 {strides = array<i32>} : memref<2x128x1xf32, #tpu.memory_space<vmem>>, vector<1x128x1xf32>,
    %c1_i32 = arith.constant 1 : i32
    %99 = arith.cmpi eq, %arg1, %c1_i32 : i32
    %100 = arith.extui %99 : i1 to i32
    %c0_i32_56 = arith.constant 0 : i32
    %101 = arith.cmpi ne, %100, %c0_i32_56 : i32
    scf.if %101 {
      %cst_57 = arith.constant 0.000000e+00 : f32
      %102 = vector.broadcast %cst_57 : f32 to vector<128x8xf32>
      %c0_58 = arith.constant 0 : index
      %c0_59 = arith.constant 0 : index
      %c0_60 = arith.constant 0 : index
      %103 = vector.load %arg9[%c0_58, %c0_59, %c0_60] : memref<2x128x1xf32, #tpu.memory_space<vmem>>, vector<1x128x1xf32>
      %104 = vector.shape_cast %103 : vector<1x128x1xf32> to vector<128x1xf32>
      %cst_61 = arith.constant 1.000000e-30 : f32
      %105 = vector.broadcast %cst_61 : f32 to vector<128x1xf32>
      %106 = arith.maximumf %104, %105 : vector<128x1xf32>
      %107 = tpu.reciprocal %106 {approx = true} : vector<128x1xf32> -> vector<128x1xf32>
      %c0_62 = arith.constant 0 : index
      %c0_63 = arith.constant 0 : index
      %c0_64 = arith.constant 0 : index
      %108 = vector.load %arg10[%c0_62, %c0_63, %c0_64] : memref<2x128x8xf32, #tpu.memory_space<vmem>>, vector<1x128x8xf32>
      %109 = vector.shape_cast %108 : vector<1x128x8xf32> to vector<128x8xf32>
      %110 = vector.broadcast %107 : vector<128x1xf32> to vector<128x8xf32>
      %111 = arith.mulf %109, %110 : vector<128x8xf32>
      %112 = arith.addf %102, %111 : vector<128x8xf32>
      %c1_65 = arith.constant 1 : index
      %c0_66 = arith.constant 0 : index
      %c0_67 = arith.constant 0 : index
      %113 = vector.load %arg9[%c1_65, %c0_66, %c0_67] : memref<2x128x1xf32, #tpu.memory_space<vmem>>, vector<1x128x1xf32>
      %114 = vector.shape_cast %113 : vector<1x128x1xf32> to vector<128x1xf32>
      %cst_68 = arith.constant 1.000000e-30 : f32
      %115 = vector.broadcast %cst_68 : f32 to vector<128x1xf32>
      %116 = arith.maximumf %114, %115 : vector<128x1xf32>
      %117 = tpu.reciprocal %116 {approx = true} : vector<128x1xf32> -> vector<128x1xf32>
      %c1_69 = arith.constant 1 : index
      %c0_70 = arith.constant 0 : index
      %c0_71 = arith.constant 0 : index
      %118 = vector.load %arg10[%c1_69, %c0_70, %c0_71] : memref<2x128x8xf32, #tpu.memory_space<vmem>>, vector<1x128x8xf32>
      %119 = vector.shape_cast %118 : vector<1x128x8xf32> to vector<128x8xf32>
      %120 = vector.broadcast %117 : vector<128x1xf32> to vector<128x8xf32>
      %121 = arith.mulf %119, %120 : vector<128x8xf32>
      %122 = arith.addf %112, %121 : vector<128x8xf32>
      %cst_72 = arith.constant 5.000000e-01 : f32
      %123 = vector.broadcast %cst_72 : f32 to vector<128x8xf32>
      %124 = arith.mulf %122, %123 : vector<128x8xf32>
      %c0_73 = arith.constant 0 : index
      %c0_74 = arith.constant 0 : index
      %125 = vector.load %arg6[%c0_73, %c0_74] : memref<1x8xf32, #tpu.memory_space<vmem>>, vector<1x8xf32>
      %126 = vector.broadcast %125 : vector<1x8xf32> to vector<128x8xf32>
      %127 = arith.addf %124, %126 : vector<128x8xf32>
      %c0_75 = arith.constant 0 : index
      %c0_76 = arith.constant 0 : index
      %128 = vector.load %arg7[%c0_75, %c0_76] : memref<128x8xf32, #tpu.memory_space<vmem>>, vector<128x8xf32>
      tpu.vector_store %arg7[%c0_75, %c0_76], %127 {strides = array<i32>} : memref<128x8xf32, #tpu.memory_space<vmem>>, vector<128x8xf32>,
    } else {
    }
    return
  }
  func.func @transform_0(%arg0: i32, %arg1: i32) -> (i32, i32) {
    %c0_i32 = arith.constant 0 : i32
    return %arg0, %arg1 : i32, i32
  }
  func.func @transform_1(%arg0: i32, %arg1: i32) -> (i32, i32, i32) {
    %c0_i32 = arith.constant 0 : i32
    %c0_i32_0 = arith.constant 0 : i32
    %c0_i32_1 = arith.constant 0 : i32
    return %c0_i32, %arg1, %c0_i32_0 : i32, i32, i32
  }
  func.func @transform_2(%arg0: i32, %arg1: i32) -> (i32, i32) {
    %c0_i32 = arith.constant 0 : i32
    %c0_i32_0 = arith.constant 0 : i32
    return %c0_i32, %arg1 : i32, i32
  }
  func.func @transform_3(%arg0: i32, %arg1: i32) -> (i32, i32) {
    %c0_i32 = arith.constant 0 : i32
    %c0_i32_0 = arith.constant 0 : i32
    return %arg0, %c0_i32 : i32, i32
  }
  func.func @transform_4(%arg0: i32, %arg1: i32) -> (i32, i32) {
    %c0_i32 = arith.constant 0 : i32
    %c0_i32_0 = arith.constant 0 : i32
    %c0_i32_1 = arith.constant 0 : i32
    return %c0_i32, %c0_i32_0 : i32, i32
  }
  func.func @transform_5(%arg0: i32, %arg1: i32) -> (i32, i32) {
    %c0_i32 = arith.constant 0 : i32
    %c0_i32_0 = arith.constant 0 : i32
    return %arg0, %c0_i32 : i32, i32
  }
}

module attributes {stable_mosaic.version = 11 : i64} {
  func.func @_fusion_kernel(%arg0: i32, %arg1: memref<128x24xf32, #tpu.memory_space<vmem>>, %arg2: memref<24x24xf32, #tpu.memory_space<vmem>>, %arg3: memref<1x24xf32, #tpu.memory_space<vmem>>, %arg4: memref<24x3xf32, #tpu.memory_space<vmem>>, %arg5: memref<128x8xf32, #tpu.memory_space<vmem>>) attributes {dimension_semantics = [#tpu.dimension_semantics<parallel>], iteration_bounds = array<i64: 2>, scalar_prefetch = 0 : i64, scratch_operands = 0 : i64, tpu.core_type = #tpu.core_type<tc>, window_params = [{transform_indices = @transform_0, window_bounds = array<i64: 128, 24>}, {pipeline_mode = #tpu.pipeline_mode<synchronous>, transform_indices = @transform_1, window_bounds = array<i64: 24, 24>}, {pipeline_mode = #tpu.pipeline_mode<synchronous>, transform_indices = @transform_2, window_bounds = array<i64: 1, 24>}, {pipeline_mode = #tpu.pipeline_mode<synchronous>, transform_indices = @transform_3, window_bounds = array<i64: 24, 3>}, {transform_indices = @transform_4, window_bounds = array<i64: 128, 8>}]} {
    %c0 = arith.constant 0 : index
    %c0_0 = arith.constant 0 : index
    %0 = vector.load %arg1[%c0, %c0_0] : memref<128x24xf32, #tpu.memory_space<vmem>>, vector<128x24xf32>
    %c0_1 = arith.constant 0 : index
    %c0_2 = arith.constant 0 : index
    %1 = vector.load %arg2[%c0_1, %c0_2] : memref<24x24xf32, #tpu.memory_space<vmem>>, vector<24x24xf32>
    %cst = arith.constant dense<0.000000e+00> : vector<128x24xf32>
    %2 = tpu.matmul %0, %1, %cst {dimension_numbers = #tpu.dot_dimension_numbers<[1], [0], [0], [1], [0, 0, 1, 1], [], []>} : vector<128x24xf32>, vector<24x24xf32>, vector<128x24xf32> -> vector<128x24xf32>
    %c0_3 = arith.constant 0 : index
    %c0_4 = arith.constant 0 : index
    %3 = vector.load %arg3[%c0_3, %c0_4] : memref<1x24xf32, #tpu.memory_space<vmem>>, vector<1x24xf32>
    %4 = vector.broadcast %3 : vector<1x24xf32> to vector<128x24xf32>
    %5 = arith.addf %2, %4 : vector<128x24xf32>
    %6 = math.tanh %5 : vector<128x24xf32>
    %c0_5 = arith.constant 0 : index
    %c0_6 = arith.constant 0 : index
    %7 = vector.load %arg4[%c0_5, %c0_6] : memref<24x3xf32, #tpu.memory_space<vmem>>, vector<24x3xf32>
    %cst_7 = arith.constant dense<0.000000e+00> : vector<128x3xf32>
    %8 = tpu.matmul %6, %7, %cst_7 {dimension_numbers = #tpu.dot_dimension_numbers<[1], [0], [0], [1], [0, 0, 1, 1], [], []>} : vector<128x24xf32>, vector<24x3xf32>, vector<128x3xf32> -> vector<128x3xf32>
    %cst_8 = arith.constant dense<0xFF800000> : vector<128xf32>
    %9 = vector.multi_reduction <maximumf>, %8, %cst_8 [1] : vector<128x3xf32> to vector<128xf32>
    %10 = vector.shape_cast %9 : vector<128xf32> to vector<128x1xf32>
    %11 = vector.broadcast %10 : vector<128x1xf32> to vector<128x3xf32>
    %12 = arith.subf %8, %11 : vector<128x3xf32>
    %13 = math.exp %12 : vector<128x3xf32>
    %cst_9 = arith.constant dense<0.000000e+00> : vector<128xf32>
    %14 = vector.multi_reduction <add>, %13, %cst_9 [1] : vector<128x3xf32> to vector<128xf32>
    %15 = vector.shape_cast %14 : vector<128xf32> to vector<128x1xf32>
    %16 = tpu.reciprocal %15 {approx = true} : vector<128x1xf32> -> vector<128x1xf32>
    %17 = vector.broadcast %16 : vector<128x1xf32> to vector<128x3xf32>
    %18 = arith.mulf %13, %17 : vector<128x3xf32>
    %19 = vector.extract_strided_slice %18 {offsets = [0, 0], sizes = [128, 1], strides = [1, 1]} : vector<128x3xf32> to vector<128x1xf32>
    %20 = vector.extract_strided_slice %0 {offsets = [0, 0], sizes = [128, 8], strides = [1, 1]} : vector<128x24xf32> to vector<128x8xf32>
    %21 = vector.broadcast %19 : vector<128x1xf32> to vector<128x8xf32>
    %22 = arith.mulf %21, %20 : vector<128x8xf32>
    %23 = vector.extract_strided_slice %18 {offsets = [0, 1], sizes = [128, 1], strides = [1, 1]} : vector<128x3xf32> to vector<128x1xf32>
    %24 = vector.extract_strided_slice %0 {offsets = [0, 8], sizes = [128, 8], strides = [1, 1]} : vector<128x24xf32> to vector<128x8xf32>
    %25 = vector.broadcast %23 : vector<128x1xf32> to vector<128x8xf32>
    %26 = arith.mulf %25, %24 : vector<128x8xf32>
    %27 = arith.addf %22, %26 : vector<128x8xf32>
    %28 = vector.extract_strided_slice %18 {offsets = [0, 2], sizes = [128, 1], strides = [1, 1]} : vector<128x3xf32> to vector<128x1xf32>
    %29 = vector.extract_strided_slice %0 {offsets = [0, 16], sizes = [128, 8], strides = [1, 1]} : vector<128x24xf32> to vector<128x8xf32>
    %30 = vector.broadcast %28 : vector<128x1xf32> to vector<128x8xf32>
    %31 = arith.mulf %30, %29 : vector<128x8xf32>
    %32 = arith.addf %27, %31 : vector<128x8xf32>
    %cst_10 = arith.constant dense<0xFF800000> : vector<128xf32>
    %33 = vector.multi_reduction <maximumf>, %32, %cst_10 [1] : vector<128x8xf32> to vector<128xf32>
    %34 = vector.shape_cast %33 : vector<128xf32> to vector<128x1xf32>
    %35 = vector.broadcast %34 : vector<128x1xf32> to vector<128x8xf32>
    %36 = arith.subf %32, %35 : vector<128x8xf32>
    %37 = math.exp %36 : vector<128x8xf32>
    %cst_11 = arith.constant dense<0.000000e+00> : vector<128xf32>
    %38 = vector.multi_reduction <add>, %37, %cst_11 [1] : vector<128x8xf32> to vector<128xf32>
    %39 = vector.shape_cast %38 : vector<128xf32> to vector<128x1xf32>
    %40 = math.log %39 : vector<128x1xf32>
    %41 = arith.addf %40, %34 : vector<128x1xf32>
    %42 = vector.broadcast %41 : vector<128x1xf32> to vector<128x8xf32>
    %43 = arith.subf %32, %42 : vector<128x8xf32>
    %c0_12 = arith.constant 0 : index
    %c0_13 = arith.constant 0 : index
    %44 = vector.load %arg5[%c0_12, %c0_13] : memref<128x8xf32, #tpu.memory_space<vmem>>, vector<128x8xf32>
    tpu.vector_store %arg5[%c0_12, %c0_13], %43 {strides = array<i32>} : memref<128x8xf32, #tpu.memory_space<vmem>>, vector<128x8xf32>,
    return
  }
  func.func @transform_0(%arg0: i32) -> (i32, i32) {
    %c0_i32 = arith.constant 0 : i32
    %c0_i32_0 = arith.constant 0 : i32
    return %arg0, %c0_i32 : i32, i32
  }
  func.func @transform_1(%arg0: i32) -> (i32, i32) {
    %c0_i32 = arith.constant 0 : i32
    %c0_i32_0 = arith.constant 0 : i32
    %c0_i32_1 = arith.constant 0 : i32
    return %c0_i32, %c0_i32_0 : i32, i32
  }
  func.func @transform_2(%arg0: i32) -> (i32, i32) {
    %c0_i32 = arith.constant 0 : i32
    %c0_i32_0 = arith.constant 0 : i32
    %c0_i32_1 = arith.constant 0 : i32
    return %c0_i32, %c0_i32_0 : i32, i32
  }
  func.func @transform_3(%arg0: i32) -> (i32, i32) {
    %c0_i32 = arith.constant 0 : i32
    %c0_i32_0 = arith.constant 0 : i32
    %c0_i32_1 = arith.constant 0 : i32
    return %c0_i32, %c0_i32_0 : i32, i32
  }
  func.func @transform_4(%arg0: i32) -> (i32, i32) {
    %c0_i32 = arith.constant 0 : i32
    %c0_i32_0 = arith.constant 0 : i32
    return %arg0, %c0_i32 : i32, i32
  }
}

</mosaic_0001>

<llo_original>
// kernel: ugcn_forward.13
$region0: #{ugcn_forward.13}
  #allocation0 [shape = 'u32[]', space=smem, size = 0x4, offset = 0x4, fixed_abs, tag = 'smem constant byte address 0x4 - core index']
  #allocation1 [shape = 'u32[144,128]{1,0:T(1,128)}', space=vmem, size = 0x12000, scoped, tag = 'internal scratch']
  %s0 = inlined_call_operand.vmem [shape: bf16[256,16], index: 0, kind: input, shape index: {}]
  %s1 = inlined_call_operand.vmem [shape: bf16[16,64], index: 1, kind: input, shape index: {}]
  %s2 = inlined_call_operand.vmem [shape: bf16[64,2], index: 2, kind: input, shape index: {}]
  %s3 = inlined_call_operand.vmem [shape: bf16[64,2], index: 3, kind: input, shape index: {}]
  %s4 = inlined_call_operand.vmem [shape: bf16[2,256,32], index: 4, kind: output, shape index: {0}]
  %s5 = inlined_call_operand.vmem [shape: f32[256,2], index: 5, kind: output, shape index: {1}]
  %s6 = inlined_call_operand.vmem [shape: f32[256,2], index: 6, kind: output, shape index: {2}]
  %7 = xla_tuple %s4, %s5, %s6
  %s8 = sld [smem:[#allocation0]]
  $region102: #{ugcn_forward.13} parent=0
    _
  %s10 = ssub.s32 1, %s8
  %s11 = scalar_select 0, %s10, %s8
  $region1: #{ugcn_forward.13} parent=0
    #allocation2 [shape = 'u8[131072]{0}', space=vmem, size = 0x20000, scoped, tag = 'output window, operand 0']
    loop: start=0, step=1, limit=4
    $region2: #{ugcn_forward.13} parent=1 // loop_pre_header
      _
    $region3: #{ugcn_forward.13} parent=1 // loop_header
      %s13 = sphi 0, %s17
      %p14 = scmp.ge.s32.totalorder %s13, 4
      %s23 = sphi 0, %s25
      %s26 = sphi 0, %s23
      %s27 = sphi 0, %s26
      %s43 = sphi 0, %s27
      %s47 = sphi 0, %s47
      %s49 = sphi 0, %s47
      %s50 = sphi 0, %s49
      %s64 = sphi 0, %s50
      %s68 = sphi 0, %s68
      %s70 = sphi 0, %s68
      %s71 = sphi 0, %s70
      %s85 = sphi 0, %s71
      %s89 = sphi 0, %s89
      %s91 = sphi 0, %s89
      %s92 = sphi 0, %s91
      %s106 = sphi 0, %s92
      %s112 = sphi 0, %s114
      %s115 = sphi 0, %s112
      %s116 = sphi 0, %s115
      %s132 = sphi 0, %s116
      %s138 = sphi 0, %s140
      %s141 = sphi 0, %s138
      %s142 = sphi 0, %s141
      %s158 = sphi 0, %s142
      %s164 = sphi 0, %s166
      %s167 = sphi 0, %s164
      %s168 = sphi 0, %s167
      %s184 = sphi 0, %s168
    $region4: #{ugcn_forward.13} parent=1 // loop_header_branch
      %16 = sbr.rel (%p14) target = $region8
    $region5: #{ugcn_forward.13} parent=1 // loop_body
      %s18 = ssub.s32 %s13, 1
      %s19 = ssub.s32 %s13, 2
      %s20 = sadd.s32 %s13, 1
      %s21 = ssub.s32 %s13, %s20
      %p22 = scmp.eq.s32.totalorder %s21, 0
      %s24 = sadd.s32 %s23, 1
      %s25 = scalar_select %p22, %s23, %s24
      %p28 = pneg %p22
      %p29 = scmp.eq.s32.totalorder %s13, 1
      %p30 = por %p28, %p29
      %p31 = scmp.ne.s32.totalorder %s23, %s26
      %p32 = scmp.eq.s32.totalorder %s13, 0
      %p33 = por %p31, %p32
      %p34 = scmp.ne.s32.totalorder %s23, %s26
      %p35 = scmp.eq.s32.totalorder %s18, 1
      %p36 = por %p34, %p35
      %p37 = scmp.ne.s32.totalorder %s26, %s27
      %p38 = scmp.eq.s32.totalorder %s18, 0
      %p39 = por %p37, %p38
      %p40 = scmp.ne.s32.totalorder %s26, %s27
      %p41 = scmp.eq.s32.totalorder %s19, 1
      %p42 = por %p40, %p41
      %p44 = scmp.ne.s32.totalorder %s27, %s43
      %p45 = scmp.eq.s32.totalorder %s19, 0
      %p46 = por %p44, %p45
      %s48 = sadd.s32 %s47, 1
      %p51 = scmp.eq.s32.totalorder %s13, 1
      %p52 = scmp.ne.s32.totalorder %s47, %s49
      %p53 = scmp.eq.s32.totalorder %s13, 0
      %p54 = por %p52, %p53
      %p55 = scmp.ne.s32.totalorder %s47, %s49
      %p56 = scmp.eq.s32.totalorder %s18, 1
      %p57 = por %p55, %p56
      %p58 = scmp.ne.s32.totalorder %s49, %s50
      %p59 = scmp.eq.s32.totalorder %s18, 0
      %p60 = por %p58, %p59
      %p61 = scmp.ne.s32.totalorder %s49, %s50
      %p62 = scmp.eq.s32.totalorder %s19, 1
      %p63 = por %p61, %p62
      %p65 = scmp.ne.s32.totalorder %s50, %s64
      %p66 = scmp.eq.s32.totalorder %s19, 0
      %p67 = por %p65, %p66
      %s69 = sadd.s32 %s68, 1
      %p72 = scmp.eq.s32.totalorder %s13, 1
      %p73 = scmp.ne.s32.totalorder %s68, %s70
      %p74 = scmp.eq.s32.totalorder %s13, 0
      %p75 = por %p73, %p74
      %p76 = scmp.ne.s32.totalorder %s68, %s70
      %p77 = scmp.eq.s32.totalorder %s18, 1
      %p78 = por %p76, %p77
      %p79 = scmp.ne.s32.totalorder %s70, %s71
      %p80 = scmp.eq.s32.totalorder %s18, 0
      %p81 = por %p79, %p80
      %p82 = scmp.ne.s32.totalorder %s70, %s71
      %p83 = scmp.eq.s32.totalorder %s19, 1
      %p84 = por %p82, %p83
      %p86 = scmp.ne.s32.totalorder %s71, %s85
      %p87 = scmp.eq.s32.totalorder %s19, 0
      %p88 = por %p86, %p87
      %s90 = sadd.s32 %s89, 1
      %p93 = scmp.eq.s32.totalorder %s13, 1
      %p94 = scmp.ne.s32.totalorder %s89, %s91
      %p95 = scmp.eq.s32.totalorder %s13, 0
      %p96 = por %p94, %p95
      %p97 = scmp.ne.s32.totalorder %s89, %s91
      %p98 = scmp.eq.s32.totalorder %s18, 1
      %p99 = por %p97, %p98
      %p100 = scmp.ne.s32.totalorder %s91, %s92
      %p101 = scmp.eq.s32.totalorder %s18, 0
      %p102 = por %p100, %p101
      %p103 = scmp.ne.s32.totalorder %s91, %s92
      %p104 = scmp.eq.s32.totalorder %s19, 1
      %p105 = por %p103, %p104
      %p107 = scmp.ne.s32.totalorder %s92, %s106
      %p108 = scmp.eq.s32.totalorder %s19, 0
      %p109 = por %p107, %p108
      %s110 = ssub.s32 %s13, %s20
      %p111 = scmp.eq.s32.totalorder %s110, 0
      %s113 = sadd.s32 %s112, 1
      %s114 = scalar_select %p111, %s112, %s113
      %p117 = pneg %p111
      %p118 = scmp.eq.s32.totalorder %s13, 1
      %p119 = por %p117, %p118
      %p120 = scmp.ne.s32.totalorder %s112, %s115
      %p121 = scmp.eq.s32.totalorder %s13, 0
      %p122 = por %p120, %p121
      %p123 = scmp.ne.s32.totalorder %s112, %s115
      %p124 = scmp.eq.s32.totalorder %s18, 1
      %p125 = por %p123, %p124
      %p126 = scmp.ne.s32.totalorder %s115, %s116
      %p127 = scmp.eq.s32.totalorder %s18, 0
      %p128 = por %p126, %p127
      %p129 = scmp.ne.s32.totalorder %s115, %s116
      %p130 = scmp.eq.s32.totalorder %s19, 1
      %p131 = por %p129, %p130
      %p133 = scmp.ne.s32.totalorder %s116, %s132
      %p134 = scmp.eq.s32.totalorder %s19, 0
      %p135 = por %p133, %p134
      %s136 = ssub.s32 %s13, %s20
      %p137 = scmp.eq.s32.totalorder %s136, 0
      %s139 = sadd.s32 %s138, 1
      %s140 = scalar_select %p137, %s138, %s139
      %p143 = pneg %p137
      %p144 = scmp.eq.s32.totalorder %s13, 1
      %p145 = por %p143, %p144
      %p146 = scmp.ne.s32.totalorder %s138, %s141
      %p147 = scmp.eq.s32.totalorder %s13, 0
      %p148 = por %p146, %p147
      %p149 = scmp.ne.s32.totalorder %s138, %s141
      %p150 = scmp.eq.s32.totalorder %s18, 1
      %p151 = por %p149, %p150
      %p152 = scmp.ne.s32.totalorder %s141, %s142
      %p153 = scmp.eq.s32.totalorder %s18, 0
      %p154 = por %p152, %p153
      %p155 = scmp.ne.s32.totalorder %s141, %s142
      %p156 = scmp.eq.s32.totalorder %s19, 1
      %p157 = por %p155, %p156
      %p159 = scmp.ne.s32.totalorder %s142, %s158
      %p160 = scmp.eq.s32.totalorder %s19, 0
      %p161 = por %p159, %p160
      %s162 = ssub.s32 %s13, %s20
      %p163 = scmp.eq.s32.totalorder %s162, 0
      %s165 = sadd.s32 %s164, 1
      %s166 = scalar_select %p163, %s164, %s165
      %p169 = pneg %p163
      %p170 = scmp.eq.s32.totalorder %s13, 1
      %p171 = por %p169, %p170
      %p172 = scmp.ne.s32.totalorder %s164, %s167
      %p173 = scmp.eq.s32.totalorder %s13, 0
      %p174 = por %p172, %p173
      %p175 = scmp.ne.s32.totalorder %s164, %s167
      %p176 = scmp.eq.s32.totalorder %s18, 1
      %p177 = por %p175, %p176
      %p178 = scmp.ne.s32.totalorder %s167, %s168
      %p179 = scmp.eq.s32.totalorder %s18, 0
      %p180 = por %p178, %p179
      %p181 = scmp.ne.s32.totalorder %s167, %s168
      %p182 = scmp.eq.s32.totalorder %s19, 1
      %p183 = por %p181, %p182
      %p185 = scmp.ne.s32.totalorder %s168, %s184
      %p186 = scmp.eq.s32.totalorder %s19, 0
      %p187 = por %p185, %p186
      %p188 = scmp.le.s32.totalorder 1, %s13
      %p189 = scmp.lt.s32.totalorder %s13, 3
      %p190 = pnand %p188, %p189
      %p191 = pneg %p190
      // Predicated region
      $region9: #{ugcn_forward.13} parent=5 // pred_check
        _
      $region10: #{ugcn_forward.13} parent=5 // pred_check_branch
        %193 = sbr.rel (%p190) target = $region12
      $region11: #{ugcn_forward.13} parent=5 // pred_region
        %s194 = ssub.s32 %s13, 1
        // Predicated region
        $region13: #{ugcn_forward.13} parent=11 // pred_check
          %p195 = pneg %p60
        $region14: #{ugcn_forward.13} parent=11 // pred_check_branch
          %197 = sbr.rel (%p195) target = $region16
        $region15: #{ugcn_forward.13} parent=11 // pred_region
          _
        $region16: #{ugcn_forward.13} parent=11 // pred_fallthru
          _
        // Predicated region
        $region17: #{ugcn_forward.13} parent=11 // pred_check
          %p198 = pneg %p81
        $region18: #{ugcn_forward.13} parent=11 // pred_check_branch
          %200 = sbr.rel (%p198) target = $region20
        $region19: #{ugcn_forward.13} parent=11 // pred_region
          _
        $region20: #{ugcn_forward.13} parent=11 // pred_fallthru
          _
        // Predicated region
        $region21: #{ugcn_forward.13} parent=11 // pred_check
          %p201 = pneg %p102
        $region22: #{ugcn_forward.13} parent=11 // pred_check_branch
          %203 = sbr.rel (%p201) target = $region24
        $region23: #{ugcn_forward.13} parent=11 // pred_region
          _
        $region24: #{ugcn_forward.13} parent=11 // pred_fallthru
          _
      $region12: #{ugcn_forward.13} parent=5 // pred_fallthru
        _
      %p204 = scmp.lt.s32.totalorder %s13, 2
      // Predicated region
      $region25: #{ugcn_forward.13} parent=5 // pred_check
        %p205 = pneg %p204
      $region26: #{ugcn_forward.13} parent=5 // pred_check_branch
        %207 = sbr.rel (%p205) target = $region28
      $region27: #{ugcn_forward.13} parent=5 // pred_region
        // Predicated region
        $region29: #{ugcn_forward.13} parent=27 // pred_check
          %p208 = pneg %p33
        $region30: #{ugcn_forward.13} parent=27 // pred_check_branch
          %210 = sbr.rel (%p208) target = $region32
        $region31: #{ugcn_forward.13} parent=27 // pred_region
          %s211 = smul.u32 16, %s13
          %p212 = scmp.lt.s32.totalorder %s211, 31
          %s213 = scalar_select %p212, %s211, 31
          %s214 = smul.addr %s213, 4
          %s215 = scalar_lea.vmem %s0, %s214
          %s216 = smul.u32 16, %s13
        $region32: #{ugcn_forward.13} parent=27 // pred_fallthru
          _
      $region28: #{ugcn_forward.13} parent=5 // pred_fallthru
        _
      %p217 = scmp.le.s32.totalorder 1, %s13
      %p218 = scmp.lt.s32.totalorder %s13, 3
      %p219 = pnand %p217, %p218
      %p220 = pneg %p219
      // Predicated region
      $region33: #{ugcn_forward.13} parent=5 // pred_check
        _
      $region34: #{ugcn_forward.13} parent=5 // pred_check_branch
        %222 = sbr.rel (%p219) target = $region36
      $region35: #{ugcn_forward.13} parent=5 // pred_region
        %s223 = ssub.s32 %s13, 1
        %s224 = smul.u32 16, %s18
        %p225 = scmp.lt.s32.totalorder %s224, 31
        %s226 = scalar_select %p225, %s224, 31
        %s227 = smul.addr %s226, 4
        %s228 = scalar_lea.vmem %s0, %s227
        %p229 = pneg %p39
        %p230 = pneg %p36
        %p231 = pneg %p60
        %p232 = pneg %p57
        %p233 = pneg %p81
        %p234 = pneg %p78
        %p235 = pneg %p102
        %p236 = pneg %p99
        %p237 = pneg %p128
        %p238 = pneg %p125
        %s239 = sand.u32 %s115, 1
        %s240 = sand.u32 %s115, 1
        %s241 = smul.addr %s240, 128
        %s242 = scalar_lea.vmem [#allocation2], %s241
        %p243 = pneg %p154
        %p244 = pneg %p151
        %s245 = smul.u32 16, %s18
        %p246 = scmp.lt.s32.totalorder %s245, 31
        %s247 = scalar_select %p246, %s245, 31
        %s248 = smul.addr %s247, 8
        %s249 = scalar_lea.vmem %s5, %s248
        %p250 = pneg %p180
        %p251 = pneg %p177
        %s252 = smul.u32 16, %s18
        %p253 = scmp.lt.s32.totalorder %s252, 31
        %s254 = scalar_select %p253, %s252, 31
        %s255 = smul.addr %s254, 8
        %s256 = scalar_lea.vmem %s6, %s255
        %s257 = smul.u32 16, %s18
        %p258 = scmp.lt.s32.totalorder %s257, 31
        %s259 = scalar_select %p258, %s257, 31
        %s260 = smul.addr %s259, 4
        %s261 = scalar_lea.vmem %s0, %s260
        %s262 = smul.u32 16, %s18
        %s263 = smul.u32 16, %s18
        %s264 = smul.u32 16, %s18
        %p265 = scmp.lt.s32.totalorder %s264, 31
        %s266 = scalar_select %p265, %s264, 31
        %s267 = smul.addr %s266, 8
        %s268 = scalar_lea.vmem %s5, %s267
        %s269 = smul.u32 16, %s18
        %s270 = smul.u32 16, %s18
        %p271 = scmp.lt.s32.totalorder %s270, 31
        %s272 = scalar_select %p271, %s270, 31
        %s273 = smul.addr %s272, 8
        %s274 = scalar_lea.vmem %s6, %s273
        %s275 = smul.u32 16, %s18
        %v277 = vld [vmem:[%s261] sm:$0xf]
        %v278 = vld [vmem:[%s261 + $0x4] sm:$0xf]
        %v279 = vld [vmem:[%s261 + $0x8] sm:$0xf]
        %v280 = vld [vmem:[%s261 + $0xc] sm:$0xf]
        %v281 = vld [vmem:[%s261 + $0x10] sm:$0xf]
        %v282 = vld [vmem:[%s261 + $0x14] sm:$0xf]
        %v283 = vld [vmem:[%s261 + $0x18] sm:$0xf]
        %v284 = vld [vmem:[%s261 + $0x1c] sm:$0xf]
        %v285 = vld [vmem:[%s261 + $0x20] sm:$0xf]
        %v286 = vld [vmem:[%s261 + $0x24] sm:$0xf]
        %v287 = vld [vmem:[%s261 + $0x28] sm:$0xf]
        %v288 = vld [vmem:[%s261 + $0x2c] sm:$0xf]
        %v289 = vld [vmem:[%s261 + $0x30] sm:$0xf]
        %v290 = vld [vmem:[%s261 + $0x34] sm:$0xf]
        %v291 = vld [vmem:[%s261 + $0x38] sm:$0xf]
        %v292 = vld [vmem:[%s261 + $0x3c] sm:$0xf]
        %v293 = vld [vmem:[%s1] sm:$0xf]
        %v294 = vld [vmem:[%s1 + $0x4] sm:$0xf]
        %v311 = vunpack.c.l.b16 %v277
        %v312 = vunpack.c.l.b16 %v278
        %v313 = vunpack.c.l.b16 %v279
        %v314 = vunpack.c.l.b16 %v280
        %v315 = vunpack.c.l.b16 %v281
        %v316 = vunpack.c.l.b16 %v282
        %v317 = vunpack.c.l.b16 %v283
        %v318 = vunpack.c.l.b16 %v284
        %v319 = vunpack.c.l.b16 %v285
        %v320 = vunpack.c.l.b16 %v286
        %v321 = vunpack.c.l.b16 %v287
        %v322 = vunpack.c.l.b16 %v288
        %v323 = vunpack.c.l.b16 %v289
        %v324 = vunpack.c.l.b16 %v290
        %v325 = vunpack.c.l.b16 %v291
        %v326 = vunpack.c.l.b16 %v292
        %v327 = vpack.c.b16 %v312, %v311
        %v328 = vpack.c.b16 %v314, %v313
        %v329 = vpack.c.b16 %v316, %v315
        %v330 = vpack.c.b16 %v318, %v317
        %v331 = vpack.c.b16 %v320, %v319
        %v332 = vpack.c.b16 %v322, %v321
        %v333 = vpack.c.b16 %v324, %v323
        %v334 = vpack.c.b16 %v326, %v325
        %v337 = vunpack.c.l.b16 %v293
        %v338 = vunpack.c.l.b16 %v294
        %v339 = vpack.c.b16 %v338, %v337
        %vm341 = vcmask 130048
        %v343 = vsel %vm341, %v327, 0
        %v346 = vsel %vm341, %v328, 0
        %v349 = vsel %vm341, %v329, 0
        %v352 = vsel %vm341, %v330, 0
        %v355 = vsel %vm341, %v331, 0
        %v358 = vsel %vm341, %v332, 0
        %v361 = vsel %vm341, %v333, 0
        %v364 = vsel %vm341, %v334, 0
        %366 = vmatprep.subr.bf16.mxu0 0
        %367 = vmatpush1.bf16.msra.mxu0 0
        %368 = vmatprep.subr.bf16.mxu0 0
        %369 = vmatpush1.bf16.msra.mxu0 0
        %370 = vmatprep.subr.bf16.mxu0 0
        %371 = vmatpush1.bf16.msra.mxu0 0
        %372 = vmatprep.subr.bf16.mxu0 0
        %373 = vmatpush1.bf16.msra.mxu0 0
        %374 = vmatprep.subr.bf16.mxu0 0
        %375 = vmatpush1.bf16.msra.mxu0 0
        %376 = vmatprep.subr.bf16.mxu0 0
        %377 = vmatpush1.bf16.msra.mxu0 0
        %378 = vmatprep.subr.bf16.mxu0 0
        %379 = vmatpush1.bf16.msra.mxu0 0
        %380 = vmatprep.subr.bf16.mxu0 0
        %381 = vmatpush1.bf16.msra.mxu0 %v339
        %382 = vmatprep.subr.bf16.mxu0 0
        %383 = vmatpush2.bf16.msra.mxu0 0
        %384 = vmatprep.subr.bf16.mxu0 0
        %385 = vmatpush2.bf16.msra.mxu0 0
        %386 = vmatprep.subr.bf16.mxu0 0
        %387 = vmatpush2.bf16.msra.mxu0 0
        %388 = vmatprep.subr.bf16.mxu0 0
        %389 = vmatpush2.bf16.msra.mxu0 0
        %390 = vmatprep.subr.bf16.mxu0 0
        %391 = vmatpush2.bf16.msra.mxu0 0
        %392 = vmatprep.subr.bf16.mxu0 0
        %393 = vmatpush2.bf16.msra.mxu0 0
        %394 = vmatprep.subr.bf16.mxu0 0
        %395 = vmatpush2.bf16.msra.mxu0 0
        %396 = vmatprep.subr.bf16.mxu0 0
        %397 = vmatpush2.bf16.msra.mxu0 0
        %398 = vmatprep.mubr.bf16.mxu0 0
        %399 = vmatmul.mubr.bf16.gmra.mxu0 %v343
        %v400 = vpop.f32.mrf.mxu0
        %v401 = vadd.f32 0.0, %v400
        %v402 = vpop.f32.mrf.mxu0
        %v403 = vpop.f32.mrf.mxu0
        %v404 = vadd.f32 0.0, %v403
        %v405 = vpop.f32.mrf.mxu0
        %406 = vmatprep.mubr.bf16.mxu0 0
        %407 = vmatmul.mubr.bf16.gmra.mxu0 %v346
        %v408 = vpop.f32.mrf.mxu0
        %v409 = vadd.f32 0.0, %v408
        %v410 = vpop.f32.mrf.mxu0
        %v411 = vpop.f32.mrf.mxu0
        %v412 = vadd.f32 0.0, %v411
        %v413 = vpop.f32.mrf.mxu0
        %414 = vmatprep.mubr.bf16.mxu0 0
        %415 = vmatmul.mubr.bf16.gmra.mxu0 %v349
        %v416 = vpop.f32.mrf.mxu0
        %v417 = vadd.f32 0.0, %v416
        %v418 = vpop.f32.mrf.mxu0
        %v419 = vpop.f32.mrf.mxu0
        %v420 = vadd.f32 0.0, %v419
        %v421 = vpop.f32.mrf.mxu0
        %422 = vmatprep.mubr.bf16.mxu0 0
        %423 = vmatmul.mubr.bf16.gmra.mxu0 %v352
        %v424 = vpop.f32.mrf.mxu0
        %v425 = vadd.f32 0.0, %v424
        %v426 = vpop.f32.mrf.mxu0
        %v427 = vpop.f32.mrf.mxu0
        %v428 = vadd.f32 0.0, %v427
        %v429 = vpop.f32.mrf.mxu0
        %430 = vmatprep.mubr.bf16.mxu0 0
        %431 = vmatmul.mubr.bf16.gmra.mxu0 %v355
        %v432 = vpop.f32.mrf.mxu0
        %v433 = vadd.f32 0.0, %v432
        %v434 = vpop.f32.mrf.mxu0
        %v435 = vpop.f32.mrf.mxu0
        %v436 = vadd.f32 0.0, %v435
        %v437 = vpop.f32.mrf.mxu0
        %438 = vmatprep.mubr.bf16.mxu0 0
        %439 = vmatmul.mubr.bf16.gmra.mxu0 %v358
        %v440 = vpop.f32.mrf.mxu0
        %v441 = vadd.f32 0.0, %v440
        %v442 = vpop.f32.mrf.mxu0
        %v443 = vpop.f32.mrf.mxu0
        %v444 = vadd.f32 0.0, %v443
        %v445 = vpop.f32.mrf.mxu0
        %446 = vmatprep.mubr.bf16.mxu0 0
        %447 = vmatmul.mubr.bf16.gmra.mxu0 %v361
        %v448 = vpop.f32.mrf.mxu0
        %v449 = vadd.f32 0.0, %v448
        %v450 = vpop.f32.mrf.mxu0
        %v451 = vpop.f32.mrf.mxu0
        %v452 = vadd.f32 0.0, %v451
        %v453 = vpop.f32.mrf.mxu0
        %454 = vmatprep.mubr.bf16.mxu0 0
        %455 = vmatmul.mubr.bf16.gmra.mxu0 %v364
        %v456 = vpop.f32.mrf.mxu0
        %v457 = vadd.f32 0.0, %v456
        %v458 = vpop.f32.mrf.mxu0
        %v459 = vpop.f32.mrf.mxu0
        %v460 = vadd.f32 0.0, %v459
        %v461 = vpop.f32.mrf.mxu0
        %462 = vdwg.mxu0
        %v463 = vpack.c.bf16 %v404, %v401
        %v464 = vpack.c.bf16 %v412, %v409
        %v465 = vpack.c.bf16 %v420, %v417
        %v466 = vpack.c.bf16 %v428, %v425
        %v467 = vpack.c.bf16 %v436, %v433
        %v468 = vpack.c.bf16 %v444, %v441
        %v469 = vpack.c.bf16 %v452, %v449
        %v470 = vpack.c.bf16 %v460, %v457
        %v471 = vld [vmem:[%s2] sm:$0xf]
        %v472 = vld [vmem:[%s2 + $0x4] sm:$0xf]
        %v473 = vld [vmem:[%s2 + $0x8] sm:$0xf]
        %v474 = vld [vmem:[%s2 + $0xc] sm:$0xf]
        %v475 = vld [vmem:[%s2 + $0x10] sm:$0xf]
        %v476 = vld [vmem:[%s2 + $0x14] sm:$0xf]
        %v477 = vld [vmem:[%s2 + $0x18] sm:$0xf]
        %v478 = vld [vmem:[%s2 + $0x1c] sm:$0xf]
        %v487 = vunpack.c.l.b16 %v471
        %v488 = vunpack.c.l.b16 %v472
        %v489 = vunpack.c.l.b16 %v473
        %v490 = vunpack.c.l.b16 %v474
        %v491 = vunpack.c.l.b16 %v475
        %v492 = vunpack.c.l.b16 %v476
        %v493 = vunpack.c.l.b16 %v477
        %v494 = vunpack.c.l.b16 %v478
        %v495 = vpack.c.b16 %v488, %v487
        %v496 = vpack.c.b16 %v490, %v489
        %v497 = vpack.c.b16 %v492, %v491
        %v498 = vpack.c.b16 %v494, %v493
        %vm503 = vcmask 523264
        %v505 = vsel %vm503, %v463, 0
        %v508 = vsel %vm503, %v464, 0
        %v511 = vsel %vm503, %v465, 0
        %v514 = vsel %vm503, %v466, 0
        %v517 = vsel %vm503, %v467, 0
        %v520 = vsel %vm503, %v468, 0
        %v523 = vsel %vm503, %v469, 0
        %v526 = vsel %vm503, %v470, 0
        %528 = vmatprep.subr.bf16.mxu0 0
        %529 = vmatpush1.bf16.msra.mxu0 0
        %530 = vmatprep.subr.bf16.mxu0 0
        %531 = vmatpush1.bf16.msra.mxu0 0
        %532 = vmatprep.subr.bf16.mxu0 0
        %533 = vmatpush1.bf16.msra.mxu0 0
        %534 = vmatprep.subr.bf16.mxu0 0
        %535 = vmatpush1.bf16.msra.mxu0 0
        %536 = vmatprep.subr.bf16.mxu0 0
        %537 = vmatpush1.bf16.msra.mxu0 %v498
        %538 = vmatprep.subr.bf16.mxu0 0
        %539 = vmatpush1.bf16.msra.mxu0 %v497
        %540 = vmatprep.subr.bf16.mxu0 0
        %541 = vmatpush1.bf16.msra.mxu0 %v496
        %542 = vmatprep.subr.bf16.mxu0 0
        %543 = vmatpush1.bf16.msra.mxu0 %v495
        %544 = vmatprep.subr.bf16.mxu0 0
        %545 = vmatpush2.bf16.msra.mxu0 0
        %546 = vmatprep.subr.bf16.mxu0 0
        %547 = vmatpush2.bf16.msra.mxu0 0
        %548 = vmatprep.subr.bf16.mxu0 0
        %549 = vmatpush2.bf16.msra.mxu0 0
        %550 = vmatprep.subr.bf16.mxu0 0
        %551 = vmatpush2.bf16.msra.mxu0 0
        %552 = vmatprep.subr.bf16.mxu0 0
        %553 = vmatpush2.bf16.msra.mxu0 0
        %554 = vmatprep.subr.bf16.mxu0 0
        %555 = vmatpush2.bf16.msra.mxu0 0
        %556 = vmatprep.subr.bf16.mxu0 0
        %557 = vmatpush2.bf16.msra.mxu0 0
        %558 = vmatprep.subr.bf16.mxu0 0
        %559 = vmatpush2.bf16.msra.mxu0 0
        %560 = vmatprep.mubr.bf16.mxu0 0
        %561 = vmatmul.mubr.bf16.gmra.mxu0 %v505
        %v562 = vpop.f32.mrf.mxu0
        %v563 = vadd.f32 0.0, %v562
        %v564 = vpop.f32.mrf.mxu0
        %v565 = vpop.f32.mrf.mxu0
        %v566 = vadd.f32 0.0, %v565
        %v567 = vpop.f32.mrf.mxu0
        %568 = vmatprep.mubr.bf16.mxu0 0
        %569 = vmatmul.mubr.bf16.gmra.mxu0 %v508
        %v570 = vpop.f32.mrf.mxu0
        %v571 = vadd.f32 0.0, %v570
        %v572 = vpop.f32.mrf.mxu0
        %v573 = vpop.f32.mrf.mxu0
        %v574 = vadd.f32 0.0, %v573
        %v575 = vpop.f32.mrf.mxu0
        %576 = vmatprep.mubr.bf16.mxu0 0
        %577 = vmatmul.mubr.bf16.gmra.mxu0 %v511
        %v578 = vpop.f32.mrf.mxu0
        %v579 = vadd.f32 0.0, %v578
        %v580 = vpop.f32.mrf.mxu0
        %v581 = vpop.f32.mrf.mxu0
        %v582 = vadd.f32 0.0, %v581
        %v583 = vpop.f32.mrf.mxu0
        %584 = vmatprep.mubr.bf16.mxu0 0
        %585 = vmatmul.mubr.bf16.gmra.mxu0 %v514
        %v586 = vpop.f32.mrf.mxu0
        %v587 = vadd.f32 0.0, %v586
        %v588 = vpop.f32.mrf.mxu0
        %v589 = vpop.f32.mrf.mxu0
        %v590 = vadd.f32 0.0, %v589
        %v591 = vpop.f32.mrf.mxu0
        %592 = vmatprep.mubr.bf16.mxu0 0
        %593 = vmatmul.mubr.bf16.gmra.mxu0 %v517
        %v594 = vpop.f32.mrf.mxu0
        %v595 = vadd.f32 0.0, %v594
        %v596 = vpop.f32.mrf.mxu0
        %v597 = vpop.f32.mrf.mxu0
        %v598 = vadd.f32 0.0, %v597
        %v599 = vpop.f32.mrf.mxu0
        %600 = vmatprep.mubr.bf16.mxu0 0
        %601 = vmatmul.mubr.bf16.gmra.mxu0 %v520
        %v602 = vpop.f32.mrf.mxu0
        %v603 = vadd.f32 0.0, %v602
        %v604 = vpop.f32.mrf.mxu0
        %v605 = vpop.f32.mrf.mxu0
        %v606 = vadd.f32 0.0, %v605
        %v607 = vpop.f32.mrf.mxu0
        %608 = vmatprep.mubr.bf16.mxu0 0
        %609 = vmatmul.mubr.bf16.gmra.mxu0 %v523
        %v610 = vpop.f32.mrf.mxu0
        %v611 = vadd.f32 0.0, %v610
        %v612 = vpop.f32.mrf.mxu0
        %v613 = vpop.f32.mrf.mxu0
        %v614 = vadd.f32 0.0, %v613
        %v615 = vpop.f32.mrf.mxu0
        %616 = vmatprep.mubr.bf16.mxu0 0
        %617 = vmatmul.mubr.bf16.gmra.mxu0 %v526
        %v618 = vpop.f32.mrf.mxu0
        %v619 = vadd.f32 0.0, %v618
        %v620 = vpop.f32.mrf.mxu0
        %v621 = vpop.f32.mrf.mxu0
        %v622 = vadd.f32 0.0, %v621
        %v623 = vpop.f32.mrf.mxu0
        %624 = vdwg.mxu0
        %vm625 = vcmask 15360
        %626 = vst.msk [vmem:[%s268] sm:$0xff] %vm625, %v563
        %627 = vst.msk [vmem:[%s268 + $0x8] sm:$0xff] %vm625, %v566
        %628 = vst.msk [vmem:[%s268 + $0x10] sm:$0xff] %vm625, %v571
        %629 = vst.msk [vmem:[%s268 + $0x18] sm:$0xff] %vm625, %v574
        %630 = vst.msk [vmem:[%s268 + $0x20] sm:$0xff] %vm625, %v579
        %631 = vst.msk [vmem:[%s268 + $0x28] sm:$0xff] %vm625, %v582
        %632 = vst.msk [vmem:[%s268 + $0x30] sm:$0xff] %vm625, %v587
        %633 = vst.msk [vmem:[%s268 + $0x38] sm:$0xff] %vm625, %v590
        %634 = vst.msk [vmem:[%s268 + $0x40] sm:$0xff] %vm625, %v595
        %635 = vst.msk [vmem:[%s268 + $0x48] sm:$0xff] %vm625, %v598
        %636 = vst.msk [vmem:[%s268 + $0x50] sm:$0xff] %vm625, %v603
        %637 = vst.msk [vmem:[%s268 + $0x58] sm:$0xff] %vm625, %v606
        %638 = vst.msk [vmem:[%s268 + $0x60] sm:$0xff] %vm625, %v611
        %639 = vst.msk [vmem:[%s268 + $0x68] sm:$0xff] %vm625, %v614
        %640 = vst.msk [vmem:[%s268 + $0x70] sm:$0xff] %vm625, %v619
        %641 = vst.msk [vmem:[%s268 + $0x78] sm:$0xff] %vm625, %v622
        %v642 = vld [vmem:[%s3] sm:$0xf]
        %v643 = vld [vmem:[%s3 + $0x4] sm:$0xf]
        %v644 = vld [vmem:[%s3 + $0x8] sm:$0xf]
        %v645 = vld [vmem:[%s3 + $0xc] sm:$0xf]
        %v646 = vld [vmem:[%s3 + $0x10] sm:$0xf]
        %v647 = vld [vmem:[%s3 + $0x14] sm:$0xf]
        %v648 = vld [vmem:[%s3 + $0x18] sm:$0xf]
        %v649 = vld [vmem:[%s3 + $0x1c] sm:$0xf]
        %v658 = vunpack.c.l.b16 %v642
        %v659 = vunpack.c.l.b16 %v643
        %v660 = vunpack.c.l.b16 %v644
        %v661 = vunpack.c.l.b16 %v645
        %v662 = vunpack.c.l.b16 %v646
        %v663 = vunpack.c.l.b16 %v647
        %v664 = vunpack.c.l.b16 %v648
        %v665 = vunpack.c.l.b16 %v649
        %v666 = vpack.c.b16 %v659, %v658
        %v667 = vpack.c.b16 %v661, %v660
        %v668 = vpack.c.b16 %v663, %v662
        %v669 = vpack.c.b16 %v665, %v664
        %674 = vmatprep.subr.bf16.mxu0 0
        %675 = vmatpush1.bf16.msra.mxu0 0
        %676 = vmatprep.subr.bf16.mxu0 0
        %677 = vmatpush1.bf16.msra.mxu0 0
        %678 = vmatprep.subr.bf16.mxu0 0
        %679 = vmatpush1.bf16.msra.mxu0 0
        %680 = vmatprep.subr.bf16.mxu0 0
        %681 = vmatpush1.bf16.msra.mxu0 0
        %682 = vmatprep.subr.bf16.mxu0 0
        %683 = vmatpush1.bf16.msra.mxu0 %v669
        %684 = vmatprep.subr.bf16.mxu0 0
        %685 = vmatpush1.bf16.msra.mxu0 %v668
        %686 = vmatprep.subr.bf16.mxu0 0
        %687 = vmatpush1.bf16.msra.mxu0 %v667
        %688 = vmatprep.subr.bf16.mxu0 0
        %689 = vmatpush1.bf16.msra.mxu0 %v666
        %690 = vmatprep.subr.bf16.mxu0 0
        %691 = vmatpush2.bf16.msra.mxu0 0
        %692 = vmatprep.subr.bf16.mxu0 0
        %693 = vmatpush2.bf16.msra.mxu0 0
        %694 = vmatprep.subr.bf16.mxu0 0
        %695 = vmatpush2.bf16.msra.mxu0 0
        %696 = vmatprep.subr.bf16.mxu0 0
        %697 = vmatpush2.bf16.msra.mxu0 0
        %698 = vmatprep.subr.bf16.mxu0 0
        %699 = vmatpush2.bf16.msra.mxu0 0
        %700 = vmatprep.subr.bf16.mxu0 0
        %701 = vmatpush2.bf16.msra.mxu0 0
        %702 = vmatprep.subr.bf16.mxu0 0
        %703 = vmatpush2.bf16.msra.mxu0 0
        %704 = vmatprep.subr.bf16.mxu0 0
        %705 = vmatpush2.bf16.msra.mxu0 0
        %706 = vmatprep.mubr.bf16.mxu0 0
        %707 = vmatmul.mubr.bf16.gmra.mxu0 %v505
        %v708 = vpop.f32.mrf.mxu0
        %v709 = vadd.f32 0.0, %v708
        %v710 = vpop.f32.mrf.mxu0
        %v711 = vpop.f32.mrf.mxu0
        %v712 = vadd.f32 0.0, %v711
        %v713 = vpop.f32.mrf.mxu0
        %714 = vmatprep.mubr.bf16.mxu0 0
        %715 = vmatmul.mubr.bf16.gmra.mxu0 %v508
        %v716 = vpop.f32.mrf.mxu0
        %v717 = vadd.f32 0.0, %v716
        %v718 = vpop.f32.mrf.mxu0
        %v719 = vpop.f32.mrf.mxu0
        %v720 = vadd.f32 0.0, %v719
        %v721 = vpop.f32.mrf.mxu0
        %722 = vmatprep.mubr.bf16.mxu0 0
        %723 = vmatmul.mubr.bf16.gmra.mxu0 %v511
        %v724 = vpop.f32.mrf.mxu0
        %v725 = vadd.f32 0.0, %v724
        %v726 = vpop.f32.mrf.mxu0
        %v727 = vpop.f32.mrf.mxu0
        %v728 = vadd.f32 0.0, %v727
        %v729 = vpop.f32.mrf.mxu0
        %730 = vmatprep.mubr.bf16.mxu0 0
        %731 = vmatmul.mubr.bf16.gmra.mxu0 %v514
        %v732 = vpop.f32.mrf.mxu0
        %v733 = vadd.f32 0.0, %v732
        %v734 = vpop.f32.mrf.mxu0
        %v735 = vpop.f32.mrf.mxu0
        %v736 = vadd.f32 0.0, %v735
        %v737 = vpop.f32.mrf.mxu0
        %738 = vmatprep.mubr.bf16.mxu0 0
        %739 = vmatmul.mubr.bf16.gmra.mxu0 %v517
        %v740 = vpop.f32.mrf.mxu0
        %v741 = vadd.f32 0.0, %v740
        %v742 = vpop.f32.mrf.mxu0
        %v743 = vpop.f32.mrf.mxu0
        %v744 = vadd.f32 0.0, %v743
        %v745 = vpop.f32.mrf.mxu0
        %746 = vmatprep.mubr.bf16.mxu0 0
        %747 = vmatmul.mubr.bf16.gmra.mxu0 %v520
        %v748 = vpop.f32.mrf.mxu0
        %v749 = vadd.f32 0.0, %v748
        %v750 = vpop.f32.mrf.mxu0
        %v751 = vpop.f32.mrf.mxu0
        %v752 = vadd.f32 0.0, %v751
        %v753 = vpop.f32.mrf.mxu0
        %754 = vmatprep.mubr.bf16.mxu0 0
        %755 = vmatmul.mubr.bf16.gmra.mxu0 %v523
        %v756 = vpop.f32.mrf.mxu0
        %v757 = vadd.f32 0.0, %v756
        %v758 = vpop.f32.mrf.mxu0
        %v759 = vpop.f32.mrf.mxu0
        %v760 = vadd.f32 0.0, %v759
        %v761 = vpop.f32.mrf.mxu0
        %762 = vmatprep.mubr.bf16.mxu0 0
        %763 = vmatmul.mubr.bf16.gmra.mxu0 %v526
        %v764 = vpop.f32.mrf.mxu0
        %v765 = vadd.f32 0.0, %v764
        %v766 = vpop.f32.mrf.mxu0
        %v767 = vpop.f32.mrf.mxu0
        %v768 = vadd.f32 0.0, %v767
        %v769 = vpop.f32.mrf.mxu0
        %770 = vdwg.mxu0
        %771 = vst.msk [vmem:[%s274] sm:$0xff] %vm625, %v709
        %772 = vst.msk [vmem:[%s274 + $0x8] sm:$0xff] %vm625, %v712
        %773 = vst.msk [vmem:[%s274 + $0x10] sm:$0xff] %vm625, %v717
        %774 = vst.msk [vmem:[%s274 + $0x18] sm:$0xff] %vm625, %v720
        %775 = vst.msk [vmem:[%s274 + $0x20] sm:$0xff] %vm625, %v725
        %776 = vst.msk [vmem:[%s274 + $0x28] sm:$0xff] %vm625, %v728
        %777 = vst.msk [vmem:[%s274 + $0x30] sm:$0xff] %vm625, %v733
        %778 = vst.msk [vmem:[%s274 + $0x38] sm:$0xff] %vm625, %v736
        %779 = vst.msk [vmem:[%s274 + $0x40] sm:$0xff] %vm625, %v741
        %780 = vst.msk [vmem:[%s274 + $0x48] sm:$0xff] %vm625, %v744
        %781 = vst.msk [vmem:[%s274 + $0x50] sm:$0xff] %vm625, %v749
        %782 = vst.msk [vmem:[%s274 + $0x58] sm:$0xff] %vm625, %v752
        %783 = vst.msk [vmem:[%s274 + $0x60] sm:$0xff] %vm625, %v757
        %784 = vst.msk [vmem:[%s274 + $0x68] sm:$0xff] %vm625, %v760
        %785 = vst.msk [vmem:[%s274 + $0x70] sm:$0xff] %vm625, %v765
        %786 = vst.msk [vmem:[%s274 + $0x78] sm:$0xff] %vm625, %v768
        %v795 = vunpack.c.l.b16 %v463
        %v796 = vunpack.c.h.b16 %v463
        %v797 = vunpack.c.l.b16 %v464
        %v798 = vunpack.c.h.b16 %v464
        %v799 = vunpack.c.l.b16 %v465
        %v800 = vunpack.c.h.b16 %v465
        %v801 = vunpack.c.l.b16 %v466
        %v802 = vunpack.c.h.b16 %v466
        %v803 = vunpack.c.l.b16 %v467
        %v804 = vunpack.c.h.b16 %v467
        %v805 = vunpack.c.l.b16 %v468
        %v806 = vunpack.c.h.b16 %v468
        %v807 = vunpack.c.l.b16 %v469
        %v808 = vunpack.c.h.b16 %v469
        %v809 = vunpack.c.l.b16 %v470
        %v810 = vunpack.c.h.b16 %v470
        %v811 = vpack.c.b16 %v795, %v795
        %v812 = vpack.c.b16 %v796, %v796
        %v813 = vpack.c.b16 %v797, %v797
        %v814 = vpack.c.b16 %v798, %v798
        %v815 = vpack.c.b16 %v799, %v799
        %v816 = vpack.c.b16 %v800, %v800
        %v817 = vpack.c.b16 %v801, %v801
        %v818 = vpack.c.b16 %v802, %v802
        %v819 = vpack.c.b16 %v803, %v803
        %v820 = vpack.c.b16 %v804, %v804
        %v821 = vpack.c.b16 %v805, %v805
        %v822 = vpack.c.b16 %v806, %v806
        %v823 = vpack.c.b16 %v807, %v807
        %v824 = vpack.c.b16 %v808, %v808
        %v825 = vpack.c.b16 %v809, %v809
        %v826 = vpack.c.b16 %v810, %v810
        %vm843 = vcmask 257024
        %844 = vst.msk [vmem:[%s242] sm:$0xf] %vm843, %v811
        %845 = vst.msk [vmem:[%s242 + $0x4] sm:$0xf] %vm843, %v812
        %846 = vst.msk [vmem:[%s242 + $0x8] sm:$0xf] %vm843, %v813
        %847 = vst.msk [vmem:[%s242 + $0xc] sm:$0xf] %vm843, %v814
        %848 = vst.msk [vmem:[%s242 + $0x10] sm:$0xf] %vm843, %v815
        %849 = vst.msk [vmem:[%s242 + $0x14] sm:$0xf] %vm843, %v816
        %850 = vst.msk [vmem:[%s242 + $0x18] sm:$0xf] %vm843, %v817
        %851 = vst.msk [vmem:[%s242 + $0x1c] sm:$0xf] %vm843, %v818
        %852 = vst.msk [vmem:[%s242 + $0x20] sm:$0xf] %vm843, %v819
        %853 = vst.msk [vmem:[%s242 + $0x24] sm:$0xf] %vm843, %v820
        %854 = vst.msk [vmem:[%s242 + $0x28] sm:$0xf] %vm843, %v821
        %855 = vst.msk [vmem:[%s242 + $0x2c] sm:$0xf] %vm843, %v822
        %856 = vst.msk [vmem:[%s242 + $0x30] sm:$0xf] %vm843, %v823
        %857 = vst.msk [vmem:[%s242 + $0x34] sm:$0xf] %vm843, %v824
        %858 = vst.msk [vmem:[%s242 + $0x38] sm:$0xf] %vm843, %v825
        %859 = vst.msk [vmem:[%s242 + $0x3c] sm:$0xf] %vm843, %v826
        %860 = vrot.lane.b32.xlu0 %v811, 96
        %v861 = vpop.permute.xlu0 %860
        %862 = vrot.lane.b32.xlu0 %v812, 96
        %v863 = vpop.permute.xlu0 %862
        %864 = vrot.lane.b32.xlu0 %v813, 96
        %v865 = vpop.permute.xlu0 %864
        %866 = vrot.lane.b32.xlu0 %v814, 96
        %v867 = vpop.permute.xlu0 %866
        %868 = vrot.lane.b32.xlu0 %v815, 96
        %v869 = vpop.permute.xlu0 %868
        %870 = vrot.lane.b32.xlu0 %v816, 96
        %v871 = vpop.permute.xlu0 %870
        %872 = vrot.lane.b32.xlu0 %v817, 96
        %v873 = vpop.permute.xlu0 %872
        %874 = vrot.lane.b32.xlu0 %v818, 96
        %v875 = vpop.permute.xlu0 %874
        %876 = vrot.lane.b32.xlu0 %v819, 96
        %v877 = vpop.permute.xlu0 %876
        %878 = vrot.lane.b32.xlu0 %v820, 96
        %v879 = vpop.permute.xlu0 %878
        %880 = vrot.lane.b32.xlu0 %v821, 96
        %v881 = vpop.permute.xlu0 %880
        %882 = vrot.lane.b32.xlu0 %v822, 96
        %v883 = vpop.permute.xlu0 %882
        %884 = vrot.lane.b32.xlu0 %v823, 96
        %v885 = vpop.permute.xlu0 %884
        %886 = vrot.lane.b32.xlu0 %v824, 96
        %v887 = vpop.permute.xlu0 %886
        %888 = vrot.lane.b32.xlu0 %v825, 96
        %v889 = vpop.permute.xlu0 %888
        %890 = vrot.lane.b32.xlu0 %v826, 96
        %v891 = vpop.permute.xlu0 %890
        %s908 = scalar_lea.vmem %s242, 64 [#allocation2]
        %909 = vst.msk [vmem:[%s908] sm:$0xf] %vm843, %v861
        %910 = vst.msk [vmem:[%s908 + $0x4] sm:$0xf] %vm843, %v863
        %911 = vst.msk [vmem:[%s908 + $0x8] sm:$0xf] %vm843, %v865
        %912 = vst.msk [vmem:[%s908 + $0xc] sm:$0xf] %vm843, %v867
        %913 = vst.msk [vmem:[%s908 + $0x10] sm:$0xf] %vm843, %v869
        %914 = vst.msk [vmem:[%s908 + $0x14] sm:$0xf] %vm843, %v871
        %915 = vst.msk [vmem:[%s908 + $0x18] sm:$0xf] %vm843, %v873
        %916 = vst.msk [vmem:[%s908 + $0x1c] sm:$0xf] %vm843, %v875
        %917 = vst.msk [vmem:[%s908 + $0x20] sm:$0xf] %vm843, %v877
        %918 = vst.msk [vmem:[%s908 + $0x24] sm:$0xf] %vm843, %v879
        %919 = vst.msk [vmem:[%s908 + $0x28] sm:$0xf] %vm843, %v881
        %920 = vst.msk [vmem:[%s908 + $0x2c] sm:$0xf] %vm843, %v883
        %921 = vst.msk [vmem:[%s908 + $0x30] sm:$0xf] %vm843, %v885
        %922 = vst.msk [vmem:[%s908 + $0x34] sm:$0xf] %vm843, %v887
        %923 = vst.msk [vmem:[%s908 + $0x38] sm:$0xf] %vm843, %v889
        %924 = vst.msk [vmem:[%s908 + $0x3c] sm:$0xf] %vm843, %v891
        %s925 = sand.u32 %s115, 1
        %s926 = sand.u32 %s115, 1
        %s927 = smul.addr %s926, 128
        %s928 = scalar_lea.vmem [#allocation2], %s927
        %s929 = smul.u32 16, %s18
        %p930 = scmp.lt.s32.totalorder %s929, 31
        %s931 = scalar_select %p930, %s929, 31
        %s932 = smul.addr %s931, 8
        %s933 = scalar_lea.vmem %s5, %s932
        %s934 = smul.u32 16, %s18
        %p935 = scmp.lt.s32.totalorder %s934, 31
        %s936 = scalar_select %p935, %s934, 31
        %s937 = smul.addr %s936, 8
        %s938 = scalar_lea.vmem %s6, %s937
        // Predicated region
        $region37: #{ugcn_forward.13} parent=35 // pred_check
          %p939 = pneg %p125
        $region38: #{ugcn_forward.13} parent=35 // pred_check_branch
          %941 = sbr.rel (%p939) target = $region40
        $region39: #{ugcn_forward.13} parent=35 // pred_region
          %s942 = smul.u32 16, %s18
          %s943 = smul.addr %s942, 4
          %s944 = scalar_lea.vmem %s4, %s943
          // Predicated region
          $region41: #{ugcn_forward.13} parent=39 // pred_check
            _
          $region42: #{ugcn_forward.13} parent=39 // pred_check_branch
            %946 = sbr.rel (0) target = $region44
          $region43: #{ugcn_forward.13} parent=39 // pred_region
            // Predicated region
            $region45: #{ugcn_forward.13} parent=43 // pred_check
              _
            $region46: #{ugcn_forward.13} parent=43 // pred_check_branch
              %948 = sbr.rel target = $region48
            $region47: #{ugcn_forward.13} parent=43 // pred_region
              // Predicated region
              $region60: #{ugcn_forward.13} parent=47 // pred_check
                _
              $region61: #{ugcn_forward.13} parent=47 // pred_check_branch
                %1026 = sbr.rel (0) target = $region63
              $region62: #{ugcn_forward.13} parent=47 // pred_region
                loop: start=0, step=1, limit=1
                $region64: #{ugcn_forward.13} parent=62 // loop_pre_header
                  _
                $region65: #{ugcn_forward.13} parent=62 // loop_header
                  %s1028 = sphi 0, %s1032
                  %p1029 = scmp.ge.s32.totalorder %s1028, 1
                  %s1033 = sphi %s928, %s928
                  %s1034 = sphi %s944, %s944
                $region66: #{ugcn_forward.13} parent=62 // loop_header_branch
                  %1031 = sbr.rel (%p1029) target = $region70
                $region67: #{ugcn_forward.13} parent=62 // loop_body
                  _
                $region68: #{ugcn_forward.13} parent=62 // loop_footer
                  %s1032 = sadd.s32 1, %s1028
                $region69: #{ugcn_forward.13} parent=62 // loop_footer_branch
                  %1027 = sbr.rel target = $region65
                $region70: #{ugcn_forward.13} parent=62 // loop_exit
                  _
                %s1036 = ssub.s32 16, 1
                loop: start=0, step=1, limit=1
                $region71: #{ugcn_forward.13} parent=62 // loop_pre_header
                  _
                $region72: #{ugcn_forward.13} parent=62 // loop_header
                  %s1038 = sphi 0, %s1042
                  %p1039 = scmp.ge.s32.totalorder %s1038, 1
                  %s1043 = sphi %s928, %s928
                  %s1044 = sphi %s944, %s944
                $region73: #{ugcn_forward.13} parent=62 // loop_header_branch
                  %1041 = sbr.rel (%p1039) target = $region77
                $region74: #{ugcn_forward.13} parent=62 // loop_body
                  %v1045 = vld [vmem:[%s1043] sm:%s1036]
                  %1046 = vst [vmem:[%s1044] sm:%s1036] %v1045
                  %v1047 = vld [vmem:[%s1043 + $0x4] sm:%s1036]
                  %1048 = vst [vmem:[%s1044 + $0x4] sm:%s1036] %v1047
                  %v1049 = vld [vmem:[%s1043 + $0x8] sm:%s1036]
                  %1050 = vst [vmem:[%s1044 + $0x8] sm:%s1036] %v1049
                  %v1051 = vld [vmem:[%s1043 + $0xc] sm:%s1036]
                  %1052 = vst [vmem:[%s1044 + $0xc] sm:%s1036] %v1051
                  %v1053 = vld [vmem:[%s1043 + $0x10] sm:%s1036]
                  %1054 = vst [vmem:[%s1044 + $0x10] sm:%s1036] %v1053
                  %v1055 = vld [vmem:[%s1043 + $0x14] sm:%s1036]
                  %1056 = vst [vmem:[%s1044 + $0x14] sm:%s1036] %v1055
                  %v1057 = vld [vmem:[%s1043 + $0x18] sm:%s1036]
                  %1058 = vst [vmem:[%s1044 + $0x18] sm:%s1036] %v1057
                  %v1059 = vld [vmem:[%s1043 + $0x1c] sm:%s1036]
                  %1060 = vst [vmem:[%s1044 + $0x1c] sm:%s1036] %v1059
                  %v1061 = vld [vmem:[%s1043 + $0x20] sm:%s1036]
                  %1062 = vst [vmem:[%s1044 + $0x20] sm:%s1036] %v1061
                  %v1063 = vld [vmem:[%s1043 + $0x24] sm:%s1036]
                  %1064 = vst [vmem:[%s1044 + $0x24] sm:%s1036] %v1063
                  %v1065 = vld [vmem:[%s1043 + $0x28] sm:%s1036]
                  %1066 = vst [vmem:[%s1044 + $0x28] sm:%s1036] %v1065
                  %v1067 = vld [vmem:[%s1043 + $0x2c] sm:%s1036]
                  %1068 = vst [vmem:[%s1044 + $0x2c] sm:%s1036] %v1067
                  %v1069 = vld [vmem:[%s1043 + $0x30] sm:%s1036]
                  %1070 = vst [vmem:[%s1044 + $0x30] sm:%s1036] %v1069
                  %v1071 = vld [vmem:[%s1043 + $0x34] sm:%s1036]
                  %1072 = vst [vmem:[%s1044 + $0x34] sm:%s1036] %v1071
                  %v1073 = vld [vmem:[%s1043 + $0x38] sm:%s1036]
                  %1074 = vst [vmem:[%s1044 + $0x38] sm:%s1036] %v1073
                  %v1075 = vld [vmem:[%s1043 + $0x3c] sm:%s1036]
                  %1076 = vst [vmem:[%s1044 + $0x3c] sm:%s1036] %v1075
                  %v1077 = vld [vmem:[%s1043 + $0x40] sm:%s1036]
                  %1078 = vst [vmem:[%s1044 + $0x80] sm:%s1036] %v1077
                  %v1079 = vld [vmem:[%s1043 + $0x44] sm:%s1036]
                  %1080 = vst [vmem:[%s1044 + $0x84] sm:%s1036] %v1079
                  %v1081 = vld [vmem:[%s1043 + $0x48] sm:%s1036]
                  %1082 = vst [vmem:[%s1044 + $0x88] sm:%s1036] %v1081
                  %v1083 = vld [vmem:[%s1043 + $0x4c] sm:%s1036]
                  %1084 = vst [vmem:[%s1044 + $0x8c] sm:%s1036] %v1083
                  %v1085 = vld [vmem:[%s1043 + $0x50] sm:%s1036]
                  %1086 = vst [vmem:[%s1044 + $0x90] sm:%s1036] %v1085
                  %v1087 = vld [vmem:[%s1043 + $0x54] sm:%s1036]
                  %1088 = vst [vmem:[%s1044 + $0x94] sm:%s1036] %v1087
                  %v1089 = vld [vmem:[%s1043 + $0x58] sm:%s1036]
                  %1090 = vst [vmem:[%s1044 + $0x98] sm:%s1036] %v1089
                  %v1091 = vld [vmem:[%s1043 + $0x5c] sm:%s1036]
                  %1092 = vst [vmem:[%s1044 + $0x9c] sm:%s1036] %v1091
                  %v1093 = vld [vmem:[%s1043 + $0x60] sm:%s1036]
                  %1094 = vst [vmem:[%s1044 + $0xa0] sm:%s1036] %v1093
                  %v1095 = vld [vmem:[%s1043 + $0x64] sm:%s1036]
                  %1096 = vst [vmem:[%s1044 + $0xa4] sm:%s1036] %v1095
                  %v1097 = vld [vmem:[%s1043 + $0x68] sm:%s1036]
                  %1098 = vst [vmem:[%s1044 + $0xa8] sm:%s1036] %v1097
                  %v1099 = vld [vmem:[%s1043 + $0x6c] sm:%s1036]
                  %1100 = vst [vmem:[%s1044 + $0xac] sm:%s1036] %v1099
                  %v1101 = vld [vmem:[%s1043 + $0x70] sm:%s1036]
                  %1102 = vst [vmem:[%s1044 + $0xb0] sm:%s1036] %v1101
                  %v1103 = vld [vmem:[%s1043 + $0x74] sm:%s1036]
                  %1104 = vst [vmem:[%s1044 + $0xb4] sm:%s1036] %v1103
                  %v1105 = vld [vmem:[%s1043 + $0x78] sm:%s1036]
                  %1106 = vst [vmem:[%s1044 + $0xb8] sm:%s1036] %v1105
                  %v1107 = vld [vmem:[%s1043 + $0x7c] sm:%s1036]
                  %1108 = vst [vmem:[%s1044 + $0xbc] sm:%s1036] %v1107
                $region75: #{ugcn_forward.13} parent=62 // loop_footer
                  %s1042 = sadd.s32 1, %s1038
                $region76: #{ugcn_forward.13} parent=62 // loop_footer_branch
                  %1037 = sbr.rel target = $region72
                $region77: #{ugcn_forward.13} parent=62 // loop_exit
                  _
              $region63: #{ugcn_forward.13} parent=47 // pred_fallthru
                _
            $region48: #{ugcn_forward.13} parent=43 // pred_fallthru
              _
            // Predicated region
            $region49: #{ugcn_forward.13} parent=43 // pred_check
              _
            $region50: #{ugcn_forward.13} parent=43 // pred_check_branch
              %950 = sbr.rel (0) target = $region52
            $region51: #{ugcn_forward.13} parent=43 // pred_region
              %s952 = ssub.s32 16, 1
              loop: start=0, step=1, limit=1
              $region53: #{ugcn_forward.13} parent=51 // loop_pre_header
                _
              $region54: #{ugcn_forward.13} parent=51 // loop_header
                %s954 = sphi 0, %s958
                %p955 = scmp.ge.s32.totalorder %s954, 1
                %s959 = sphi %s928, %s928
                %s960 = sphi %s944, %s944
              $region55: #{ugcn_forward.13} parent=51 // loop_header_branch
                %957 = sbr.rel (%p955) target = $region59
              $region56: #{ugcn_forward.13} parent=51 // loop_body
                %v961 = vld [vmem:[%s959] sm:%s952]
                %962 = vst [vmem:[%s960] sm:%s952] %v961
                %v963 = vld [vmem:[%s959 + $0x4] sm:%s952]
                %964 = vst [vmem:[%s960 + $0x4] sm:%s952] %v963
                %v965 = vld [vmem:[%s959 + $0x8] sm:%s952]
                %966 = vst [vmem:[%s960 + $0x8] sm:%s952] %v965
                %v967 = vld [vmem:[%s959 + $0xc] sm:%s952]
                %968 = vst [vmem:[%s960 + $0xc] sm:%s952] %v967
                %v969 = vld [vmem:[%s959 + $0x10] sm:%s952]
                %970 = vst [vmem:[%s960 + $0x10] sm:%s952] %v969
                %v971 = vld [vmem:[%s959 + $0x14] sm:%s952]
                %972 = vst [vmem:[%s960 + $0x14] sm:%s952] %v971
                %v973 = vld [vmem:[%s959 + $0x18] sm:%s952]
                %974 = vst [vmem:[%s960 + $0x18] sm:%s952] %v973
                %v975 = vld [vmem:[%s959 + $0x1c] sm:%s952]
                %976 = vst [vmem:[%s960 + $0x1c] sm:%s952] %v975
                %v977 = vld [vmem:[%s959 + $0x20] sm:%s952]
                %978 = vst [vmem:[%s960 + $0x20] sm:%s952] %v977
                %v979 = vld [vmem:[%s959 + $0x24] sm:%s952]
                %980 = vst [vmem:[%s960 + $0x24] sm:%s952] %v979
                %v981 = vld [vmem:[%s959 + $0x28] sm:%s952]
                %982 = vst [vmem:[%s960 + $0x28] sm:%s952] %v981
                %v983 = vld [vmem:[%s959 + $0x2c] sm:%s952]
                %984 = vst [vmem:[%s960 + $0x2c] sm:%s952] %v983
                %v985 = vld [vmem:[%s959 + $0x30] sm:%s952]
                %986 = vst [vmem:[%s960 + $0x30] sm:%s952] %v985
                %v987 = vld [vmem:[%s959 + $0x34] sm:%s952]
                %988 = vst [vmem:[%s960 + $0x34] sm:%s952] %v987
                %v989 = vld [vmem:[%s959 + $0x38] sm:%s952]
                %990 = vst [vmem:[%s960 + $0x38] sm:%s952] %v989
                %v991 = vld [vmem:[%s959 + $0x3c] sm:%s952]
                %992 = vst [vmem:[%s960 + $0x3c] sm:%s952] %v991
                %v993 = vld [vmem:[%s959 + $0x40] sm:%s952]
                %994 = vst [vmem:[%s960 + $0x80] sm:%s952] %v993
                %v995 = vld [vmem:[%s959 + $0x44] sm:%s952]
                %996 = vst [vmem:[%s960 + $0x84] sm:%s952] %v995
                %v997 = vld [vmem:[%s959 + $0x48] sm:%s952]
                %998 = vst [vmem:[%s960 + $0x88] sm:%s952] %v997
                %v999 = vld [vmem:[%s959 + $0x4c] sm:%s952]
                %1000 = vst [vmem:[%s960 + $0x8c] sm:%s952] %v999
                %v1001 = vld [vmem:[%s959 + $0x50] sm:%s952]
                %1002 = vst [vmem:[%s960 + $0x90] sm:%s952] %v1001
                %v1003 = vld [vmem:[%s959 + $0x54] sm:%s952]
                %1004 = vst [vmem:[%s960 + $0x94] sm:%s952] %v1003
                %v1005 = vld [vmem:[%s959 + $0x58] sm:%s952]
                %1006 = vst [vmem:[%s960 + $0x98] sm:%s952] %v1005
                %v1007 = vld [vmem:[%s959 + $0x5c] sm:%s952]
                %1008 = vst [vmem:[%s960 + $0x9c] sm:%s952] %v1007
                %v1009 = vld [vmem:[%s959 + $0x60] sm:%s952]
                %1010 = vst [vmem:[%s960 + $0xa0] sm:%s952] %v1009
                %v1011 = vld [vmem:[%s959 + $0x64] sm:%s952]
                %1012 = vst [vmem:[%s960 + $0xa4] sm:%s952] %v1011
                %v1013 = vld [vmem:[%s959 + $0x68] sm:%s952]
                %1014 = vst [vmem:[%s960 + $0xa8] sm:%s952] %v1013
                %v1015 = vld [vmem:[%s959 + $0x6c] sm:%s952]
                %1016 = vst [vmem:[%s960 + $0xac] sm:%s952] %v1015
                %v1017 = vld [vmem:[%s959 + $0x70] sm:%s952]
                %1018 = vst [vmem:[%s960 + $0xb0] sm:%s952] %v1017
                %v1019 = vld [vmem:[%s959 + $0x74] sm:%s952]
                %1020 = vst [vmem:[%s960 + $0xb4] sm:%s952] %v1019
                %v1021 = vld [vmem:[%s959 + $0x78] sm:%s952]
                %1022 = vst [vmem:[%s960 + $0xb8] sm:%s952] %v1021
                %v1023 = vld [vmem:[%s959 + $0x7c] sm:%s952]
                %1024 = vst [vmem:[%s960 + $0xbc] sm:%s952] %v1023
              $region57: #{ugcn_forward.13} parent=51 // loop_footer
                %s958 = sadd.s32 1, %s954
              $region58: #{ugcn_forward.13} parent=51 // loop_footer_branch
                %953 = sbr.rel target = $region54
              $region59: #{ugcn_forward.13} parent=51 // loop_exit
                _
            $region52: #{ugcn_forward.13} parent=43 // pred_fallthru
              _
          $region44: #{ugcn_forward.13} parent=39 // pred_fallthru
            _
          %1109 = vnop
        $region40: #{ugcn_forward.13} parent=35 // pred_fallthru
          _
        // Predicated region
        $region78: #{ugcn_forward.13} parent=35 // pred_check
          %p1110 = pneg %p151
        $region79: #{ugcn_forward.13} parent=35 // pred_check_branch
          %1112 = sbr.rel (%p1110) target = $region81
        $region80: #{ugcn_forward.13} parent=35 // pred_region
          %s1113 = smul.u32 16, %s18
        $region81: #{ugcn_forward.13} parent=35 // pred_fallthru
          _
        // Predicated region
        $region82: #{ugcn_forward.13} parent=35 // pred_check
          %p1114 = pneg %p177
        $region83: #{ugcn_forward.13} parent=35 // pred_check_branch
          %1116 = sbr.rel (%p1114) target = $region85
        $region84: #{ugcn_forward.13} parent=35 // pred_region
          %s1117 = smul.u32 16, %s18
        $region85: #{ugcn_forward.13} parent=35 // pred_fallthru
          _
      $region36: #{ugcn_forward.13} parent=5 // pred_fallthru
        _
      %p1118 = scmp.le.s32.totalorder 2, %s13
      // Predicated region
      $region86: #{ugcn_forward.13} parent=5 // pred_check
        %p1119 = pneg %p1118
      $region87: #{ugcn_forward.13} parent=5 // pred_check_branch
        %1121 = sbr.rel (%p1119) target = $region89
      $region88: #{ugcn_forward.13} parent=5 // pred_region
        %s1122 = ssub.s32 %s13, 2
        // Predicated region
        $region90: #{ugcn_forward.13} parent=88 // pred_check
          %p1123 = pneg %p131
        $region91: #{ugcn_forward.13} parent=88 // pred_check_branch
          %1125 = sbr.rel (%p1123) target = $region93
        $region92: #{ugcn_forward.13} parent=88 // pred_region
          %s1126 = sand.u32 %s116, 1
          %s1127 = sand.u32 %s116, 1
          %s1128 = smul.addr %s1127, 128
          %s1129 = scalar_lea.vmem [#allocation2], %s1128
        $region93: #{ugcn_forward.13} parent=88 // pred_fallthru
          _
        // Predicated region
        $region94: #{ugcn_forward.13} parent=88 // pred_check
          %p1130 = pneg %p157
        $region95: #{ugcn_forward.13} parent=88 // pred_check_branch
          %1132 = sbr.rel (%p1130) target = $region97
        $region96: #{ugcn_forward.13} parent=88 // pred_region
          %s1133 = smul.u32 16, %s19
          %p1134 = scmp.lt.s32.totalorder %s1133, 31
          %s1135 = scalar_select %p1134, %s1133, 31
          %s1136 = smul.addr %s1135, 8
          %s1137 = scalar_lea.vmem %s5, %s1136
        $region97: #{ugcn_forward.13} parent=88 // pred_fallthru
          _
        // Predicated region
        $region98: #{ugcn_forward.13} parent=88 // pred_check
          %p1138 = pneg %p183
        $region99: #{ugcn_forward.13} parent=88 // pred_check_branch
          %1140 = sbr.rel (%p1138) target = $region101
        $region100: #{ugcn_forward.13} parent=88 // pred_region
          %s1141 = smul.u32 16, %s19
          %p1142 = scmp.lt.s32.totalorder %s1141, 31
          %s1143 = scalar_select %p1142, %s1141, 31
          %s1144 = smul.addr %s1143, 8
          %s1145 = scalar_lea.vmem %s6, %s1144
        $region101: #{ugcn_forward.13} parent=88 // pred_fallthru
          _
      $region89: #{ugcn_forward.13} parent=5 // pred_fallthru
        _
    $region6: #{ugcn_forward.13} parent=1 // loop_footer
      %s17 = sadd.s32 1, %s13
    $region7: #{ugcn_forward.13} parent=1 // loop_footer_branch
      %12 = sbr.rel target = $region3
    $region8: #{ugcn_forward.13} parent=1 // loop_exit
      _

// kernel: ugcn_forward.15
$region0: #{ugcn_forward.15}
  #allocation0 [shape = 'u32[]', space=smem, size = 0x4, offset = 0x4, fixed_abs, tag = 'smem constant byte address 0x4 - core index']
  #allocation1 [shape = 'u32[144,128]{1,0:T(1,128)}', space=vmem, size = 0x12000, scoped, tag = 'internal scratch']
  %s0 = inlined_call_operand.vmem [shape: bf16[256,32], index: 0, kind: input, shape index: {}]
  %s1 = inlined_call_operand.vmem [shape: bf16[32,16], index: 1, kind: input, shape index: {}]
  %s2 = inlined_call_operand.vmem [shape: bf16[16,2], index: 2, kind: input, shape index: {}]
  %s3 = inlined_call_operand.vmem [shape: bf16[16,2], index: 3, kind: input, shape index: {}]
  %s4 = inlined_call_operand.vmem [shape: bf16[2,256,8], index: 4, kind: output, shape index: {0}]
  %s5 = inlined_call_operand.vmem [shape: f32[256,2], index: 5, kind: output, shape index: {1}]
  %s6 = inlined_call_operand.vmem [shape: f32[256,2], index: 6, kind: output, shape index: {2}]
  %7 = xla_tuple %s4, %s5, %s6
  %s8 = sld [smem:[#allocation0]]
  $region102: #{ugcn_forward.15} parent=0
    _
  %s10 = ssub.s32 1, %s8
  %s11 = scalar_select 0, %s10, %s8
  $region1: #{ugcn_forward.15} parent=0
    #allocation2 [shape = 'u8[131072]{0}', space=vmem, size = 0x20000, scoped, tag = 'output window, operand 0']
    loop: start=0, step=1, limit=4
    $region2: #{ugcn_forward.15} parent=1 // loop_pre_header
      _
    $region3: #{ugcn_forward.15} parent=1 // loop_header
      %s13 = sphi 0, %s17
      %p14 = scmp.ge.s32.totalorder %s13, 4
      %s23 = sphi 0, %s25
      %s26 = sphi 0, %s23
      %s27 = sphi 0, %s26
      %s43 = sphi 0, %s27
      %s47 = sphi 0, %s47
      %s49 = sphi 0, %s47
      %s50 = sphi 0, %s49
      %s64 = sphi 0, %s50
      %s68 = sphi 0, %s68
      %s70 = sphi 0, %s68
      %s71 = sphi 0, %s70
      %s85 = sphi 0, %s71
      %s89 = sphi 0, %s89
      %s91 = sphi 0, %s89
      %s92 = sphi 0, %s91
      %s106 = sphi 0, %s92
      %s112 = sphi 0, %s114
      %s115 = sphi 0, %s112
      %s116 = sphi 0, %s115
      %s132 = sphi 0, %s116
      %s138 = sphi 0, %s140
      %s141 = sphi 0, %s138
      %s142 = sphi 0, %s141
      %s158 = sphi 0, %s142
      %s164 = sphi 0, %s166
      %s167 = sphi 0, %s164
      %s168 = sphi 0, %s167
      %s184 = sphi 0, %s168
    $region4: #{ugcn_forward.15} parent=1 // loop_header_branch
      %16 = sbr.rel (%p14) target = $region8
    $region5: #{ugcn_forward.15} parent=1 // loop_body
      %s18 = ssub.s32 %s13, 1
      %s19 = ssub.s32 %s13, 2
      %s20 = sadd.s32 %s13, 1
      %s21 = ssub.s32 %s13, %s20
      %p22 = scmp.eq.s32.totalorder %s21, 0
      %s24 = sadd.s32 %s23, 1
      %s25 = scalar_select %p22, %s23, %s24
      %p28 = pneg %p22
      %p29 = scmp.eq.s32.totalorder %s13, 1
      %p30 = por %p28, %p29
      %p31 = scmp.ne.s32.totalorder %s23, %s26
      %p32 = scmp.eq.s32.totalorder %s13, 0
      %p33 = por %p31, %p32
      %p34 = scmp.ne.s32.totalorder %s23, %s26
      %p35 = scmp.eq.s32.totalorder %s18, 1
      %p36 = por %p34, %p35
      %p37 = scmp.ne.s32.totalorder %s26, %s27
      %p38 = scmp.eq.s32.totalorder %s18, 0
      %p39 = por %p37, %p38
      %p40 = scmp.ne.s32.totalorder %s26, %s27
      %p41 = scmp.eq.s32.totalorder %s19, 1
      %p42 = por %p40, %p41
      %p44 = scmp.ne.s32.totalorder %s27, %s43
      %p45 = scmp.eq.s32.totalorder %s19, 0
      %p46 = por %p44, %p45
      %s48 = sadd.s32 %s47, 1
      %p51 = scmp.eq.s32.totalorder %s13, 1
      %p52 = scmp.ne.s32.totalorder %s47, %s49
      %p53 = scmp.eq.s32.totalorder %s13, 0
      %p54 = por %p52, %p53
      %p55 = scmp.ne.s32.totalorder %s47, %s49
      %p56 = scmp.eq.s32.totalorder %s18, 1
      %p57 = por %p55, %p56
      %p58 = scmp.ne.s32.totalorder %s49, %s50
      %p59 = scmp.eq.s32.totalorder %s18, 0
      %p60 = por %p58, %p59
      %p61 = scmp.ne.s32.totalorder %s49, %s50
      %p62 = scmp.eq.s32.totalorder %s19, 1
      %p63 = por %p61, %p62
      %p65 = scmp.ne.s32.totalorder %s50, %s64
      %p66 = scmp.eq.s32.totalorder %s19, 0
      %p67 = por %p65, %p66
      %s69 = sadd.s32 %s68, 1
      %p72 = scmp.eq.s32.totalorder %s13, 1
      %p73 = scmp.ne.s32.totalorder %s68, %s70
      %p74 = scmp.eq.s32.totalorder %s13, 0
      %p75 = por %p73, %p74
      %p76 = scmp.ne.s32.totalorder %s68, %s70
      %p77 = scmp.eq.s32.totalorder %s18, 1
      %p78 = por %p76, %p77
      %p79 = scmp.ne.s32.totalorder %s70, %s71
      %p80 = scmp.eq.s32.totalorder %s18, 0
      %p81 = por %p79, %p80
      %p82 = scmp.ne.s32.totalorder %s70, %s71
      %p83 = scmp.eq.s32.totalorder %s19, 1
      %p84 = por %p82, %p83
      %p86 = scmp.ne.s32.totalorder %s71, %s85
      %p87 = scmp.eq.s32.totalorder %s19, 0
      %p88 = por %p86, %p87
      %s90 = sadd.s32 %s89, 1
      %p93 = scmp.eq.s32.totalorder %s13, 1
      %p94 = scmp.ne.s32.totalorder %s89, %s91
      %p95 = scmp.eq.s32.totalorder %s13, 0
      %p96 = por %p94, %p95
      %p97 = scmp.ne.s32.totalorder %s89, %s91
      %p98 = scmp.eq.s32.totalorder %s18, 1
      %p99 = por %p97, %p98
      %p100 = scmp.ne.s32.totalorder %s91, %s92
      %p101 = scmp.eq.s32.totalorder %s18, 0
      %p102 = por %p100, %p101
      %p103 = scmp.ne.s32.totalorder %s91, %s92
      %p104 = scmp.eq.s32.totalorder %s19, 1
      %p105 = por %p103, %p104
      %p107 = scmp.ne.s32.totalorder %s92, %s106
      %p108 = scmp.eq.s32.totalorder %s19, 0
      %p109 = por %p107, %p108
      %s110 = ssub.s32 %s13, %s20
      %p111 = scmp.eq.s32.totalorder %s110, 0
      %s113 = sadd.s32 %s112, 1
      %s114 = scalar_select %p111, %s112, %s113
      %p117 = pneg %p111
      %p118 = scmp.eq.s32.totalorder %s13, 1
      %p119 = por %p117, %p118
      %p120 = scmp.ne.s32.totalorder %s112, %s115
      %p121 = scmp.eq.s32.totalorder %s13, 0
      %p122 = por %p120, %p121
      %p123 = scmp.ne.s32.totalorder %s112, %s115
      %p124 = scmp.eq.s32.totalorder %s18, 1
      %p125 = por %p123, %p124
      %p126 = scmp.ne.s32.totalorder %s115, %s116
      %p127 = scmp.eq.s32.totalorder %s18, 0
      %p128 = por %p126, %p127
      %p129 = scmp.ne.s32.totalorder %s115, %s116
      %p130 = scmp.eq.s32.totalorder %s19, 1
      %p131 = por %p129, %p130
      %p133 = scmp.ne.s32.totalorder %s116, %s132
      %p134 = scmp.eq.s32.totalorder %s19, 0
      %p135 = por %p133, %p134
      %s136 = ssub.s32 %s13, %s20
      %p137 = scmp.eq.s32.totalorder %s136, 0
      %s139 = sadd.s32 %s138, 1
      %s140 = scalar_select %p137, %s138, %s139
      %p143 = pneg %p137
      %p144 = scmp.eq.s32.totalorder %s13, 1
      %p145 = por %p143, %p144
      %p146 = scmp.ne.s32.totalorder %s138, %s141
      %p147 = scmp.eq.s32.totalorder %s13, 0
      %p148 = por %p146, %p147
      %p149 = scmp.ne.s32.totalorder %s138, %s141
      %p150 = scmp.eq.s32.totalorder %s18, 1
      %p151 = por %p149, %p150
      %p152 = scmp.ne.s32.totalorder %s141, %s142
      %p153 = scmp.eq.s32.totalorder %s18, 0
      %p154 = por %p152, %p153
      %p155 = scmp.ne.s32.totalorder %s141, %s142
      %p156 = scmp.eq.s32.totalorder %s19, 1
      %p157 = por %p155, %p156
      %p159 = scmp.ne.s32.totalorder %s142, %s158
      %p160 = scmp.eq.s32.totalorder %s19, 0
      %p161 = por %p159, %p160
      %s162 = ssub.s32 %s13, %s20
      %p163 = scmp.eq.s32.totalorder %s162, 0
      %s165 = sadd.s32 %s164, 1
      %s166 = scalar_select %p163, %s164, %s165
      %p169 = pneg %p163
      %p170 = scmp.eq.s32.totalorder %s13, 1
      %p171 = por %p169, %p170
      %p172 = scmp.ne.s32.totalorder %s164, %s167
      %p173 = scmp.eq.s32.totalorder %s13, 0
      %p174 = por %p172, %p173
      %p175 = scmp.ne.s32.totalorder %s164, %s167
      %p176 = scmp.eq.s32.totalorder %s18, 1
      %p177 = por %p175, %p176
      %p178 = scmp.ne.s32.totalorder %s167, %s168
      %p179 = scmp.eq.s32.totalorder %s18, 0
      %p180 = por %p178, %p179
      %p181 = scmp.ne.s32.totalorder %s167, %s168
      %p182 = scmp.eq.s32.totalorder %s19, 1
      %p183 = por %p181, %p182
      %p185 = scmp.ne.s32.totalorder %s168, %s184
      %p186 = scmp.eq.s32.totalorder %s19, 0
      %p187 = por %p185, %p186
      %p188 = scmp.le.s32.totalorder 1, %s13
      %p189 = scmp.lt.s32.totalorder %s13, 3
      %p190 = pnand %p188, %p189
      %p191 = pneg %p190
      // Predicated region
      $region9: #{ugcn_forward.15} parent=5 // pred_check
        _
      $region10: #{ugcn_forward.15} parent=5 // pred_check_branch
        %193 = sbr.rel (%p190) target = $region12
      $region11: #{ugcn_forward.15} parent=5 // pred_region
        %s194 = ssub.s32 %s13, 1
        // Predicated region
        $region13: #{ugcn_forward.15} parent=11 // pred_check
          %p195 = pneg %p60
        $region14: #{ugcn_forward.15} parent=11 // pred_check_branch
          %197 = sbr.rel (%p195) target = $region16
        $region15: #{ugcn_forward.15} parent=11 // pred_region
          _
        $region16: #{ugcn_forward.15} parent=11 // pred_fallthru
          _
        // Predicated region
        $region17: #{ugcn_forward.15} parent=11 // pred_check
          %p198 = pneg %p81
        $region18: #{ugcn_forward.15} parent=11 // pred_check_branch
          %200 = sbr.rel (%p198) target = $region20
        $region19: #{ugcn_forward.15} parent=11 // pred_region
          _
        $region20: #{ugcn_forward.15} parent=11 // pred_fallthru
          _
        // Predicated region
        $region21: #{ugcn_forward.15} parent=11 // pred_check
          %p201 = pneg %p102
        $region22: #{ugcn_forward.15} parent=11 // pred_check_branch
          %203 = sbr.rel (%p201) target = $region24
        $region23: #{ugcn_forward.15} parent=11 // pred_region
          _
        $region24: #{ugcn_forward.15} parent=11 // pred_fallthru
          _
      $region12: #{ugcn_forward.15} parent=5 // pred_fallthru
        _
      %p204 = scmp.lt.s32.totalorder %s13, 2
      // Predicated region
      $region25: #{ugcn_forward.15} parent=5 // pred_check
        %p205 = pneg %p204
      $region26: #{ugcn_forward.15} parent=5 // pred_check_branch
        %207 = sbr.rel (%p205) target = $region28
      $region27: #{ugcn_forward.15} parent=5 // pred_region
        // Predicated region
        $region29: #{ugcn_forward.15} parent=27 // pred_check
          %p208 = pneg %p33
        $region30: #{ugcn_forward.15} parent=27 // pred_check_branch
          %210 = sbr.rel (%p208) target = $region32
        $region31: #{ugcn_forward.15} parent=27 // pred_region
          %s211 = smul.u32 16, %s13
          %p212 = scmp.lt.s32.totalorder %s211, 31
          %s213 = scalar_select %p212, %s211, 31
          %s214 = smul.addr %s213, 4
          %s215 = scalar_lea.vmem %s0, %s214
          %s216 = smul.u32 16, %s13
        $region32: #{ugcn_forward.15} parent=27 // pred_fallthru
          _
      $region28: #{ugcn_forward.15} parent=5 // pred_fallthru
        _
      %p217 = scmp.le.s32.totalorder 1, %s13
      %p218 = scmp.lt.s32.totalorder %s13, 3
      %p219 = pnand %p217, %p218
      %p220 = pneg %p219
      // Predicated region
      $region33: #{ugcn_forward.15} parent=5 // pred_check
        _
      $region34: #{ugcn_forward.15} parent=5 // pred_check_branch
        %222 = sbr.rel (%p219) target = $region36
      $region35: #{ugcn_forward.15} parent=5 // pred_region
        %s223 = ssub.s32 %s13, 1
        %s224 = smul.u32 16, %s18
        %p225 = scmp.lt.s32.totalorder %s224, 31
        %s226 = scalar_select %p225, %s224, 31
        %s227 = smul.addr %s226, 4
        %s228 = scalar_lea.vmem %s0, %s227
        %p229 = pneg %p39
        %p230 = pneg %p36
        %p231 = pneg %p60
        %p232 = pneg %p57
        %p233 = pneg %p81
        %p234 = pneg %p78
        %p235 = pneg %p102
        %p236 = pneg %p99
        %p237 = pneg %p128
        %p238 = pneg %p125
        %s239 = sand.u32 %s115, 1
        %s240 = sand.u32 %s115, 1
        %s241 = smul.addr %s240, 128
        %s242 = scalar_lea.vmem [#allocation2], %s241
        %p243 = pneg %p154
        %p244 = pneg %p151
        %s245 = smul.u32 16, %s18
        %p246 = scmp.lt.s32.totalorder %s245, 31
        %s247 = scalar_select %p246, %s245, 31
        %s248 = smul.addr %s247, 8
        %s249 = scalar_lea.vmem %s5, %s248
        %p250 = pneg %p180
        %p251 = pneg %p177
        %s252 = smul.u32 16, %s18
        %p253 = scmp.lt.s32.totalorder %s252, 31
        %s254 = scalar_select %p253, %s252, 31
        %s255 = smul.addr %s254, 8
        %s256 = scalar_lea.vmem %s6, %s255
        %s257 = smul.u32 16, %s18
        %p258 = scmp.lt.s32.totalorder %s257, 31
        %s259 = scalar_select %p258, %s257, 31
        %s260 = smul.addr %s259, 4
        %s261 = scalar_lea.vmem %s0, %s260
        %s262 = smul.u32 16, %s18
        %s263 = smul.u32 16, %s18
        %s264 = smul.u32 16, %s18
        %p265 = scmp.lt.s32.totalorder %s264, 31
        %s266 = scalar_select %p265, %s264, 31
        %s267 = smul.addr %s266, 8
        %s268 = scalar_lea.vmem %s5, %s267
        %s269 = smul.u32 16, %s18
        %s270 = smul.u32 16, %s18
        %p271 = scmp.lt.s32.totalorder %s270, 31
        %s272 = scalar_select %p271, %s270, 31
        %s273 = smul.addr %s272, 8
        %s274 = scalar_lea.vmem %s6, %s273
        %s275 = smul.u32 16, %s18
        %v277 = vld [vmem:[%s261] sm:$0xf]
        %v278 = vld [vmem:[%s261 + $0x4] sm:$0xf]
        %v279 = vld [vmem:[%s261 + $0x8] sm:$0xf]
        %v280 = vld [vmem:[%s261 + $0xc] sm:$0xf]
        %v281 = vld [vmem:[%s261 + $0x10] sm:$0xf]
        %v282 = vld [vmem:[%s261 + $0x14] sm:$0xf]
        %v283 = vld [vmem:[%s261 + $0x18] sm:$0xf]
        %v284 = vld [vmem:[%s261 + $0x1c] sm:$0xf]
        %v285 = vld [vmem:[%s261 + $0x20] sm:$0xf]
        %v286 = vld [vmem:[%s261 + $0x24] sm:$0xf]
        %v287 = vld [vmem:[%s261 + $0x28] sm:$0xf]
        %v288 = vld [vmem:[%s261 + $0x2c] sm:$0xf]
        %v289 = vld [vmem:[%s261 + $0x30] sm:$0xf]
        %v290 = vld [vmem:[%s261 + $0x34] sm:$0xf]
        %v291 = vld [vmem:[%s261 + $0x38] sm:$0xf]
        %v292 = vld [vmem:[%s261 + $0x3c] sm:$0xf]
        %v293 = vmax.bf16 %v277, 0
        %v294 = vmax.bf16 %v278, 0
        %v295 = vmax.bf16 %v279, 0
        %v296 = vmax.bf16 %v280, 0
        %v297 = vmax.bf16 %v281, 0
        %v298 = vmax.bf16 %v282, 0
        %v299 = vmax.bf16 %v283, 0
        %v300 = vmax.bf16 %v284, 0
        %v301 = vmax.bf16 %v285, 0
        %v302 = vmax.bf16 %v286, 0
        %v303 = vmax.bf16 %v287, 0
        %v304 = vmax.bf16 %v288, 0
        %v305 = vmax.bf16 %v289, 0
        %v306 = vmax.bf16 %v290, 0
        %v307 = vmax.bf16 %v291, 0
        %v308 = vmax.bf16 %v292, 0
        %v309 = vld [vmem:[%s1] sm:$0xf]
        %v310 = vld [vmem:[%s1 + $0x4] sm:$0xf]
        %v311 = vld [vmem:[%s1 + $0x8] sm:$0xf]
        %v312 = vld [vmem:[%s1 + $0xc] sm:$0xf]
        %v329 = vunpack.c.l.b16 %v293
        %v330 = vunpack.c.l.b16 %v294
        %v331 = vunpack.c.l.b16 %v295
        %v332 = vunpack.c.l.b16 %v296
        %v333 = vunpack.c.l.b16 %v297
        %v334 = vunpack.c.l.b16 %v298
        %v335 = vunpack.c.l.b16 %v299
        %v336 = vunpack.c.l.b16 %v300
        %v337 = vunpack.c.l.b16 %v301
        %v338 = vunpack.c.l.b16 %v302
        %v339 = vunpack.c.l.b16 %v303
        %v340 = vunpack.c.l.b16 %v304
        %v341 = vunpack.c.l.b16 %v305
        %v342 = vunpack.c.l.b16 %v306
        %v343 = vunpack.c.l.b16 %v307
        %v344 = vunpack.c.l.b16 %v308
        %v345 = vpack.c.b16 %v330, %v329
        %v346 = vpack.c.b16 %v332, %v331
        %v347 = vpack.c.b16 %v334, %v333
        %v348 = vpack.c.b16 %v336, %v335
        %v349 = vpack.c.b16 %v338, %v337
        %v350 = vpack.c.b16 %v340, %v339
        %v351 = vpack.c.b16 %v342, %v341
        %v352 = vpack.c.b16 %v344, %v343
        %v357 = vunpack.c.l.b16 %v309
        %v358 = vunpack.c.l.b16 %v310
        %v359 = vunpack.c.l.b16 %v311
        %v360 = vunpack.c.l.b16 %v312
        %v361 = vpack.c.b16 %v358, %v357
        %v362 = vpack.c.b16 %v360, %v359
        %vm365 = vcmask 261120
        %v367 = vsel %vm365, %v345, 0
        %v370 = vsel %vm365, %v346, 0
        %v373 = vsel %vm365, %v347, 0
        %v376 = vsel %vm365, %v348, 0
        %v379 = vsel %vm365, %v349, 0
        %v382 = vsel %vm365, %v350, 0
        %v385 = vsel %vm365, %v351, 0
        %v388 = vsel %vm365, %v352, 0
        %390 = vmatprep.subr.bf16.mxu0 0
        %391 = vmatpush1.bf16.msra.mxu0 0
        %392 = vmatprep.subr.bf16.mxu0 0
        %393 = vmatpush1.bf16.msra.mxu0 0
        %394 = vmatprep.subr.bf16.mxu0 0
        %395 = vmatpush1.bf16.msra.mxu0 0
        %396 = vmatprep.subr.bf16.mxu0 0
        %397 = vmatpush1.bf16.msra.mxu0 0
        %398 = vmatprep.subr.bf16.mxu0 0
        %399 = vmatpush1.bf16.msra.mxu0 0
        %400 = vmatprep.subr.bf16.mxu0 0
        %401 = vmatpush1.bf16.msra.mxu0 0
        %402 = vmatprep.subr.bf16.mxu0 0
        %403 = vmatpush1.bf16.msra.mxu0 %v362
        %404 = vmatprep.subr.bf16.mxu0 0
        %405 = vmatpush1.bf16.msra.mxu0 %v361
        %406 = vmatprep.subr.bf16.mxu0 0
        %407 = vmatpush2.bf16.msra.mxu0 0
        %408 = vmatprep.subr.bf16.mxu0 0
        %409 = vmatpush2.bf16.msra.mxu0 0
        %410 = vmatprep.subr.bf16.mxu0 0
        %411 = vmatpush2.bf16.msra.mxu0 0
        %412 = vmatprep.subr.bf16.mxu0 0
        %413 = vmatpush2.bf16.msra.mxu0 0
        %414 = vmatprep.subr.bf16.mxu0 0
        %415 = vmatpush2.bf16.msra.mxu0 0
        %416 = vmatprep.subr.bf16.mxu0 0
        %417 = vmatpush2.bf16.msra.mxu0 0
        %418 = vmatprep.subr.bf16.mxu0 0
        %419 = vmatpush2.bf16.msra.mxu0 0
        %420 = vmatprep.subr.bf16.mxu0 0
        %421 = vmatpush2.bf16.msra.mxu0 0
        %422 = vmatprep.mubr.bf16.mxu0 0
        %423 = vmatmul.mubr.bf16.gmra.mxu0 %v367
        %v424 = vpop.f32.mrf.mxu0
        %v425 = vadd.f32 0.0, %v424
        %v426 = vpop.f32.mrf.mxu0
        %v427 = vpop.f32.mrf.mxu0
        %v428 = vadd.f32 0.0, %v427
        %v429 = vpop.f32.mrf.mxu0
        %430 = vmatprep.mubr.bf16.mxu0 0
        %431 = vmatmul.mubr.bf16.gmra.mxu0 %v370
        %v432 = vpop.f32.mrf.mxu0
        %v433 = vadd.f32 0.0, %v432
        %v434 = vpop.f32.mrf.mxu0
        %v435 = vpop.f32.mrf.mxu0
        %v436 = vadd.f32 0.0, %v435
        %v437 = vpop.f32.mrf.mxu0
        %438 = vmatprep.mubr.bf16.mxu0 0
        %439 = vmatmul.mubr.bf16.gmra.mxu0 %v373
        %v440 = vpop.f32.mrf.mxu0
        %v441 = vadd.f32 0.0, %v440
        %v442 = vpop.f32.mrf.mxu0
        %v443 = vpop.f32.mrf.mxu0
        %v444 = vadd.f32 0.0, %v443
        %v445 = vpop.f32.mrf.mxu0
        %446 = vmatprep.mubr.bf16.mxu0 0
        %447 = vmatmul.mubr.bf16.gmra.mxu0 %v376
        %v448 = vpop.f32.mrf.mxu0
        %v449 = vadd.f32 0.0, %v448
        %v450 = vpop.f32.mrf.mxu0
        %v451 = vpop.f32.mrf.mxu0
        %v452 = vadd.f32 0.0, %v451
        %v453 = vpop.f32.mrf.mxu0
        %454 = vmatprep.mubr.bf16.mxu0 0
        %455 = vmatmul.mubr.bf16.gmra.mxu0 %v379
        %v456 = vpop.f32.mrf.mxu0
        %v457 = vadd.f32 0.0, %v456
        %v458 = vpop.f32.mrf.mxu0
        %v459 = vpop.f32.mrf.mxu0
        %v460 = vadd.f32 0.0, %v459
        %v461 = vpop.f32.mrf.mxu0
        %462 = vmatprep.mubr.bf16.mxu0 0
        %463 = vmatmul.mubr.bf16.gmra.mxu0 %v382
        %v464 = vpop.f32.mrf.mxu0
        %v465 = vadd.f32 0.0, %v464
        %v466 = vpop.f32.mrf.mxu0
        %v467 = vpop.f32.mrf.mxu0
        %v468 = vadd.f32 0.0, %v467
        %v469 = vpop.f32.mrf.mxu0
        %470 = vmatprep.mubr.bf16.mxu0 0
        %471 = vmatmul.mubr.bf16.gmra.mxu0 %v385
        %v472 = vpop.f32.mrf.mxu0
        %v473 = vadd.f32 0.0, %v472
        %v474 = vpop.f32.mrf.mxu0
        %v475 = vpop.f32.mrf.mxu0
        %v476 = vadd.f32 0.0, %v475
        %v477 = vpop.f32.mrf.mxu0
        %478 = vmatprep.mubr.bf16.mxu0 0
        %479 = vmatmul.mubr.bf16.gmra.mxu0 %v388
        %v480 = vpop.f32.mrf.mxu0
        %v481 = vadd.f32 0.0, %v480
        %v482 = vpop.f32.mrf.mxu0
        %v483 = vpop.f32.mrf.mxu0
        %v484 = vadd.f32 0.0, %v483
        %v485 = vpop.f32.mrf.mxu0
        %486 = vdwg.mxu0
        %v487 = vpack.c.bf16 %v428, %v425
        %v488 = vpack.c.bf16 %v436, %v433
        %v489 = vpack.c.bf16 %v444, %v441
        %v490 = vpack.c.bf16 %v452, %v449
        %v491 = vpack.c.bf16 %v460, %v457
        %v492 = vpack.c.bf16 %v468, %v465
        %v493 = vpack.c.bf16 %v476, %v473
        %v494 = vpack.c.bf16 %v484, %v481
        %v495 = vld [vmem:[%s2] sm:$0xf]
        %v496 = vld [vmem:[%s2 + $0x4] sm:$0xf]
        %v499 = vunpack.c.l.b16 %v495
        %v500 = vunpack.c.l.b16 %v496
        %v501 = vpack.c.b16 %v500, %v499
        %vm503 = vcmask 130048
        %v505 = vsel %vm503, %v487, 0
        %v508 = vsel %vm503, %v488, 0
        %v511 = vsel %vm503, %v489, 0
        %v514 = vsel %vm503, %v490, 0
        %v517 = vsel %vm503, %v491, 0
        %v520 = vsel %vm503, %v492, 0
        %v523 = vsel %vm503, %v493, 0
        %v526 = vsel %vm503, %v494, 0
        %528 = vmatprep.subr.bf16.mxu0 0
        %529 = vmatpush1.bf16.msra.mxu0 0
        %530 = vmatprep.subr.bf16.mxu0 0
        %531 = vmatpush1.bf16.msra.mxu0 0
        %532 = vmatprep.subr.bf16.mxu0 0
        %533 = vmatpush1.bf16.msra.mxu0 0
        %534 = vmatprep.subr.bf16.mxu0 0
        %535 = vmatpush1.bf16.msra.mxu0 0
        %536 = vmatprep.subr.bf16.mxu0 0
        %537 = vmatpush1.bf16.msra.mxu0 0
        %538 = vmatprep.subr.bf16.mxu0 0
        %539 = vmatpush1.bf16.msra.mxu0 0
        %540 = vmatprep.subr.bf16.mxu0 0
        %541 = vmatpush1.bf16.msra.mxu0 0
        %542 = vmatprep.subr.bf16.mxu0 0
        %543 = vmatpush1.bf16.msra.mxu0 %v501
        %544 = vmatprep.subr.bf16.mxu0 0
        %545 = vmatpush2.bf16.msra.mxu0 0
        %546 = vmatprep.subr.bf16.mxu0 0
        %547 = vmatpush2.bf16.msra.mxu0 0
        %548 = vmatprep.subr.bf16.mxu0 0
        %549 = vmatpush2.bf16.msra.mxu0 0
        %550 = vmatprep.subr.bf16.mxu0 0
        %551 = vmatpush2.bf16.msra.mxu0 0
        %552 = vmatprep.subr.bf16.mxu0 0
        %553 = vmatpush2.bf16.msra.mxu0 0
        %554 = vmatprep.subr.bf16.mxu0 0
        %555 = vmatpush2.bf16.msra.mxu0 0
        %556 = vmatprep.subr.bf16.mxu0 0
        %557 = vmatpush2.bf16.msra.mxu0 0
        %558 = vmatprep.subr.bf16.mxu0 0
        %559 = vmatpush2.bf16.msra.mxu0 0
        %560 = vmatprep.mubr.bf16.mxu0 0
        %561 = vmatmul.mubr.bf16.gmra.mxu0 %v505
        %v562 = vpop.f32.mrf.mxu0
        %v563 = vadd.f32 0.0, %v562
        %v564 = vpop.f32.mrf.mxu0
        %v565 = vpop.f32.mrf.mxu0
        %v566 = vadd.f32 0.0, %v565
        %v567 = vpop.f32.mrf.mxu0
        %568 = vmatprep.mubr.bf16.mxu0 0
        %569 = vmatmul.mubr.bf16.gmra.mxu0 %v508
        %v570 = vpop.f32.mrf.mxu0
        %v571 = vadd.f32 0.0, %v570
        %v572 = vpop.f32.mrf.mxu0
        %v573 = vpop.f32.mrf.mxu0
        %v574 = vadd.f32 0.0, %v573
        %v575 = vpop.f32.mrf.mxu0
        %576 = vmatprep.mubr.bf16.mxu0 0
        %577 = vmatmul.mubr.bf16.gmra.mxu0 %v511
        %v578 = vpop.f32.mrf.mxu0
        %v579 = vadd.f32 0.0, %v578
        %v580 = vpop.f32.mrf.mxu0
        %v581 = vpop.f32.mrf.mxu0
        %v582 = vadd.f32 0.0, %v581
        %v583 = vpop.f32.mrf.mxu0
        %584 = vmatprep.mubr.bf16.mxu0 0
        %585 = vmatmul.mubr.bf16.gmra.mxu0 %v514
        %v586 = vpop.f32.mrf.mxu0
        %v587 = vadd.f32 0.0, %v586
        %v588 = vpop.f32.mrf.mxu0
        %v589 = vpop.f32.mrf.mxu0
        %v590 = vadd.f32 0.0, %v589
        %v591 = vpop.f32.mrf.mxu0
        %592 = vmatprep.mubr.bf16.mxu0 0
        %593 = vmatmul.mubr.bf16.gmra.mxu0 %v517
        %v594 = vpop.f32.mrf.mxu0
        %v595 = vadd.f32 0.0, %v594
        %v596 = vpop.f32.mrf.mxu0
        %v597 = vpop.f32.mrf.mxu0
        %v598 = vadd.f32 0.0, %v597
        %v599 = vpop.f32.mrf.mxu0
        %600 = vmatprep.mubr.bf16.mxu0 0
        %601 = vmatmul.mubr.bf16.gmra.mxu0 %v520
        %v602 = vpop.f32.mrf.mxu0
        %v603 = vadd.f32 0.0, %v602
        %v604 = vpop.f32.mrf.mxu0
        %v605 = vpop.f32.mrf.mxu0
        %v606 = vadd.f32 0.0, %v605
        %v607 = vpop.f32.mrf.mxu0
        %608 = vmatprep.mubr.bf16.mxu0 0
        %609 = vmatmul.mubr.bf16.gmra.mxu0 %v523
        %v610 = vpop.f32.mrf.mxu0
        %v611 = vadd.f32 0.0, %v610
        %v612 = vpop.f32.mrf.mxu0
        %v613 = vpop.f32.mrf.mxu0
        %v614 = vadd.f32 0.0, %v613
        %v615 = vpop.f32.mrf.mxu0
        %616 = vmatprep.mubr.bf16.mxu0 0
        %617 = vmatmul.mubr.bf16.gmra.mxu0 %v526
        %v618 = vpop.f32.mrf.mxu0
        %v619 = vadd.f32 0.0, %v618
        %v620 = vpop.f32.mrf.mxu0
        %v621 = vpop.f32.mrf.mxu0
        %v622 = vadd.f32 0.0, %v621
        %v623 = vpop.f32.mrf.mxu0
        %624 = vdwg.mxu0
        %vm625 = vcmask 15360
        %626 = vst.msk [vmem:[%s268] sm:$0xff] %vm625, %v563
        %627 = vst.msk [vmem:[%s268 + $0x8] sm:$0xff] %vm625, %v566
        %628 = vst.msk [vmem:[%s268 + $0x10] sm:$0xff] %vm625, %v571
        %629 = vst.msk [vmem:[%s268 + $0x18] sm:$0xff] %vm625, %v574
        %630 = vst.msk [vmem:[%s268 + $0x20] sm:$0xff] %vm625, %v579
        %631 = vst.msk [vmem:[%s268 + $0x28] sm:$0xff] %vm625, %v582
        %632 = vst.msk [vmem:[%s268 + $0x30] sm:$0xff] %vm625, %v587
        %633 = vst.msk [vmem:[%s268 + $0x38] sm:$0xff] %vm625, %v590
        %634 = vst.msk [vmem:[%s268 + $0x40] sm:$0xff] %vm625, %v595
        %635 = vst.msk [vmem:[%s268 + $0x48] sm:$0xff] %vm625, %v598
        %636 = vst.msk [vmem:[%s268 + $0x50] sm:$0xff] %vm625, %v603
        %637 = vst.msk [vmem:[%s268 + $0x58] sm:$0xff] %vm625, %v606
        %638 = vst.msk [vmem:[%s268 + $0x60] sm:$0xff] %vm625, %v611
        %639 = vst.msk [vmem:[%s268 + $0x68] sm:$0xff] %vm625, %v614
        %640 = vst.msk [vmem:[%s268 + $0x70] sm:$0xff] %vm625, %v619
        %641 = vst.msk [vmem:[%s268 + $0x78] sm:$0xff] %vm625, %v622
        %v642 = vld [vmem:[%s3] sm:$0xf]
        %v643 = vld [vmem:[%s3 + $0x4] sm:$0xf]
        %v646 = vunpack.c.l.b16 %v642
        %v647 = vunpack.c.l.b16 %v643
        %v648 = vpack.c.b16 %v647, %v646
        %650 = vmatprep.subr.bf16.mxu0 0
        %651 = vmatpush1.bf16.msra.mxu0 0
        %652 = vmatprep.subr.bf16.mxu0 0
        %653 = vmatpush1.bf16.msra.mxu0 0
        %654 = vmatprep.subr.bf16.mxu0 0
        %655 = vmatpush1.bf16.msra.mxu0 0
        %656 = vmatprep.subr.bf16.mxu0 0
        %657 = vmatpush1.bf16.msra.mxu0 0
        %658 = vmatprep.subr.bf16.mxu0 0
        %659 = vmatpush1.bf16.msra.mxu0 0
        %660 = vmatprep.subr.bf16.mxu0 0
        %661 = vmatpush1.bf16.msra.mxu0 0
        %662 = vmatprep.subr.bf16.mxu0 0
        %663 = vmatpush1.bf16.msra.mxu0 0
        %664 = vmatprep.subr.bf16.mxu0 0
        %665 = vmatpush1.bf16.msra.mxu0 %v648
        %666 = vmatprep.subr.bf16.mxu0 0
        %667 = vmatpush2.bf16.msra.mxu0 0
        %668 = vmatprep.subr.bf16.mxu0 0
        %669 = vmatpush2.bf16.msra.mxu0 0
        %670 = vmatprep.subr.bf16.mxu0 0
        %671 = vmatpush2.bf16.msra.mxu0 0
        %672 = vmatprep.subr.bf16.mxu0 0
        %673 = vmatpush2.bf16.msra.mxu0 0
        %674 = vmatprep.subr.bf16.mxu0 0
        %675 = vmatpush2.bf16.msra.mxu0 0
        %676 = vmatprep.subr.bf16.mxu0 0
        %677 = vmatpush2.bf16.msra.mxu0 0
        %678 = vmatprep.subr.bf16.mxu0 0
        %679 = vmatpush2.bf16.msra.mxu0 0
        %680 = vmatprep.subr.bf16.mxu0 0
        %681 = vmatpush2.bf16.msra.mxu0 0
        %682 = vmatprep.mubr.bf16.mxu0 0
        %683 = vmatmul.mubr.bf16.gmra.mxu0 %v505
        %v684 = vpop.f32.mrf.mxu0
        %v685 = vadd.f32 0.0, %v684
        %v686 = vpop.f32.mrf.mxu0
        %v687 = vpop.f32.mrf.mxu0
        %v688 = vadd.f32 0.0, %v687
        %v689 = vpop.f32.mrf.mxu0
        %690 = vmatprep.mubr.bf16.mxu0 0
        %691 = vmatmul.mubr.bf16.gmra.mxu0 %v508
        %v692 = vpop.f32.mrf.mxu0
        %v693 = vadd.f32 0.0, %v692
        %v694 = vpop.f32.mrf.mxu0
        %v695 = vpop.f32.mrf.mxu0
        %v696 = vadd.f32 0.0, %v695
        %v697 = vpop.f32.mrf.mxu0
        %698 = vmatprep.mubr.bf16.mxu0 0
        %699 = vmatmul.mubr.bf16.gmra.mxu0 %v511
        %v700 = vpop.f32.mrf.mxu0
        %v701 = vadd.f32 0.0, %v700
        %v702 = vpop.f32.mrf.mxu0
        %v703 = vpop.f32.mrf.mxu0
        %v704 = vadd.f32 0.0, %v703
        %v705 = vpop.f32.mrf.mxu0
        %706 = vmatprep.mubr.bf16.mxu0 0
        %707 = vmatmul.mubr.bf16.gmra.mxu0 %v514
        %v708 = vpop.f32.mrf.mxu0
        %v709 = vadd.f32 0.0, %v708
        %v710 = vpop.f32.mrf.mxu0
        %v711 = vpop.f32.mrf.mxu0
        %v712 = vadd.f32 0.0, %v711
        %v713 = vpop.f32.mrf.mxu0
        %714 = vmatprep.mubr.bf16.mxu0 0
        %715 = vmatmul.mubr.bf16.gmra.mxu0 %v517
        %v716 = vpop.f32.mrf.mxu0
        %v717 = vadd.f32 0.0, %v716
        %v718 = vpop.f32.mrf.mxu0
        %v719 = vpop.f32.mrf.mxu0
        %v720 = vadd.f32 0.0, %v719
        %v721 = vpop.f32.mrf.mxu0
        %722 = vmatprep.mubr.bf16.mxu0 0
        %723 = vmatmul.mubr.bf16.gmra.mxu0 %v520
        %v724 = vpop.f32.mrf.mxu0
        %v725 = vadd.f32 0.0, %v724
        %v726 = vpop.f32.mrf.mxu0
        %v727 = vpop.f32.mrf.mxu0
        %v728 = vadd.f32 0.0, %v727
        %v729 = vpop.f32.mrf.mxu0
        %730 = vmatprep.mubr.bf16.mxu0 0
        %731 = vmatmul.mubr.bf16.gmra.mxu0 %v523
        %v732 = vpop.f32.mrf.mxu0
        %v733 = vadd.f32 0.0, %v732
        %v734 = vpop.f32.mrf.mxu0
        %v735 = vpop.f32.mrf.mxu0
        %v736 = vadd.f32 0.0, %v735
        %v737 = vpop.f32.mrf.mxu0
        %738 = vmatprep.mubr.bf16.mxu0 0
        %739 = vmatmul.mubr.bf16.gmra.mxu0 %v526
        %v740 = vpop.f32.mrf.mxu0
        %v741 = vadd.f32 0.0, %v740
        %v742 = vpop.f32.mrf.mxu0
        %v743 = vpop.f32.mrf.mxu0
        %v744 = vadd.f32 0.0, %v743
        %v745 = vpop.f32.mrf.mxu0
        %746 = vdwg.mxu0
        %747 = vst.msk [vmem:[%s274] sm:$0xff] %vm625, %v685
        %748 = vst.msk [vmem:[%s274 + $0x8] sm:$0xff] %vm625, %v688
        %749 = vst.msk [vmem:[%s274 + $0x10] sm:$0xff] %vm625, %v693
        %750 = vst.msk [vmem:[%s274 + $0x18] sm:$0xff] %vm625, %v696
        %751 = vst.msk [vmem:[%s274 + $0x20] sm:$0xff] %vm625, %v701
        %752 = vst.msk [vmem:[%s274 + $0x28] sm:$0xff] %vm625, %v704
        %753 = vst.msk [vmem:[%s274 + $0x30] sm:$0xff] %vm625, %v709
        %754 = vst.msk [vmem:[%s274 + $0x38] sm:$0xff] %vm625, %v712
        %755 = vst.msk [vmem:[%s274 + $0x40] sm:$0xff] %vm625, %v717
        %756 = vst.msk [vmem:[%s274 + $0x48] sm:$0xff] %vm625, %v720
        %757 = vst.msk [vmem:[%s274 + $0x50] sm:$0xff] %vm625, %v725
        %758 = vst.msk [vmem:[%s274 + $0x58] sm:$0xff] %vm625, %v728
        %759 = vst.msk [vmem:[%s274 + $0x60] sm:$0xff] %vm625, %v733
        %760 = vst.msk [vmem:[%s274 + $0x68] sm:$0xff] %vm625, %v736
        %761 = vst.msk [vmem:[%s274 + $0x70] sm:$0xff] %vm625, %v741
        %762 = vst.msk [vmem:[%s274 + $0x78] sm:$0xff] %vm625, %v744
        %v771 = vunpack.c.l.b16 %v487
        %v772 = vunpack.c.h.b16 %v487
        %v773 = vunpack.c.l.b16 %v488
        %v774 = vunpack.c.h.b16 %v488
        %v775 = vunpack.c.l.b16 %v489
        %v776 = vunpack.c.h.b16 %v489
        %v777 = vunpack.c.l.b16 %v490
        %v778 = vunpack.c.h.b16 %v490
        %v779 = vunpack.c.l.b16 %v491
        %v780 = vunpack.c.h.b16 %v491
        %v781 = vunpack.c.l.b16 %v492
        %v782 = vunpack.c.h.b16 %v492
        %v783 = vunpack.c.l.b16 %v493
        %v784 = vunpack.c.h.b16 %v493
        %v785 = vunpack.c.l.b16 %v494
        %v786 = vunpack.c.h.b16 %v494
        %v787 = vpack.c.b16 %v771, %v771
        %v788 = vpack.c.b16 %v772, %v772
        %v789 = vpack.c.b16 %v773, %v773
        %v790 = vpack.c.b16 %v774, %v774
        %v791 = vpack.c.b16 %v775, %v775
        %v792 = vpack.c.b16 %v776, %v776
        %v793 = vpack.c.b16 %v777, %v777
        %v794 = vpack.c.b16 %v778, %v778
        %v795 = vpack.c.b16 %v779, %v779
        %v796 = vpack.c.b16 %v780, %v780
        %v797 = vpack.c.b16 %v781, %v781
        %v798 = vpack.c.b16 %v782, %v782
        %v799 = vpack.c.b16 %v783, %v783
        %v800 = vpack.c.b16 %v784, %v784
        %v801 = vpack.c.b16 %v785, %v785
        %v802 = vpack.c.b16 %v786, %v786
        %vm819 = vcmask 60416
        %820 = vst.msk [vmem:[%s242] sm:$0xf] %vm819, %v787
        %821 = vst.msk [vmem:[%s242 + $0x4] sm:$0xf] %vm819, %v788
        %822 = vst.msk [vmem:[%s242 + $0x8] sm:$0xf] %vm819, %v789
        %823 = vst.msk [vmem:[%s242 + $0xc] sm:$0xf] %vm819, %v790
        %824 = vst.msk [vmem:[%s242 + $0x10] sm:$0xf] %vm819, %v791
        %825 = vst.msk [vmem:[%s242 + $0x14] sm:$0xf] %vm819, %v792
        %826 = vst.msk [vmem:[%s242 + $0x18] sm:$0xf] %vm819, %v793
        %827 = vst.msk [vmem:[%s242 + $0x1c] sm:$0xf] %vm819, %v794
        %828 = vst.msk [vmem:[%s242 + $0x20] sm:$0xf] %vm819, %v795
        %829 = vst.msk [vmem:[%s242 + $0x24] sm:$0xf] %vm819, %v796
        %830 = vst.msk [vmem:[%s242 + $0x28] sm:$0xf] %vm819, %v797
        %831 = vst.msk [vmem:[%s242 + $0x2c] sm:$0xf] %vm819, %v798
        %832 = vst.msk [vmem:[%s242 + $0x30] sm:$0xf] %vm819, %v799
        %833 = vst.msk [vmem:[%s242 + $0x34] sm:$0xf] %vm819, %v800
        %834 = vst.msk [vmem:[%s242 + $0x38] sm:$0xf] %vm819, %v801
        %835 = vst.msk [vmem:[%s242 + $0x3c] sm:$0xf] %vm819, %v802
        %836 = vrot.lane.b32.xlu0 %v787, 120
        %v837 = vpop.permute.xlu0 %836
        %838 = vrot.lane.b32.xlu0 %v788, 120
        %v839 = vpop.permute.xlu0 %838
        %840 = vrot.lane.b32.xlu0 %v789, 120
        %v841 = vpop.permute.xlu0 %840
        %842 = vrot.lane.b32.xlu0 %v790, 120
        %v843 = vpop.permute.xlu0 %842
        %844 = vrot.lane.b32.xlu0 %v791, 120
        %v845 = vpop.permute.xlu0 %844
        %846 = vrot.lane.b32.xlu0 %v792, 120
        %v847 = vpop.permute.xlu0 %846
        %848 = vrot.lane.b32.xlu0 %v793, 120
        %v849 = vpop.permute.xlu0 %848
        %850 = vrot.lane.b32.xlu0 %v794, 120
        %v851 = vpop.permute.xlu0 %850
        %852 = vrot.lane.b32.xlu0 %v795, 120
        %v853 = vpop.permute.xlu0 %852
        %854 = vrot.lane.b32.xlu0 %v796, 120
        %v855 = vpop.permute.xlu0 %854
        %856 = vrot.lane.b32.xlu0 %v797, 120
        %v857 = vpop.permute.xlu0 %856
        %858 = vrot.lane.b32.xlu0 %v798, 120
        %v859 = vpop.permute.xlu0 %858
        %860 = vrot.lane.b32.xlu0 %v799, 120
        %v861 = vpop.permute.xlu0 %860
        %862 = vrot.lane.b32.xlu0 %v800, 120
        %v863 = vpop.permute.xlu0 %862
        %864 = vrot.lane.b32.xlu0 %v801, 120
        %v865 = vpop.permute.xlu0 %864
        %866 = vrot.lane.b32.xlu0 %v802, 120
        %v867 = vpop.permute.xlu0 %866
        %s884 = scalar_lea.vmem %s242, 64 [#allocation2]
        %885 = vst.msk [vmem:[%s884] sm:$0xf] %vm819, %v837
        %886 = vst.msk [vmem:[%s884 + $0x4] sm:$0xf] %vm819, %v839
        %887 = vst.msk [vmem:[%s884 + $0x8] sm:$0xf] %vm819, %v841
        %888 = vst.msk [vmem:[%s884 + $0xc] sm:$0xf] %vm819, %v843
        %889 = vst.msk [vmem:[%s884 + $0x10] sm:$0xf] %vm819, %v845
        %890 = vst.msk [vmem:[%s884 + $0x14] sm:$0xf] %vm819, %v847
        %891 = vst.msk [vmem:[%s884 + $0x18] sm:$0xf] %vm819, %v849
        %892 = vst.msk [vmem:[%s884 + $0x1c] sm:$0xf] %vm819, %v851
        %893 = vst.msk [vmem:[%s884 + $0x20] sm:$0xf] %vm819, %v853
        %894 = vst.msk [vmem:[%s884 + $0x24] sm:$0xf] %vm819, %v855
        %895 = vst.msk [vmem:[%s884 + $0x28] sm:$0xf] %vm819, %v857
        %896 = vst.msk [vmem:[%s884 + $0x2c] sm:$0xf] %vm819, %v859
        %897 = vst.msk [vmem:[%s884 + $0x30] sm:$0xf] %vm819, %v861
        %898 = vst.msk [vmem:[%s884 + $0x34] sm:$0xf] %vm819, %v863
        %899 = vst.msk [vmem:[%s884 + $0x38] sm:$0xf] %vm819, %v865
        %900 = vst.msk [vmem:[%s884 + $0x3c] sm:$0xf] %vm819, %v867
        %s901 = sand.u32 %s115, 1
        %s902 = sand.u32 %s115, 1
        %s903 = smul.addr %s902, 128
        %s904 = scalar_lea.vmem [#allocation2], %s903
        %s905 = smul.u32 16, %s18
        %p906 = scmp.lt.s32.totalorder %s905, 31
        %s907 = scalar_select %p906, %s905, 31
        %s908 = smul.addr %s907, 8
        %s909 = scalar_lea.vmem %s5, %s908
        %s910 = smul.u32 16, %s18
        %p911 = scmp.lt.s32.totalorder %s910, 31
        %s912 = scalar_select %p911, %s910, 31
        %s913 = smul.addr %s912, 8
        %s914 = scalar_lea.vmem %s6, %s913
        // Predicated region
        $region37: #{ugcn_forward.15} parent=35 // pred_check
          %p915 = pneg %p125
        $region38: #{ugcn_forward.15} parent=35 // pred_check_branch
          %917 = sbr.rel (%p915) target = $region40
        $region39: #{ugcn_forward.15} parent=35 // pred_region
          %s918 = smul.u32 16, %s18
          %s919 = smul.addr %s918, 4
          %s920 = scalar_lea.vmem %s4, %s919
          // Predicated region
          $region41: #{ugcn_forward.15} parent=39 // pred_check
            _
          $region42: #{ugcn_forward.15} parent=39 // pred_check_branch
            %922 = sbr.rel (0) target = $region44
          $region43: #{ugcn_forward.15} parent=39 // pred_region
            // Predicated region
            $region45: #{ugcn_forward.15} parent=43 // pred_check
              _
            $region46: #{ugcn_forward.15} parent=43 // pred_check_branch
              %924 = sbr.rel target = $region48
            $region47: #{ugcn_forward.15} parent=43 // pred_region
              // Predicated region
              $region60: #{ugcn_forward.15} parent=47 // pred_check
                _
              $region61: #{ugcn_forward.15} parent=47 // pred_check_branch
                %1002 = sbr.rel (0) target = $region63
              $region62: #{ugcn_forward.15} parent=47 // pred_region
                loop: start=0, step=1, limit=1
                $region64: #{ugcn_forward.15} parent=62 // loop_pre_header
                  _
                $region65: #{ugcn_forward.15} parent=62 // loop_header
                  %s1004 = sphi 0, %s1008
                  %p1005 = scmp.ge.s32.totalorder %s1004, 1
                  %s1009 = sphi %s904, %s904
                  %s1010 = sphi %s920, %s920
                $region66: #{ugcn_forward.15} parent=62 // loop_header_branch
                  %1007 = sbr.rel (%p1005) target = $region70
                $region67: #{ugcn_forward.15} parent=62 // loop_body
                  _
                $region68: #{ugcn_forward.15} parent=62 // loop_footer
                  %s1008 = sadd.s32 1, %s1004
                $region69: #{ugcn_forward.15} parent=62 // loop_footer_branch
                  %1003 = sbr.rel target = $region65
                $region70: #{ugcn_forward.15} parent=62 // loop_exit
                  _
                %s1012 = ssub.s32 16, 1
                loop: start=0, step=1, limit=1
                $region71: #{ugcn_forward.15} parent=62 // loop_pre_header
                  _
                $region72: #{ugcn_forward.15} parent=62 // loop_header
                  %s1014 = sphi 0, %s1018
                  %p1015 = scmp.ge.s32.totalorder %s1014, 1
                  %s1019 = sphi %s904, %s904
                  %s1020 = sphi %s920, %s920
                $region73: #{ugcn_forward.15} parent=62 // loop_header_branch
                  %1017 = sbr.rel (%p1015) target = $region77
                $region74: #{ugcn_forward.15} parent=62 // loop_body
                  %v1021 = vld [vmem:[%s1019] sm:%s1012]
                  %1022 = vst [vmem:[%s1020] sm:%s1012] %v1021
                  %v1023 = vld [vmem:[%s1019 + $0x4] sm:%s1012]
                  %1024 = vst [vmem:[%s1020 + $0x4] sm:%s1012] %v1023
                  %v1025 = vld [vmem:[%s1019 + $0x8] sm:%s1012]
                  %1026 = vst [vmem:[%s1020 + $0x8] sm:%s1012] %v1025
                  %v1027 = vld [vmem:[%s1019 + $0xc] sm:%s1012]
                  %1028 = vst [vmem:[%s1020 + $0xc] sm:%s1012] %v1027
                  %v1029 = vld [vmem:[%s1019 + $0x10] sm:%s1012]
                  %1030 = vst [vmem:[%s1020 + $0x10] sm:%s1012] %v1029
                  %v1031 = vld [vmem:[%s1019 + $0x14] sm:%s1012]
                  %1032 = vst [vmem:[%s1020 + $0x14] sm:%s1012] %v1031
                  %v1033 = vld [vmem:[%s1019 + $0x18] sm:%s1012]
                  %1034 = vst [vmem:[%s1020 + $0x18] sm:%s1012] %v1033
                  %v1035 = vld [vmem:[%s1019 + $0x1c] sm:%s1012]
                  %1036 = vst [vmem:[%s1020 + $0x1c] sm:%s1012] %v1035
                  %v1037 = vld [vmem:[%s1019 + $0x20] sm:%s1012]
                  %1038 = vst [vmem:[%s1020 + $0x20] sm:%s1012] %v1037
                  %v1039 = vld [vmem:[%s1019 + $0x24] sm:%s1012]
                  %1040 = vst [vmem:[%s1020 + $0x24] sm:%s1012] %v1039
                  %v1041 = vld [vmem:[%s1019 + $0x28] sm:%s1012]
                  %1042 = vst [vmem:[%s1020 + $0x28] sm:%s1012] %v1041
                  %v1043 = vld [vmem:[%s1019 + $0x2c] sm:%s1012]
                  %1044 = vst [vmem:[%s1020 + $0x2c] sm:%s1012] %v1043
                  %v1045 = vld [vmem:[%s1019 + $0x30] sm:%s1012]
                  %1046 = vst [vmem:[%s1020 + $0x30] sm:%s1012] %v1045
                  %v1047 = vld [vmem:[%s1019 + $0x34] sm:%s1012]
                  %1048 = vst [vmem:[%s1020 + $0x34] sm:%s1012] %v1047
                  %v1049 = vld [vmem:[%s1019 + $0x38] sm:%s1012]
                  %1050 = vst [vmem:[%s1020 + $0x38] sm:%s1012] %v1049
                  %v1051 = vld [vmem:[%s1019 + $0x3c] sm:%s1012]
                  %1052 = vst [vmem:[%s1020 + $0x3c] sm:%s1012] %v1051
                  %v1053 = vld [vmem:[%s1019 + $0x40] sm:%s1012]
                  %1054 = vst [vmem:[%s1020 + $0x80] sm:%s1012] %v1053
                  %v1055 = vld [vmem:[%s1019 + $0x44] sm:%s1012]
                  %1056 = vst [vmem:[%s1020 + $0x84] sm:%s1012] %v1055
                  %v1057 = vld [vmem:[%s1019 + $0x48] sm:%s1012]
                  %1058 = vst [vmem:[%s1020 + $0x88] sm:%s1012] %v1057
                  %v1059 = vld [vmem:[%s1019 + $0x4c] sm:%s1012]
                  %1060 = vst [vmem:[%s1020 + $0x8c] sm:%s1012] %v1059
                  %v1061 = vld [vmem:[%s1019 + $0x50] sm:%s1012]
                  %1062 = vst [vmem:[%s1020 + $0x90] sm:%s1012] %v1061
                  %v1063 = vld [vmem:[%s1019 + $0x54] sm:%s1012]
                  %1064 = vst [vmem:[%s1020 + $0x94] sm:%s1012] %v1063
                  %v1065 = vld [vmem:[%s1019 + $0x58] sm:%s1012]
                  %1066 = vst [vmem:[%s1020 + $0x98] sm:%s1012] %v1065
                  %v1067 = vld [vmem:[%s1019 + $0x5c] sm:%s1012]
                  %1068 = vst [vmem:[%s1020 + $0x9c] sm:%s1012] %v1067
                  %v1069 = vld [vmem:[%s1019 + $0x60] sm:%s1012]
                  %1070 = vst [vmem:[%s1020 + $0xa0] sm:%s1012] %v1069
                  %v1071 = vld [vmem:[%s1019 + $0x64] sm:%s1012]
                  %1072 = vst [vmem:[%s1020 + $0xa4] sm:%s1012] %v1071
                  %v1073 = vld [vmem:[%s1019 + $0x68] sm:%s1012]
                  %1074 = vst [vmem:[%s1020 + $0xa8] sm:%s1012] %v1073
                  %v1075 = vld [vmem:[%s1019 + $0x6c] sm:%s1012]
                  %1076 = vst [vmem:[%s1020 + $0xac] sm:%s1012] %v1075
                  %v1077 = vld [vmem:[%s1019 + $0x70] sm:%s1012]
                  %1078 = vst [vmem:[%s1020 + $0xb0] sm:%s1012] %v1077
                  %v1079 = vld [vmem:[%s1019 + $0x74] sm:%s1012]
                  %1080 = vst [vmem:[%s1020 + $0xb4] sm:%s1012] %v1079
                  %v1081 = vld [vmem:[%s1019 + $0x78] sm:%s1012]
                  %1082 = vst [vmem:[%s1020 + $0xb8] sm:%s1012] %v1081
                  %v1083 = vld [vmem:[%s1019 + $0x7c] sm:%s1012]
                  %1084 = vst [vmem:[%s1020 + $0xbc] sm:%s1012] %v1083
                $region75: #{ugcn_forward.15} parent=62 // loop_footer
                  %s1018 = sadd.s32 1, %s1014
                $region76: #{ugcn_forward.15} parent=62 // loop_footer_branch
                  %1013 = sbr.rel target = $region72
                $region77: #{ugcn_forward.15} parent=62 // loop_exit
                  _
              $region63: #{ugcn_forward.15} parent=47 // pred_fallthru
                _
            $region48: #{ugcn_forward.15} parent=43 // pred_fallthru
              _
            // Predicated region
            $region49: #{ugcn_forward.15} parent=43 // pred_check
              _
            $region50: #{ugcn_forward.15} parent=43 // pred_check_branch
              %926 = sbr.rel (0) target = $region52
            $region51: #{ugcn_forward.15} parent=43 // pred_region
              %s928 = ssub.s32 16, 1
              loop: start=0, step=1, limit=1
              $region53: #{ugcn_forward.15} parent=51 // loop_pre_header
                _
              $region54: #{ugcn_forward.15} parent=51 // loop_header
                %s930 = sphi 0, %s934
                %p931 = scmp.ge.s32.totalorder %s930, 1
                %s935 = sphi %s904, %s904
                %s936 = sphi %s920, %s920
              $region55: #{ugcn_forward.15} parent=51 // loop_header_branch
                %933 = sbr.rel (%p931) target = $region59
              $region56: #{ugcn_forward.15} parent=51 // loop_body
                %v937 = vld [vmem:[%s935] sm:%s928]
                %938 = vst [vmem:[%s936] sm:%s928] %v937
                %v939 = vld [vmem:[%s935 + $0x4] sm:%s928]
                %940 = vst [vmem:[%s936 + $0x4] sm:%s928] %v939
                %v941 = vld [vmem:[%s935 + $0x8] sm:%s928]
                %942 = vst [vmem:[%s936 + $0x8] sm:%s928] %v941
                %v943 = vld [vmem:[%s935 + $0xc] sm:%s928]
                %944 = vst [vmem:[%s936 + $0xc] sm:%s928] %v943
                %v945 = vld [vmem:[%s935 + $0x10] sm:%s928]
                %946 = vst [vmem:[%s936 + $0x10] sm:%s928] %v945
                %v947 = vld [vmem:[%s935 + $0x14] sm:%s928]
                %948 = vst [vmem:[%s936 + $0x14] sm:%s928] %v947
                %v949 = vld [vmem:[%s935 + $0x18] sm:%s928]
                %950 = vst [vmem:[%s936 + $0x18] sm:%s928] %v949
                %v951 = vld [vmem:[%s935 + $0x1c] sm:%s928]
                %952 = vst [vmem:[%s936 + $0x1c] sm:%s928] %v951
                %v953 = vld [vmem:[%s935 + $0x20] sm:%s928]
                %954 = vst [vmem:[%s936 + $0x20] sm:%s928] %v953
                %v955 = vld [vmem:[%s935 + $0x24] sm:%s928]
                %956 = vst [vmem:[%s936 + $0x24] sm:%s928] %v955
                %v957 = vld [vmem:[%s935 + $0x28] sm:%s928]
                %958 = vst [vmem:[%s936 + $0x28] sm:%s928] %v957
                %v959 = vld [vmem:[%s935 + $0x2c] sm:%s928]
                %960 = vst [vmem:[%s936 + $0x2c] sm:%s928] %v959
                %v961 = vld [vmem:[%s935 + $0x30] sm:%s928]
                %962 = vst [vmem:[%s936 + $0x30] sm:%s928] %v961
                %v963 = vld [vmem:[%s935 + $0x34] sm:%s928]
                %964 = vst [vmem:[%s936 + $0x34] sm:%s928] %v963
                %v965 = vld [vmem:[%s935 + $0x38] sm:%s928]
                %966 = vst [vmem:[%s936 + $0x38] sm:%s928] %v965
                %v967 = vld [vmem:[%s935 + $0x3c] sm:%s928]
                %968 = vst [vmem:[%s936 + $0x3c] sm:%s928] %v967
                %v969 = vld [vmem:[%s935 + $0x40] sm:%s928]
                %970 = vst [vmem:[%s936 + $0x80] sm:%s928] %v969
                %v971 = vld [vmem:[%s935 + $0x44] sm:%s928]
                %972 = vst [vmem:[%s936 + $0x84] sm:%s928] %v971
                %v973 = vld [vmem:[%s935 + $0x48] sm:%s928]
                %974 = vst [vmem:[%s936 + $0x88] sm:%s928] %v973
                %v975 = vld [vmem:[%s935 + $0x4c] sm:%s928]
                %976 = vst [vmem:[%s936 + $0x8c] sm:%s928] %v975
                %v977 = vld [vmem:[%s935 + $0x50] sm:%s928]
                %978 = vst [vmem:[%s936 + $0x90] sm:%s928] %v977
                %v979 = vld [vmem:[%s935 + $0x54] sm:%s928]
                %980 = vst [vmem:[%s936 + $0x94] sm:%s928] %v979
                %v981 = vld [vmem:[%s935 + $0x58] sm:%s928]
                %982 = vst [vmem:[%s936 + $0x98] sm:%s928] %v981
                %v983 = vld [vmem:[%s935 + $0x5c] sm:%s928]
                %984 = vst [vmem:[%s936 + $0x9c] sm:%s928] %v983
                %v985 = vld [vmem:[%s935 + $0x60] sm:%s928]
                %986 = vst [vmem:[%s936 + $0xa0] sm:%s928] %v985
                %v987 = vld [vmem:[%s935 + $0x64] sm:%s928]
                %988 = vst [vmem:[%s936 + $0xa4] sm:%s928] %v987
                %v989 = vld [vmem:[%s935 + $0x68] sm:%s928]
                %990 = vst [vmem:[%s936 + $0xa8] sm:%s928] %v989
                %v991 = vld [vmem:[%s935 + $0x6c] sm:%s928]
                %992 = vst [vmem:[%s936 + $0xac] sm:%s928] %v991
                %v993 = vld [vmem:[%s935 + $0x70] sm:%s928]
                %994 = vst [vmem:[%s936 + $0xb0] sm:%s928] %v993
                %v995 = vld [vmem:[%s935 + $0x74] sm:%s928]
                %996 = vst [vmem:[%s936 + $0xb4] sm:%s928] %v995
                %v997 = vld [vmem:[%s935 + $0x78] sm:%s928]
                %998 = vst [vmem:[%s936 + $0xb8] sm:%s928] %v997
                %v999 = vld [vmem:[%s935 + $0x7c] sm:%s928]
                %1000 = vst [vmem:[%s936 + $0xbc] sm:%s928] %v999
              $region57: #{ugcn_forward.15} parent=51 // loop_footer
                %s934 = sadd.s32 1, %s930
              $region58: #{ugcn_forward.15} parent=51 // loop_footer_branch
                %929 = sbr.rel target = $region54
              $region59: #{ugcn_forward.15} parent=51 // loop_exit
                _
            $region52: #{ugcn_forward.15} parent=43 // pred_fallthru
              _
          $region44: #{ugcn_forward.15} parent=39 // pred_fallthru
            _
          %1085 = vnop
        $region40: #{ugcn_forward.15} parent=35 // pred_fallthru
          _
        // Predicated region
        $region78: #{ugcn_forward.15} parent=35 // pred_check
          %p1086 = pneg %p151
        $region79: #{ugcn_forward.15} parent=35 // pred_check_branch
          %1088 = sbr.rel (%p1086) target = $region81
        $region80: #{ugcn_forward.15} parent=35 // pred_region
          %s1089 = smul.u32 16, %s18
        $region81: #{ugcn_forward.15} parent=35 // pred_fallthru
          _
        // Predicated region
        $region82: #{ugcn_forward.15} parent=35 // pred_check
          %p1090 = pneg %p177
        $region83: #{ugcn_forward.15} parent=35 // pred_check_branch
          %1092 = sbr.rel (%p1090) target = $region85
        $region84: #{ugcn_forward.15} parent=35 // pred_region
          %s1093 = smul.u32 16, %s18
        $region85: #{ugcn_forward.15} parent=35 // pred_fallthru
          _
      $region36: #{ugcn_forward.15} parent=5 // pred_fallthru
        _
      %p1094 = scmp.le.s32.totalorder 2, %s13
      // Predicated region
      $region86: #{ugcn_forward.15} parent=5 // pred_check
        %p1095 = pneg %p1094
      $region87: #{ugcn_forward.15} parent=5 // pred_check_branch
        %1097 = sbr.rel (%p1095) target = $region89
      $region88: #{ugcn_forward.15} parent=5 // pred_region
        %s1098 = ssub.s32 %s13, 2
        // Predicated region
        $region90: #{ugcn_forward.15} parent=88 // pred_check
          %p1099 = pneg %p131
        $region91: #{ugcn_forward.15} parent=88 // pred_check_branch
          %1101 = sbr.rel (%p1099) target = $region93
        $region92: #{ugcn_forward.15} parent=88 // pred_region
          %s1102 = sand.u32 %s116, 1
          %s1103 = sand.u32 %s116, 1
          %s1104 = smul.addr %s1103, 128
          %s1105 = scalar_lea.vmem [#allocation2], %s1104
        $region93: #{ugcn_forward.15} parent=88 // pred_fallthru
          _
        // Predicated region
        $region94: #{ugcn_forward.15} parent=88 // pred_check
          %p1106 = pneg %p157
        $region95: #{ugcn_forward.15} parent=88 // pred_check_branch
          %1108 = sbr.rel (%p1106) target = $region97
        $region96: #{ugcn_forward.15} parent=88 // pred_region
          %s1109 = smul.u32 16, %s19
          %p1110 = scmp.lt.s32.totalorder %s1109, 31
          %s1111 = scalar_select %p1110, %s1109, 31
          %s1112 = smul.addr %s1111, 8
          %s1113 = scalar_lea.vmem %s5, %s1112
        $region97: #{ugcn_forward.15} parent=88 // pred_fallthru
          _
        // Predicated region
        $region98: #{ugcn_forward.15} parent=88 // pred_check
          %p1114 = pneg %p183
        $region99: #{ugcn_forward.15} parent=88 // pred_check_branch
          %1116 = sbr.rel (%p1114) target = $region101
        $region100: #{ugcn_forward.15} parent=88 // pred_region
          %s1117 = smul.u32 16, %s19
          %p1118 = scmp.lt.s32.totalorder %s1117, 31
          %s1119 = scalar_select %p1118, %s1117, 31
          %s1120 = smul.addr %s1119, 8
          %s1121 = scalar_lea.vmem %s6, %s1120
        $region101: #{ugcn_forward.15} parent=88 // pred_fallthru
          _
      $region89: #{ugcn_forward.15} parent=5 // pred_fallthru
        _
    $region6: #{ugcn_forward.15} parent=1 // loop_footer
      %s17 = sadd.s32 1, %s13
    $region7: #{ugcn_forward.15} parent=1 // loop_footer_branch
      %12 = sbr.rel target = $region3
    $region8: #{ugcn_forward.15} parent=1 // loop_exit
      _

// kernel: ugcn_forward.16
$region0: #{ugcn_forward.16}
  #allocation0 [shape = 'u32[]', space=smem, size = 0x4, offset = 0x4, fixed_abs, tag = 'smem constant byte address 0x4 - core index']
  #allocation1 [shape = 'u32[144,128]{1,0:T(1,128)}', space=vmem, size = 0x12000, scoped, tag = 'internal scratch']
  #allocation2 [shape = 'f32[2,128,1]{2,1,0:T(8,128)}', space=vmem, size = 0x20000, scoped, tag = 'scratch operand']
  #allocation3 [shape = 'f32[2,128,1]{2,1,0:T(8,128)}', space=vmem, size = 0x20000, scoped, tag = 'scratch operand']
  #allocation4 [shape = 'f32[2,128,8]{2,1,0:T(8,128)}', space=vmem, size = 0x20000, scoped, tag = 'scratch operand']
  %s0 = inlined_call_operand.vmem [shape: s8[256,256], index: 0, kind: input, shape index: {}]
  %s1 = inlined_call_operand.vmem [shape: bf16[2,256,8], index: 1, kind: input, shape index: {}]
  %s2 = inlined_call_operand.vmem [shape: f32[2,256], index: 2, kind: input, shape index: {}]
  %s3 = inlined_call_operand.vmem [shape: f32[256,2], index: 3, kind: input, shape index: {}]
  %s4 = inlined_call_operand.vmem [shape: f32[1,8], index: 4, kind: input, shape index: {}]
  %s5 = inlined_call_operand.vmem [shape: f32[256,8], index: 5, kind: output, shape index: {}]
  %s6 = sld [smem:[#allocation0]]
  $region140: #{ugcn_forward.16} parent=0
    _
  %s8 = ssub.s32 1, %s6
  %s9 = scalar_select 0, %s8, %s6
  $region1: #{ugcn_forward.16} parent=0
    #allocation5 [shape = 'u8[32768]{0}', space=vmem, size = 0x8000, scoped, tag = 'input window, operand 0']
    #allocation6 [shape = 'u8[131072]{0}', space=vmem, size = 0x20000, scoped, tag = 'input window, operand 1']
    loop: start=0, step=1, limit=6
    $region2: #{ugcn_forward.16} parent=1 // loop_pre_header
      _
    $region3: #{ugcn_forward.16} parent=1 // loop_header
      %s11 = sphi 0, %s15
      %p12 = scmp.ge.s32.totalorder %s11, 6
      %s18 = sphi 0, %s30
      %s19 = sphi 0, %s26
      %s20 = sphi 0, %s18
      %s21 = sphi 0, %s19
      %s22 = sphi 0, %s20
      %s23 = sphi 0, %s21
      %s35 = sphi 0, %s37
      %s38 = sphi 0, %s35
      %s39 = sphi 0, %s38
      %s55 = sphi 0, %s39
      %s61 = sphi 0, %s63
      %s64 = sphi 0, %s61
      %s65 = sphi 0, %s64
      %s81 = sphi 0, %s65
      %s87 = sphi 0, %s89
      %s90 = sphi 0, %s87
      %s91 = sphi 0, %s90
      %s107 = sphi 0, %s91
      %s113 = sphi 0, %s115
      %s116 = sphi 0, %s113
      %s117 = sphi 0, %s116
      %s133 = sphi 0, %s117
      %s137 = sphi 0, %s137
      %s139 = sphi 0, %s137
      %s140 = sphi 0, %s139
      %s154 = sphi 0, %s140
      %s160 = sphi 0, %s162
      %s163 = sphi 0, %s160
      %s164 = sphi 0, %s163
      %s180 = sphi 0, %s164
    $region4: #{ugcn_forward.16} parent=1 // loop_header_branch
      %14 = sbr.rel (%p12) target = $region8
    $region5: #{ugcn_forward.16} parent=1 // loop_body
      %s16 = ssub.s32 %s11, 1
      %s17 = ssub.s32 %s11, 2
      %s24 = sadd.s32 1, %s19
      %p25 = scmp.ge.s32.totalorder %s24, 2
      %s26 = scalar_select %p25, 0, %s24
      %s27 = sadd.s32 1, %s18
      %s28 = scalar_select %p25, %s27, %s18
      %p29 = scmp.ge.s32.totalorder %s28, 2
      %s30 = scalar_select %p29, 0, %s28
      %s31 = ssub.s32 %s18, %s30
      %s32 = ssub.s32 %s19, %s26
      %s33 = sor.u32 %s31, %s32
      %p34 = scmp.eq.s32.totalorder %s33, 0
      %s36 = sadd.s32 %s35, 1
      %s37 = scalar_select %p34, %s35, %s36
      %p40 = pneg %p34
      %p41 = scmp.eq.s32.totalorder %s11, 3
      %p42 = por %p40, %p41
      %p43 = scmp.ne.s32.totalorder %s35, %s38
      %p44 = scmp.eq.s32.totalorder %s11, 0
      %p45 = por %p43, %p44
      %p46 = scmp.ne.s32.totalorder %s35, %s38
      %p47 = scmp.eq.s32.totalorder %s16, 3
      %p48 = por %p46, %p47
      %p49 = scmp.ne.s32.totalorder %s38, %s39
      %p50 = scmp.eq.s32.totalorder %s16, 0
      %p51 = por %p49, %p50
      %p52 = scmp.ne.s32.totalorder %s38, %s39
      %p53 = scmp.eq.s32.totalorder %s17, 3
      %p54 = por %p52, %p53
      %p56 = scmp.ne.s32.totalorder %s39, %s55
      %p57 = scmp.eq.s32.totalorder %s17, 0
      %p58 = por %p56, %p57
      %s59 = ssub.s32 %s19, %s26
      %p60 = scmp.eq.s32.totalorder %s59, 0
      %s62 = sadd.s32 %s61, 1
      %s63 = scalar_select %p60, %s61, %s62
      %p66 = pneg %p60
      %p67 = scmp.eq.s32.totalorder %s11, 3
      %p68 = por %p66, %p67
      %p69 = scmp.ne.s32.totalorder %s61, %s64
      %p70 = scmp.eq.s32.totalorder %s11, 0
      %p71 = por %p69, %p70
      %p72 = scmp.ne.s32.totalorder %s61, %s64
      %p73 = scmp.eq.s32.totalorder %s16, 3
      %p74 = por %p72, %p73
      %p75 = scmp.ne.s32.totalorder %s64, %s65
      %p76 = scmp.eq.s32.totalorder %s16, 0
      %p77 = por %p75, %p76
      %p78 = scmp.ne.s32.totalorder %s64, %s65
      %p79 = scmp.eq.s32.totalorder %s17, 3
      %p80 = por %p78, %p79
      %p82 = scmp.ne.s32.totalorder %s65, %s81
      %p83 = scmp.eq.s32.totalorder %s17, 0
      %p84 = por %p82, %p83
      %s85 = ssub.s32 %s19, %s26
      %p86 = scmp.eq.s32.totalorder %s85, 0
      %s88 = sadd.s32 %s87, 1
      %s89 = scalar_select %p86, %s87, %s88
      %p92 = pneg %p86
      %p93 = scmp.eq.s32.totalorder %s11, 3
      %p94 = por %p92, %p93
      %p95 = scmp.ne.s32.totalorder %s87, %s90
      %p96 = scmp.eq.s32.totalorder %s11, 0
      %p97 = por %p95, %p96
      %p98 = scmp.ne.s32.totalorder %s87, %s90
      %p99 = scmp.eq.s32.totalorder %s16, 3
      %p100 = por %p98, %p99
      %p101 = scmp.ne.s32.totalorder %s90, %s91
      %p102 = scmp.eq.s32.totalorder %s16, 0
      %p103 = por %p101, %p102
      %p104 = scmp.ne.s32.totalorder %s90, %s91
      %p105 = scmp.eq.s32.totalorder %s17, 3
      %p106 = por %p104, %p105
      %p108 = scmp.ne.s32.totalorder %s91, %s107
      %p109 = scmp.eq.s32.totalorder %s17, 0
      %p110 = por %p108, %p109
      %s111 = ssub.s32 %s18, %s30
      %p112 = scmp.eq.s32.totalorder %s111, 0
      %s114 = sadd.s32 %s113, 1
      %s115 = scalar_select %p112, %s113, %s114
      %p118 = pneg %p112
      %p119 = scmp.eq.s32.totalorder %s11, 3
      %p120 = por %p118, %p119
      %p121 = scmp.ne.s32.totalorder %s113, %s116
      %p122 = scmp.eq.s32.totalorder %s11, 0
      %p123 = por %p121, %p122
      %p124 = scmp.ne.s32.totalorder %s113, %s116
      %p125 = scmp.eq.s32.totalorder %s16, 3
      %p126 = por %p124, %p125
      %p127 = scmp.ne.s32.totalorder %s116, %s117
      %p128 = scmp.eq.s32.totalorder %s16, 0
      %p129 = por %p127, %p128
      %p130 = scmp.ne.s32.totalorder %s116, %s117
      %p131 = scmp.eq.s32.totalorder %s17, 3
      %p132 = por %p130, %p131
      %p134 = scmp.ne.s32.totalorder %s117, %s133
      %p135 = scmp.eq.s32.totalorder %s17, 0
      %p136 = por %p134, %p135
      %s138 = sadd.s32 %s137, 1
      %p141 = scmp.eq.s32.totalorder %s11, 3
      %p142 = scmp.ne.s32.totalorder %s137, %s139
      %p143 = scmp.eq.s32.totalorder %s11, 0
      %p144 = por %p142, %p143
      %p145 = scmp.ne.s32.totalorder %s137, %s139
      %p146 = scmp.eq.s32.totalorder %s16, 3
      %p147 = por %p145, %p146
      %p148 = scmp.ne.s32.totalorder %s139, %s140
      %p149 = scmp.eq.s32.totalorder %s16, 0
      %p150 = por %p148, %p149
      %p151 = scmp.ne.s32.totalorder %s139, %s140
      %p152 = scmp.eq.s32.totalorder %s17, 3
      %p153 = por %p151, %p152
      %p155 = scmp.ne.s32.totalorder %s140, %s154
      %p156 = scmp.eq.s32.totalorder %s17, 0
      %p157 = por %p155, %p156
      %s158 = ssub.s32 %s18, %s30
      %p159 = scmp.eq.s32.totalorder %s158, 0
      %s161 = sadd.s32 %s160, 1
      %s162 = scalar_select %p159, %s160, %s161
      %p165 = pneg %p159
      %p166 = scmp.eq.s32.totalorder %s11, 3
      %p167 = por %p165, %p166
      %p168 = scmp.ne.s32.totalorder %s160, %s163
      %p169 = scmp.eq.s32.totalorder %s11, 0
      %p170 = por %p168, %p169
      %p171 = scmp.ne.s32.totalorder %s160, %s163
      %p172 = scmp.eq.s32.totalorder %s16, 3
      %p173 = por %p171, %p172
      %p174 = scmp.ne.s32.totalorder %s163, %s164
      %p175 = scmp.eq.s32.totalorder %s16, 0
      %p176 = por %p174, %p175
      %p177 = scmp.ne.s32.totalorder %s163, %s164
      %p178 = scmp.eq.s32.totalorder %s17, 3
      %p179 = por %p177, %p178
      %p181 = scmp.ne.s32.totalorder %s164, %s180
      %p182 = scmp.eq.s32.totalorder %s17, 0
      %p183 = por %p181, %p182
      %p184 = scmp.le.s32.totalorder 1, %s11
      %p185 = scmp.lt.s32.totalorder %s11, 5
      %p186 = pnand %p184, %p185
      %p187 = pneg %p186
      // Predicated region
      $region9: #{ugcn_forward.16} parent=5 // pred_check
        _
      $region10: #{ugcn_forward.16} parent=5 // pred_check_branch
        %189 = sbr.rel (%p186) target = $region12
      $region11: #{ugcn_forward.16} parent=5 // pred_region
        %s190 = ssub.s32 %s11, 1
        // Predicated region
        $region13: #{ugcn_forward.16} parent=11 // pred_check
          %p191 = pneg %p150
        $region14: #{ugcn_forward.16} parent=11 // pred_check_branch
          %193 = sbr.rel (%p191) target = $region16
        $region15: #{ugcn_forward.16} parent=11 // pred_region
          _
        $region16: #{ugcn_forward.16} parent=11 // pred_fallthru
          _
      $region12: #{ugcn_forward.16} parent=5 // pred_fallthru
        _
      %p194 = scmp.lt.s32.totalorder %s11, 4
      // Predicated region
      $region17: #{ugcn_forward.16} parent=5 // pred_check
        %p195 = pneg %p194
      $region18: #{ugcn_forward.16} parent=5 // pred_check_branch
        %197 = sbr.rel (%p195) target = $region20
      $region19: #{ugcn_forward.16} parent=5 // pred_region
        // Predicated region
        $region21: #{ugcn_forward.16} parent=19 // pred_check
          %p198 = pneg %p45
        $region22: #{ugcn_forward.16} parent=19 // pred_check_branch
          %200 = sbr.rel (%p198) target = $region24
        $region23: #{ugcn_forward.16} parent=19 // pred_region
          %s201 = sand.u32 %s35, 1
          %s202 = sand.u32 %s35, 1
          %s203 = smul.addr %s202, 32
          %s204 = scalar_lea.vmem [#allocation5], %s203
          %s205 = smul.u32 4, %s18
          %s206 = smul.addr %s205, 2
          %s207 = sadd.s32 %s19, %s206
          %s208 = smul.addr %s207, 8
          %s209 = scalar_lea.vmem %s0, %s208
          // Predicated region
          $region25: #{ugcn_forward.16} parent=23 // pred_check
            _
          $region26: #{ugcn_forward.16} parent=23 // pred_check_branch
            %211 = sbr.rel (0) target = $region28
          $region27: #{ugcn_forward.16} parent=23 // pred_region
            // Predicated region
            $region29: #{ugcn_forward.16} parent=27 // pred_check
              _
            $region30: #{ugcn_forward.16} parent=27 // pred_check_branch
              %213 = sbr.rel (0) target = $region32
            $region31: #{ugcn_forward.16} parent=27 // pred_region
              // Predicated region
              $region44: #{ugcn_forward.16} parent=31 // pred_check
                _
              $region45: #{ugcn_forward.16} parent=31 // pred_check_branch
                %235 = sbr.rel (0) target = $region47
              $region46: #{ugcn_forward.16} parent=31 // pred_region
                loop: start=0, step=1, limit=1
                $region48: #{ugcn_forward.16} parent=46 // loop_pre_header
                  _
                $region49: #{ugcn_forward.16} parent=46 // loop_header
                  %s237 = sphi 0, %s241
                  %p238 = scmp.ge.s32.totalorder %s237, 1
                  %s242 = sphi %s209, %s209
                  %s243 = sphi %s204, %s204
                $region50: #{ugcn_forward.16} parent=46 // loop_header_branch
                  %240 = sbr.rel (%p238) target = $region54
                $region51: #{ugcn_forward.16} parent=46 // loop_body
                  %v244 = vld [vmem:[%s242] sm:$0xff]
                  %245 = vst [vmem:[%s243] sm:$0xff] %v244
                  %v246 = vld [vmem:[%s242 + $0x10] sm:$0xff]
                  %247 = vst [vmem:[%s243 + $0x8] sm:$0xff] %v246
                  %v248 = vld [vmem:[%s242 + $0x20] sm:$0xff]
                  %249 = vst [vmem:[%s243 + $0x10] sm:$0xff] %v248
                  %v250 = vld [vmem:[%s242 + $0x30] sm:$0xff]
                  %251 = vst [vmem:[%s243 + $0x18] sm:$0xff] %v250
                $region52: #{ugcn_forward.16} parent=46 // loop_footer
                  %s241 = sadd.s32 1, %s237
                $region53: #{ugcn_forward.16} parent=46 // loop_footer_branch
                  %236 = sbr.rel target = $region49
                $region54: #{ugcn_forward.16} parent=46 // loop_exit
                  _
              $region47: #{ugcn_forward.16} parent=31 // pred_fallthru
                _
              // Predicated region
              $region55: #{ugcn_forward.16} parent=31 // pred_check
                _
              $region56: #{ugcn_forward.16} parent=31 // pred_check_branch
                %253 = sbr.rel target = $region58
              $region57: #{ugcn_forward.16} parent=31 // pred_region
                _
              $region58: #{ugcn_forward.16} parent=31 // pred_fallthru
                _
            $region32: #{ugcn_forward.16} parent=27 // pred_fallthru
              _
            // Predicated region
            $region33: #{ugcn_forward.16} parent=27 // pred_check
              _
            $region34: #{ugcn_forward.16} parent=27 // pred_check_branch
              %215 = sbr.rel target = $region36
            $region35: #{ugcn_forward.16} parent=27 // pred_region
              %s217 = ssub.s32 256, 1
              loop: start=0, step=1, limit=1
              $region37: #{ugcn_forward.16} parent=35 // loop_pre_header
                _
              $region38: #{ugcn_forward.16} parent=35 // loop_header
                %s219 = sphi 0, %s223
                %p220 = scmp.ge.s32.totalorder %s219, 1
                %s224 = sphi %s209, %s209
                %s225 = sphi %s204, %s204
              $region39: #{ugcn_forward.16} parent=35 // loop_header_branch
                %222 = sbr.rel (%p220) target = $region43
              $region40: #{ugcn_forward.16} parent=35 // loop_body
                %v226 = vld [vmem:[%s224] sm:%s217]
                %227 = vst [vmem:[%s225] sm:%s217] %v226
                %v228 = vld [vmem:[%s224 + $0x10] sm:%s217]
                %229 = vst [vmem:[%s225 + $0x8] sm:%s217] %v228
                %v230 = vld [vmem:[%s224 + $0x20] sm:%s217]
                %231 = vst [vmem:[%s225 + $0x10] sm:%s217] %v230
                %v232 = vld [vmem:[%s224 + $0x30] sm:%s217]
                %233 = vst [vmem:[%s225 + $0x18] sm:%s217] %v232
              $region41: #{ugcn_forward.16} parent=35 // loop_footer
                %s223 = sadd.s32 1, %s219
              $region42: #{ugcn_forward.16} parent=35 // loop_footer_branch
                %218 = sbr.rel target = $region38
              $region43: #{ugcn_forward.16} parent=35 // loop_exit
                _
            $region36: #{ugcn_forward.16} parent=27 // pred_fallthru
              _
          $region28: #{ugcn_forward.16} parent=23 // pred_fallthru
            _
          %254 = vnop
        $region24: #{ugcn_forward.16} parent=19 // pred_fallthru
          _
        // Predicated region
        $region59: #{ugcn_forward.16} parent=19 // pred_check
          %p255 = pneg %p71
        $region60: #{ugcn_forward.16} parent=19 // pred_check_branch
          %257 = sbr.rel (%p255) target = $region62
        $region61: #{ugcn_forward.16} parent=19 // pred_region
          %s258 = sand.u32 %s61, 1
          %s259 = sand.u32 %s61, 1
          %s260 = smul.addr %s259, 128
          %s261 = scalar_lea.vmem [#allocation6], %s260
          %s262 = smul.u32 16, %s19
          %s263 = smul.addr %s262, 4
          %s264 = scalar_lea.vmem %s1, %s263
          // Predicated region
          $region63: #{ugcn_forward.16} parent=61 // pred_check
            _
          $region64: #{ugcn_forward.16} parent=61 // pred_check_branch
            %266 = sbr.rel (0) target = $region66
          $region65: #{ugcn_forward.16} parent=61 // pred_region
            // Predicated region
            $region67: #{ugcn_forward.16} parent=65 // pred_check
              _
            $region68: #{ugcn_forward.16} parent=65 // pred_check_branch
              %268 = sbr.rel target = $region70
            $region69: #{ugcn_forward.16} parent=65 // pred_region
              // Predicated region
              $region82: #{ugcn_forward.16} parent=69 // pred_check
                _
              $region83: #{ugcn_forward.16} parent=69 // pred_check_branch
                %346 = sbr.rel (0) target = $region85
              $region84: #{ugcn_forward.16} parent=69 // pred_region
                loop: start=0, step=1, limit=1
                $region86: #{ugcn_forward.16} parent=84 // loop_pre_header
                  _
                $region87: #{ugcn_forward.16} parent=84 // loop_header
                  %s348 = sphi 0, %s352
                  %p349 = scmp.ge.s32.totalorder %s348, 1
                  %s353 = sphi %s264, %s264
                  %s354 = sphi %s261, %s261
                $region88: #{ugcn_forward.16} parent=84 // loop_header_branch
                  %351 = sbr.rel (%p349) target = $region92
                $region89: #{ugcn_forward.16} parent=84 // loop_body
                  _
                $region90: #{ugcn_forward.16} parent=84 // loop_footer
                  %s352 = sadd.s32 1, %s348
                $region91: #{ugcn_forward.16} parent=84 // loop_footer_branch
                  %347 = sbr.rel target = $region87
                $region92: #{ugcn_forward.16} parent=84 // loop_exit
                  _
                %s356 = ssub.s32 16, 1
                loop: start=0, step=1, limit=1
                $region93: #{ugcn_forward.16} parent=84 // loop_pre_header
                  _
                $region94: #{ugcn_forward.16} parent=84 // loop_header
                  %s358 = sphi 0, %s362
                  %p359 = scmp.ge.s32.totalorder %s358, 1
                  %s363 = sphi %s264, %s264
                  %s364 = sphi %s261, %s261
                $region95: #{ugcn_forward.16} parent=84 // loop_header_branch
                  %361 = sbr.rel (%p359) target = $region99
                $region96: #{ugcn_forward.16} parent=84 // loop_body
                  %v365 = vld [vmem:[%s363] sm:%s356]
                  %366 = vst [vmem:[%s364] sm:%s356] %v365
                  %v367 = vld [vmem:[%s363 + $0x4] sm:%s356]
                  %368 = vst [vmem:[%s364 + $0x4] sm:%s356] %v367
                  %v369 = vld [vmem:[%s363 + $0x8] sm:%s356]
                  %370 = vst [vmem:[%s364 + $0x8] sm:%s356] %v369
                  %v371 = vld [vmem:[%s363 + $0xc] sm:%s356]
                  %372 = vst [vmem:[%s364 + $0xc] sm:%s356] %v371
                  %v373 = vld [vmem:[%s363 + $0x10] sm:%s356]
                  %374 = vst [vmem:[%s364 + $0x10] sm:%s356] %v373
                  %v375 = vld [vmem:[%s363 + $0x14] sm:%s356]
                  %376 = vst [vmem:[%s364 + $0x14] sm:%s356] %v375
                  %v377 = vld [vmem:[%s363 + $0x18] sm:%s356]
                  %378 = vst [vmem:[%s364 + $0x18] sm:%s356] %v377
                  %v379 = vld [vmem:[%s363 + $0x1c] sm:%s356]
                  %380 = vst [vmem:[%s364 + $0x1c] sm:%s356] %v379
                  %v381 = vld [vmem:[%s363 + $0x20] sm:%s356]
                  %382 = vst [vmem:[%s364 + $0x20] sm:%s356] %v381
                  %v383 = vld [vmem:[%s363 + $0x24] sm:%s356]
                  %384 = vst [vmem:[%s364 + $0x24] sm:%s356] %v383
                  %v385 = vld [vmem:[%s363 + $0x28] sm:%s356]
                  %386 = vst [vmem:[%s364 + $0x28] sm:%s356] %v385
                  %v387 = vld [vmem:[%s363 + $0x2c] sm:%s356]
                  %388 = vst [vmem:[%s364 + $0x2c] sm:%s356] %v387
                  %v389 = vld [vmem:[%s363 + $0x30] sm:%s356]
                  %390 = vst [vmem:[%s364 + $0x30] sm:%s356] %v389
                  %v391 = vld [vmem:[%s363 + $0x34] sm:%s356]
                  %392 = vst [vmem:[%s364 + $0x34] sm:%s356] %v391
                  %v393 = vld [vmem:[%s363 + $0x38] sm:%s356]
                  %394 = vst [vmem:[%s364 + $0x38] sm:%s356] %v393
                  %v395 = vld [vmem:[%s363 + $0x3c] sm:%s356]
                  %396 = vst [vmem:[%s364 + $0x3c] sm:%s356] %v395
                  %v397 = vld [vmem:[%s363 + $0x80] sm:%s356]
                  %398 = vst [vmem:[%s364 + $0x40] sm:%s356] %v397
                  %v399 = vld [vmem:[%s363 + $0x84] sm:%s356]
                  %400 = vst [vmem:[%s364 + $0x44] sm:%s356] %v399
                  %v401 = vld [vmem:[%s363 + $0x88] sm:%s356]
                  %402 = vst [vmem:[%s364 + $0x48] sm:%s356] %v401
                  %v403 = vld [vmem:[%s363 + $0x8c] sm:%s356]
                  %404 = vst [vmem:[%s364 + $0x4c] sm:%s356] %v403
                  %v405 = vld [vmem:[%s363 + $0x90] sm:%s356]
                  %406 = vst [vmem:[%s364 + $0x50] sm:%s356] %v405
                  %v407 = vld [vmem:[%s363 + $0x94] sm:%s356]
                  %408 = vst [vmem:[%s364 + $0x54] sm:%s356] %v407
                  %v409 = vld [vmem:[%s363 + $0x98] sm:%s356]
                  %410 = vst [vmem:[%s364 + $0x58] sm:%s356] %v409
                  %v411 = vld [vmem:[%s363 + $0x9c] sm:%s356]
                  %412 = vst [vmem:[%s364 + $0x5c] sm:%s356] %v411
                  %v413 = vld [vmem:[%s363 + $0xa0] sm:%s356]
                  %414 = vst [vmem:[%s364 + $0x60] sm:%s356] %v413
                  %v415 = vld [vmem:[%s363 + $0xa4] sm:%s356]
                  %416 = vst [vmem:[%s364 + $0x64] sm:%s356] %v415
                  %v417 = vld [vmem:[%s363 + $0xa8] sm:%s356]
                  %418 = vst [vmem:[%s364 + $0x68] sm:%s356] %v417
                  %v419 = vld [vmem:[%s363 + $0xac] sm:%s356]
                  %420 = vst [vmem:[%s364 + $0x6c] sm:%s356] %v419
                  %v421 = vld [vmem:[%s363 + $0xb0] sm:%s356]
                  %422 = vst [vmem:[%s364 + $0x70] sm:%s356] %v421
                  %v423 = vld [vmem:[%s363 + $0xb4] sm:%s356]
                  %424 = vst [vmem:[%s364 + $0x74] sm:%s356] %v423
                  %v425 = vld [vmem:[%s363 + $0xb8] sm:%s356]
                  %426 = vst [vmem:[%s364 + $0x78] sm:%s356] %v425
                  %v427 = vld [vmem:[%s363 + $0xbc] sm:%s356]
                  %428 = vst [vmem:[%s364 + $0x7c] sm:%s356] %v427
                $region97: #{ugcn_forward.16} parent=84 // loop_footer
                  %s362 = sadd.s32 1, %s358
                $region98: #{ugcn_forward.16} parent=84 // loop_footer_branch
                  %357 = sbr.rel target = $region94
                $region99: #{ugcn_forward.16} parent=84 // loop_exit
                  _
              $region85: #{ugcn_forward.16} parent=69 // pred_fallthru
                _
            $region70: #{ugcn_forward.16} parent=65 // pred_fallthru
              _
            // Predicated region
            $region71: #{ugcn_forward.16} parent=65 // pred_check
              _
            $region72: #{ugcn_forward.16} parent=65 // pred_check_branch
              %270 = sbr.rel (0) target = $region74
            $region73: #{ugcn_forward.16} parent=65 // pred_region
              %s272 = ssub.s32 16, 1
              loop: start=0, step=1, limit=1
              $region75: #{ugcn_forward.16} parent=73 // loop_pre_header
                _
              $region76: #{ugcn_forward.16} parent=73 // loop_header
                %s274 = sphi 0, %s278
                %p275 = scmp.ge.s32.totalorder %s274, 1
                %s279 = sphi %s264, %s264
                %s280 = sphi %s261, %s261
              $region77: #{ugcn_forward.16} parent=73 // loop_header_branch
                %277 = sbr.rel (%p275) target = $region81
              $region78: #{ugcn_forward.16} parent=73 // loop_body
                %v281 = vld [vmem:[%s279] sm:%s272]
                %282 = vst [vmem:[%s280] sm:%s272] %v281
                %v283 = vld [vmem:[%s279 + $0x4] sm:%s272]
                %284 = vst [vmem:[%s280 + $0x4] sm:%s272] %v283
                %v285 = vld [vmem:[%s279 + $0x8] sm:%s272]
                %286 = vst [vmem:[%s280 + $0x8] sm:%s272] %v285
                %v287 = vld [vmem:[%s279 + $0xc] sm:%s272]
                %288 = vst [vmem:[%s280 + $0xc] sm:%s272] %v287
                %v289 = vld [vmem:[%s279 + $0x10] sm:%s272]
                %290 = vst [vmem:[%s280 + $0x10] sm:%s272] %v289
                %v291 = vld [vmem:[%s279 + $0x14] sm:%s272]
                %292 = vst [vmem:[%s280 + $0x14] sm:%s272] %v291
                %v293 = vld [vmem:[%s279 + $0x18] sm:%s272]
                %294 = vst [vmem:[%s280 + $0x18] sm:%s272] %v293
                %v295 = vld [vmem:[%s279 + $0x1c] sm:%s272]
                %296 = vst [vmem:[%s280 + $0x1c] sm:%s272] %v295
                %v297 = vld [vmem:[%s279 + $0x20] sm:%s272]
                %298 = vst [vmem:[%s280 + $0x20] sm:%s272] %v297
                %v299 = vld [vmem:[%s279 + $0x24] sm:%s272]
                %300 = vst [vmem:[%s280 + $0x24] sm:%s272] %v299
                %v301 = vld [vmem:[%s279 + $0x28] sm:%s272]
                %302 = vst [vmem:[%s280 + $0x28] sm:%s272] %v301
                %v303 = vld [vmem:[%s279 + $0x2c] sm:%s272]
                %304 = vst [vmem:[%s280 + $0x2c] sm:%s272] %v303
                %v305 = vld [vmem:[%s279 + $0x30] sm:%s272]
                %306 = vst [vmem:[%s280 + $0x30] sm:%s272] %v305
                %v307 = vld [vmem:[%s279 + $0x34] sm:%s272]
                %308 = vst [vmem:[%s280 + $0x34] sm:%s272] %v307
                %v309 = vld [vmem:[%s279 + $0x38] sm:%s272]
                %310 = vst [vmem:[%s280 + $0x38] sm:%s272] %v309
                %v311 = vld [vmem:[%s279 + $0x3c] sm:%s272]
                %312 = vst [vmem:[%s280 + $0x3c] sm:%s272] %v311
                %v313 = vld [vmem:[%s279 + $0x80] sm:%s272]
                %314 = vst [vmem:[%s280 + $0x40] sm:%s272] %v313
                %v315 = vld [vmem:[%s279 + $0x84] sm:%s272]
                %316 = vst [vmem:[%s280 + $0x44] sm:%s272] %v315
                %v317 = vld [vmem:[%s279 + $0x88] sm:%s272]
                %318 = vst [vmem:[%s280 + $0x48] sm:%s272] %v317
                %v319 = vld [vmem:[%s279 + $0x8c] sm:%s272]
                %320 = vst [vmem:[%s280 + $0x4c] sm:%s272] %v319
                %v321 = vld [vmem:[%s279 + $0x90] sm:%s272]
                %322 = vst [vmem:[%s280 + $0x50] sm:%s272] %v321
                %v323 = vld [vmem:[%s279 + $0x94] sm:%s272]
                %324 = vst [vmem:[%s280 + $0x54] sm:%s272] %v323
                %v325 = vld [vmem:[%s279 + $0x98] sm:%s272]
                %326 = vst [vmem:[%s280 + $0x58] sm:%s272] %v325
                %v327 = vld [vmem:[%s279 + $0x9c] sm:%s272]
                %328 = vst [vmem:[%s280 + $0x5c] sm:%s272] %v327
                %v329 = vld [vmem:[%s279 + $0xa0] sm:%s272]
                %330 = vst [vmem:[%s280 + $0x60] sm:%s272] %v329
                %v331 = vld [vmem:[%s279 + $0xa4] sm:%s272]
                %332 = vst [vmem:[%s280 + $0x64] sm:%s272] %v331
                %v333 = vld [vmem:[%s279 + $0xa8] sm:%s272]
                %334 = vst [vmem:[%s280 + $0x68] sm:%s272] %v333
                %v335 = vld [vmem:[%s279 + $0xac] sm:%s272]
                %336 = vst [vmem:[%s280 + $0x6c] sm:%s272] %v335
                %v337 = vld [vmem:[%s279 + $0xb0] sm:%s272]
                %338 = vst [vmem:[%s280 + $0x70] sm:%s272] %v337
                %v339 = vld [vmem:[%s279 + $0xb4] sm:%s272]
                %340 = vst [vmem:[%s280 + $0x74] sm:%s272] %v339
                %v341 = vld [vmem:[%s279 + $0xb8] sm:%s272]
                %342 = vst [vmem:[%s280 + $0x78] sm:%s272] %v341
                %v343 = vld [vmem:[%s279 + $0xbc] sm:%s272]
                %344 = vst [vmem:[%s280 + $0x7c] sm:%s272] %v343
              $region79: #{ugcn_forward.16} parent=73 // loop_footer
                %s278 = sadd.s32 1, %s274
              $region80: #{ugcn_forward.16} parent=73 // loop_footer_branch
                %273 = sbr.rel target = $region76
              $region81: #{ugcn_forward.16} parent=73 // loop_exit
                _
            $region74: #{ugcn_forward.16} parent=65 // pred_fallthru
              _
          $region66: #{ugcn_forward.16} parent=61 // pred_fallthru
            _
          %429 = vnop
        $region62: #{ugcn_forward.16} parent=19 // pred_fallthru
          _
        // Predicated region
        $region100: #{ugcn_forward.16} parent=19 // pred_check
          %p430 = pneg %p97
        $region101: #{ugcn_forward.16} parent=19 // pred_check_branch
          %432 = sbr.rel (%p430) target = $region103
        $region102: #{ugcn_forward.16} parent=19 // pred_region
          %p433 = scmp.lt.s32.totalorder %s19, 1
          %s434 = scalar_select %p433, %s19, 1
          %s435 = smul.addr %s434, 2
          %s436 = scalar_lea.vmem %s2, %s435
        $region103: #{ugcn_forward.16} parent=19 // pred_fallthru
          _
        // Predicated region
        $region104: #{ugcn_forward.16} parent=19 // pred_check
          %p437 = pneg %p123
        $region105: #{ugcn_forward.16} parent=19 // pred_check_branch
          %439 = sbr.rel (%p437) target = $region107
        $region106: #{ugcn_forward.16} parent=19 // pred_region
          %s440 = smul.u32 16, %s18
          %p441 = scmp.lt.s32.totalorder %s440, 31
          %s442 = scalar_select %p441, %s440, 31
          %s443 = smul.addr %s442, 8
          %s444 = scalar_lea.vmem %s3, %s443
          %s445 = smul.u32 16, %s18
        $region107: #{ugcn_forward.16} parent=19 // pred_fallthru
          _
      $region20: #{ugcn_forward.16} parent=5 // pred_fallthru
        _
      %p446 = scmp.le.s32.totalorder 1, %s11
      %p447 = scmp.lt.s32.totalorder %s11, 5
      %p448 = pnand %p446, %p447
      %p449 = pneg %p448
      // Predicated region
      $region108: #{ugcn_forward.16} parent=5 // pred_check
        _
      $region109: #{ugcn_forward.16} parent=5 // pred_check_branch
        %451 = sbr.rel (%p448) target = $region111
      $region110: #{ugcn_forward.16} parent=5 // pred_region
        %s452 = ssub.s32 %s11, 1
        %s453 = sand.u32 %s38, 1
        %s454 = sand.u32 %s38, 1
        %s455 = smul.addr %s454, 32
        %s456 = scalar_lea.vmem [#allocation5], %s455
        // Predicated region
        $region112: #{ugcn_forward.16} parent=110 // pred_check
          %p457 = pneg %p51
        $region113: #{ugcn_forward.16} parent=110 // pred_check_branch
          %459 = sbr.rel (%p457) target = $region115
        $region114: #{ugcn_forward.16} parent=110 // pred_region
          _
        $region115: #{ugcn_forward.16} parent=110 // pred_fallthru
          _
        %s460 = sand.u32 %s64, 1
        %s461 = sand.u32 %s64, 1
        %s462 = smul.addr %s461, 128
        %s463 = scalar_lea.vmem [#allocation6], %s462
        // Predicated region
        $region116: #{ugcn_forward.16} parent=110 // pred_check
          %p464 = pneg %p77
        $region117: #{ugcn_forward.16} parent=110 // pred_check_branch
          %466 = sbr.rel (%p464) target = $region119
        $region118: #{ugcn_forward.16} parent=110 // pred_region
          _
        $region119: #{ugcn_forward.16} parent=110 // pred_fallthru
          _
        %s467 = sand.u32 %s38, 1
        %s468 = sand.u32 %s38, 1
        %s469 = smul.addr %s468, 32
        %s470 = scalar_lea.vmem [#allocation5], %s469
        %p471 = pneg %p51
        %p472 = pneg %p48
        %s473 = sand.u32 %s64, 1
        %s474 = sand.u32 %s64, 1
        %s475 = smul.addr %s474, 128
        %s476 = scalar_lea.vmem [#allocation6], %s475
        %p477 = pneg %p77
        %p478 = pneg %p74
        %p479 = scmp.lt.s32.totalorder %s21, 1
        %s480 = scalar_select %p479, %s21, 1
        %s481 = smul.addr %s480, 2
        %s482 = scalar_lea.vmem %s2, %s481
        %p483 = pneg %p103
        %p484 = pneg %p100
        %s485 = smul.u32 16, %s20
        %p486 = scmp.lt.s32.totalorder %s485, 31
        %s487 = scalar_select %p486, %s485, 31
        %s488 = smul.addr %s487, 8
        %s489 = scalar_lea.vmem %s3, %s488
        %p490 = pneg %p129
        %p491 = pneg %p126
        %p492 = pneg %p150
        %p493 = pneg %p147
        %p494 = pneg %p176
        %p495 = pneg %p173
        %s496 = smul.u32 16, %s20
        %p497 = scmp.lt.s32.totalorder %s496, 31
        %s498 = scalar_select %p497, %s496, 31
        %s499 = smul.addr %s498, 8
        %s500 = scalar_lea.vmem %s5, %s499
        %s501 = smul.u32 4, %s20
        %s502 = smul.u32 16, %s21
        %p503 = scmp.lt.s32.totalorder %s21, 1
        %s504 = scalar_select %p503, %s21, 1
        %s505 = smul.addr %s504, 2
        %s506 = scalar_lea.vmem %s2, %s505
        %s507 = smul.u32 16, %s20
        %p508 = scmp.lt.s32.totalorder %s507, 31
        %s509 = scalar_select %p508, %s507, 31
        %s510 = smul.addr %s509, 8
        %s511 = scalar_lea.vmem %s3, %s510
        %s512 = smul.u32 16, %s20
        %s513 = smul.u32 16, %s20
        %p514 = scmp.lt.s32.totalorder %s513, 31
        %s515 = scalar_select %p514, %s513, 31
        %s516 = smul.addr %s515, 8
        %s517 = scalar_lea.vmem %s5, %s516
        %s518 = smul.u32 16, %s20
        %p520 = scmp.eq.s32.totalorder %s21, 0
        // Predicated region
        $region120: #{ugcn_forward.16} parent=110 // pred_check
          %p521 = pneg %p520
        $region121: #{ugcn_forward.16} parent=110 // pred_check_branch
          %523 = sbr.rel (%p521) target = $region123
        $region122: #{ugcn_forward.16} parent=110 // pred_region
          %vm524 = vcmask 7168
          %525 = vst.msk [vmem:[#allocation2] sm:$0xff] %vm524, -1e+30
          %526 = vst.msk [vmem:[#allocation2 + $0x8] sm:$0xff] %vm524, -1e+30
          %527 = vst.msk [vmem:[#allocation2 + $0x10] sm:$0xff] %vm524, -1e+30
          %528 = vst.msk [vmem:[#allocation2 + $0x18] sm:$0xff] %vm524, -1e+30
          %529 = vst.msk [vmem:[#allocation2 + $0x20] sm:$0xff] %vm524, -1e+30
          %530 = vst.msk [vmem:[#allocation2 + $0x28] sm:$0xff] %vm524, -1e+30
          %531 = vst.msk [vmem:[#allocation2 + $0x30] sm:$0xff] %vm524, -1e+30
          %532 = vst.msk [vmem:[#allocation2 + $0x38] sm:$0xff] %vm524, -1e+30
          %533 = vst.msk [vmem:[#allocation2 + $0x40] sm:$0xff] %vm524, -1e+30
          %534 = vst.msk [vmem:[#allocation2 + $0x48] sm:$0xff] %vm524, -1e+30
          %535 = vst.msk [vmem:[#allocation2 + $0x50] sm:$0xff] %vm524, -1e+30
          %536 = vst.msk [vmem:[#allocation2 + $0x58] sm:$0xff] %vm524, -1e+30
          %537 = vst.msk [vmem:[#allocation2 + $0x60] sm:$0xff] %vm524, -1e+30
          %538 = vst.msk [vmem:[#allocation2 + $0x68] sm:$0xff] %vm524, -1e+30
          %539 = vst.msk [vmem:[#allocation2 + $0x70] sm:$0xff] %vm524, -1e+30
          %540 = vst.msk [vmem:[#allocation2 + $0x78] sm:$0xff] %vm524, -1e+30
          %541 = vst.msk [vmem:[#allocation2 + $0x80] sm:$0xff] %vm524, -1e+30
          %542 = vst.msk [vmem:[#allocation2 + $0x88] sm:$0xff] %vm524, -1e+30
          %543 = vst.msk [vmem:[#allocation2 + $0x90] sm:$0xff] %vm524, -1e+30
          %544 = vst.msk [vmem:[#allocation2 + $0x98] sm:$0xff] %vm524, -1e+30
          %545 = vst.msk [vmem:[#allocation2 + $0xa0] sm:$0xff] %vm524, -1e+30
          %546 = vst.msk [vmem:[#allocation2 + $0xa8] sm:$0xff] %vm524, -1e+30
          %547 = vst.msk [vmem:[#allocation2 + $0xb0] sm:$0xff] %vm524, -1e+30
          %548 = vst.msk [vmem:[#allocation2 + $0xb8] sm:$0xff] %vm524, -1e+30
          %549 = vst.msk [vmem:[#allocation2 + $0xc0] sm:$0xff] %vm524, -1e+30
          %550 = vst.msk [vmem:[#allocation2 + $0xc8] sm:$0xff] %vm524, -1e+30
          %551 = vst.msk [vmem:[#allocation2 + $0xd0] sm:$0xff] %vm524, -1e+30
          %552 = vst.msk [vmem:[#allocation2 + $0xd8] sm:$0xff] %vm524, -1e+30
          %553 = vst.msk [vmem:[#allocation2 + $0xe0] sm:$0xff] %vm524, -1e+30
          %554 = vst.msk [vmem:[#allocation2 + $0xe8] sm:$0xff] %vm524, -1e+30
          %555 = vst.msk [vmem:[#allocation2 + $0xf0] sm:$0xff] %vm524, -1e+30
          %556 = vst.msk [vmem:[#allocation2 + $0xf8] sm:$0xff] %vm524, -1e+30
          %557 = vst.msk [vmem:[#allocation3] sm:$0xff] %vm524, 0.0
          %558 = vst.msk [vmem:[#allocation3 + $0x8] sm:$0xff] %vm524, 0.0
          %559 = vst.msk [vmem:[#allocation3 + $0x10] sm:$0xff] %vm524, 0.0
          %560 = vst.msk [vmem:[#allocation3 + $0x18] sm:$0xff] %vm524, 0.0
          %561 = vst.msk [vmem:[#allocation3 + $0x20] sm:$0xff] %vm524, 0.0
          %562 = vst.msk [vmem:[#allocation3 + $0x28] sm:$0xff] %vm524, 0.0
          %563 = vst.msk [vmem:[#allocation3 + $0x30] sm:$0xff] %vm524, 0.0
          %564 = vst.msk [vmem:[#allocation3 + $0x38] sm:$0xff] %vm524, 0.0
          %565 = vst.msk [vmem:[#allocation3 + $0x40] sm:$0xff] %vm524, 0.0
          %566 = vst.msk [vmem:[#allocation3 + $0x48] sm:$0xff] %vm524, 0.0
          %567 = vst.msk [vmem:[#allocation3 + $0x50] sm:$0xff] %vm524, 0.0
          %568 = vst.msk [vmem:[#allocation3 + $0x58] sm:$0xff] %vm524, 0.0
          %569 = vst.msk [vmem:[#allocation3 + $0x60] sm:$0xff] %vm524, 0.0
          %570 = vst.msk [vmem:[#allocation3 + $0x68] sm:$0xff] %vm524, 0.0
          %571 = vst.msk [vmem:[#allocation3 + $0x70] sm:$0xff] %vm524, 0.0
          %572 = vst.msk [vmem:[#allocation3 + $0x78] sm:$0xff] %vm524, 0.0
          %573 = vst.msk [vmem:[#allocation3 + $0x80] sm:$0xff] %vm524, 0.0
          %574 = vst.msk [vmem:[#allocation3 + $0x88] sm:$0xff] %vm524, 0.0
          %575 = vst.msk [vmem:[#allocation3 + $0x90] sm:$0xff] %vm524, 0.0
          %576 = vst.msk [vmem:[#allocation3 + $0x98] sm:$0xff] %vm524, 0.0
          %577 = vst.msk [vmem:[#allocation3 + $0xa0] sm:$0xff] %vm524, 0.0
          %578 = vst.msk [vmem:[#allocation3 + $0xa8] sm:$0xff] %vm524, 0.0
          %579 = vst.msk [vmem:[#allocation3 + $0xb0] sm:$0xff] %vm524, 0.0
          %580 = vst.msk [vmem:[#allocation3 + $0xb8] sm:$0xff] %vm524, 0.0
          %581 = vst.msk [vmem:[#allocation3 + $0xc0] sm:$0xff] %vm524, 0.0
          %582 = vst.msk [vmem:[#allocation3 + $0xc8] sm:$0xff] %vm524, 0.0
          %583 = vst.msk [vmem:[#allocation3 + $0xd0] sm:$0xff] %vm524, 0.0
          %584 = vst.msk [vmem:[#allocation3 + $0xd8] sm:$0xff] %vm524, 0.0
          %585 = vst.msk [vmem:[#allocation3 + $0xe0] sm:$0xff] %vm524, 0.0
          %586 = vst.msk [vmem:[#allocation3 + $0xe8] sm:$0xff] %vm524, 0.0
          %587 = vst.msk [vmem:[#allocation3 + $0xf0] sm:$0xff] %vm524, 0.0
          %588 = vst.msk [vmem:[#allocation3 + $0xf8] sm:$0xff] %vm524, 0.0
          %vm589 = vcmask 64512
          %590 = vst.msk [vmem:[#allocation4] sm:$0xff] %vm589, 0.0
          %591 = vst.msk [vmem:[#allocation4 + $0x8] sm:$0xff] %vm589, 0.0
          %592 = vst.msk [vmem:[#allocation4 + $0x10] sm:$0xff] %vm589, 0.0
          %593 = vst.msk [vmem:[#allocation4 + $0x18] sm:$0xff] %vm589, 0.0
          %594 = vst.msk [vmem:[#allocation4 + $0x20] sm:$0xff] %vm589, 0.0
          %595 = vst.msk [vmem:[#allocation4 + $0x28] sm:$0xff] %vm589, 0.0
          %596 = vst.msk [vmem:[#allocation4 + $0x30] sm:$0xff] %vm589, 0.0
          %597 = vst.msk [vmem:[#allocation4 + $0x38] sm:$0xff] %vm589, 0.0
          %598 = vst.msk [vmem:[#allocation4 + $0x40] sm:$0xff] %vm589, 0.0
          %599 = vst.msk [vmem:[#allocation4 + $0x48] sm:$0xff] %vm589, 0.0
          %600 = vst.msk [vmem:[#allocation4 + $0x50] sm:$0xff] %vm589, 0.0
          %601 = vst.msk [vmem:[#allocation4 + $0x58] sm:$0xff] %vm589, 0.0
          %602 = vst.msk [vmem:[#allocation4 + $0x60] sm:$0xff] %vm589, 0.0
          %603 = vst.msk [vmem:[#allocation4 + $0x68] sm:$0xff] %vm589, 0.0
          %604 = vst.msk [vmem:[#allocation4 + $0x70] sm:$0xff] %vm589, 0.0
          %605 = vst.msk [vmem:[#allocation4 + $0x78] sm:$0xff] %vm589, 0.0
          %606 = vst.msk [vmem:[#allocation4 + $0x80] sm:$0xff] %vm589, 0.0
          %607 = vst.msk [vmem:[#allocation4 + $0x88] sm:$0xff] %vm589, 0.0
          %608 = vst.msk [vmem:[#allocation4 + $0x90] sm:$0xff] %vm589, 0.0
          %609 = vst.msk [vmem:[#allocation4 + $0x98] sm:$0xff] %vm589, 0.0
          %610 = vst.msk [vmem:[#allocation4 + $0xa0] sm:$0xff] %vm589, 0.0
          %611 = vst.msk [vmem:[#allocation4 + $0xa8] sm:$0xff] %vm589, 0.0
          %612 = vst.msk [vmem:[#allocation4 + $0xb0] sm:$0xff] %vm589, 0.0
          %613 = vst.msk [vmem:[#allocation4 + $0xb8] sm:$0xff] %vm589, 0.0
          %614 = vst.msk [vmem:[#allocation4 + $0xc0] sm:$0xff] %vm589, 0.0
          %615 = vst.msk [vmem:[#allocation4 + $0xc8] sm:$0xff] %vm589, 0.0
          %616 = vst.msk [vmem:[#allocation4 + $0xd0] sm:$0xff] %vm589, 0.0
          %617 = vst.msk [vmem:[#allocation4 + $0xd8] sm:$0xff] %vm589, 0.0
          %618 = vst.msk [vmem:[#allocation4 + $0xe0] sm:$0xff] %vm589, 0.0
          %619 = vst.msk [vmem:[#allocation4 + $0xe8] sm:$0xff] %vm589, 0.0
          %620 = vst.msk [vmem:[#allocation4 + $0xf0] sm:$0xff] %vm589, 0.0
          %621 = vst.msk [vmem:[#allocation4 + $0xf8] sm:$0xff] %vm589, 0.0
        $region123: #{ugcn_forward.16} parent=110 // pred_fallthru
          _
        %v622 = vld [vmem:[%s456] sm:$0xff]
        %v623 = vld [vmem:[%s456 + $0x8] sm:$0xff]
        %v624 = vld [vmem:[%s456 + $0x10] sm:$0xff]
        %v625 = vld [vmem:[%s456 + $0x18] sm:$0xff]
        %v626 = vunpack.c.0.s8 %v622
        %v627 = vunpack.c.1.s8 %v622
        %v628 = vunpack.c.2.s8 %v622
        %v629 = vunpack.c.3.s8 %v622
        %v630 = vunpack.c.0.s8 %v623
        %v631 = vunpack.c.1.s8 %v623
        %v632 = vunpack.c.2.s8 %v623
        %v633 = vunpack.c.3.s8 %v623
        %v634 = vunpack.c.0.s8 %v624
        %v635 = vunpack.c.1.s8 %v624
        %v636 = vunpack.c.2.s8 %v624
        %v637 = vunpack.c.3.s8 %v624
        %v638 = vunpack.c.0.s8 %v625
        %v639 = vunpack.c.1.s8 %v625
        %v640 = vunpack.c.2.s8 %v625
        %v641 = vunpack.c.3.s8 %v625
        %v642 = vcvt.s32.f32 %v626
        %v643 = vcvt.s32.f32 %v627
        %v644 = vcvt.s32.f32 %v628
        %v645 = vcvt.s32.f32 %v629
        %v646 = vcvt.s32.f32 %v630
        %v647 = vcvt.s32.f32 %v631
        %v648 = vcvt.s32.f32 %v632
        %v649 = vcvt.s32.f32 %v633
        %v650 = vcvt.s32.f32 %v634
        %v651 = vcvt.s32.f32 %v635
        %v652 = vcvt.s32.f32 %v636
        %v653 = vcvt.s32.f32 %v637
        %v654 = vcvt.s32.f32 %v638
        %v655 = vcvt.s32.f32 %v639
        %v656 = vcvt.s32.f32 %v640
        %v657 = vcvt.s32.f32 %v641
        %v658 = vsub.f32 %v642, 1.0
        %v659 = vsub.f32 %v643, 1.0
        %v660 = vsub.f32 %v644, 1.0
        %v661 = vsub.f32 %v645, 1.0
        %v662 = vsub.f32 %v646, 1.0
        %v663 = vsub.f32 %v647, 1.0
        %v664 = vsub.f32 %v648, 1.0
        %v665 = vsub.f32 %v649, 1.0
        %v666 = vsub.f32 %v650, 1.0
        %v667 = vsub.f32 %v651, 1.0
        %v668 = vsub.f32 %v652, 1.0
        %v669 = vsub.f32 %v653, 1.0
        %v670 = vsub.f32 %v654, 1.0
        %v671 = vsub.f32 %v655, 1.0
        %v672 = vsub.f32 %v656, 1.0
        %v673 = vsub.f32 %v657, 1.0
        %v674 = vmul.f32 %v658, 1e+30
        %v675 = vmul.f32 %v659, 1e+30
        %v676 = vmul.f32 %v660, 1e+30
        %v677 = vmul.f32 %v661, 1e+30
        %v678 = vmul.f32 %v662, 1e+30
        %v679 = vmul.f32 %v663, 1e+30
        %v680 = vmul.f32 %v664, 1e+30
        %v681 = vmul.f32 %v665, 1e+30
        %v682 = vmul.f32 %v666, 1e+30
        %v683 = vmul.f32 %v667, 1e+30
        %v684 = vmul.f32 %v668, 1e+30
        %v685 = vmul.f32 %v669, 1e+30
        %v686 = vmul.f32 %v670, 1e+30
        %v687 = vmul.f32 %v671, 1e+30
        %v688 = vmul.f32 %v672, 1e+30
        %v689 = vmul.f32 %v673, 1e+30
        %v690 = vld [vmem:[%s511] sm:$0xff]
        %v691 = vld [vmem:[%s511 + $0x8] sm:$0xff]
        %v692 = vld [vmem:[%s511 + $0x10] sm:$0xff]
        %v693 = vld [vmem:[%s511 + $0x18] sm:$0xff]
        %v694 = vld [vmem:[%s511 + $0x20] sm:$0xff]
        %v695 = vld [vmem:[%s511 + $0x28] sm:$0xff]
        %v696 = vld [vmem:[%s511 + $0x30] sm:$0xff]
        %v697 = vld [vmem:[%s511 + $0x38] sm:$0xff]
        %v698 = vld [vmem:[%s511 + $0x40] sm:$0xff]
        %v699 = vld [vmem:[%s511 + $0x48] sm:$0xff]
        %v700 = vld [vmem:[%s511 + $0x50] sm:$0xff]
        %v701 = vld [vmem:[%s511 + $0x58] sm:$0xff]
        %v702 = vld [vmem:[%s511 + $0x60] sm:$0xff]
        %v703 = vld [vmem:[%s511 + $0x68] sm:$0xff]
        %v704 = vld [vmem:[%s511 + $0x70] sm:$0xff]
        %v705 = vld [vmem:[%s511 + $0x78] sm:$0xff]
        %v706 = vld [vmem:[%s506] sm:$0x3]
        %708 = vset.pattern.permute.xlu0 0
        %709 = vperm.xlu0 %708, %v690
        %v710 = vpop.permute.xlu0 %709
        %713 = vset.pattern.permute.xlu0 0
        %714 = vperm.xlu0 %713, %v691
        %v715 = vpop.permute.xlu0 %714
        %718 = vset.pattern.permute.xlu0 0
        %719 = vperm.xlu0 %718, %v692
        %v720 = vpop.permute.xlu0 %719
        %723 = vset.pattern.permute.xlu0 0
        %724 = vperm.xlu0 %723, %v693
        %v725 = vpop.permute.xlu0 %724
        %728 = vset.pattern.permute.xlu0 0
        %729 = vperm.xlu0 %728, %v694
        %v730 = vpop.permute.xlu0 %729
        %733 = vset.pattern.permute.xlu0 0
        %734 = vperm.xlu0 %733, %v695
        %v735 = vpop.permute.xlu0 %734
        %738 = vset.pattern.permute.xlu0 0
        %739 = vperm.xlu0 %738, %v696
        %v740 = vpop.permute.xlu0 %739
        %743 = vset.pattern.permute.xlu0 0
        %744 = vperm.xlu0 %743, %v697
        %v745 = vpop.permute.xlu0 %744
        %748 = vset.pattern.permute.xlu0 0
        %749 = vperm.xlu0 %748, %v698
        %v750 = vpop.permute.xlu0 %749
        %753 = vset.pattern.permute.xlu0 0
        %754 = vperm.xlu0 %753, %v699
        %v755 = vpop.permute.xlu0 %754
        %758 = vset.pattern.permute.xlu0 0
        %759 = vperm.xlu0 %758, %v700
        %v760 = vpop.permute.xlu0 %759
        %763 = vset.pattern.permute.xlu0 0
        %764 = vperm.xlu0 %763, %v701
        %v765 = vpop.permute.xlu0 %764
        %768 = vset.pattern.permute.xlu0 0
        %769 = vperm.xlu0 %768, %v702
        %v770 = vpop.permute.xlu0 %769
        %773 = vset.pattern.permute.xlu0 0
        %774 = vperm.xlu0 %773, %v703
        %v775 = vpop.permute.xlu0 %774
        %778 = vset.pattern.permute.xlu0 0
        %779 = vperm.xlu0 %778, %v704
        %v780 = vpop.permute.xlu0 %779
        %783 = vset.pattern.permute.xlu0 0
        %784 = vperm.xlu0 %783, %v705
        %v785 = vpop.permute.xlu0 %784
        %v787 = vlaneseq
        %v788 = vshrl.u32 %v787, 7
        %v789 = vsub.s32 0, %v788
        %v790 = vrot.slane %v706, %v789
        %v791 = vadd.f32 %v710, %v790
        %v792 = vadd.f32 %v715, %v790
        %v793 = vadd.f32 %v720, %v790
        %v794 = vadd.f32 %v725, %v790
        %v795 = vadd.f32 %v730, %v790
        %v796 = vadd.f32 %v735, %v790
        %v797 = vadd.f32 %v740, %v790
        %v798 = vadd.f32 %v745, %v790
        %v799 = vadd.f32 %v750, %v790
        %v800 = vadd.f32 %v755, %v790
        %v801 = vadd.f32 %v760, %v790
        %v802 = vadd.f32 %v765, %v790
        %v803 = vadd.f32 %v770, %v790
        %v804 = vadd.f32 %v775, %v790
        %v805 = vadd.f32 %v780, %v790
        %v806 = vadd.f32 %v785, %v790
        %v807 = vmul.f32 %v791, 0.2
        %v808 = vmul.f32 %v792, 0.2
        %v809 = vmul.f32 %v793, 0.2
        %v810 = vmul.f32 %v794, 0.2
        %v811 = vmul.f32 %v795, 0.2
        %v812 = vmul.f32 %v796, 0.2
        %v813 = vmul.f32 %v797, 0.2
        %v814 = vmul.f32 %v798, 0.2
        %v815 = vmul.f32 %v799, 0.2
        %v816 = vmul.f32 %v800, 0.2
        %v817 = vmul.f32 %v801, 0.2
        %v818 = vmul.f32 %v802, 0.2
        %v819 = vmul.f32 %v803, 0.2
        %v820 = vmul.f32 %v804, 0.2
        %v821 = vmul.f32 %v805, 0.2
        %v822 = vmul.f32 %v806, 0.2
        %v823 = vmax.f32 %v791, %v807
        %v824 = vmax.f32 %v792, %v808
        %v825 = vmax.f32 %v793, %v809
        %v826 = vmax.f32 %v794, %v810
        %v827 = vmax.f32 %v795, %v811
        %v828 = vmax.f32 %v796, %v812
        %v829 = vmax.f32 %v797, %v813
        %v830 = vmax.f32 %v798, %v814
        %v831 = vmax.f32 %v799, %v815
        %v832 = vmax.f32 %v800, %v816
        %v833 = vmax.f32 %v801, %v817
        %v834 = vmax.f32 %v802, %v818
        %v835 = vmax.f32 %v803, %v819
        %v836 = vmax.f32 %v804, %v820
        %v837 = vmax.f32 %v805, %v821
        %v838 = vmax.f32 %v806, %v822
        %v839 = vadd.f32 %v823, %v674
        %v840 = vadd.f32 %v824, %v675
        %v841 = vadd.f32 %v825, %v676
        %v842 = vadd.f32 %v826, %v677
        %v843 = vadd.f32 %v827, %v678
        %v844 = vadd.f32 %v828, %v679
        %v845 = vadd.f32 %v829, %v680
        %v846 = vadd.f32 %v830, %v681
        %v847 = vadd.f32 %v831, %v682
        %v848 = vadd.f32 %v832, %v683
        %v849 = vadd.f32 %v833, %v684
        %v850 = vadd.f32 %v834, %v685
        %v851 = vadd.f32 %v835, %v686
        %v852 = vadd.f32 %v836, %v687
        %v853 = vadd.f32 %v837, %v688
        %v854 = vadd.f32 %v838, %v689
        %v855 = vld [vmem:[#allocation2] sm:$0xff]
        %v856 = vld [vmem:[#allocation2 + $0x8] sm:$0xff]
        %v857 = vld [vmem:[#allocation2 + $0x10] sm:$0xff]
        %v858 = vld [vmem:[#allocation2 + $0x18] sm:$0xff]
        %v859 = vld [vmem:[#allocation2 + $0x20] sm:$0xff]
        %v860 = vld [vmem:[#allocation2 + $0x28] sm:$0xff]
        %v861 = vld [vmem:[#allocation2 + $0x30] sm:$0xff]
        %v862 = vld [vmem:[#allocation2 + $0x38] sm:$0xff]
        %v863 = vld [vmem:[#allocation2 + $0x40] sm:$0xff]
        %v864 = vld [vmem:[#allocation2 + $0x48] sm:$0xff]
        %v865 = vld [vmem:[#allocation2 + $0x50] sm:$0xff]
        %v866 = vld [vmem:[#allocation2 + $0x58] sm:$0xff]
        %v867 = vld [vmem:[#allocation2 + $0x60] sm:$0xff]
        %v868 = vld [vmem:[#allocation2 + $0x68] sm:$0xff]
        %v869 = vld [vmem:[#allocation2 + $0x70] sm:$0xff]
        %v870 = vld [vmem:[#allocation2 + $0x78] sm:$0xff]
        %871 = vmax.xlane.f32.xlu0 %v839
        %v872 = vpop.xlane.xlu0 %871
        %873 = vmax.xlane.f32.xlu0 %v840
        %v874 = vpop.xlane.xlu0 %873
        %875 = vmax.xlane.f32.xlu0 %v841
        %v876 = vpop.xlane.xlu0 %875
        %877 = vmax.xlane.f32.xlu0 %v842
        %v878 = vpop.xlane.xlu0 %877
        %879 = vmax.xlane.f32.xlu0 %v843
        %v880 = vpop.xlane.xlu0 %879
        %881 = vmax.xlane.f32.xlu0 %v844
        %v882 = vpop.xlane.xlu0 %881
        %883 = vmax.xlane.f32.xlu0 %v845
        %v884 = vpop.xlane.xlu0 %883
        %885 = vmax.xlane.f32.xlu0 %v846
        %v886 = vpop.xlane.xlu0 %885
        %887 = vmax.xlane.f32.xlu0 %v847
        %v888 = vpop.xlane.xlu0 %887
        %889 = vmax.xlane.f32.xlu0 %v848
        %v890 = vpop.xlane.xlu0 %889
        %891 = vmax.xlane.f32.xlu0 %v849
        %v892 = vpop.xlane.xlu0 %891
        %893 = vmax.xlane.f32.xlu0 %v850
        %v894 = vpop.xlane.xlu0 %893
        %895 = vmax.xlane.f32.xlu0 %v851
        %v896 = vpop.xlane.xlu0 %895
        %897 = vmax.xlane.f32.xlu0 %v852
        %v898 = vpop.xlane.xlu0 %897
        %899 = vmax.xlane.f32.xlu0 %v853
        %v900 = vpop.xlane.xlu0 %899
        %901 = vmax.xlane.f32.xlu0 %v854
        %v902 = vpop.xlane.xlu0 %901
        %v903 = vmax.f32 %v855, %v872
        %v904 = vmax.f32 %v856, %v874
        %v905 = vmax.f32 %v857, %v876
        %v906 = vmax.f32 %v858, %v878
        %v907 = vmax.f32 %v859, %v880
        %v908 = vmax.f32 %v860, %v882
        %v909 = vmax.f32 %v861, %v884
        %v910 = vmax.f32 %v862, %v886
        %v911 = vmax.f32 %v863, %v888
        %v912 = vmax.f32 %v864, %v890
        %v913 = vmax.f32 %v865, %v892
        %v914 = vmax.f32 %v866, %v894
        %v915 = vmax.f32 %v867, %v896
        %v916 = vmax.f32 %v868, %v898
        %v917 = vmax.f32 %v869, %v900
        %v918 = vmax.f32 %v870, %v902
        %v919 = vsub.f32 %v855, %v903
        %v920 = vsub.f32 %v856, %v904
        %v921 = vsub.f32 %v857, %v905
        %v922 = vsub.f32 %v858, %v906
        %v923 = vsub.f32 %v859, %v907
        %v924 = vsub.f32 %v860, %v908
        %v925 = vsub.f32 %v861, %v909
        %v926 = vsub.f32 %v862, %v910
        %v927 = vsub.f32 %v863, %v911
        %v928 = vsub.f32 %v864, %v912
        %v929 = vsub.f32 %v865, %v913
        %v930 = vsub.f32 %v866, %v914
        %v931 = vsub.f32 %v867, %v915
        %v932 = vsub.f32 %v868, %v916
        %v933 = vsub.f32 %v869, %v917
        %v934 = vsub.f32 %v870, %v918
        %v935 = vmul.f32 %v919, 1.442695
        %v936 = vpow.pop %v935
        %v937 = vmul.f32 %v920, 1.442695
        %v938 = vpow.pop %v937
        %v939 = vmul.f32 %v921, 1.442695
        %v940 = vpow.pop %v939
        %v941 = vmul.f32 %v922, 1.442695
        %v942 = vpow.pop %v941
        %v943 = vmul.f32 %v923, 1.442695
        %v944 = vpow.pop %v943
        %v945 = vmul.f32 %v924, 1.442695
        %v946 = vpow.pop %v945
        %v947 = vmul.f32 %v925, 1.442695
        %v948 = vpow.pop %v947
        %v949 = vmul.f32 %v926, 1.442695
        %v950 = vpow.pop %v949
        %v951 = vmul.f32 %v927, 1.442695
        %v952 = vpow.pop %v951
        %v953 = vmul.f32 %v928, 1.442695
        %v954 = vpow.pop %v953
        %v955 = vmul.f32 %v929, 1.442695
        %v956 = vpow.pop %v955
        %v957 = vmul.f32 %v930, 1.442695
        %v958 = vpow.pop %v957
        %v959 = vmul.f32 %v931, 1.442695
        %v960 = vpow.pop %v959
        %v961 = vmul.f32 %v932, 1.442695
        %v962 = vpow.pop %v961
        %v963 = vmul.f32 %v933, 1.442695
        %v964 = vpow.pop %v963
        %v965 = vmul.f32 %v934, 1.442695
        %v966 = vpow.pop %v965
        %968 = vset.pattern.permute.xlu0 0
        %969 = vperm.xlu0 %968, %v903
        %v970 = vpop.permute.xlu0 %969
        %973 = vset.pattern.permute.xlu0 0
        %974 = vperm.xlu0 %973, %v904
        %v975 = vpop.permute.xlu0 %974
        %978 = vset.pattern.permute.xlu0 0
        %979 = vperm.xlu0 %978, %v905
        %v980 = vpop.permute.xlu0 %979
        %983 = vset.pattern.permute.xlu0 0
        %984 = vperm.xlu0 %983, %v906
        %v985 = vpop.permute.xlu0 %984
        %988 = vset.pattern.permute.xlu0 0
        %989 = vperm.xlu0 %988, %v907
        %v990 = vpop.permute.xlu0 %989
        %993 = vset.pattern.permute.xlu0 0
        %994 = vperm.xlu0 %993, %v908
        %v995 = vpop.permute.xlu0 %994
        %998 = vset.pattern.permute.xlu0 0
        %999 = vperm.xlu0 %998, %v909
        %v1000 = vpop.permute.xlu0 %999
        %1003 = vset.pattern.permute.xlu0 0
        %1004 = vperm.xlu0 %1003, %v910
        %v1005 = vpop.permute.xlu0 %1004
        %1008 = vset.pattern.permute.xlu0 0
        %1009 = vperm.xlu0 %1008, %v911
        %v1010 = vpop.permute.xlu0 %1009
        %1013 = vset.pattern.permute.xlu0 0
        %1014 = vperm.xlu0 %1013, %v912
        %v1015 = vpop.permute.xlu0 %1014
        %1018 = vset.pattern.permute.xlu0 0
        %1019 = vperm.xlu0 %1018, %v913
        %v1020 = vpop.permute.xlu0 %1019
        %1023 = vset.pattern.permute.xlu0 0
        %1024 = vperm.xlu0 %1023, %v914
        %v1025 = vpop.permute.xlu0 %1024
        %1028 = vset.pattern.permute.xlu0 0
        %1029 = vperm.xlu0 %1028, %v915
        %v1030 = vpop.permute.xlu0 %1029
        %1033 = vset.pattern.permute.xlu0 0
        %1034 = vperm.xlu0 %1033, %v916
        %v1035 = vpop.permute.xlu0 %1034
        %1038 = vset.pattern.permute.xlu0 0
        %1039 = vperm.xlu0 %1038, %v917
        %v1040 = vpop.permute.xlu0 %1039
        %1043 = vset.pattern.permute.xlu0 0
        %1044 = vperm.xlu0 %1043, %v918
        %v1045 = vpop.permute.xlu0 %1044
        %v1047 = vsub.f32 %v839, %v970
        %v1048 = vsub.f32 %v840, %v975
        %v1049 = vsub.f32 %v841, %v980
        %v1050 = vsub.f32 %v842, %v985
        %v1051 = vsub.f32 %v843, %v990
        %v1052 = vsub.f32 %v844, %v995
        %v1053 = vsub.f32 %v845, %v1000
        %v1054 = vsub.f32 %v846, %v1005
        %v1055 = vsub.f32 %v847, %v1010
        %v1056 = vsub.f32 %v848, %v1015
        %v1057 = vsub.f32 %v849, %v1020
        %v1058 = vsub.f32 %v850, %v1025
        %v1059 = vsub.f32 %v851, %v1030
        %v1060 = vsub.f32 %v852, %v1035
        %v1061 = vsub.f32 %v853, %v1040
        %v1062 = vsub.f32 %v854, %v1045
        %v1063 = vpack.c.bf16 %v1048, %v1047
        %v1064 = vpack.c.bf16 %v1050, %v1049
        %v1065 = vpack.c.bf16 %v1052, %v1051
        %v1066 = vpack.c.bf16 %v1054, %v1053
        %v1067 = vpack.c.bf16 %v1056, %v1055
        %v1068 = vpack.c.bf16 %v1058, %v1057
        %v1069 = vpack.c.bf16 %v1060, %v1059
        %v1070 = vpack.c.bf16 %v1062, %v1061
        %v1072 = vmul.bf16 %v1063, 1069105081
        %v1073 = vpow.bf16.pop %v1072
        %v1075 = vmul.bf16 %v1064, 1069105081
        %v1076 = vpow.bf16.pop %v1075
        %v1078 = vmul.bf16 %v1065, 1069105081
        %v1079 = vpow.bf16.pop %v1078
        %v1081 = vmul.bf16 %v1066, 1069105081
        %v1082 = vpow.bf16.pop %v1081
        %v1084 = vmul.bf16 %v1067, 1069105081
        %v1085 = vpow.bf16.pop %v1084
        %v1087 = vmul.bf16 %v1068, 1069105081
        %v1088 = vpow.bf16.pop %v1087
        %v1090 = vmul.bf16 %v1069, 1069105081
        %v1091 = vpow.bf16.pop %v1090
        %v1093 = vmul.bf16 %v1070, 1069105081
        %v1094 = vpow.bf16.pop %v1093
        %v1095 = vld [vmem:[#allocation3] sm:$0xff]
        %v1096 = vld [vmem:[#allocation3 + $0x8] sm:$0xff]
        %v1097 = vld [vmem:[#allocation3 + $0x10] sm:$0xff]
        %v1098 = vld [vmem:[#allocation3 + $0x18] sm:$0xff]
        %v1099 = vld [vmem:[#allocation3 + $0x20] sm:$0xff]
        %v1100 = vld [vmem:[#allocation3 + $0x28] sm:$0xff]
        %v1101 = vld [vmem:[#allocation3 + $0x30] sm:$0xff]
        %v1102 = vld [vmem:[#allocation3 + $0x38] sm:$0xff]
        %v1103 = vld [vmem:[#allocation3 + $0x40] sm:$0xff]
        %v1104 = vld [vmem:[#allocation3 + $0x48] sm:$0xff]
        %v1105 = vld [vmem:[#allocation3 + $0x50] sm:$0xff]
        %v1106 = vld [vmem:[#allocation3 + $0x58] sm:$0xff]
        %v1107 = vld [vmem:[#allocation3 + $0x60] sm:$0xff]
        %v1108 = vld [vmem:[#allocation3 + $0x68] sm:$0xff]
        %v1109 = vld [vmem:[#allocation3 + $0x70] sm:$0xff]
        %v1110 = vld [vmem:[#allocation3 + $0x78] sm:$0xff]
        %v1111 = vmul.f32 %v936, %v1095
        %v1112 = vmul.f32 %v938, %v1096
        %v1113 = vmul.f32 %v940, %v1097
        %v1114 = vmul.f32 %v942, %v1098
        %v1115 = vmul.f32 %v944, %v1099
        %v1116 = vmul.f32 %v946, %v1100
        %v1117 = vmul.f32 %v948, %v1101
        %v1118 = vmul.f32 %v950, %v1102
        %v1119 = vmul.f32 %v952, %v1103
        %v1120 = vmul.f32 %v954, %v1104
        %v1121 = vmul.f32 %v956, %v1105
        %v1122 = vmul.f32 %v958, %v1106
        %v1123 = vmul.f32 %v960, %v1107
        %v1124 = vmul.f32 %v962, %v1108
        %v1125 = vmul.f32 %v964, %v1109
        %v1126 = vmul.f32 %v966, %v1110
        %v1127 = vunpack.c.l.bf16 %v1073
        %v1128 = vunpack.c.h.bf16 %v1073
        %v1129 = vunpack.c.l.bf16 %v1076
        %v1130 = vunpack.c.h.bf16 %v1076
        %v1131 = vunpack.c.l.bf16 %v1079
        %v1132 = vunpack.c.h.bf16 %v1079
        %v1133 = vunpack.c.l.bf16 %v1082
        %v1134 = vunpack.c.h.bf16 %v1082
        %v1135 = vunpack.c.l.bf16 %v1085
        %v1136 = vunpack.c.h.bf16 %v1085
        %v1137 = vunpack.c.l.bf16 %v1088
        %v1138 = vunpack.c.h.bf16 %v1088
        %v1139 = vunpack.c.l.bf16 %v1091
        %v1140 = vunpack.c.h.bf16 %v1091
        %v1141 = vunpack.c.l.bf16 %v1094
        %v1142 = vunpack.c.h.bf16 %v1094
        %1143 = vadd.xlane.f32.xlu0 %v1127
        %v1144 = vpop.xlane.xlu0 %1143
        %1145 = vadd.xlane.f32.xlu0 %v1128
        %v1146 = vpop.xlane.xlu0 %1145
        %1147 = vadd.xlane.f32.xlu0 %v1129
        %v1148 = vpop.xlane.xlu0 %1147
        %1149 = vadd.xlane.f32.xlu0 %v1130
        %v1150 = vpop.xlane.xlu0 %1149
        %1151 = vadd.xlane.f32.xlu0 %v1131
        %v1152 = vpop.xlane.xlu0 %1151
        %1153 = vadd.xlane.f32.xlu0 %v1132
        %v1154 = vpop.xlane.xlu0 %1153
        %1155 = vadd.xlane.f32.xlu0 %v1133
        %v1156 = vpop.xlane.xlu0 %1155
        %1157 = vadd.xlane.f32.xlu0 %v1134
        %v1158 = vpop.xlane.xlu0 %1157
        %1159 = vadd.xlane.f32.xlu0 %v1135
        %v1160 = vpop.xlane.xlu0 %1159
        %1161 = vadd.xlane.f32.xlu0 %v1136
        %v1162 = vpop.xlane.xlu0 %1161
        %1163 = vadd.xlane.f32.xlu0 %v1137
        %v1164 = vpop.xlane.xlu0 %1163
        %1165 = vadd.xlane.f32.xlu0 %v1138
        %v1166 = vpop.xlane.xlu0 %1165
        %1167 = vadd.xlane.f32.xlu0 %v1139
        %v1168 = vpop.xlane.xlu0 %1167
        %1169 = vadd.xlane.f32.xlu0 %v1140
        %v1170 = vpop.xlane.xlu0 %1169
        %1171 = vadd.xlane.f32.xlu0 %v1141
        %v1172 = vpop.xlane.xlu0 %1171
        %1173 = vadd.xlane.f32.xlu0 %v1142
        %v1174 = vpop.xlane.xlu0 %1173
        %v1175 = vadd.f32 %v1111, %v1144
        %v1176 = vadd.f32 %v1112, %v1146
        %v1177 = vadd.f32 %v1113, %v1148
        %v1178 = vadd.f32 %v1114, %v1150
        %v1179 = vadd.f32 %v1115, %v1152
        %v1180 = vadd.f32 %v1116, %v1154
        %v1181 = vadd.f32 %v1117, %v1156
        %v1182 = vadd.f32 %v1118, %v1158
        %v1183 = vadd.f32 %v1119, %v1160
        %v1184 = vadd.f32 %v1120, %v1162
        %v1185 = vadd.f32 %v1121, %v1164
        %v1186 = vadd.f32 %v1122, %v1166
        %v1187 = vadd.f32 %v1123, %v1168
        %v1188 = vadd.f32 %v1124, %v1170
        %v1189 = vadd.f32 %v1125, %v1172
        %v1190 = vadd.f32 %v1126, %v1174
        %vm1191 = vcmask 7168
        %1192 = vst.msk [vmem:[#allocation3] sm:$0xff] %vm1191, %v1175
        %1193 = vst.msk [vmem:[#allocation3 + $0x8] sm:$0xff] %vm1191, %v1176
        %1194 = vst.msk [vmem:[#allocation3 + $0x10] sm:$0xff] %vm1191, %v1177
        %1195 = vst.msk [vmem:[#allocation3 + $0x18] sm:$0xff] %vm1191, %v1178
        %1196 = vst.msk [vmem:[#allocation3 + $0x20] sm:$0xff] %vm1191, %v1179
        %1197 = vst.msk [vmem:[#allocation3 + $0x28] sm:$0xff] %vm1191, %v1180
        %1198 = vst.msk [vmem:[#allocation3 + $0x30] sm:$0xff] %vm1191, %v1181
        %1199 = vst.msk [vmem:[#allocation3 + $0x38] sm:$0xff] %vm1191, %v1182
        %1200 = vst.msk [vmem:[#allocation3 + $0x40] sm:$0xff] %vm1191, %v1183
        %1201 = vst.msk [vmem:[#allocation3 + $0x48] sm:$0xff] %vm1191, %v1184
        %1202 = vst.msk [vmem:[#allocation3 + $0x50] sm:$0xff] %vm1191, %v1185
        %1203 = vst.msk [vmem:[#allocation3 + $0x58] sm:$0xff] %vm1191, %v1186
        %1204 = vst.msk [vmem:[#allocation3 + $0x60] sm:$0xff] %vm1191, %v1187
        %1205 = vst.msk [vmem:[#allocation3 + $0x68] sm:$0xff] %vm1191, %v1188
        %1206 = vst.msk [vmem:[#allocation3 + $0x70] sm:$0xff] %vm1191, %v1189
        %1207 = vst.msk [vmem:[#allocation3 + $0x78] sm:$0xff] %vm1191, %v1190
        %v1208 = vld [vmem:[#allocation4] sm:$0xff]
        %v1209 = vld [vmem:[#allocation4 + $0x8] sm:$0xff]
        %v1210 = vld [vmem:[#allocation4 + $0x10] sm:$0xff]
        %v1211 = vld [vmem:[#allocation4 + $0x18] sm:$0xff]
        %v1212 = vld [vmem:[#allocation4 + $0x20] sm:$0xff]
        %v1213 = vld [vmem:[#allocation4 + $0x28] sm:$0xff]
        %v1214 = vld [vmem:[#allocation4 + $0x30] sm:$0xff]
        %v1215 = vld [vmem:[#allocation4 + $0x38] sm:$0xff]
        %v1216 = vld [vmem:[#allocation4 + $0x40] sm:$0xff]
        %v1217 = vld [vmem:[#allocation4 + $0x48] sm:$0xff]
        %v1218 = vld [vmem:[#allocation4 + $0x50] sm:$0xff]
        %v1219 = vld [vmem:[#allocation4 + $0x58] sm:$0xff]
        %v1220 = vld [vmem:[#allocation4 + $0x60] sm:$0xff]
        %v1221 = vld [vmem:[#allocation4 + $0x68] sm:$0xff]
        %v1222 = vld [vmem:[#allocation4 + $0x70] sm:$0xff]
        %v1223 = vld [vmem:[#allocation4 + $0x78] sm:$0xff]
        %1225 = vset.pattern.permute.xlu0 0
        %1226 = vperm.xlu0 %1225, %v936
        %v1227 = vpop.permute.xlu0 %1226
        %1230 = vset.pattern.permute.xlu0 0
        %1231 = vperm.xlu0 %1230, %v938
        %v1232 = vpop.permute.xlu0 %1231
        %1235 = vset.pattern.permute.xlu0 0
        %1236 = vperm.xlu0 %1235, %v940
        %v1237 = vpop.permute.xlu0 %1236
        %1240 = vset.pattern.permute.xlu0 0
        %1241 = vperm.xlu0 %1240, %v942
        %v1242 = vpop.permute.xlu0 %1241
        %1245 = vset.pattern.permute.xlu0 0
        %1246 = vperm.xlu0 %1245, %v944
        %v1247 = vpop.permute.xlu0 %1246
        %1250 = vset.pattern.permute.xlu0 0
        %1251 = vperm.xlu0 %1250, %v946
        %v1252 = vpop.permute.xlu0 %1251
        %1255 = vset.pattern.permute.xlu0 0
        %1256 = vperm.xlu0 %1255, %v948
        %v1257 = vpop.permute.xlu0 %1256
        %1260 = vset.pattern.permute.xlu0 0
        %1261 = vperm.xlu0 %1260, %v950
        %v1262 = vpop.permute.xlu0 %1261
        %1265 = vset.pattern.permute.xlu0 0
        %1266 = vperm.xlu0 %1265, %v952
        %v1267 = vpop.permute.xlu0 %1266
        %1270 = vset.pattern.permute.xlu0 0
        %1271 = vperm.xlu0 %1270, %v954
        %v1272 = vpop.permute.xlu0 %1271
        %1275 = vset.pattern.permute.xlu0 0
        %1276 = vperm.xlu0 %1275, %v956
        %v1277 = vpop.permute.xlu0 %1276
        %1280 = vset.pattern.permute.xlu0 0
        %1281 = vperm.xlu0 %1280, %v958
        %v1282 = vpop.permute.xlu0 %1281
        %1285 = vset.pattern.permute.xlu0 0
        %1286 = vperm.xlu0 %1285, %v960
        %v1287 = vpop.permute.xlu0 %1286
        %1290 = vset.pattern.permute.xlu0 0
        %1291 = vperm.xlu0 %1290, %v962
        %v1292 = vpop.permute.xlu0 %1291
        %1295 = vset.pattern.permute.xlu0 0
        %1296 = vperm.xlu0 %1295, %v964
        %v1297 = vpop.permute.xlu0 %1296
        %1300 = vset.pattern.permute.xlu0 0
        %1301 = vperm.xlu0 %1300, %v966
        %v1302 = vpop.permute.xlu0 %1301
        %v1304 = vmul.f32 %v1227, %v1208
        %v1305 = vmul.f32 %v1232, %v1209
        %v1306 = vmul.f32 %v1237, %v1210
        %v1307 = vmul.f32 %v1242, %v1211
        %v1308 = vmul.f32 %v1247, %v1212
        %v1309 = vmul.f32 %v1252, %v1213
        %v1310 = vmul.f32 %v1257, %v1214
        %v1311 = vmul.f32 %v1262, %v1215
        %v1312 = vmul.f32 %v1267, %v1216
        %v1313 = vmul.f32 %v1272, %v1217
        %v1314 = vmul.f32 %v1277, %v1218
        %v1315 = vmul.f32 %v1282, %v1219
        %v1316 = vmul.f32 %v1287, %v1220
        %v1317 = vmul.f32 %v1292, %v1221
        %v1318 = vmul.f32 %v1297, %v1222
        %v1319 = vmul.f32 %v1302, %v1223
        %v1320 = vld [vmem:[%s463] sm:$0xf]
        %v1321 = vld [vmem:[%s463 + $0x4] sm:$0xf]
        %v1322 = vld [vmem:[%s463 + $0x8] sm:$0xf]
        %v1323 = vld [vmem:[%s463 + $0xc] sm:$0xf]
        %v1324 = vld [vmem:[%s463 + $0x10] sm:$0xf]
        %v1325 = vld [vmem:[%s463 + $0x14] sm:$0xf]
        %v1326 = vld [vmem:[%s463 + $0x18] sm:$0xf]
        %v1327 = vld [vmem:[%s463 + $0x1c] sm:$0xf]
        %v1328 = vld [vmem:[%s463 + $0x20] sm:$0xf]
        %v1329 = vld [vmem:[%s463 + $0x24] sm:$0xf]
        %v1330 = vld [vmem:[%s463 + $0x28] sm:$0xf]
        %v1331 = vld [vmem:[%s463 + $0x2c] sm:$0xf]
        %v1332 = vld [vmem:[%s463 + $0x30] sm:$0xf]
        %v1333 = vld [vmem:[%s463 + $0x34] sm:$0xf]
        %v1334 = vld [vmem:[%s463 + $0x38] sm:$0xf]
        %v1335 = vld [vmem:[%s463 + $0x3c] sm:$0xf]
        %v1352 = vunpack.c.l.b16 %v1320
        %v1353 = vunpack.c.l.b16 %v1321
        %v1354 = vunpack.c.l.b16 %v1322
        %v1355 = vunpack.c.l.b16 %v1323
        %v1356 = vunpack.c.l.b16 %v1324
        %v1357 = vunpack.c.l.b16 %v1325
        %v1358 = vunpack.c.l.b16 %v1326
        %v1359 = vunpack.c.l.b16 %v1327
        %v1360 = vunpack.c.l.b16 %v1328
        %v1361 = vunpack.c.l.b16 %v1329
        %v1362 = vunpack.c.l.b16 %v1330
        %v1363 = vunpack.c.l.b16 %v1331
        %v1364 = vunpack.c.l.b16 %v1332
        %v1365 = vunpack.c.l.b16 %v1333
        %v1366 = vunpack.c.l.b16 %v1334
        %v1367 = vunpack.c.l.b16 %v1335
        %v1368 = vpack.c.b16 %v1353, %v1352
        %v1369 = vpack.c.b16 %v1355, %v1354
        %v1370 = vpack.c.b16 %v1357, %v1356
        %v1371 = vpack.c.b16 %v1359, %v1358
        %v1372 = vpack.c.b16 %v1361, %v1360
        %v1373 = vpack.c.b16 %v1363, %v1362
        %v1374 = vpack.c.b16 %v1365, %v1364
        %v1375 = vpack.c.b16 %v1367, %v1366
        %1384 = vmatprep.subr.bf16.mxu0 0
        %1385 = vmatpush1.bf16.msra.mxu0 %v1375
        %1386 = vmatprep.subr.bf16.mxu0 0
        %1387 = vmatpush1.bf16.msra.mxu0 %v1374
        %1388 = vmatprep.subr.bf16.mxu0 0
        %1389 = vmatpush1.bf16.msra.mxu0 %v1373
        %1390 = vmatprep.subr.bf16.mxu0 0
        %1391 = vmatpush1.bf16.msra.mxu0 %v1372
        %1392 = vmatprep.subr.bf16.mxu0 0
        %1393 = vmatpush1.bf16.msra.mxu0 %v1371
        %1394 = vmatprep.subr.bf16.mxu0 0
        %1395 = vmatpush1.bf16.msra.mxu0 %v1370
        %1396 = vmatprep.subr.bf16.mxu0 0
        %1397 = vmatpush1.bf16.msra.mxu0 %v1369
        %1398 = vmatprep.subr.bf16.mxu0 0
        %1399 = vmatpush1.bf16.msra.mxu0 %v1368
        %1400 = vmatprep.subr.bf16.mxu0 0
        %1401 = vmatpush2.bf16.msra.mxu0 0
        %1402 = vmatprep.subr.bf16.mxu0 0
        %1403 = vmatpush2.bf16.msra.mxu0 0
        %1404 = vmatprep.subr.bf16.mxu0 0
        %1405 = vmatpush2.bf16.msra.mxu0 0
        %1406 = vmatprep.subr.bf16.mxu0 0
        %1407 = vmatpush2.bf16.msra.mxu0 0
        %1408 = vmatprep.subr.bf16.mxu0 0
        %1409 = vmatpush2.bf16.msra.mxu0 0
        %1410 = vmatprep.subr.bf16.mxu0 0
        %1411 = vmatpush2.bf16.msra.mxu0 0
        %1412 = vmatprep.subr.bf16.mxu0 0
        %1413 = vmatpush2.bf16.msra.mxu0 0
        %1414 = vmatprep.subr.bf16.mxu0 0
        %1415 = vmatpush2.bf16.msra.mxu0 0
        %1416 = vmatprep.mubr.bf16.mxu0 0
        %1417 = vmatmul.mubr.bf16.gmra.mxu0 %v1073
        %v1418 = vpop.f32.mrf.mxu0
        %v1419 = vadd.f32 0.0, %v1418
        %v1420 = vpop.f32.mrf.mxu0
        %v1421 = vpop.f32.mrf.mxu0
        %v1422 = vadd.f32 0.0, %v1421
        %v1423 = vpop.f32.mrf.mxu0
        %1424 = vmatprep.mubr.bf16.mxu0 0
        %1425 = vmatmul.mubr.bf16.gmra.mxu0 %v1076
        %v1426 = vpop.f32.mrf.mxu0
        %v1427 = vadd.f32 0.0, %v1426
        %v1428 = vpop.f32.mrf.mxu0
        %v1429 = vpop.f32.mrf.mxu0
        %v1430 = vadd.f32 0.0, %v1429
        %v1431 = vpop.f32.mrf.mxu0
        %1432 = vmatprep.mubr.bf16.mxu0 0
        %1433 = vmatmul.mubr.bf16.gmra.mxu0 %v1079
        %v1434 = vpop.f32.mrf.mxu0
        %v1435 = vadd.f32 0.0, %v1434
        %v1436 = vpop.f32.mrf.mxu0
        %v1437 = vpop.f32.mrf.mxu0
        %v1438 = vadd.f32 0.0, %v1437
        %v1439 = vpop.f32.mrf.mxu0
        %1440 = vmatprep.mubr.bf16.mxu0 0
        %1441 = vmatmul.mubr.bf16.gmra.mxu0 %v1082
        %v1442 = vpop.f32.mrf.mxu0
        %v1443 = vadd.f32 0.0, %v1442
        %v1444 = vpop.f32.mrf.mxu0
        %v1445 = vpop.f32.mrf.mxu0
        %v1446 = vadd.f32 0.0, %v1445
        %v1447 = vpop.f32.mrf.mxu0
        %1448 = vmatprep.mubr.bf16.mxu0 0
        %1449 = vmatmul.mubr.bf16.gmra.mxu0 %v1085
        %v1450 = vpop.f32.mrf.mxu0
        %v1451 = vadd.f32 0.0, %v1450
        %v1452 = vpop.f32.mrf.mxu0
        %v1453 = vpop.f32.mrf.mxu0
        %v1454 = vadd.f32 0.0, %v1453
        %v1455 = vpop.f32.mrf.mxu0
        %1456 = vmatprep.mubr.bf16.mxu0 0
        %1457 = vmatmul.mubr.bf16.gmra.mxu0 %v1088
        %v1458 = vpop.f32.mrf.mxu0
        %v1459 = vadd.f32 0.0, %v1458
        %v1460 = vpop.f32.mrf.mxu0
        %v1461 = vpop.f32.mrf.mxu0
        %v1462 = vadd.f32 0.0, %v1461
        %v1463 = vpop.f32.mrf.mxu0
        %1464 = vmatprep.mubr.bf16.mxu0 0
        %1465 = vmatmul.mubr.bf16.gmra.mxu0 %v1091
        %v1466 = vpop.f32.mrf.mxu0
        %v1467 = vadd.f32 0.0, %v1466
        %v1468 = vpop.f32.mrf.mxu0
        %v1469 = vpop.f32.mrf.mxu0
        %v1470 = vadd.f32 0.0, %v1469
        %v1471 = vpop.f32.mrf.mxu0
        %1472 = vmatprep.mubr.bf16.mxu0 0
        %1473 = vmatmul.mubr.bf16.gmra.mxu0 %v1094
        %v1474 = vpop.f32.mrf.mxu0
        %v1475 = vadd.f32 0.0, %v1474
        %v1476 = vpop.f32.mrf.mxu0
        %v1477 = vpop.f32.mrf.mxu0
        %v1478 = vadd.f32 0.0, %v1477
        %v1479 = vpop.f32.mrf.mxu0
        %1480 = vdwg.mxu0
        %v1481 = vadd.f32 %v1304, %v1419
        %v1482 = vadd.f32 %v1305, %v1422
        %v1483 = vadd.f32 %v1306, %v1427
        %v1484 = vadd.f32 %v1307, %v1430
        %v1485 = vadd.f32 %v1308, %v1435
        %v1486 = vadd.f32 %v1309, %v1438
        %v1487 = vadd.f32 %v1310, %v1443
        %v1488 = vadd.f32 %v1311, %v1446
        %v1489 = vadd.f32 %v1312, %v1451
        %v1490 = vadd.f32 %v1313, %v1454
        %v1491 = vadd.f32 %v1314, %v1459
        %v1492 = vadd.f32 %v1315, %v1462
        %v1493 = vadd.f32 %v1316, %v1467
        %v1494 = vadd.f32 %v1317, %v1470
        %v1495 = vadd.f32 %v1318, %v1475
        %v1496 = vadd.f32 %v1319, %v1478
        %vm1497 = vcmask 64512
        %1498 = vst.msk [vmem:[#allocation4] sm:$0xff] %vm1497, %v1481
        %1499 = vst.msk [vmem:[#allocation4 + $0x8] sm:$0xff] %vm1497, %v1482
        %1500 = vst.msk [vmem:[#allocation4 + $0x10] sm:$0xff] %vm1497, %v1483
        %1501 = vst.msk [vmem:[#allocation4 + $0x18] sm:$0xff] %vm1497, %v1484
        %1502 = vst.msk [vmem:[#allocation4 + $0x20] sm:$0xff] %vm1497, %v1485
        %1503 = vst.msk [vmem:[#allocation4 + $0x28] sm:$0xff] %vm1497, %v1486
        %1504 = vst.msk [vmem:[#allocation4 + $0x30] sm:$0xff] %vm1497, %v1487
        %1505 = vst.msk [vmem:[#allocation4 + $0x38] sm:$0xff] %vm1497, %v1488
        %1506 = vst.msk [vmem:[#allocation4 + $0x40] sm:$0xff] %vm1497, %v1489
        %1507 = vst.msk [vmem:[#allocation4 + $0x48] sm:$0xff] %vm1497, %v1490
        %1508 = vst.msk [vmem:[#allocation4 + $0x50] sm:$0xff] %vm1497, %v1491
        %1509 = vst.msk [vmem:[#allocation4 + $0x58] sm:$0xff] %vm1497, %v1492
        %1510 = vst.msk [vmem:[#allocation4 + $0x60] sm:$0xff] %vm1497, %v1493
        %1511 = vst.msk [vmem:[#allocation4 + $0x68] sm:$0xff] %vm1497, %v1494
        %1512 = vst.msk [vmem:[#allocation4 + $0x70] sm:$0xff] %vm1497, %v1495
        %1513 = vst.msk [vmem:[#allocation4 + $0x78] sm:$0xff] %vm1497, %v1496
        %1514 = vst.msk [vmem:[#allocation2] sm:$0xff] %vm1191, %v903
        %1515 = vst.msk [vmem:[#allocation2 + $0x8] sm:$0xff] %vm1191, %v904
        %1516 = vst.msk [vmem:[#allocation2 + $0x10] sm:$0xff] %vm1191, %v905
        %1517 = vst.msk [vmem:[#allocation2 + $0x18] sm:$0xff] %vm1191, %v906
        %1518 = vst.msk [vmem:[#allocation2 + $0x20] sm:$0xff] %vm1191, %v907
        %1519 = vst.msk [vmem:[#allocation2 + $0x28] sm:$0xff] %vm1191, %v908
        %1520 = vst.msk [vmem:[#allocation2 + $0x30] sm:$0xff] %vm1191, %v909
        %1521 = vst.msk [vmem:[#allocation2 + $0x38] sm:$0xff] %vm1191, %v910
        %1522 = vst.msk [vmem:[#allocation2 + $0x40] sm:$0xff] %vm1191, %v911
        %1523 = vst.msk [vmem:[#allocation2 + $0x48] sm:$0xff] %vm1191, %v912
        %1524 = vst.msk [vmem:[#allocation2 + $0x50] sm:$0xff] %vm1191, %v913
        %1525 = vst.msk [vmem:[#allocation2 + $0x58] sm:$0xff] %vm1191, %v914
        %1526 = vst.msk [vmem:[#allocation2 + $0x60] sm:$0xff] %vm1191, %v915
        %1527 = vst.msk [vmem:[#allocation2 + $0x68] sm:$0xff] %vm1191, %v916
        %1528 = vst.msk [vmem:[#allocation2 + $0x70] sm:$0xff] %vm1191, %v917
        %1529 = vst.msk [vmem:[#allocation2 + $0x78] sm:$0xff] %vm1191, %v918
        %1530 = vset.pattern.permute.xlu0 1
        %1531 = vperm.xlu0 %1530, %v690
        %v1532 = vpop.permute.xlu0 %1531
        %1534 = vset.pattern.permute.xlu0 1
        %1535 = vperm.xlu0 %1534, %v691
        %v1536 = vpop.permute.xlu0 %1535
        %1538 = vset.pattern.permute.xlu0 1
        %1539 = vperm.xlu0 %1538, %v692
        %v1540 = vpop.permute.xlu0 %1539
        %1542 = vset.pattern.permute.xlu0 1
        %1543 = vperm.xlu0 %1542, %v693
        %v1544 = vpop.permute.xlu0 %1543
        %1546 = vset.pattern.permute.xlu0 1
        %1547 = vperm.xlu0 %1546, %v694
        %v1548 = vpop.permute.xlu0 %1547
        %1550 = vset.pattern.permute.xlu0 1
        %1551 = vperm.xlu0 %1550, %v695
        %v1552 = vpop.permute.xlu0 %1551
        %1554 = vset.pattern.permute.xlu0 1
        %1555 = vperm.xlu0 %1554, %v696
        %v1556 = vpop.permute.xlu0 %1555
        %1558 = vset.pattern.permute.xlu0 1
        %1559 = vperm.xlu0 %1558, %v697
        %v1560 = vpop.permute.xlu0 %1559
        %1562 = vset.pattern.permute.xlu0 1
        %1563 = vperm.xlu0 %1562, %v698
        %v1564 = vpop.permute.xlu0 %1563
        %1566 = vset.pattern.permute.xlu0 1
        %1567 = vperm.xlu0 %1566, %v699
        %v1568 = vpop.permute.xlu0 %1567
        %1570 = vset.pattern.permute.xlu0 1
        %1571 = vperm.xlu0 %1570, %v700
        %v1572 = vpop.permute.xlu0 %1571
        %1574 = vset.pattern.permute.xlu0 1
        %1575 = vperm.xlu0 %1574, %v701
        %v1576 = vpop.permute.xlu0 %1575
        %1578 = vset.pattern.permute.xlu0 1
        %1579 = vperm.xlu0 %1578, %v702
        %v1580 = vpop.permute.xlu0 %1579
        %1582 = vset.pattern.permute.xlu0 1
        %1583 = vperm.xlu0 %1582, %v703
        %v1584 = vpop.permute.xlu0 %1583
        %1586 = vset.pattern.permute.xlu0 1
        %1587 = vperm.xlu0 %1586, %v704
        %v1588 = vpop.permute.xlu0 %1587
        %1590 = vset.pattern.permute.xlu0 1
        %1591 = vperm.xlu0 %1590, %v705
        %v1592 = vpop.permute.xlu0 %1591
        %v1594 = vlaneseq
        %v1595 = vshrl.u32 %v1594, 7
        %v1596 = vsub.s32 1, %v1595
        %v1597 = vrot.slane %v706, %v1596
        %v1598 = vadd.f32 %v1532, %v1597
        %v1599 = vadd.f32 %v1536, %v1597
        %v1600 = vadd.f32 %v1540, %v1597
        %v1601 = vadd.f32 %v1544, %v1597
        %v1602 = vadd.f32 %v1548, %v1597
        %v1603 = vadd.f32 %v1552, %v1597
        %v1604 = vadd.f32 %v1556, %v1597
        %v1605 = vadd.f32 %v1560, %v1597
        %v1606 = vadd.f32 %v1564, %v1597
        %v1607 = vadd.f32 %v1568, %v1597
        %v1608 = vadd.f32 %v1572, %v1597
        %v1609 = vadd.f32 %v1576, %v1597
        %v1610 = vadd.f32 %v1580, %v1597
        %v1611 = vadd.f32 %v1584, %v1597
        %v1612 = vadd.f32 %v1588, %v1597
        %v1613 = vadd.f32 %v1592, %v1597
        %v1614 = vmul.f32 %v1598, 0.2
        %v1615 = vmul.f32 %v1599, 0.2
        %v1616 = vmul.f32 %v1600, 0.2
        %v1617 = vmul.f32 %v1601, 0.2
        %v1618 = vmul.f32 %v1602, 0.2
        %v1619 = vmul.f32 %v1603, 0.2
        %v1620 = vmul.f32 %v1604, 0.2
        %v1621 = vmul.f32 %v1605, 0.2
        %v1622 = vmul.f32 %v1606, 0.2
        %v1623 = vmul.f32 %v1607, 0.2
        %v1624 = vmul.f32 %v1608, 0.2
        %v1625 = vmul.f32 %v1609, 0.2
        %v1626 = vmul.f32 %v1610, 0.2
        %v1627 = vmul.f32 %v1611, 0.2
        %v1628 = vmul.f32 %v1612, 0.2
        %v1629 = vmul.f32 %v1613, 0.2
        %v1630 = vmax.f32 %v1598, %v1614
        %v1631 = vmax.f32 %v1599, %v1615
        %v1632 = vmax.f32 %v1600, %v1616
        %v1633 = vmax.f32 %v1601, %v1617
        %v1634 = vmax.f32 %v1602, %v1618
        %v1635 = vmax.f32 %v1603, %v1619
        %v1636 = vmax.f32 %v1604, %v1620
        %v1637 = vmax.f32 %v1605, %v1621
        %v1638 = vmax.f32 %v1606, %v1622
        %v1639 = vmax.f32 %v1607, %v1623
        %v1640 = vmax.f32 %v1608, %v1624
        %v1641 = vmax.f32 %v1609, %v1625
        %v1642 = vmax.f32 %v1610, %v1626
        %v1643 = vmax.f32 %v1611, %v1627
        %v1644 = vmax.f32 %v1612, %v1628
        %v1645 = vmax.f32 %v1613, %v1629
        %v1646 = vadd.f32 %v1630, %v674
        %v1647 = vadd.f32 %v1631, %v675
        %v1648 = vadd.f32 %v1632, %v676
        %v1649 = vadd.f32 %v1633, %v677
        %v1650 = vadd.f32 %v1634, %v678
        %v1651 = vadd.f32 %v1635, %v679
        %v1652 = vadd.f32 %v1636, %v680
        %v1653 = vadd.f32 %v1637, %v681
        %v1654 = vadd.f32 %v1638, %v682
        %v1655 = vadd.f32 %v1639, %v683
        %v1656 = vadd.f32 %v1640, %v684
        %v1657 = vadd.f32 %v1641, %v685
        %v1658 = vadd.f32 %v1642, %v686
        %v1659 = vadd.f32 %v1643, %v687
        %v1660 = vadd.f32 %v1644, %v688
        %v1661 = vadd.f32 %v1645, %v689
        %s1662 = scalar_lea.vmem [#allocation2], 128
        %v1663 = vld [vmem:[%s1662] sm:$0xff]
        %v1664 = vld [vmem:[%s1662 + $0x8] sm:$0xff]
        %v1665 = vld [vmem:[%s1662 + $0x10] sm:$0xff]
        %v1666 = vld [vmem:[%s1662 + $0x18] sm:$0xff]
        %v1667 = vld [vmem:[%s1662 + $0x20] sm:$0xff]
        %v1668 = vld [vmem:[%s1662 + $0x28] sm:$0xff]
        %v1669 = vld [vmem:[%s1662 + $0x30] sm:$0xff]
        %v1670 = vld [vmem:[%s1662 + $0x38] sm:$0xff]
        %v1671 = vld [vmem:[%s1662 + $0x40] sm:$0xff]
        %v1672 = vld [vmem:[%s1662 + $0x48] sm:$0xff]
        %v1673 = vld [vmem:[%s1662 + $0x50] sm:$0xff]
        %v1674 = vld [vmem:[%s1662 + $0x58] sm:$0xff]
        %v1675 = vld [vmem:[%s1662 + $0x60] sm:$0xff]
        %v1676 = vld [vmem:[%s1662 + $0x68] sm:$0xff]
        %v1677 = vld [vmem:[%s1662 + $0x70] sm:$0xff]
        %v1678 = vld [vmem:[%s1662 + $0x78] sm:$0xff]
        %1679 = vmax.xlane.f32.xlu0 %v1646
        %v1680 = vpop.xlane.xlu0 %1679
        %1681 = vmax.xlane.f32.xlu0 %v1647
        %v1682 = vpop.xlane.xlu0 %1681
        %1683 = vmax.xlane.f32.xlu0 %v1648
        %v1684 = vpop.xlane.xlu0 %1683
        %1685 = vmax.xlane.f32.xlu0 %v1649
        %v1686 = vpop.xlane.xlu0 %1685
        %1687 = vmax.xlane.f32.xlu0 %v1650
        %v1688 = vpop.xlane.xlu0 %1687
        %1689 = vmax.xlane.f32.xlu0 %v1651
        %v1690 = vpop.xlane.xlu0 %1689
        %1691 = vmax.xlane.f32.xlu0 %v1652
        %v1692 = vpop.xlane.xlu0 %1691
        %1693 = vmax.xlane.f32.xlu0 %v1653
        %v1694 = vpop.xlane.xlu0 %1693
        %1695 = vmax.xlane.f32.xlu0 %v1654
        %v1696 = vpop.xlane.xlu0 %1695
        %1697 = vmax.xlane.f32.xlu0 %v1655
        %v1698 = vpop.xlane.xlu0 %1697
        %1699 = vmax.xlane.f32.xlu0 %v1656
        %v1700 = vpop.xlane.xlu0 %1699
        %1701 = vmax.xlane.f32.xlu0 %v1657
        %v1702 = vpop.xlane.xlu0 %1701
        %1703 = vmax.xlane.f32.xlu0 %v1658
        %v1704 = vpop.xlane.xlu0 %1703
        %1705 = vmax.xlane.f32.xlu0 %v1659
        %v1706 = vpop.xlane.xlu0 %1705
        %1707 = vmax.xlane.f32.xlu0 %v1660
        %v1708 = vpop.xlane.xlu0 %1707
        %1709 = vmax.xlane.f32.xlu0 %v1661
        %v1710 = vpop.xlane.xlu0 %1709
        %v1711 = vmax.f32 %v1663, %v1680
        %v1712 = vmax.f32 %v1664, %v1682
        %v1713 = vmax.f32 %v1665, %v1684
        %v1714 = vmax.f32 %v1666, %v1686
        %v1715 = vmax.f32 %v1667, %v1688
        %v1716 = vmax.f32 %v1668, %v1690
        %v1717 = vmax.f32 %v1669, %v1692
        %v1718 = vmax.f32 %v1670, %v1694
        %v1719 = vmax.f32 %v1671, %v1696
        %v1720 = vmax.f32 %v1672, %v1698
        %v1721 = vmax.f32 %v1673, %v1700
        %v1722 = vmax.f32 %v1674, %v1702
        %v1723 = vmax.f32 %v1675, %v1704
        %v1724 = vmax.f32 %v1676, %v1706
        %v1725 = vmax.f32 %v1677, %v1708
        %v1726 = vmax.f32 %v1678, %v1710
        %v1727 = vsub.f32 %v1663, %v1711
        %v1728 = vsub.f32 %v1664, %v1712
        %v1729 = vsub.f32 %v1665, %v1713
        %v1730 = vsub.f32 %v1666, %v1714
        %v1731 = vsub.f32 %v1667, %v1715
        %v1732 = vsub.f32 %v1668, %v1716
        %v1733 = vsub.f32 %v1669, %v1717
        %v1734 = vsub.f32 %v1670, %v1718
        %v1735 = vsub.f32 %v1671, %v1719
        %v1736 = vsub.f32 %v1672, %v1720
        %v1737 = vsub.f32 %v1673, %v1721
        %v1738 = vsub.f32 %v1674, %v1722
        %v1739 = vsub.f32 %v1675, %v1723
        %v1740 = vsub.f32 %v1676, %v1724
        %v1741 = vsub.f32 %v1677, %v1725
        %v1742 = vsub.f32 %v1678, %v1726
        %v1743 = vmul.f32 %v1727, 1.442695
        %v1744 = vpow.pop %v1743
        %v1745 = vmul.f32 %v1728, 1.442695
        %v1746 = vpow.pop %v1745
        %v1747 = vmul.f32 %v1729, 1.442695
        %v1748 = vpow.pop %v1747
        %v1749 = vmul.f32 %v1730, 1.442695
        %v1750 = vpow.pop %v1749
        %v1751 = vmul.f32 %v1731, 1.442695
        %v1752 = vpow.pop %v1751
        %v1753 = vmul.f32 %v1732, 1.442695
        %v1754 = vpow.pop %v1753
        %v1755 = vmul.f32 %v1733, 1.442695
        %v1756 = vpow.pop %v1755
        %v1757 = vmul.f32 %v1734, 1.442695
        %v1758 = vpow.pop %v1757
        %v1759 = vmul.f32 %v1735, 1.442695
        %v1760 = vpow.pop %v1759
        %v1761 = vmul.f32 %v1736, 1.442695
        %v1762 = vpow.pop %v1761
        %v1763 = vmul.f32 %v1737, 1.442695
        %v1764 = vpow.pop %v1763
        %v1765 = vmul.f32 %v1738, 1.442695
        %v1766 = vpow.pop %v1765
        %v1767 = vmul.f32 %v1739, 1.442695
        %v1768 = vpow.pop %v1767
        %v1769 = vmul.f32 %v1740, 1.442695
        %v1770 = vpow.pop %v1769
        %v1771 = vmul.f32 %v1741, 1.442695
        %v1772 = vpow.pop %v1771
        %v1773 = vmul.f32 %v1742, 1.442695
        %v1774 = vpow.pop %v1773
        %1776 = vset.pattern.permute.xlu0 0
        %1777 = vperm.xlu0 %1776, %v1711
        %v1778 = vpop.permute.xlu0 %1777
        %1781 = vset.pattern.permute.xlu0 0
        %1782 = vperm.xlu0 %1781, %v1712
        %v1783 = vpop.permute.xlu0 %1782
        %1786 = vset.pattern.permute.xlu0 0
        %1787 = vperm.xlu0 %1786, %v1713
        %v1788 = vpop.permute.xlu0 %1787
        %1791 = vset.pattern.permute.xlu0 0
        %1792 = vperm.xlu0 %1791, %v1714
        %v1793 = vpop.permute.xlu0 %1792
        %1796 = vset.pattern.permute.xlu0 0
        %1797 = vperm.xlu0 %1796, %v1715
        %v1798 = vpop.permute.xlu0 %1797
        %1801 = vset.pattern.permute.xlu0 0
        %1802 = vperm.xlu0 %1801, %v1716
        %v1803 = vpop.permute.xlu0 %1802
        %1806 = vset.pattern.permute.xlu0 0
        %1807 = vperm.xlu0 %1806, %v1717
        %v1808 = vpop.permute.xlu0 %1807
        %1811 = vset.pattern.permute.xlu0 0
        %1812 = vperm.xlu0 %1811, %v1718
        %v1813 = vpop.permute.xlu0 %1812
        %1816 = vset.pattern.permute.xlu0 0
        %1817 = vperm.xlu0 %1816, %v1719
        %v1818 = vpop.permute.xlu0 %1817
        %1821 = vset.pattern.permute.xlu0 0
        %1822 = vperm.xlu0 %1821, %v1720
        %v1823 = vpop.permute.xlu0 %1822
        %1826 = vset.pattern.permute.xlu0 0
        %1827 = vperm.xlu0 %1826, %v1721
        %v1828 = vpop.permute.xlu0 %1827
        %1831 = vset.pattern.permute.xlu0 0
        %1832 = vperm.xlu0 %1831, %v1722
        %v1833 = vpop.permute.xlu0 %1832
        %1836 = vset.pattern.permute.xlu0 0
        %1837 = vperm.xlu0 %1836, %v1723
        %v1838 = vpop.permute.xlu0 %1837
        %1841 = vset.pattern.permute.xlu0 0
        %1842 = vperm.xlu0 %1841, %v1724
        %v1843 = vpop.permute.xlu0 %1842
        %1846 = vset.pattern.permute.xlu0 0
        %1847 = vperm.xlu0 %1846, %v1725
        %v1848 = vpop.permute.xlu0 %1847
        %1851 = vset.pattern.permute.xlu0 0
        %1852 = vperm.xlu0 %1851, %v1726
        %v1853 = vpop.permute.xlu0 %1852
        %v1855 = vsub.f32 %v1646, %v1778
        %v1856 = vsub.f32 %v1647, %v1783
        %v1857 = vsub.f32 %v1648, %v1788
        %v1858 = vsub.f32 %v1649, %v1793
        %v1859 = vsub.f32 %v1650, %v1798
        %v1860 = vsub.f32 %v1651, %v1803
        %v1861 = vsub.f32 %v1652, %v1808
        %v1862 = vsub.f32 %v1653, %v1813
        %v1863 = vsub.f32 %v1654, %v1818
        %v1864 = vsub.f32 %v1655, %v1823
        %v1865 = vsub.f32 %v1656, %v1828
        %v1866 = vsub.f32 %v1657, %v1833
        %v1867 = vsub.f32 %v1658, %v1838
        %v1868 = vsub.f32 %v1659, %v1843
        %v1869 = vsub.f32 %v1660, %v1848
        %v1870 = vsub.f32 %v1661, %v1853
        %v1871 = vpack.c.bf16 %v1856, %v1855
        %v1872 = vpack.c.bf16 %v1858, %v1857
        %v1873 = vpack.c.bf16 %v1860, %v1859
        %v1874 = vpack.c.bf16 %v1862, %v1861
        %v1875 = vpack.c.bf16 %v1864, %v1863
        %v1876 = vpack.c.bf16 %v1866, %v1865
        %v1877 = vpack.c.bf16 %v1868, %v1867
        %v1878 = vpack.c.bf16 %v1870, %v1869
        %v1880 = vmul.bf16 %v1871, 1069105081
        %v1881 = vpow.bf16.pop %v1880
        %v1883 = vmul.bf16 %v1872, 1069105081
        %v1884 = vpow.bf16.pop %v1883
        %v1886 = vmul.bf16 %v1873, 1069105081
        %v1887 = vpow.bf16.pop %v1886
        %v1889 = vmul.bf16 %v1874, 1069105081
        %v1890 = vpow.bf16.pop %v1889
        %v1892 = vmul.bf16 %v1875, 1069105081
        %v1893 = vpow.bf16.pop %v1892
        %v1895 = vmul.bf16 %v1876, 1069105081
        %v1896 = vpow.bf16.pop %v1895
        %v1898 = vmul.bf16 %v1877, 1069105081
        %v1899 = vpow.bf16.pop %v1898
        %v1901 = vmul.bf16 %v1878, 1069105081
        %v1902 = vpow.bf16.pop %v1901
        %s1903 = scalar_lea.vmem [#allocation3], 128
        %v1904 = vld [vmem:[%s1903] sm:$0xff]
        %v1905 = vld [vmem:[%s1903 + $0x8] sm:$0xff]
        %v1906 = vld [vmem:[%s1903 + $0x10] sm:$0xff]
        %v1907 = vld [vmem:[%s1903 + $0x18] sm:$0xff]
        %v1908 = vld [vmem:[%s1903 + $0x20] sm:$0xff]
        %v1909 = vld [vmem:[%s1903 + $0x28] sm:$0xff]
        %v1910 = vld [vmem:[%s1903 + $0x30] sm:$0xff]
        %v1911 = vld [vmem:[%s1903 + $0x38] sm:$0xff]
        %v1912 = vld [vmem:[%s1903 + $0x40] sm:$0xff]
        %v1913 = vld [vmem:[%s1903 + $0x48] sm:$0xff]
        %v1914 = vld [vmem:[%s1903 + $0x50] sm:$0xff]
        %v1915 = vld [vmem:[%s1903 + $0x58] sm:$0xff]
        %v1916 = vld [vmem:[%s1903 + $0x60] sm:$0xff]
        %v1917 = vld [vmem:[%s1903 + $0x68] sm:$0xff]
        %v1918 = vld [vmem:[%s1903 + $0x70] sm:$0xff]
        %v1919 = vld [vmem:[%s1903 + $0x78] sm:$0xff]
        %v1920 = vmul.f32 %v1744, %v1904
        %v1921 = vmul.f32 %v1746, %v1905
        %v1922 = vmul.f32 %v1748, %v1906
        %v1923 = vmul.f32 %v1750, %v1907
        %v1924 = vmul.f32 %v1752, %v1908
        %v1925 = vmul.f32 %v1754, %v1909
        %v1926 = vmul.f32 %v1756, %v1910
        %v1927 = vmul.f32 %v1758, %v1911
        %v1928 = vmul.f32 %v1760, %v1912
        %v1929 = vmul.f32 %v1762, %v1913
        %v1930 = vmul.f32 %v1764, %v1914
        %v1931 = vmul.f32 %v1766, %v1915
        %v1932 = vmul.f32 %v1768, %v1916
        %v1933 = vmul.f32 %v1770, %v1917
        %v1934 = vmul.f32 %v1772, %v1918
        %v1935 = vmul.f32 %v1774, %v1919
        %v1936 = vunpack.c.l.bf16 %v1881
        %v1937 = vunpack.c.h.bf16 %v1881
        %v1938 = vunpack.c.l.bf16 %v1884
        %v1939 = vunpack.c.h.bf16 %v1884
        %v1940 = vunpack.c.l.bf16 %v1887
        %v1941 = vunpack.c.h.bf16 %v1887
        %v1942 = vunpack.c.l.bf16 %v1890
        %v1943 = vunpack.c.h.bf16 %v1890
        %v1944 = vunpack.c.l.bf16 %v1893
        %v1945 = vunpack.c.h.bf16 %v1893
        %v1946 = vunpack.c.l.bf16 %v1896
        %v1947 = vunpack.c.h.bf16 %v1896
        %v1948 = vunpack.c.l.bf16 %v1899
        %v1949 = vunpack.c.h.bf16 %v1899
        %v1950 = vunpack.c.l.bf16 %v1902
        %v1951 = vunpack.c.h.bf16 %v1902
        %1952 = vadd.xlane.f32.xlu0 %v1936
        %v1953 = vpop.xlane.xlu0 %1952
        %1954 = vadd.xlane.f32.xlu0 %v1937
        %v1955 = vpop.xlane.xlu0 %1954
        %1956 = vadd.xlane.f32.xlu0 %v1938
        %v1957 = vpop.xlane.xlu0 %1956
        %1958 = vadd.xlane.f32.xlu0 %v1939
        %v1959 = vpop.xlane.xlu0 %1958
        %1960 = vadd.xlane.f32.xlu0 %v1940
        %v1961 = vpop.xlane.xlu0 %1960
        %1962 = vadd.xlane.f32.xlu0 %v1941
        %v1963 = vpop.xlane.xlu0 %1962
        %1964 = vadd.xlane.f32.xlu0 %v1942
        %v1965 = vpop.xlane.xlu0 %1964
        %1966 = vadd.xlane.f32.xlu0 %v1943
        %v1967 = vpop.xlane.xlu0 %1966
        %1968 = vadd.xlane.f32.xlu0 %v1944
        %v1969 = vpop.xlane.xlu0 %1968
        %1970 = vadd.xlane.f32.xlu0 %v1945
        %v1971 = vpop.xlane.xlu0 %1970
        %1972 = vadd.xlane.f32.xlu0 %v1946
        %v1973 = vpop.xlane.xlu0 %1972
        %1974 = vadd.xlane.f32.xlu0 %v1947
        %v1975 = vpop.xlane.xlu0 %1974
        %1976 = vadd.xlane.f32.xlu0 %v1948
        %v1977 = vpop.xlane.xlu0 %1976
        %1978 = vadd.xlane.f32.xlu0 %v1949
        %v1979 = vpop.xlane.xlu0 %1978
        %1980 = vadd.xlane.f32.xlu0 %v1950
        %v1981 = vpop.xlane.xlu0 %1980
        %1982 = vadd.xlane.f32.xlu0 %v1951
        %v1983 = vpop.xlane.xlu0 %1982
        %v1984 = vadd.f32 %v1920, %v1953
        %v1985 = vadd.f32 %v1921, %v1955
        %v1986 = vadd.f32 %v1922, %v1957
        %v1987 = vadd.f32 %v1923, %v1959
        %v1988 = vadd.f32 %v1924, %v1961
        %v1989 = vadd.f32 %v1925, %v1963
        %v1990 = vadd.f32 %v1926, %v1965
        %v1991 = vadd.f32 %v1927, %v1967
        %v1992 = vadd.f32 %v1928, %v1969
        %v1993 = vadd.f32 %v1929, %v1971
        %v1994 = vadd.f32 %v1930, %v1973
        %v1995 = vadd.f32 %v1931, %v1975
        %v1996 = vadd.f32 %v1932, %v1977
        %v1997 = vadd.f32 %v1933, %v1979
        %v1998 = vadd.f32 %v1934, %v1981
        %v1999 = vadd.f32 %v1935, %v1983
        %2000 = vst.msk [vmem:[%s1903] sm:$0xff] %vm1191, %v1984
        %2001 = vst.msk [vmem:[%s1903 + $0x8] sm:$0xff] %vm1191, %v1985
        %2002 = vst.msk [vmem:[%s1903 + $0x10] sm:$0xff] %vm1191, %v1986
        %2003 = vst.msk [vmem:[%s1903 + $0x18] sm:$0xff] %vm1191, %v1987
        %2004 = vst.msk [vmem:[%s1903 + $0x20] sm:$0xff] %vm1191, %v1988
        %2005 = vst.msk [vmem:[%s1903 + $0x28] sm:$0xff] %vm1191, %v1989
        %2006 = vst.msk [vmem:[%s1903 + $0x30] sm:$0xff] %vm1191, %v1990
        %2007 = vst.msk [vmem:[%s1903 + $0x38] sm:$0xff] %vm1191, %v1991
        %2008 = vst.msk [vmem:[%s1903 + $0x40] sm:$0xff] %vm1191, %v1992
        %2009 = vst.msk [vmem:[%s1903 + $0x48] sm:$0xff] %vm1191, %v1993
        %2010 = vst.msk [vmem:[%s1903 + $0x50] sm:$0xff] %vm1191, %v1994
        %2011 = vst.msk [vmem:[%s1903 + $0x58] sm:$0xff] %vm1191, %v1995
        %2012 = vst.msk [vmem:[%s1903 + $0x60] sm:$0xff] %vm1191, %v1996
        %2013 = vst.msk [vmem:[%s1903 + $0x68] sm:$0xff] %vm1191, %v1997
        %2014 = vst.msk [vmem:[%s1903 + $0x70] sm:$0xff] %vm1191, %v1998
        %2015 = vst.msk [vmem:[%s1903 + $0x78] sm:$0xff] %vm1191, %v1999
        %s2016 = scalar_lea.vmem [#allocation4], 128
        %v2017 = vld [vmem:[%s2016] sm:$0xff]
        %v2018 = vld [vmem:[%s2016 + $0x8] sm:$0xff]
        %v2019 = vld [vmem:[%s2016 + $0x10] sm:$0xff]
        %v2020 = vld [vmem:[%s2016 + $0x18] sm:$0xff]
        %v2021 = vld [vmem:[%s2016 + $0x20] sm:$0xff]
        %v2022 = vld [vmem:[%s2016 + $0x28] sm:$0xff]
        %v2023 = vld [vmem:[%s2016 + $0x30] sm:$0xff]
        %v2024 = vld [vmem:[%s2016 + $0x38] sm:$0xff]
        %v2025 = vld [vmem:[%s2016 + $0x40] sm:$0xff]
        %v2026 = vld [vmem:[%s2016 + $0x48] sm:$0xff]
        %v2027 = vld [vmem:[%s2016 + $0x50] sm:$0xff]
        %v2028 = vld [vmem:[%s2016 + $0x58] sm:$0xff]
        %v2029 = vld [vmem:[%s2016 + $0x60] sm:$0xff]
        %v2030 = vld [vmem:[%s2016 + $0x68] sm:$0xff]
        %v2031 = vld [vmem:[%s2016 + $0x70] sm:$0xff]
        %v2032 = vld [vmem:[%s2016 + $0x78] sm:$0xff]
        %2034 = vset.pattern.permute.xlu0 0
        %2035 = vperm.xlu0 %2034, %v1744
        %v2036 = vpop.permute.xlu0 %2035
        %2039 = vset.pattern.permute.xlu0 0
        %2040 = vperm.xlu0 %2039, %v1746
        %v2041 = vpop.permute.xlu0 %2040
        %2044 = vset.pattern.permute.xlu0 0
        %2045 = vperm.xlu0 %2044, %v1748
        %v2046 = vpop.permute.xlu0 %2045
        %2049 = vset.pattern.permute.xlu0 0
        %2050 = vperm.xlu0 %2049, %v1750
        %v2051 = vpop.permute.xlu0 %2050
        %2054 = vset.pattern.permute.xlu0 0
        %2055 = vperm.xlu0 %2054, %v1752
        %v2056 = vpop.permute.xlu0 %2055
        %2059 = vset.pattern.permute.xlu0 0
        %2060 = vperm.xlu0 %2059, %v1754
        %v2061 = vpop.permute.xlu0 %2060
        %2064 = vset.pattern.permute.xlu0 0
        %2065 = vperm.xlu0 %2064, %v1756
        %v2066 = vpop.permute.xlu0 %2065
        %2069 = vset.pattern.permute.xlu0 0
        %2070 = vperm.xlu0 %2069, %v1758
        %v2071 = vpop.permute.xlu0 %2070
        %2074 = vset.pattern.permute.xlu0 0
        %2075 = vperm.xlu0 %2074, %v1760
        %v2076 = vpop.permute.xlu0 %2075
        %2079 = vset.pattern.permute.xlu0 0
        %2080 = vperm.xlu0 %2079, %v1762
        %v2081 = vpop.permute.xlu0 %2080
        %2084 = vset.pattern.permute.xlu0 0
        %2085 = vperm.xlu0 %2084, %v1764
        %v2086 = vpop.permute.xlu0 %2085
        %2089 = vset.pattern.permute.xlu0 0
        %2090 = vperm.xlu0 %2089, %v1766
        %v2091 = vpop.permute.xlu0 %2090
        %2094 = vset.pattern.permute.xlu0 0
        %2095 = vperm.xlu0 %2094, %v1768
        %v2096 = vpop.permute.xlu0 %2095
        %2099 = vset.pattern.permute.xlu0 0
        %2100 = vperm.xlu0 %2099, %v1770
        %v2101 = vpop.permute.xlu0 %2100
        %2104 = vset.pattern.permute.xlu0 0
        %2105 = vperm.xlu0 %2104, %v1772
        %v2106 = vpop.permute.xlu0 %2105
        %2109 = vset.pattern.permute.xlu0 0
        %2110 = vperm.xlu0 %2109, %v1774
        %v2111 = vpop.permute.xlu0 %2110
        %v2113 = vmul.f32 %v2036, %v2017
        %v2114 = vmul.f32 %v2041, %v2018
        %v2115 = vmul.f32 %v2046, %v2019
        %v2116 = vmul.f32 %v2051, %v2020
        %v2117 = vmul.f32 %v2056, %v2021
        %v2118 = vmul.f32 %v2061, %v2022
        %v2119 = vmul.f32 %v2066, %v2023
        %v2120 = vmul.f32 %v2071, %v2024
        %v2121 = vmul.f32 %v2076, %v2025
        %v2122 = vmul.f32 %v2081, %v2026
        %v2123 = vmul.f32 %v2086, %v2027
        %v2124 = vmul.f32 %v2091, %v2028
        %v2125 = vmul.f32 %v2096, %v2029
        %v2126 = vmul.f32 %v2101, %v2030
        %v2127 = vmul.f32 %v2106, %v2031
        %v2128 = vmul.f32 %v2111, %v2032
        %s2129 = scalar_lea.vmem %s463, 64 [#allocation6]
        %v2130 = vld [vmem:[%s2129] sm:$0xf]
        %v2131 = vld [vmem:[%s2129 + $0x4] sm:$0xf]
        %v2132 = vld [vmem:[%s2129 + $0x8] sm:$0xf]
        %v2133 = vld [vmem:[%s2129 + $0xc] sm:$0xf]
        %v2134 = vld [vmem:[%s2129 + $0x10] sm:$0xf]
        %v2135 = vld [vmem:[%s2129 + $0x14] sm:$0xf]
        %v2136 = vld [vmem:[%s2129 + $0x18] sm:$0xf]
        %v2137 = vld [vmem:[%s2129 + $0x1c] sm:$0xf]
        %v2138 = vld [vmem:[%s2129 + $0x20] sm:$0xf]
        %v2139 = vld [vmem:[%s2129 + $0x24] sm:$0xf]
        %v2140 = vld [vmem:[%s2129 + $0x28] sm:$0xf]
        %v2141 = vld [vmem:[%s2129 + $0x2c] sm:$0xf]
        %v2142 = vld [vmem:[%s2129 + $0x30] sm:$0xf]
        %v2143 = vld [vmem:[%s2129 + $0x34] sm:$0xf]
        %v2144 = vld [vmem:[%s2129 + $0x38] sm:$0xf]
        %v2145 = vld [vmem:[%s2129 + $0x3c] sm:$0xf]
        %v2162 = vunpack.c.l.b16 %v2130
        %v2163 = vunpack.c.l.b16 %v2131
        %v2164 = vunpack.c.l.b16 %v2132
        %v2165 = vunpack.c.l.b16 %v2133
        %v2166 = vunpack.c.l.b16 %v2134
        %v2167 = vunpack.c.l.b16 %v2135
        %v2168 = vunpack.c.l.b16 %v2136
        %v2169 = vunpack.c.l.b16 %v2137
        %v2170 = vunpack.c.l.b16 %v2138
        %v2171 = vunpack.c.l.b16 %v2139
        %v2172 = vunpack.c.l.b16 %v2140
        %v2173 = vunpack.c.l.b16 %v2141
        %v2174 = vunpack.c.l.b16 %v2142
        %v2175 = vunpack.c.l.b16 %v2143
        %v2176 = vunpack.c.l.b16 %v2144
        %v2177 = vunpack.c.l.b16 %v2145
        %v2178 = vpack.c.b16 %v2163, %v2162
        %v2179 = vpack.c.b16 %v2165, %v2164
        %v2180 = vpack.c.b16 %v2167, %v2166
        %v2181 = vpack.c.b16 %v2169, %v2168
        %v2182 = vpack.c.b16 %v2171, %v2170
        %v2183 = vpack.c.b16 %v2173, %v2172
        %v2184 = vpack.c.b16 %v2175, %v2174
        %v2185 = vpack.c.b16 %v2177, %v2176
        %2194 = vmatprep.subr.bf16.mxu0 0
        %2195 = vmatpush1.bf16.msra.mxu0 %v2185
        %2196 = vmatprep.subr.bf16.mxu0 0
        %2197 = vmatpush1.bf16.msra.mxu0 %v2184
        %2198 = vmatprep.subr.bf16.mxu0 0
        %2199 = vmatpush1.bf16.msra.mxu0 %v2183
        %2200 = vmatprep.subr.bf16.mxu0 0
        %2201 = vmatpush1.bf16.msra.mxu0 %v2182
        %2202 = vmatprep.subr.bf16.mxu0 0
        %2203 = vmatpush1.bf16.msra.mxu0 %v2181
        %2204 = vmatprep.subr.bf16.mxu0 0
        %2205 = vmatpush1.bf16.msra.mxu0 %v2180
        %2206 = vmatprep.subr.bf16.mxu0 0
        %2207 = vmatpush1.bf16.msra.mxu0 %v2179
        %2208 = vmatprep.subr.bf16.mxu0 0
        %2209 = vmatpush1.bf16.msra.mxu0 %v2178
        %2210 = vmatprep.subr.bf16.mxu0 0
        %2211 = vmatpush2.bf16.msra.mxu0 0
        %2212 = vmatprep.subr.bf16.mxu0 0
        %2213 = vmatpush2.bf16.msra.mxu0 0
        %2214 = vmatprep.subr.bf16.mxu0 0
        %2215 = vmatpush2.bf16.msra.mxu0 0
        %2216 = vmatprep.subr.bf16.mxu0 0
        %2217 = vmatpush2.bf16.msra.mxu0 0
        %2218 = vmatprep.subr.bf16.mxu0 0
        %2219 = vmatpush2.bf16.msra.mxu0 0
        %2220 = vmatprep.subr.bf16.mxu0 0
        %2221 = vmatpush2.bf16.msra.mxu0 0
        %2222 = vmatprep.subr.bf16.mxu0 0
        %2223 = vmatpush2.bf16.msra.mxu0 0
        %2224 = vmatprep.subr.bf16.mxu0 0
        %2225 = vmatpush2.bf16.msra.mxu0 0
        %2226 = vmatprep.mubr.bf16.mxu0 0
        %2227 = vmatmul.mubr.bf16.gmra.mxu0 %v1881
        %v2228 = vpop.f32.mrf.mxu0
        %v2229 = vadd.f32 0.0, %v2228
        %v2230 = vpop.f32.mrf.mxu0
        %v2231 = vpop.f32.mrf.mxu0
        %v2232 = vadd.f32 0.0, %v2231
        %v2233 = vpop.f32.mrf.mxu0
        %2234 = vmatprep.mubr.bf16.mxu0 0
        %2235 = vmatmul.mubr.bf16.gmra.mxu0 %v1884
        %v2236 = vpop.f32.mrf.mxu0
        %v2237 = vadd.f32 0.0, %v2236
        %v2238 = vpop.f32.mrf.mxu0
        %v2239 = vpop.f32.mrf.mxu0
        %v2240 = vadd.f32 0.0, %v2239
        %v2241 = vpop.f32.mrf.mxu0
        %2242 = vmatprep.mubr.bf16.mxu0 0
        %2243 = vmatmul.mubr.bf16.gmra.mxu0 %v1887
        %v2244 = vpop.f32.mrf.mxu0
        %v2245 = vadd.f32 0.0, %v2244
        %v2246 = vpop.f32.mrf.mxu0
        %v2247 = vpop.f32.mrf.mxu0
        %v2248 = vadd.f32 0.0, %v2247
        %v2249 = vpop.f32.mrf.mxu0
        %2250 = vmatprep.mubr.bf16.mxu0 0
        %2251 = vmatmul.mubr.bf16.gmra.mxu0 %v1890
        %v2252 = vpop.f32.mrf.mxu0
        %v2253 = vadd.f32 0.0, %v2252
        %v2254 = vpop.f32.mrf.mxu0
        %v2255 = vpop.f32.mrf.mxu0
        %v2256 = vadd.f32 0.0, %v2255
        %v2257 = vpop.f32.mrf.mxu0
        %2258 = vmatprep.mubr.bf16.mxu0 0
        %2259 = vmatmul.mubr.bf16.gmra.mxu0 %v1893
        %v2260 = vpop.f32.mrf.mxu0
        %v2261 = vadd.f32 0.0, %v2260
        %v2262 = vpop.f32.mrf.mxu0
        %v2263 = vpop.f32.mrf.mxu0
        %v2264 = vadd.f32 0.0, %v2263
        %v2265 = vpop.f32.mrf.mxu0
        %2266 = vmatprep.mubr.bf16.mxu0 0
        %2267 = vmatmul.mubr.bf16.gmra.mxu0 %v1896
        %v2268 = vpop.f32.mrf.mxu0
        %v2269 = vadd.f32 0.0, %v2268
        %v2270 = vpop.f32.mrf.mxu0
        %v2271 = vpop.f32.mrf.mxu0
        %v2272 = vadd.f32 0.0, %v2271
        %v2273 = vpop.f32.mrf.mxu0
        %2274 = vmatprep.mubr.bf16.mxu0 0
        %2275 = vmatmul.mubr.bf16.gmra.mxu0 %v1899
        %v2276 = vpop.f32.mrf.mxu0
        %v2277 = vadd.f32 0.0, %v2276
        %v2278 = vpop.f32.mrf.mxu0
        %v2279 = vpop.f32.mrf.mxu0
        %v2280 = vadd.f32 0.0, %v2279
        %v2281 = vpop.f32.mrf.mxu0
        %2282 = vmatprep.mubr.bf16.mxu0 0
        %2283 = vmatmul.mubr.bf16.gmra.mxu0 %v1902
        %v2284 = vpop.f32.mrf.mxu0
        %v2285 = vadd.f32 0.0, %v2284
        %v2286 = vpop.f32.mrf.mxu0
        %v2287 = vpop.f32.mrf.mxu0
        %v2288 = vadd.f32 0.0, %v2287
        %v2289 = vpop.f32.mrf.mxu0
        %2290 = vdwg.mxu0
        %v2291 = vadd.f32 %v2113, %v2229
        %v2292 = vadd.f32 %v2114, %v2232
        %v2293 = vadd.f32 %v2115, %v2237
        %v2294 = vadd.f32 %v2116, %v2240
        %v2295 = vadd.f32 %v2117, %v2245
        %v2296 = vadd.f32 %v2118, %v2248
        %v2297 = vadd.f32 %v2119, %v2253
        %v2298 = vadd.f32 %v2120, %v2256
        %v2299 = vadd.f32 %v2121, %v2261
        %v2300 = vadd.f32 %v2122, %v2264
        %v2301 = vadd.f32 %v2123, %v2269
        %v2302 = vadd.f32 %v2124, %v2272
        %v2303 = vadd.f32 %v2125, %v2277
        %v2304 = vadd.f32 %v2126, %v2280
        %v2305 = vadd.f32 %v2127, %v2285
        %v2306 = vadd.f32 %v2128, %v2288
        %2307 = vst.msk [vmem:[%s2016] sm:$0xff] %vm1497, %v2291
        %2308 = vst.msk [vmem:[%s2016 + $0x8] sm:$0xff] %vm1497, %v2292
        %2309 = vst.msk [vmem:[%s2016 + $0x10] sm:$0xff] %vm1497, %v2293
        %2310 = vst.msk [vmem:[%s2016 + $0x18] sm:$0xff] %vm1497, %v2294
        %2311 = vst.msk [vmem:[%s2016 + $0x20] sm:$0xff] %vm1497, %v2295
        %2312 = vst.msk [vmem:[%s2016 + $0x28] sm:$0xff] %vm1497, %v2296
        %2313 = vst.msk [vmem:[%s2016 + $0x30] sm:$0xff] %vm1497, %v2297
        %2314 = vst.msk [vmem:[%s2016 + $0x38] sm:$0xff] %vm1497, %v2298
        %2315 = vst.msk [vmem:[%s2016 + $0x40] sm:$0xff] %vm1497, %v2299
        %2316 = vst.msk [vmem:[%s2016 + $0x48] sm:$0xff] %vm1497, %v2300
        %2317 = vst.msk [vmem:[%s2016 + $0x50] sm:$0xff] %vm1497, %v2301
        %2318 = vst.msk [vmem:[%s2016 + $0x58] sm:$0xff] %vm1497, %v2302
        %2319 = vst.msk [vmem:[%s2016 + $0x60] sm:$0xff] %vm1497, %v2303
        %2320 = vst.msk [vmem:[%s2016 + $0x68] sm:$0xff] %vm1497, %v2304
        %2321 = vst.msk [vmem:[%s2016 + $0x70] sm:$0xff] %vm1497, %v2305
        %2322 = vst.msk [vmem:[%s2016 + $0x78] sm:$0xff] %vm1497, %v2306
        %2323 = vst.msk [vmem:[%s1662] sm:$0xff] %vm1191, %v1711
        %2324 = vst.msk [vmem:[%s1662 + $0x8] sm:$0xff] %vm1191, %v1712
        %2325 = vst.msk [vmem:[%s1662 + $0x10] sm:$0xff] %vm1191, %v1713
        %2326 = vst.msk [vmem:[%s1662 + $0x18] sm:$0xff] %vm1191, %v1714
        %2327 = vst.msk [vmem:[%s1662 + $0x20] sm:$0xff] %vm1191, %v1715
        %2328 = vst.msk [vmem:[%s1662 + $0x28] sm:$0xff] %vm1191, %v1716
        %2329 = vst.msk [vmem:[%s1662 + $0x30] sm:$0xff] %vm1191, %v1717
        %2330 = vst.msk [vmem:[%s1662 + $0x38] sm:$0xff] %vm1191, %v1718
        %2331 = vst.msk [vmem:[%s1662 + $0x40] sm:$0xff] %vm1191, %v1719
        %2332 = vst.msk [vmem:[%s1662 + $0x48] sm:$0xff] %vm1191, %v1720
        %2333 = vst.msk [vmem:[%s1662 + $0x50] sm:$0xff] %vm1191, %v1721
        %2334 = vst.msk [vmem:[%s1662 + $0x58] sm:$0xff] %vm1191, %v1722
        %2335 = vst.msk [vmem:[%s1662 + $0x60] sm:$0xff] %vm1191, %v1723
        %2336 = vst.msk [vmem:[%s1662 + $0x68] sm:$0xff] %vm1191, %v1724
        %2337 = vst.msk [vmem:[%s1662 + $0x70] sm:$0xff] %vm1191, %v1725
        %2338 = vst.msk [vmem:[%s1662 + $0x78] sm:$0xff] %vm1191, %v1726
        %p2339 = scmp.eq.s32.totalorder %s21, 1
        // Predicated region
        $region124: #{ugcn_forward.16} parent=110 // pred_check
          %p2340 = pneg %p2339
        $region125: #{ugcn_forward.16} parent=110 // pred_check_branch
          %2342 = sbr.rel (%p2340) target = $region127
        $region126: #{ugcn_forward.16} parent=110 // pred_region
          %v2343 = vld [vmem:[#allocation3] sm:$0xff]
          %v2344 = vld [vmem:[#allocation3 + $0x8] sm:$0xff]
          %v2345 = vld [vmem:[#allocation3 + $0x10] sm:$0xff]
          %v2346 = vld [vmem:[#allocation3 + $0x18] sm:$0xff]
          %v2347 = vld [vmem:[#allocation3 + $0x20] sm:$0xff]
          %v2348 = vld [vmem:[#allocation3 + $0x28] sm:$0xff]
          %v2349 = vld [vmem:[#allocation3 + $0x30] sm:$0xff]
          %v2350 = vld [vmem:[#allocation3 + $0x38] sm:$0xff]
          %v2351 = vld [vmem:[#allocation3 + $0x40] sm:$0xff]
          %v2352 = vld [vmem:[#allocation3 + $0x48] sm:$0xff]
          %v2353 = vld [vmem:[#allocation3 + $0x50] sm:$0xff]
          %v2354 = vld [vmem:[#allocation3 + $0x58] sm:$0xff]
          %v2355 = vld [vmem:[#allocation3 + $0x60] sm:$0xff]
          %v2356 = vld [vmem:[#allocation3 + $0x68] sm:$0xff]
          %v2357 = vld [vmem:[#allocation3 + $0x70] sm:$0xff]
          %v2358 = vld [vmem:[#allocation3 + $0x78] sm:$0xff]
          %v2359 = vmax.f32 %v2343, 1e-30
          %v2360 = vmax.f32 %v2344, 1e-30
          %v2361 = vmax.f32 %v2345, 1e-30
          %v2362 = vmax.f32 %v2346, 1e-30
          %v2363 = vmax.f32 %v2347, 1e-30
          %v2364 = vmax.f32 %v2348, 1e-30
          %v2365 = vmax.f32 %v2349, 1e-30
          %v2366 = vmax.f32 %v2350, 1e-30
          %v2367 = vmax.f32 %v2351, 1e-30
          %v2368 = vmax.f32 %v2352, 1e-30
          %v2369 = vmax.f32 %v2353, 1e-30
          %v2370 = vmax.f32 %v2354, 1e-30
          %v2371 = vmax.f32 %v2355, 1e-30
          %v2372 = vmax.f32 %v2356, 1e-30
          %v2373 = vmax.f32 %v2357, 1e-30
          %v2374 = vmax.f32 %v2358, 1e-30
          %v2375 = vrcp.pop %v2359
          %v2376 = vrcp.pop %v2360
          %v2377 = vrcp.pop %v2361
          %v2378 = vrcp.pop %v2362
          %v2379 = vrcp.pop %v2363
          %v2380 = vrcp.pop %v2364
          %v2381 = vrcp.pop %v2365
          %v2382 = vrcp.pop %v2366
          %v2383 = vrcp.pop %v2367
          %v2384 = vrcp.pop %v2368
          %v2385 = vrcp.pop %v2369
          %v2386 = vrcp.pop %v2370
          %v2387 = vrcp.pop %v2371
          %v2388 = vrcp.pop %v2372
          %v2389 = vrcp.pop %v2373
          %v2390 = vrcp.pop %v2374
          %v2391 = vld [vmem:[#allocation4] sm:$0xff]
          %v2392 = vld [vmem:[#allocation4 + $0x8] sm:$0xff]
          %v2393 = vld [vmem:[#allocation4 + $0x10] sm:$0xff]
          %v2394 = vld [vmem:[#allocation4 + $0x18] sm:$0xff]
          %v2395 = vld [vmem:[#allocation4 + $0x20] sm:$0xff]
          %v2396 = vld [vmem:[#allocation4 + $0x28] sm:$0xff]
          %v2397 = vld [vmem:[#allocation4 + $0x30] sm:$0xff]
          %v2398 = vld [vmem:[#allocation4 + $0x38] sm:$0xff]
          %v2399 = vld [vmem:[#allocation4 + $0x40] sm:$0xff]
          %v2400 = vld [vmem:[#allocation4 + $0x48] sm:$0xff]
          %v2401 = vld [vmem:[#allocation4 + $0x50] sm:$0xff]
          %v2402 = vld [vmem:[#allocation4 + $0x58] sm:$0xff]
          %v2403 = vld [vmem:[#allocation4 + $0x60] sm:$0xff]
          %v2404 = vld [vmem:[#allocation4 + $0x68] sm:$0xff]
          %v2405 = vld [vmem:[#allocation4 + $0x70] sm:$0xff]
          %v2406 = vld [vmem:[#allocation4 + $0x78] sm:$0xff]
          %2408 = vset.pattern.permute.xlu0 0
          %2409 = vperm.xlu0 %2408, %v2375
          %v2410 = vpop.permute.xlu0 %2409
          %2413 = vset.pattern.permute.xlu0 0
          %2414 = vperm.xlu0 %2413, %v2376
          %v2415 = vpop.permute.xlu0 %2414
          %2418 = vset.pattern.permute.xlu0 0
          %2419 = vperm.xlu0 %2418, %v2377
          %v2420 = vpop.permute.xlu0 %2419
          %2423 = vset.pattern.permute.xlu0 0
          %2424 = vperm.xlu0 %2423, %v2378
          %v2425 = vpop.permute.xlu0 %2424
          %2428 = vset.pattern.permute.xlu0 0
          %2429 = vperm.xlu0 %2428, %v2379
          %v2430 = vpop.permute.xlu0 %2429
          %2433 = vset.pattern.permute.xlu0 0
          %2434 = vperm.xlu0 %2433, %v2380
          %v2435 = vpop.permute.xlu0 %2434
          %2438 = vset.pattern.permute.xlu0 0
          %2439 = vperm.xlu0 %2438, %v2381
          %v2440 = vpop.permute.xlu0 %2439
          %2443 = vset.pattern.permute.xlu0 0
          %2444 = vperm.xlu0 %2443, %v2382
          %v2445 = vpop.permute.xlu0 %2444
          %2448 = vset.pattern.permute.xlu0 0
          %2449 = vperm.xlu0 %2448, %v2383
          %v2450 = vpop.permute.xlu0 %2449
          %2453 = vset.pattern.permute.xlu0 0
          %2454 = vperm.xlu0 %2453, %v2384
          %v2455 = vpop.permute.xlu0 %2454
          %2458 = vset.pattern.permute.xlu0 0
          %2459 = vperm.xlu0 %2458, %v2385
          %v2460 = vpop.permute.xlu0 %2459
          %2463 = vset.pattern.permute.xlu0 0
          %2464 = vperm.xlu0 %2463, %v2386
          %v2465 = vpop.permute.xlu0 %2464
          %2468 = vset.pattern.permute.xlu0 0
          %2469 = vperm.xlu0 %2468, %v2387
          %v2470 = vpop.permute.xlu0 %2469
          %2473 = vset.pattern.permute.xlu0 0
          %2474 = vperm.xlu0 %2473, %v2388
          %v2475 = vpop.permute.xlu0 %2474
          %2478 = vset.pattern.permute.xlu0 0
          %2479 = vperm.xlu0 %2478, %v2389
          %v2480 = vpop.permute.xlu0 %2479
          %2483 = vset.pattern.permute.xlu0 0
          %2484 = vperm.xlu0 %2483, %v2390
          %v2485 = vpop.permute.xlu0 %2484
          %v2487 = vmul.f32 %v2391, %v2410
          %v2488 = vmul.f32 %v2392, %v2415
          %v2489 = vmul.f32 %v2393, %v2420
          %v2490 = vmul.f32 %v2394, %v2425
          %v2491 = vmul.f32 %v2395, %v2430
          %v2492 = vmul.f32 %v2396, %v2435
          %v2493 = vmul.f32 %v2397, %v2440
          %v2494 = vmul.f32 %v2398, %v2445
          %v2495 = vmul.f32 %v2399, %v2450
          %v2496 = vmul.f32 %v2400, %v2455
          %v2497 = vmul.f32 %v2401, %v2460
          %v2498 = vmul.f32 %v2402, %v2465
          %v2499 = vmul.f32 %v2403, %v2470
          %v2500 = vmul.f32 %v2404, %v2475
          %v2501 = vmul.f32 %v2405, %v2480
          %v2502 = vmul.f32 %v2406, %v2485
          %v2503 = vadd.f32 %v2487, 0.0
          %v2504 = vadd.f32 %v2488, 0.0
          %v2505 = vadd.f32 %v2489, 0.0
          %v2506 = vadd.f32 %v2490, 0.0
          %v2507 = vadd.f32 %v2491, 0.0
          %v2508 = vadd.f32 %v2492, 0.0
          %v2509 = vadd.f32 %v2493, 0.0
          %v2510 = vadd.f32 %v2494, 0.0
          %v2511 = vadd.f32 %v2495, 0.0
          %v2512 = vadd.f32 %v2496, 0.0
          %v2513 = vadd.f32 %v2497, 0.0
          %v2514 = vadd.f32 %v2498, 0.0
          %v2515 = vadd.f32 %v2499, 0.0
          %v2516 = vadd.f32 %v2500, 0.0
          %v2517 = vadd.f32 %v2501, 0.0
          %v2518 = vadd.f32 %v2502, 0.0
          %v2519 = vld [vmem:[%s1903] sm:$0xff]
          %v2520 = vld [vmem:[%s1903 + $0x8] sm:$0xff]
          %v2521 = vld [vmem:[%s1903 + $0x10] sm:$0xff]
          %v2522 = vld [vmem:[%s1903 + $0x18] sm:$0xff]
          %v2523 = vld [vmem:[%s1903 + $0x20] sm:$0xff]
          %v2524 = vld [vmem:[%s1903 + $0x28] sm:$0xff]
          %v2525 = vld [vmem:[%s1903 + $0x30] sm:$0xff]
          %v2526 = vld [vmem:[%s1903 + $0x38] sm:$0xff]
          %v2527 = vld [vmem:[%s1903 + $0x40] sm:$0xff]
          %v2528 = vld [vmem:[%s1903 + $0x48] sm:$0xff]
          %v2529 = vld [vmem:[%s1903 + $0x50] sm:$0xff]
          %v2530 = vld [vmem:[%s1903 + $0x58] sm:$0xff]
          %v2531 = vld [vmem:[%s1903 + $0x60] sm:$0xff]
          %v2532 = vld [vmem:[%s1903 + $0x68] sm:$0xff]
          %v2533 = vld [vmem:[%s1903 + $0x70] sm:$0xff]
          %v2534 = vld [vmem:[%s1903 + $0x78] sm:$0xff]
          %v2535 = vmax.f32 %v2519, 1e-30
          %v2536 = vmax.f32 %v2520, 1e-30
          %v2537 = vmax.f32 %v2521, 1e-30
          %v2538 = vmax.f32 %v2522, 1e-30
          %v2539 = vmax.f32 %v2523, 1e-30
          %v2540 = vmax.f32 %v2524, 1e-30
          %v2541 = vmax.f32 %v2525, 1e-30
          %v2542 = vmax.f32 %v2526, 1e-30
          %v2543 = vmax.f32 %v2527, 1e-30
          %v2544 = vmax.f32 %v2528, 1e-30
          %v2545 = vmax.f32 %v2529, 1e-30
          %v2546 = vmax.f32 %v2530, 1e-30
          %v2547 = vmax.f32 %v2531, 1e-30
          %v2548 = vmax.f32 %v2532, 1e-30
          %v2549 = vmax.f32 %v2533, 1e-30
          %v2550 = vmax.f32 %v2534, 1e-30
          %v2551 = vrcp.pop %v2535
          %v2552 = vrcp.pop %v2536
          %v2553 = vrcp.pop %v2537
          %v2554 = vrcp.pop %v2538
          %v2555 = vrcp.pop %v2539
          %v2556 = vrcp.pop %v2540
          %v2557 = vrcp.pop %v2541
          %v2558 = vrcp.pop %v2542
          %v2559 = vrcp.pop %v2543
          %v2560 = vrcp.pop %v2544
          %v2561 = vrcp.pop %v2545
          %v2562 = vrcp.pop %v2546
          %v2563 = vrcp.pop %v2547
          %v2564 = vrcp.pop %v2548
          %v2565 = vrcp.pop %v2549
          %v2566 = vrcp.pop %v2550
          %v2567 = vld [vmem:[%s2016] sm:$0xff]
          %v2568 = vld [vmem:[%s2016 + $0x8] sm:$0xff]
          %v2569 = vld [vmem:[%s2016 + $0x10] sm:$0xff]
          %v2570 = vld [vmem:[%s2016 + $0x18] sm:$0xff]
          %v2571 = vld [vmem:[%s2016 + $0x20] sm:$0xff]
          %v2572 = vld [vmem:[%s2016 + $0x28] sm:$0xff]
          %v2573 = vld [vmem:[%s2016 + $0x30] sm:$0xff]
          %v2574 = vld [vmem:[%s2016 + $0x38] sm:$0xff]
          %v2575 = vld [vmem:[%s2016 + $0x40] sm:$0xff]
          %v2576 = vld [vmem:[%s2016 + $0x48] sm:$0xff]
          %v2577 = vld [vmem:[%s2016 + $0x50] sm:$0xff]
          %v2578 = vld [vmem:[%s2016 + $0x58] sm:$0xff]
          %v2579 = vld [vmem:[%s2016 + $0x60] sm:$0xff]
          %v2580 = vld [vmem:[%s2016 + $0x68] sm:$0xff]
          %v2581 = vld [vmem:[%s2016 + $0x70] sm:$0xff]
          %v2582 = vld [vmem:[%s2016 + $0x78] sm:$0xff]
          %2584 = vset.pattern.permute.xlu0 0
          %2585 = vperm.xlu0 %2584, %v2551
          %v2586 = vpop.permute.xlu0 %2585
          %2589 = vset.pattern.permute.xlu0 0
          %2590 = vperm.xlu0 %2589, %v2552
          %v2591 = vpop.permute.xlu0 %2590
          %2594 = vset.pattern.permute.xlu0 0
          %2595 = vperm.xlu0 %2594, %v2553
          %v2596 = vpop.permute.xlu0 %2595
          %2599 = vset.pattern.permute.xlu0 0
          %2600 = vperm.xlu0 %2599, %v2554
          %v2601 = vpop.permute.xlu0 %2600
          %2604 = vset.pattern.permute.xlu0 0
          %2605 = vperm.xlu0 %2604, %v2555
          %v2606 = vpop.permute.xlu0 %2605
          %2609 = vset.pattern.permute.xlu0 0
          %2610 = vperm.xlu0 %2609, %v2556
          %v2611 = vpop.permute.xlu0 %2610
          %2614 = vset.pattern.permute.xlu0 0
          %2615 = vperm.xlu0 %2614, %v2557
          %v2616 = vpop.permute.xlu0 %2615
          %2619 = vset.pattern.permute.xlu0 0
          %2620 = vperm.xlu0 %2619, %v2558
          %v2621 = vpop.permute.xlu0 %2620
          %2624 = vset.pattern.permute.xlu0 0
          %2625 = vperm.xlu0 %2624, %v2559
          %v2626 = vpop.permute.xlu0 %2625
          %2629 = vset.pattern.permute.xlu0 0
          %2630 = vperm.xlu0 %2629, %v2560
          %v2631 = vpop.permute.xlu0 %2630
          %2634 = vset.pattern.permute.xlu0 0
          %2635 = vperm.xlu0 %2634, %v2561
          %v2636 = vpop.permute.xlu0 %2635
          %2639 = vset.pattern.permute.xlu0 0
          %2640 = vperm.xlu0 %2639, %v2562
          %v2641 = vpop.permute.xlu0 %2640
          %2644 = vset.pattern.permute.xlu0 0
          %2645 = vperm.xlu0 %2644, %v2563
          %v2646 = vpop.permute.xlu0 %2645
          %2649 = vset.pattern.permute.xlu0 0
          %2650 = vperm.xlu0 %2649, %v2564
          %v2651 = vpop.permute.xlu0 %2650
          %2654 = vset.pattern.permute.xlu0 0
          %2655 = vperm.xlu0 %2654, %v2565
          %v2656 = vpop.permute.xlu0 %2655
          %2659 = vset.pattern.permute.xlu0 0
          %2660 = vperm.xlu0 %2659, %v2566
          %v2661 = vpop.permute.xlu0 %2660
          %v2663 = vmul.f32 %v2567, %v2586
          %v2664 = vmul.f32 %v2568, %v2591
          %v2665 = vmul.f32 %v2569, %v2596
          %v2666 = vmul.f32 %v2570, %v2601
          %v2667 = vmul.f32 %v2571, %v2606
          %v2668 = vmul.f32 %v2572, %v2611
          %v2669 = vmul.f32 %v2573, %v2616
          %v2670 = vmul.f32 %v2574, %v2621
          %v2671 = vmul.f32 %v2575, %v2626
          %v2672 = vmul.f32 %v2576, %v2631
          %v2673 = vmul.f32 %v2577, %v2636
          %v2674 = vmul.f32 %v2578, %v2641
          %v2675 = vmul.f32 %v2579, %v2646
          %v2676 = vmul.f32 %v2580, %v2651
          %v2677 = vmul.f32 %v2581, %v2656
          %v2678 = vmul.f32 %v2582, %v2661
          %v2679 = vadd.f32 %v2503, %v2663
          %v2680 = vadd.f32 %v2504, %v2664
          %v2681 = vadd.f32 %v2505, %v2665
          %v2682 = vadd.f32 %v2506, %v2666
          %v2683 = vadd.f32 %v2507, %v2667
          %v2684 = vadd.f32 %v2508, %v2668
          %v2685 = vadd.f32 %v2509, %v2669
          %v2686 = vadd.f32 %v2510, %v2670
          %v2687 = vadd.f32 %v2511, %v2671
          %v2688 = vadd.f32 %v2512, %v2672
          %v2689 = vadd.f32 %v2513, %v2673
          %v2690 = vadd.f32 %v2514, %v2674
          %v2691 = vadd.f32 %v2515, %v2675
          %v2692 = vadd.f32 %v2516, %v2676
          %v2693 = vadd.f32 %v2517, %v2677
          %v2694 = vadd.f32 %v2518, %v2678
          %v2695 = vmul.f32 %v2679, 0.5
          %v2696 = vmul.f32 %v2680, 0.5
          %v2697 = vmul.f32 %v2681, 0.5
          %v2698 = vmul.f32 %v2682, 0.5
          %v2699 = vmul.f32 %v2683, 0.5
          %v2700 = vmul.f32 %v2684, 0.5
          %v2701 = vmul.f32 %v2685, 0.5
          %v2702 = vmul.f32 %v2686, 0.5
          %v2703 = vmul.f32 %v2687, 0.5
          %v2704 = vmul.f32 %v2688, 0.5
          %v2705 = vmul.f32 %v2689, 0.5
          %v2706 = vmul.f32 %v2690, 0.5
          %v2707 = vmul.f32 %v2691, 0.5
          %v2708 = vmul.f32 %v2692, 0.5
          %v2709 = vmul.f32 %v2693, 0.5
          %v2710 = vmul.f32 %v2694, 0.5
          %v2711 = vld [vmem:[%s4] sm:$0x1]
          %v2713 = vlaneseq
          %v2714 = vshrl.u32 %v2713, 7
          %v2715 = vsub.s32 0, %v2714
          %v2716 = vrot.slane %v2711, %v2715
          %v2718 = vadd.f32 %v2695, %v2716
          %v2719 = vadd.f32 %v2696, %v2716
          %v2720 = vadd.f32 %v2697, %v2716
          %v2721 = vadd.f32 %v2698, %v2716
          %v2722 = vadd.f32 %v2699, %v2716
          %v2723 = vadd.f32 %v2700, %v2716
          %v2724 = vadd.f32 %v2701, %v2716
          %v2725 = vadd.f32 %v2702, %v2716
          %v2726 = vadd.f32 %v2703, %v2716
          %v2727 = vadd.f32 %v2704, %v2716
          %v2728 = vadd.f32 %v2705, %v2716
          %v2729 = vadd.f32 %v2706, %v2716
          %v2730 = vadd.f32 %v2707, %v2716
          %v2731 = vadd.f32 %v2708, %v2716
          %v2732 = vadd.f32 %v2709, %v2716
          %v2733 = vadd.f32 %v2710, %v2716
          %2734 = vst.msk [vmem:[%s517] sm:$0xff] %vm1497, %v2718
          %2735 = vst.msk [vmem:[%s517 + $0x8] sm:$0xff] %vm1497, %v2719
          %2736 = vst.msk [vmem:[%s517 + $0x10] sm:$0xff] %vm1497, %v2720
          %2737 = vst.msk [vmem:[%s517 + $0x18] sm:$0xff] %vm1497, %v2721
          %2738 = vst.msk [vmem:[%s517 + $0x20] sm:$0xff] %vm1497, %v2722
          %2739 = vst.msk [vmem:[%s517 + $0x28] sm:$0xff] %vm1497, %v2723
          %2740 = vst.msk [vmem:[%s517 + $0x30] sm:$0xff] %vm1497, %v2724
          %2741 = vst.msk [vmem:[%s517 + $0x38] sm:$0xff] %vm1497, %v2725
          %2742 = vst.msk [vmem:[%s517 + $0x40] sm:$0xff] %vm1497, %v2726
          %2743 = vst.msk [vmem:[%s517 + $0x48] sm:$0xff] %vm1497, %v2727
          %2744 = vst.msk [vmem:[%s517 + $0x50] sm:$0xff] %vm1497, %v2728
          %2745 = vst.msk [vmem:[%s517 + $0x58] sm:$0xff] %vm1497, %v2729
          %2746 = vst.msk [vmem:[%s517 + $0x60] sm:$0xff] %vm1497, %v2730
          %2747 = vst.msk [vmem:[%s517 + $0x68] sm:$0xff] %vm1497, %v2731
          %2748 = vst.msk [vmem:[%s517 + $0x70] sm:$0xff] %vm1497, %v2732
          %2749 = vst.msk [vmem:[%s517 + $0x78] sm:$0xff] %vm1497, %v2733
        $region127: #{ugcn_forward.16} parent=110 // pred_fallthru
          _
        %s2750 = smul.u32 16, %s20
        %p2751 = scmp.lt.s32.totalorder %s2750, 31
        %s2752 = scalar_select %p2751, %s2750, 31
        %s2753 = smul.addr %s2752, 8
        %s2754 = scalar_lea.vmem %s5, %s2753
        // Predicated region
        $region128: #{ugcn_forward.16} parent=110 // pred_check
          %p2755 = pneg %p173
        $region129: #{ugcn_forward.16} parent=110 // pred_check_branch
          %2757 = sbr.rel (%p2755) target = $region131
        $region130: #{ugcn_forward.16} parent=110 // pred_region
          %s2758 = smul.u32 16, %s20
        $region131: #{ugcn_forward.16} parent=110 // pred_fallthru
          _
      $region111: #{ugcn_forward.16} parent=5 // pred_fallthru
        _
      %p2759 = scmp.le.s32.totalorder 2, %s11
      // Predicated region
      $region132: #{ugcn_forward.16} parent=5 // pred_check
        %p2760 = pneg %p2759
      $region133: #{ugcn_forward.16} parent=5 // pred_check_branch
        %2762 = sbr.rel (%p2760) target = $region135
      $region134: #{ugcn_forward.16} parent=5 // pred_region
        %s2763 = ssub.s32 %s11, 2
        // Predicated region
        $region136: #{ugcn_forward.16} parent=134 // pred_check
          %p2764 = pneg %p179
        $region137: #{ugcn_forward.16} parent=134 // pred_check_branch
          %2766 = sbr.rel (%p2764) target = $region139
        $region138: #{ugcn_forward.16} parent=134 // pred_region
          %s2767 = smul.u32 16, %s22
          %p2768 = scmp.lt.s32.totalorder %s2767, 31
          %s2769 = scalar_select %p2768, %s2767, 31
          %s2770 = smul.addr %s2769, 8
          %s2771 = scalar_lea.vmem %s5, %s2770
        $region139: #{ugcn_forward.16} parent=134 // pred_fallthru
          _
      $region135: #{ugcn_forward.16} parent=5 // pred_fallthru
        _
    $region6: #{ugcn_forward.16} parent=1 // loop_footer
      %s15 = sadd.s32 1, %s11
    $region7: #{ugcn_forward.16} parent=1 // loop_footer_branch
      %10 = sbr.rel target = $region3
    $region8: #{ugcn_forward.16} parent=1 // loop_exit
      _

// kernel: ugcn_forward.14
$region0: #{ugcn_forward.14}
  #allocation0 [shape = 'u32[]', space=smem, size = 0x4, offset = 0x4, fixed_abs, tag = 'smem constant byte address 0x4 - core index']
  #allocation1 [shape = 'u32[144,128]{1,0:T(1,128)}', space=vmem, size = 0x12000, scoped, tag = 'internal scratch']
  #allocation2 [shape = 'f32[2,128,1]{2,1,0:T(8,128)}', space=vmem, size = 0x20000, scoped, tag = 'scratch operand']
  #allocation3 [shape = 'f32[2,128,1]{2,1,0:T(8,128)}', space=vmem, size = 0x20000, scoped, tag = 'scratch operand']
  #allocation4 [shape = 'f32[2,128,32]{2,1,0:T(8,128)}', space=vmem, size = 0x20000, scoped, tag = 'scratch operand']
  %s0 = inlined_call_operand.vmem [shape: s8[256,256], index: 0, kind: input, shape index: {}]
  %s1 = inlined_call_operand.vmem [shape: bf16[2,256,32], index: 1, kind: input, shape index: {}]
  %s2 = inlined_call_operand.vmem [shape: f32[2,256], index: 2, kind: input, shape index: {}]
  %s3 = inlined_call_operand.vmem [shape: f32[256,2], index: 3, kind: input, shape index: {}]
  %s4 = inlined_call_operand.vmem [shape: f32[1,32], index: 4, kind: input, shape index: {}]
  %s5 = inlined_call_operand.vmem [shape: f32[256,32], index: 5, kind: output, shape index: {}]
  %s6 = sld [smem:[#allocation0]]
  $region140: #{ugcn_forward.14} parent=0
    _
  %s8 = ssub.s32 1, %s6
  %s9 = scalar_select 0, %s8, %s6
  $region1: #{ugcn_forward.14} parent=0
    #allocation5 [shape = 'u8[32768]{0}', space=vmem, size = 0x8000, scoped, tag = 'input window, operand 0']
    #allocation6 [shape = 'u8[131072]{0}', space=vmem, size = 0x20000, scoped, tag = 'input window, operand 1']
    loop: start=0, step=1, limit=6
    $region2: #{ugcn_forward.14} parent=1 // loop_pre_header
      _
    $region3: #{ugcn_forward.14} parent=1 // loop_header
      %s11 = sphi 0, %s15
      %p12 = scmp.ge.s32.totalorder %s11, 6
      %s18 = sphi 0, %s30
      %s19 = sphi 0, %s26
      %s20 = sphi 0, %s18
      %s21 = sphi 0, %s19
      %s22 = sphi 0, %s20
      %s23 = sphi 0, %s21
      %s35 = sphi 0, %s37
      %s38 = sphi 0, %s35
      %s39 = sphi 0, %s38
      %s55 = sphi 0, %s39
      %s61 = sphi 0, %s63
      %s64 = sphi 0, %s61
      %s65 = sphi 0, %s64
      %s81 = sphi 0, %s65
      %s87 = sphi 0, %s89
      %s90 = sphi 0, %s87
      %s91 = sphi 0, %s90
      %s107 = sphi 0, %s91
      %s113 = sphi 0, %s115
      %s116 = sphi 0, %s113
      %s117 = sphi 0, %s116
      %s133 = sphi 0, %s117
      %s137 = sphi 0, %s137
      %s139 = sphi 0, %s137
      %s140 = sphi 0, %s139
      %s154 = sphi 0, %s140
      %s160 = sphi 0, %s162
      %s163 = sphi 0, %s160
      %s164 = sphi 0, %s163
      %s180 = sphi 0, %s164
    $region4: #{ugcn_forward.14} parent=1 // loop_header_branch
      %14 = sbr.rel (%p12) target = $region8
    $region5: #{ugcn_forward.14} parent=1 // loop_body
      %s16 = ssub.s32 %s11, 1
      %s17 = ssub.s32 %s11, 2
      %s24 = sadd.s32 1, %s19
      %p25 = scmp.ge.s32.totalorder %s24, 2
      %s26 = scalar_select %p25, 0, %s24
      %s27 = sadd.s32 1, %s18
      %s28 = scalar_select %p25, %s27, %s18
      %p29 = scmp.ge.s32.totalorder %s28, 2
      %s30 = scalar_select %p29, 0, %s28
      %s31 = ssub.s32 %s18, %s30
      %s32 = ssub.s32 %s19, %s26
      %s33 = sor.u32 %s31, %s32
      %p34 = scmp.eq.s32.totalorder %s33, 0
      %s36 = sadd.s32 %s35, 1
      %s37 = scalar_select %p34, %s35, %s36
      %p40 = pneg %p34
      %p41 = scmp.eq.s32.totalorder %s11, 3
      %p42 = por %p40, %p41
      %p43 = scmp.ne.s32.totalorder %s35, %s38
      %p44 = scmp.eq.s32.totalorder %s11, 0
      %p45 = por %p43, %p44
      %p46 = scmp.ne.s32.totalorder %s35, %s38
      %p47 = scmp.eq.s32.totalorder %s16, 3
      %p48 = por %p46, %p47
      %p49 = scmp.ne.s32.totalorder %s38, %s39
      %p50 = scmp.eq.s32.totalorder %s16, 0
      %p51 = por %p49, %p50
      %p52 = scmp.ne.s32.totalorder %s38, %s39
      %p53 = scmp.eq.s32.totalorder %s17, 3
      %p54 = por %p52, %p53
      %p56 = scmp.ne.s32.totalorder %s39, %s55
      %p57 = scmp.eq.s32.totalorder %s17, 0
      %p58 = por %p56, %p57
      %s59 = ssub.s32 %s19, %s26
      %p60 = scmp.eq.s32.totalorder %s59, 0
      %s62 = sadd.s32 %s61, 1
      %s63 = scalar_select %p60, %s61, %s62
      %p66 = pneg %p60
      %p67 = scmp.eq.s32.totalorder %s11, 3
      %p68 = por %p66, %p67
      %p69 = scmp.ne.s32.totalorder %s61, %s64
      %p70 = scmp.eq.s32.totalorder %s11, 0
      %p71 = por %p69, %p70
      %p72 = scmp.ne.s32.totalorder %s61, %s64
      %p73 = scmp.eq.s32.totalorder %s16, 3
      %p74 = por %p72, %p73
      %p75 = scmp.ne.s32.totalorder %s64, %s65
      %p76 = scmp.eq.s32.totalorder %s16, 0
      %p77 = por %p75, %p76
      %p78 = scmp.ne.s32.totalorder %s64, %s65
      %p79 = scmp.eq.s32.totalorder %s17, 3
      %p80 = por %p78, %p79
      %p82 = scmp.ne.s32.totalorder %s65, %s81
      %p83 = scmp.eq.s32.totalorder %s17, 0
      %p84 = por %p82, %p83
      %s85 = ssub.s32 %s19, %s26
      %p86 = scmp.eq.s32.totalorder %s85, 0
      %s88 = sadd.s32 %s87, 1
      %s89 = scalar_select %p86, %s87, %s88
      %p92 = pneg %p86
      %p93 = scmp.eq.s32.totalorder %s11, 3
      %p94 = por %p92, %p93
      %p95 = scmp.ne.s32.totalorder %s87, %s90
      %p96 = scmp.eq.s32.totalorder %s11, 0
      %p97 = por %p95, %p96
      %p98 = scmp.ne.s32.totalorder %s87, %s90
      %p99 = scmp.eq.s32.totalorder %s16, 3
      %p100 = por %p98, %p99
      %p101 = scmp.ne.s32.totalorder %s90, %s91
      %p102 = scmp.eq.s32.totalorder %s16, 0
      %p103 = por %p101, %p102
      %p104 = scmp.ne.s32.totalorder %s90, %s91
      %p105 = scmp.eq.s32.totalorder %s17, 3
      %p106 = por %p104, %p105
      %p108 = scmp.ne.s32.totalorder %s91, %s107
      %p109 = scmp.eq.s32.totalorder %s17, 0
      %p110 = por %p108, %p109
      %s111 = ssub.s32 %s18, %s30
      %p112 = scmp.eq.s32.totalorder %s111, 0
      %s114 = sadd.s32 %s113, 1
      %s115 = scalar_select %p112, %s113, %s114
      %p118 = pneg %p112
      %p119 = scmp.eq.s32.totalorder %s11, 3
      %p120 = por %p118, %p119
      %p121 = scmp.ne.s32.totalorder %s113, %s116
      %p122 = scmp.eq.s32.totalorder %s11, 0
      %p123 = por %p121, %p122
      %p124 = scmp.ne.s32.totalorder %s113, %s116
      %p125 = scmp.eq.s32.totalorder %s16, 3
      %p126 = por %p124, %p125
      %p127 = scmp.ne.s32.totalorder %s116, %s117
      %p128 = scmp.eq.s32.totalorder %s16, 0
      %p129 = por %p127, %p128
      %p130 = scmp.ne.s32.totalorder %s116, %s117
      %p131 = scmp.eq.s32.totalorder %s17, 3
      %p132 = por %p130, %p131
      %p134 = scmp.ne.s32.totalorder %s117, %s133
      %p135 = scmp.eq.s32.totalorder %s17, 0
      %p136 = por %p134, %p135
      %s138 = sadd.s32 %s137, 1
      %p141 = scmp.eq.s32.totalorder %s11, 3
      %p142 = scmp.ne.s32.totalorder %s137, %s139
      %p143 = scmp.eq.s32.totalorder %s11, 0
      %p144 = por %p142, %p143
      %p145 = scmp.ne.s32.totalorder %s137, %s139
      %p146 = scmp.eq.s32.totalorder %s16, 3
      %p147 = por %p145, %p146
      %p148 = scmp.ne.s32.totalorder %s139, %s140
      %p149 = scmp.eq.s32.totalorder %s16, 0
      %p150 = por %p148, %p149
      %p151 = scmp.ne.s32.totalorder %s139, %s140
      %p152 = scmp.eq.s32.totalorder %s17, 3
      %p153 = por %p151, %p152
      %p155 = scmp.ne.s32.totalorder %s140, %s154
      %p156 = scmp.eq.s32.totalorder %s17, 0
      %p157 = por %p155, %p156
      %s158 = ssub.s32 %s18, %s30
      %p159 = scmp.eq.s32.totalorder %s158, 0
      %s161 = sadd.s32 %s160, 1
      %s162 = scalar_select %p159, %s160, %s161
      %p165 = pneg %p159
      %p166 = scmp.eq.s32.totalorder %s11, 3
      %p167 = por %p165, %p166
      %p168 = scmp.ne.s32.totalorder %s160, %s163
      %p169 = scmp.eq.s32.totalorder %s11, 0
      %p170 = por %p168, %p169
      %p171 = scmp.ne.s32.totalorder %s160, %s163
      %p172 = scmp.eq.s32.totalorder %s16, 3
      %p173 = por %p171, %p172
      %p174 = scmp.ne.s32.totalorder %s163, %s164
      %p175 = scmp.eq.s32.totalorder %s16, 0
      %p176 = por %p174, %p175
      %p177 = scmp.ne.s32.totalorder %s163, %s164
      %p178 = scmp.eq.s32.totalorder %s17, 3
      %p179 = por %p177, %p178
      %p181 = scmp.ne.s32.totalorder %s164, %s180
      %p182 = scmp.eq.s32.totalorder %s17, 0
      %p183 = por %p181, %p182
      %p184 = scmp.le.s32.totalorder 1, %s11
      %p185 = scmp.lt.s32.totalorder %s11, 5
      %p186 = pnand %p184, %p185
      %p187 = pneg %p186
      // Predicated region
      $region9: #{ugcn_forward.14} parent=5 // pred_check
        _
      $region10: #{ugcn_forward.14} parent=5 // pred_check_branch
        %189 = sbr.rel (%p186) target = $region12
      $region11: #{ugcn_forward.14} parent=5 // pred_region
        %s190 = ssub.s32 %s11, 1
        // Predicated region
        $region13: #{ugcn_forward.14} parent=11 // pred_check
          %p191 = pneg %p150
        $region14: #{ugcn_forward.14} parent=11 // pred_check_branch
          %193 = sbr.rel (%p191) target = $region16
        $region15: #{ugcn_forward.14} parent=11 // pred_region
          _
        $region16: #{ugcn_forward.14} parent=11 // pred_fallthru
          _
      $region12: #{ugcn_forward.14} parent=5 // pred_fallthru
        _
      %p194 = scmp.lt.s32.totalorder %s11, 4
      // Predicated region
      $region17: #{ugcn_forward.14} parent=5 // pred_check
        %p195 = pneg %p194
      $region18: #{ugcn_forward.14} parent=5 // pred_check_branch
        %197 = sbr.rel (%p195) target = $region20
      $region19: #{ugcn_forward.14} parent=5 // pred_region
        // Predicated region
        $region21: #{ugcn_forward.14} parent=19 // pred_check
          %p198 = pneg %p45
        $region22: #{ugcn_forward.14} parent=19 // pred_check_branch
          %200 = sbr.rel (%p198) target = $region24
        $region23: #{ugcn_forward.14} parent=19 // pred_region
          %s201 = sand.u32 %s35, 1
          %s202 = sand.u32 %s35, 1
          %s203 = smul.addr %s202, 32
          %s204 = scalar_lea.vmem [#allocation5], %s203
          %s205 = smul.u32 4, %s18
          %s206 = smul.addr %s205, 2
          %s207 = sadd.s32 %s19, %s206
          %s208 = smul.addr %s207, 8
          %s209 = scalar_lea.vmem %s0, %s208
          // Predicated region
          $region25: #{ugcn_forward.14} parent=23 // pred_check
            _
          $region26: #{ugcn_forward.14} parent=23 // pred_check_branch
            %211 = sbr.rel (0) target = $region28
          $region27: #{ugcn_forward.14} parent=23 // pred_region
            // Predicated region
            $region29: #{ugcn_forward.14} parent=27 // pred_check
              _
            $region30: #{ugcn_forward.14} parent=27 // pred_check_branch
              %213 = sbr.rel (0) target = $region32
            $region31: #{ugcn_forward.14} parent=27 // pred_region
              // Predicated region
              $region44: #{ugcn_forward.14} parent=31 // pred_check
                _
              $region45: #{ugcn_forward.14} parent=31 // pred_check_branch
                %235 = sbr.rel (0) target = $region47
              $region46: #{ugcn_forward.14} parent=31 // pred_region
                loop: start=0, step=1, limit=1
                $region48: #{ugcn_forward.14} parent=46 // loop_pre_header
                  _
                $region49: #{ugcn_forward.14} parent=46 // loop_header
                  %s237 = sphi 0, %s241
                  %p238 = scmp.ge.s32.totalorder %s237, 1
                  %s242 = sphi %s209, %s209
                  %s243 = sphi %s204, %s204
                $region50: #{ugcn_forward.14} parent=46 // loop_header_branch
                  %240 = sbr.rel (%p238) target = $region54
                $region51: #{ugcn_forward.14} parent=46 // loop_body
                  %v244 = vld [vmem:[%s242] sm:$0xff]
                  %245 = vst [vmem:[%s243] sm:$0xff] %v244
                  %v246 = vld [vmem:[%s242 + $0x10] sm:$0xff]
                  %247 = vst [vmem:[%s243 + $0x8] sm:$0xff] %v246
                  %v248 = vld [vmem:[%s242 + $0x20] sm:$0xff]
                  %249 = vst [vmem:[%s243 + $0x10] sm:$0xff] %v248
                  %v250 = vld [vmem:[%s242 + $0x30] sm:$0xff]
                  %251 = vst [vmem:[%s243 + $0x18] sm:$0xff] %v250
                $region52: #{ugcn_forward.14} parent=46 // loop_footer
                  %s241 = sadd.s32 1, %s237
                $region53: #{ugcn_forward.14} parent=46 // loop_footer_branch
                  %236 = sbr.rel target = $region49
                $region54: #{ugcn_forward.14} parent=46 // loop_exit
                  _
              $region47: #{ugcn_forward.14} parent=31 // pred_fallthru
                _
              // Predicated region
              $region55: #{ugcn_forward.14} parent=31 // pred_check
                _
              $region56: #{ugcn_forward.14} parent=31 // pred_check_branch
                %253 = sbr.rel target = $region58
              $region57: #{ugcn_forward.14} parent=31 // pred_region
                _
              $region58: #{ugcn_forward.14} parent=31 // pred_fallthru
                _
            $region32: #{ugcn_forward.14} parent=27 // pred_fallthru
              _
            // Predicated region
            $region33: #{ugcn_forward.14} parent=27 // pred_check
              _
            $region34: #{ugcn_forward.14} parent=27 // pred_check_branch
              %215 = sbr.rel target = $region36
            $region35: #{ugcn_forward.14} parent=27 // pred_region
              %s217 = ssub.s32 256, 1
              loop: start=0, step=1, limit=1
              $region37: #{ugcn_forward.14} parent=35 // loop_pre_header
                _
              $region38: #{ugcn_forward.14} parent=35 // loop_header
                %s219 = sphi 0, %s223
                %p220 = scmp.ge.s32.totalorder %s219, 1
                %s224 = sphi %s209, %s209
                %s225 = sphi %s204, %s204
              $region39: #{ugcn_forward.14} parent=35 // loop_header_branch
                %222 = sbr.rel (%p220) target = $region43
              $region40: #{ugcn_forward.14} parent=35 // loop_body
                %v226 = vld [vmem:[%s224] sm:%s217]
                %227 = vst [vmem:[%s225] sm:%s217] %v226
                %v228 = vld [vmem:[%s224 + $0x10] sm:%s217]
                %229 = vst [vmem:[%s225 + $0x8] sm:%s217] %v228
                %v230 = vld [vmem:[%s224 + $0x20] sm:%s217]
                %231 = vst [vmem:[%s225 + $0x10] sm:%s217] %v230
                %v232 = vld [vmem:[%s224 + $0x30] sm:%s217]
                %233 = vst [vmem:[%s225 + $0x18] sm:%s217] %v232
              $region41: #{ugcn_forward.14} parent=35 // loop_footer
                %s223 = sadd.s32 1, %s219
              $region42: #{ugcn_forward.14} parent=35 // loop_footer_branch
                %218 = sbr.rel target = $region38
              $region43: #{ugcn_forward.14} parent=35 // loop_exit
                _
            $region36: #{ugcn_forward.14} parent=27 // pred_fallthru
              _
          $region28: #{ugcn_forward.14} parent=23 // pred_fallthru
            _
          %254 = vnop
        $region24: #{ugcn_forward.14} parent=19 // pred_fallthru
          _
        // Predicated region
        $region59: #{ugcn_forward.14} parent=19 // pred_check
          %p255 = pneg %p71
        $region60: #{ugcn_forward.14} parent=19 // pred_check_branch
          %257 = sbr.rel (%p255) target = $region62
        $region61: #{ugcn_forward.14} parent=19 // pred_region
          %s258 = sand.u32 %s61, 1
          %s259 = sand.u32 %s61, 1
          %s260 = smul.addr %s259, 128
          %s261 = scalar_lea.vmem [#allocation6], %s260
          %s262 = smul.u32 16, %s19
          %s263 = smul.addr %s262, 4
          %s264 = scalar_lea.vmem %s1, %s263
          // Predicated region
          $region63: #{ugcn_forward.14} parent=61 // pred_check
            _
          $region64: #{ugcn_forward.14} parent=61 // pred_check_branch
            %266 = sbr.rel (0) target = $region66
          $region65: #{ugcn_forward.14} parent=61 // pred_region
            // Predicated region
            $region67: #{ugcn_forward.14} parent=65 // pred_check
              _
            $region68: #{ugcn_forward.14} parent=65 // pred_check_branch
              %268 = sbr.rel target = $region70
            $region69: #{ugcn_forward.14} parent=65 // pred_region
              // Predicated region
              $region82: #{ugcn_forward.14} parent=69 // pred_check
                _
              $region83: #{ugcn_forward.14} parent=69 // pred_check_branch
                %346 = sbr.rel (0) target = $region85
              $region84: #{ugcn_forward.14} parent=69 // pred_region
                loop: start=0, step=1, limit=1
                $region86: #{ugcn_forward.14} parent=84 // loop_pre_header
                  _
                $region87: #{ugcn_forward.14} parent=84 // loop_header
                  %s348 = sphi 0, %s352
                  %p349 = scmp.ge.s32.totalorder %s348, 1
                  %s353 = sphi %s264, %s264
                  %s354 = sphi %s261, %s261
                $region88: #{ugcn_forward.14} parent=84 // loop_header_branch
                  %351 = sbr.rel (%p349) target = $region92
                $region89: #{ugcn_forward.14} parent=84 // loop_body
                  _
                $region90: #{ugcn_forward.14} parent=84 // loop_footer
                  %s352 = sadd.s32 1, %s348
                $region91: #{ugcn_forward.14} parent=84 // loop_footer_branch
                  %347 = sbr.rel target = $region87
                $region92: #{ugcn_forward.14} parent=84 // loop_exit
                  _
                %s356 = ssub.s32 16, 1
                loop: start=0, step=1, limit=1
                $region93: #{ugcn_forward.14} parent=84 // loop_pre_header
                  _
                $region94: #{ugcn_forward.14} parent=84 // loop_header
                  %s358 = sphi 0, %s362
                  %p359 = scmp.ge.s32.totalorder %s358, 1
                  %s363 = sphi %s264, %s264
                  %s364 = sphi %s261, %s261
                $region95: #{ugcn_forward.14} parent=84 // loop_header_branch
                  %361 = sbr.rel (%p359) target = $region99
                $region96: #{ugcn_forward.14} parent=84 // loop_body
                  %v365 = vld [vmem:[%s363] sm:%s356]
                  %366 = vst [vmem:[%s364] sm:%s356] %v365
                  %v367 = vld [vmem:[%s363 + $0x4] sm:%s356]
                  %368 = vst [vmem:[%s364 + $0x4] sm:%s356] %v367
                  %v369 = vld [vmem:[%s363 + $0x8] sm:%s356]
                  %370 = vst [vmem:[%s364 + $0x8] sm:%s356] %v369
                  %v371 = vld [vmem:[%s363 + $0xc] sm:%s356]
                  %372 = vst [vmem:[%s364 + $0xc] sm:%s356] %v371
                  %v373 = vld [vmem:[%s363 + $0x10] sm:%s356]
                  %374 = vst [vmem:[%s364 + $0x10] sm:%s356] %v373
                  %v375 = vld [vmem:[%s363 + $0x14] sm:%s356]
                  %376 = vst [vmem:[%s364 + $0x14] sm:%s356] %v375
                  %v377 = vld [vmem:[%s363 + $0x18] sm:%s356]
                  %378 = vst [vmem:[%s364 + $0x18] sm:%s356] %v377
                  %v379 = vld [vmem:[%s363 + $0x1c] sm:%s356]
                  %380 = vst [vmem:[%s364 + $0x1c] sm:%s356] %v379
                  %v381 = vld [vmem:[%s363 + $0x20] sm:%s356]
                  %382 = vst [vmem:[%s364 + $0x20] sm:%s356] %v381
                  %v383 = vld [vmem:[%s363 + $0x24] sm:%s356]
                  %384 = vst [vmem:[%s364 + $0x24] sm:%s356] %v383
                  %v385 = vld [vmem:[%s363 + $0x28] sm:%s356]
                  %386 = vst [vmem:[%s364 + $0x28] sm:%s356] %v385
                  %v387 = vld [vmem:[%s363 + $0x2c] sm:%s356]
                  %388 = vst [vmem:[%s364 + $0x2c] sm:%s356] %v387
                  %v389 = vld [vmem:[%s363 + $0x30] sm:%s356]
                  %390 = vst [vmem:[%s364 + $0x30] sm:%s356] %v389
                  %v391 = vld [vmem:[%s363 + $0x34] sm:%s356]
                  %392 = vst [vmem:[%s364 + $0x34] sm:%s356] %v391
                  %v393 = vld [vmem:[%s363 + $0x38] sm:%s356]
                  %394 = vst [vmem:[%s364 + $0x38] sm:%s356] %v393
                  %v395 = vld [vmem:[%s363 + $0x3c] sm:%s356]
                  %396 = vst [vmem:[%s364 + $0x3c] sm:%s356] %v395
                  %v397 = vld [vmem:[%s363 + $0x80] sm:%s356]
                  %398 = vst [vmem:[%s364 + $0x40] sm:%s356] %v397
                  %v399 = vld [vmem:[%s363 + $0x84] sm:%s356]
                  %400 = vst [vmem:[%s364 + $0x44] sm:%s356] %v399
                  %v401 = vld [vmem:[%s363 + $0x88] sm:%s356]
                  %402 = vst [vmem:[%s364 + $0x48] sm:%s356] %v401
                  %v403 = vld [vmem:[%s363 + $0x8c] sm:%s356]
                  %404 = vst [vmem:[%s364 + $0x4c] sm:%s356] %v403
                  %v405 = vld [vmem:[%s363 + $0x90] sm:%s356]
                  %406 = vst [vmem:[%s364 + $0x50] sm:%s356] %v405
                  %v407 = vld [vmem:[%s363 + $0x94] sm:%s356]
                  %408 = vst [vmem:[%s364 + $0x54] sm:%s356] %v407
                  %v409 = vld [vmem:[%s363 + $0x98] sm:%s356]
                  %410 = vst [vmem:[%s364 + $0x58] sm:%s356] %v409
                  %v411 = vld [vmem:[%s363 + $0x9c] sm:%s356]
                  %412 = vst [vmem:[%s364 + $0x5c] sm:%s356] %v411
                  %v413 = vld [vmem:[%s363 + $0xa0] sm:%s356]
                  %414 = vst [vmem:[%s364 + $0x60] sm:%s356] %v413
                  %v415 = vld [vmem:[%s363 + $0xa4] sm:%s356]
                  %416 = vst [vmem:[%s364 + $0x64] sm:%s356] %v415
                  %v417 = vld [vmem:[%s363 + $0xa8] sm:%s356]
                  %418 = vst [vmem:[%s364 + $0x68] sm:%s356] %v417
                  %v419 = vld [vmem:[%s363 + $0xac] sm:%s356]
                  %420 = vst [vmem:[%s364 + $0x6c] sm:%s356] %v419
                  %v421 = vld [vmem:[%s363 + $0xb0] sm:%s356]
                  %422 = vst [vmem:[%s364 + $0x70] sm:%s356] %v421
                  %v423 = vld [vmem:[%s363 + $0xb4] sm:%s356]
                  %424 = vst [vmem:[%s364 + $0x74] sm:%s356] %v423
                  %v425 = vld [vmem:[%s363 + $0xb8] sm:%s356]
                  %426 = vst [vmem:[%s364 + $0x78] sm:%s356] %v425
                  %v427 = vld [vmem:[%s363 + $0xbc] sm:%s356]
                  %428 = vst [vmem:[%s364 + $0x7c] sm:%s356] %v427
                $region97: #{ugcn_forward.14} parent=84 // loop_footer
                  %s362 = sadd.s32 1, %s358
                $region98: #{ugcn_forward.14} parent=84 // loop_footer_branch
                  %357 = sbr.rel target = $region94
                $region99: #{ugcn_forward.14} parent=84 // loop_exit
                  _
              $region85: #{ugcn_forward.14} parent=69 // pred_fallthru
                _
            $region70: #{ugcn_forward.14} parent=65 // pred_fallthru
              _
            // Predicated region
            $region71: #{ugcn_forward.14} parent=65 // pred_check
              _
            $region72: #{ugcn_forward.14} parent=65 // pred_check_branch
              %270 = sbr.rel (0) target = $region74
            $region73: #{ugcn_forward.14} parent=65 // pred_region
              %s272 = ssub.s32 16, 1
              loop: start=0, step=1, limit=1
              $region75: #{ugcn_forward.14} parent=73 // loop_pre_header
                _
              $region76: #{ugcn_forward.14} parent=73 // loop_header
                %s274 = sphi 0, %s278
                %p275 = scmp.ge.s32.totalorder %s274, 1
                %s279 = sphi %s264, %s264
                %s280 = sphi %s261, %s261
              $region77: #{ugcn_forward.14} parent=73 // loop_header_branch
                %277 = sbr.rel (%p275) target = $region81
              $region78: #{ugcn_forward.14} parent=73 // loop_body
                %v281 = vld [vmem:[%s279] sm:%s272]
                %282 = vst [vmem:[%s280] sm:%s272] %v281
                %v283 = vld [vmem:[%s279 + $0x4] sm:%s272]
                %284 = vst [vmem:[%s280 + $0x4] sm:%s272] %v283
                %v285 = vld [vmem:[%s279 + $0x8] sm:%s272]
                %286 = vst [vmem:[%s280 + $0x8] sm:%s272] %v285
                %v287 = vld [vmem:[%s279 + $0xc] sm:%s272]
                %288 = vst [vmem:[%s280 + $0xc] sm:%s272] %v287
                %v289 = vld [vmem:[%s279 + $0x10] sm:%s272]
                %290 = vst [vmem:[%s280 + $0x10] sm:%s272] %v289
                %v291 = vld [vmem:[%s279 + $0x14] sm:%s272]
                %292 = vst [vmem:[%s280 + $0x14] sm:%s272] %v291
                %v293 = vld [vmem:[%s279 + $0x18] sm:%s272]
                %294 = vst [vmem:[%s280 + $0x18] sm:%s272] %v293
                %v295 = vld [vmem:[%s279 + $0x1c] sm:%s272]
                %296 = vst [vmem:[%s280 + $0x1c] sm:%s272] %v295
                %v297 = vld [vmem:[%s279 + $0x20] sm:%s272]
                %298 = vst [vmem:[%s280 + $0x20] sm:%s272] %v297
                %v299 = vld [vmem:[%s279 + $0x24] sm:%s272]
                %300 = vst [vmem:[%s280 + $0x24] sm:%s272] %v299
                %v301 = vld [vmem:[%s279 + $0x28] sm:%s272]
                %302 = vst [vmem:[%s280 + $0x28] sm:%s272] %v301
                %v303 = vld [vmem:[%s279 + $0x2c] sm:%s272]
                %304 = vst [vmem:[%s280 + $0x2c] sm:%s272] %v303
                %v305 = vld [vmem:[%s279 + $0x30] sm:%s272]
                %306 = vst [vmem:[%s280 + $0x30] sm:%s272] %v305
                %v307 = vld [vmem:[%s279 + $0x34] sm:%s272]
                %308 = vst [vmem:[%s280 + $0x34] sm:%s272] %v307
                %v309 = vld [vmem:[%s279 + $0x38] sm:%s272]
                %310 = vst [vmem:[%s280 + $0x38] sm:%s272] %v309
                %v311 = vld [vmem:[%s279 + $0x3c] sm:%s272]
                %312 = vst [vmem:[%s280 + $0x3c] sm:%s272] %v311
                %v313 = vld [vmem:[%s279 + $0x80] sm:%s272]
                %314 = vst [vmem:[%s280 + $0x40] sm:%s272] %v313
                %v315 = vld [vmem:[%s279 + $0x84] sm:%s272]
                %316 = vst [vmem:[%s280 + $0x44] sm:%s272] %v315
                %v317 = vld [vmem:[%s279 + $0x88] sm:%s272]
                %318 = vst [vmem:[%s280 + $0x48] sm:%s272] %v317
                %v319 = vld [vmem:[%s279 + $0x8c] sm:%s272]
                %320 = vst [vmem:[%s280 + $0x4c] sm:%s272] %v319
                %v321 = vld [vmem:[%s279 + $0x90] sm:%s272]
                %322 = vst [vmem:[%s280 + $0x50] sm:%s272] %v321
                %v323 = vld [vmem:[%s279 + $0x94] sm:%s272]
                %324 = vst [vmem:[%s280 + $0x54] sm:%s272] %v323
                %v325 = vld [vmem:[%s279 + $0x98] sm:%s272]
                %326 = vst [vmem:[%s280 + $0x58] sm:%s272] %v325
                %v327 = vld [vmem:[%s279 + $0x9c] sm:%s272]
                %328 = vst [vmem:[%s280 + $0x5c] sm:%s272] %v327
                %v329 = vld [vmem:[%s279 + $0xa0] sm:%s272]
                %330 = vst [vmem:[%s280 + $0x60] sm:%s272] %v329
                %v331 = vld [vmem:[%s279 + $0xa4] sm:%s272]
                %332 = vst [vmem:[%s280 + $0x64] sm:%s272] %v331
                %v333 = vld [vmem:[%s279 + $0xa8] sm:%s272]
                %334 = vst [vmem:[%s280 + $0x68] sm:%s272] %v333
                %v335 = vld [vmem:[%s279 + $0xac] sm:%s272]
                %336 = vst [vmem:[%s280 + $0x6c] sm:%s272] %v335
                %v337 = vld [vmem:[%s279 + $0xb0] sm:%s272]
                %338 = vst [vmem:[%s280 + $0x70] sm:%s272] %v337
                %v339 = vld [vmem:[%s279 + $0xb4] sm:%s272]
                %340 = vst [vmem:[%s280 + $0x74] sm:%s272] %v339
                %v341 = vld [vmem:[%s279 + $0xb8] sm:%s272]
                %342 = vst [vmem:[%s280 + $0x78] sm:%s272] %v341
                %v343 = vld [vmem:[%s279 + $0xbc] sm:%s272]
                %344 = vst [vmem:[%s280 + $0x7c] sm:%s272] %v343
              $region79: #{ugcn_forward.14} parent=73 // loop_footer
                %s278 = sadd.s32 1, %s274
              $region80: #{ugcn_forward.14} parent=73 // loop_footer_branch
                %273 = sbr.rel target = $region76
              $region81: #{ugcn_forward.14} parent=73 // loop_exit
                _
            $region74: #{ugcn_forward.14} parent=65 // pred_fallthru
              _
          $region66: #{ugcn_forward.14} parent=61 // pred_fallthru
            _
          %429 = vnop
        $region62: #{ugcn_forward.14} parent=19 // pred_fallthru
          _
        // Predicated region
        $region100: #{ugcn_forward.14} parent=19 // pred_check
          %p430 = pneg %p97
        $region101: #{ugcn_forward.14} parent=19 // pred_check_branch
          %432 = sbr.rel (%p430) target = $region103
        $region102: #{ugcn_forward.14} parent=19 // pred_region
          %p433 = scmp.lt.s32.totalorder %s19, 1
          %s434 = scalar_select %p433, %s19, 1
          %s435 = smul.addr %s434, 2
          %s436 = scalar_lea.vmem %s2, %s435
        $region103: #{ugcn_forward.14} parent=19 // pred_fallthru
          _
        // Predicated region
        $region104: #{ugcn_forward.14} parent=19 // pred_check
          %p437 = pneg %p123
        $region105: #{ugcn_forward.14} parent=19 // pred_check_branch
          %439 = sbr.rel (%p437) target = $region107
        $region106: #{ugcn_forward.14} parent=19 // pred_region
          %s440 = smul.u32 16, %s18
          %p441 = scmp.lt.s32.totalorder %s440, 31
          %s442 = scalar_select %p441, %s440, 31
          %s443 = smul.addr %s442, 8
          %s444 = scalar_lea.vmem %s3, %s443
          %s445 = smul.u32 16, %s18
        $region107: #{ugcn_forward.14} parent=19 // pred_fallthru
          _
      $region20: #{ugcn_forward.14} parent=5 // pred_fallthru
        _
      %p446 = scmp.le.s32.totalorder 1, %s11
      %p447 = scmp.lt.s32.totalorder %s11, 5
      %p448 = pnand %p446, %p447
      %p449 = pneg %p448
      // Predicated region
      $region108: #{ugcn_forward.14} parent=5 // pred_check
        _
      $region109: #{ugcn_forward.14} parent=5 // pred_check_branch
        %451 = sbr.rel (%p448) target = $region111
      $region110: #{ugcn_forward.14} parent=5 // pred_region
        %s452 = ssub.s32 %s11, 1
        %s453 = sand.u32 %s38, 1
        %s454 = sand.u32 %s38, 1
        %s455 = smul.addr %s454, 32
        %s456 = scalar_lea.vmem [#allocation5], %s455
        // Predicated region
        $region112: #{ugcn_forward.14} parent=110 // pred_check
          %p457 = pneg %p51
        $region113: #{ugcn_forward.14} parent=110 // pred_check_branch
          %459 = sbr.rel (%p457) target = $region115
        $region114: #{ugcn_forward.14} parent=110 // pred_region
          _
        $region115: #{ugcn_forward.14} parent=110 // pred_fallthru
          _
        %s460 = sand.u32 %s64, 1
        %s461 = sand.u32 %s64, 1
        %s462 = smul.addr %s461, 128
        %s463 = scalar_lea.vmem [#allocation6], %s462
        // Predicated region
        $region116: #{ugcn_forward.14} parent=110 // pred_check
          %p464 = pneg %p77
        $region117: #{ugcn_forward.14} parent=110 // pred_check_branch
          %466 = sbr.rel (%p464) target = $region119
        $region118: #{ugcn_forward.14} parent=110 // pred_region
          _
        $region119: #{ugcn_forward.14} parent=110 // pred_fallthru
          _
        %s467 = sand.u32 %s38, 1
        %s468 = sand.u32 %s38, 1
        %s469 = smul.addr %s468, 32
        %s470 = scalar_lea.vmem [#allocation5], %s469
        %p471 = pneg %p51
        %p472 = pneg %p48
        %s473 = sand.u32 %s64, 1
        %s474 = sand.u32 %s64, 1
        %s475 = smul.addr %s474, 128
        %s476 = scalar_lea.vmem [#allocation6], %s475
        %p477 = pneg %p77
        %p478 = pneg %p74
        %p479 = scmp.lt.s32.totalorder %s21, 1
        %s480 = scalar_select %p479, %s21, 1
        %s481 = smul.addr %s480, 2
        %s482 = scalar_lea.vmem %s2, %s481
        %p483 = pneg %p103
        %p484 = pneg %p100
        %s485 = smul.u32 16, %s20
        %p486 = scmp.lt.s32.totalorder %s485, 31
        %s487 = scalar_select %p486, %s485, 31
        %s488 = smul.addr %s487, 8
        %s489 = scalar_lea.vmem %s3, %s488
        %p490 = pneg %p129
        %p491 = pneg %p126
        %p492 = pneg %p150
        %p493 = pneg %p147
        %p494 = pneg %p176
        %p495 = pneg %p173
        %s496 = smul.u32 16, %s20
        %p497 = scmp.lt.s32.totalorder %s496, 31
        %s498 = scalar_select %p497, %s496, 31
        %s499 = smul.addr %s498, 8
        %s500 = scalar_lea.vmem %s5, %s499
        %s501 = smul.u32 4, %s20
        %s502 = smul.u32 16, %s21
        %p503 = scmp.lt.s32.totalorder %s21, 1
        %s504 = scalar_select %p503, %s21, 1
        %s505 = smul.addr %s504, 2
        %s506 = scalar_lea.vmem %s2, %s505
        %s507 = smul.u32 16, %s20
        %p508 = scmp.lt.s32.totalorder %s507, 31
        %s509 = scalar_select %p508, %s507, 31
        %s510 = smul.addr %s509, 8
        %s511 = scalar_lea.vmem %s3, %s510
        %s512 = smul.u32 16, %s20
        %s513 = smul.u32 16, %s20
        %p514 = scmp.lt.s32.totalorder %s513, 31
        %s515 = scalar_select %p514, %s513, 31
        %s516 = smul.addr %s515, 8
        %s517 = scalar_lea.vmem %s5, %s516
        %s518 = smul.u32 16, %s20
        %p520 = scmp.eq.s32.totalorder %s21, 0
        // Predicated region
        $region120: #{ugcn_forward.14} parent=110 // pred_check
          %p521 = pneg %p520
        $region121: #{ugcn_forward.14} parent=110 // pred_check_branch
          %523 = sbr.rel (%p521) target = $region123
        $region122: #{ugcn_forward.14} parent=110 // pred_region
          %vm524 = vcmask 7168
          %525 = vst.msk [vmem:[#allocation2] sm:$0xff] %vm524, -1e+30
          %526 = vst.msk [vmem:[#allocation2 + $0x8] sm:$0xff] %vm524, -1e+30
          %527 = vst.msk [vmem:[#allocation2 + $0x10] sm:$0xff] %vm524, -1e+30
          %528 = vst.msk [vmem:[#allocation2 + $0x18] sm:$0xff] %vm524, -1e+30
          %529 = vst.msk [vmem:[#allocation2 + $0x20] sm:$0xff] %vm524, -1e+30
          %530 = vst.msk [vmem:[#allocation2 + $0x28] sm:$0xff] %vm524, -1e+30
          %531 = vst.msk [vmem:[#allocation2 + $0x30] sm:$0xff] %vm524, -1e+30
          %532 = vst.msk [vmem:[#allocation2 + $0x38] sm:$0xff] %vm524, -1e+30
          %533 = vst.msk [vmem:[#allocation2 + $0x40] sm:$0xff] %vm524, -1e+30
          %534 = vst.msk [vmem:[#allocation2 + $0x48] sm:$0xff] %vm524, -1e+30
          %535 = vst.msk [vmem:[#allocation2 + $0x50] sm:$0xff] %vm524, -1e+30
          %536 = vst.msk [vmem:[#allocation2 + $0x58] sm:$0xff] %vm524, -1e+30
          %537 = vst.msk [vmem:[#allocation2 + $0x60] sm:$0xff] %vm524, -1e+30
          %538 = vst.msk [vmem:[#allocation2 + $0x68] sm:$0xff] %vm524, -1e+30
          %539 = vst.msk [vmem:[#allocation2 + $0x70] sm:$0xff] %vm524, -1e+30
          %540 = vst.msk [vmem:[#allocation2 + $0x78] sm:$0xff] %vm524, -1e+30
          %541 = vst.msk [vmem:[#allocation2 + $0x80] sm:$0xff] %vm524, -1e+30
          %542 = vst.msk [vmem:[#allocation2 + $0x88] sm:$0xff] %vm524, -1e+30
          %543 = vst.msk [vmem:[#allocation2 + $0x90] sm:$0xff] %vm524, -1e+30
          %544 = vst.msk [vmem:[#allocation2 + $0x98] sm:$0xff] %vm524, -1e+30
          %545 = vst.msk [vmem:[#allocation2 + $0xa0] sm:$0xff] %vm524, -1e+30
          %546 = vst.msk [vmem:[#allocation2 + $0xa8] sm:$0xff] %vm524, -1e+30
          %547 = vst.msk [vmem:[#allocation2 + $0xb0] sm:$0xff] %vm524, -1e+30
          %548 = vst.msk [vmem:[#allocation2 + $0xb8] sm:$0xff] %vm524, -1e+30
          %549 = vst.msk [vmem:[#allocation2 + $0xc0] sm:$0xff] %vm524, -1e+30
          %550 = vst.msk [vmem:[#allocation2 + $0xc8] sm:$0xff] %vm524, -1e+30
          %551 = vst.msk [vmem:[#allocation2 + $0xd0] sm:$0xff] %vm524, -1e+30
          %552 = vst.msk [vmem:[#allocation2 + $0xd8] sm:$0xff] %vm524, -1e+30
          %553 = vst.msk [vmem:[#allocation2 + $0xe0] sm:$0xff] %vm524, -1e+30
          %554 = vst.msk [vmem:[#allocation2 + $0xe8] sm:$0xff] %vm524, -1e+30
          %555 = vst.msk [vmem:[#allocation2 + $0xf0] sm:$0xff] %vm524, -1e+30
          %556 = vst.msk [vmem:[#allocation2 + $0xf8] sm:$0xff] %vm524, -1e+30
          %557 = vst.msk [vmem:[#allocation3] sm:$0xff] %vm524, 0.0
          %558 = vst.msk [vmem:[#allocation3 + $0x8] sm:$0xff] %vm524, 0.0
          %559 = vst.msk [vmem:[#allocation3 + $0x10] sm:$0xff] %vm524, 0.0
          %560 = vst.msk [vmem:[#allocation3 + $0x18] sm:$0xff] %vm524, 0.0
          %561 = vst.msk [vmem:[#allocation3 + $0x20] sm:$0xff] %vm524, 0.0
          %562 = vst.msk [vmem:[#allocation3 + $0x28] sm:$0xff] %vm524, 0.0
          %563 = vst.msk [vmem:[#allocation3 + $0x30] sm:$0xff] %vm524, 0.0
          %564 = vst.msk [vmem:[#allocation3 + $0x38] sm:$0xff] %vm524, 0.0
          %565 = vst.msk [vmem:[#allocation3 + $0x40] sm:$0xff] %vm524, 0.0
          %566 = vst.msk [vmem:[#allocation3 + $0x48] sm:$0xff] %vm524, 0.0
          %567 = vst.msk [vmem:[#allocation3 + $0x50] sm:$0xff] %vm524, 0.0
          %568 = vst.msk [vmem:[#allocation3 + $0x58] sm:$0xff] %vm524, 0.0
          %569 = vst.msk [vmem:[#allocation3 + $0x60] sm:$0xff] %vm524, 0.0
          %570 = vst.msk [vmem:[#allocation3 + $0x68] sm:$0xff] %vm524, 0.0
          %571 = vst.msk [vmem:[#allocation3 + $0x70] sm:$0xff] %vm524, 0.0
          %572 = vst.msk [vmem:[#allocation3 + $0x78] sm:$0xff] %vm524, 0.0
          %573 = vst.msk [vmem:[#allocation3 + $0x80] sm:$0xff] %vm524, 0.0
          %574 = vst.msk [vmem:[#allocation3 + $0x88] sm:$0xff] %vm524, 0.0
          %575 = vst.msk [vmem:[#allocation3 + $0x90] sm:$0xff] %vm524, 0.0
          %576 = vst.msk [vmem:[#allocation3 + $0x98] sm:$0xff] %vm524, 0.0
          %577 = vst.msk [vmem:[#allocation3 + $0xa0] sm:$0xff] %vm524, 0.0
          %578 = vst.msk [vmem:[#allocation3 + $0xa8] sm:$0xff] %vm524, 0.0
          %579 = vst.msk [vmem:[#allocation3 + $0xb0] sm:$0xff] %vm524, 0.0
          %580 = vst.msk [vmem:[#allocation3 + $0xb8] sm:$0xff] %vm524, 0.0
          %581 = vst.msk [vmem:[#allocation3 + $0xc0] sm:$0xff] %vm524, 0.0
          %582 = vst.msk [vmem:[#allocation3 + $0xc8] sm:$0xff] %vm524, 0.0
          %583 = vst.msk [vmem:[#allocation3 + $0xd0] sm:$0xff] %vm524, 0.0
          %584 = vst.msk [vmem:[#allocation3 + $0xd8] sm:$0xff] %vm524, 0.0
          %585 = vst.msk [vmem:[#allocation3 + $0xe0] sm:$0xff] %vm524, 0.0
          %586 = vst.msk [vmem:[#allocation3 + $0xe8] sm:$0xff] %vm524, 0.0
          %587 = vst.msk [vmem:[#allocation3 + $0xf0] sm:$0xff] %vm524, 0.0
          %588 = vst.msk [vmem:[#allocation3 + $0xf8] sm:$0xff] %vm524, 0.0
          %vm589 = vcmask 261120
          %590 = vst.msk [vmem:[#allocation4] sm:$0xff] %vm589, 0.0
          %591 = vst.msk [vmem:[#allocation4 + $0x8] sm:$0xff] %vm589, 0.0
          %592 = vst.msk [vmem:[#allocation4 + $0x10] sm:$0xff] %vm589, 0.0
          %593 = vst.msk [vmem:[#allocation4 + $0x18] sm:$0xff] %vm589, 0.0
          %594 = vst.msk [vmem:[#allocation4 + $0x20] sm:$0xff] %vm589, 0.0
          %595 = vst.msk [vmem:[#allocation4 + $0x28] sm:$0xff] %vm589, 0.0
          %596 = vst.msk [vmem:[#allocation4 + $0x30] sm:$0xff] %vm589, 0.0
          %597 = vst.msk [vmem:[#allocation4 + $0x38] sm:$0xff] %vm589, 0.0
          %598 = vst.msk [vmem:[#allocation4 + $0x40] sm:$0xff] %vm589, 0.0
          %599 = vst.msk [vmem:[#allocation4 + $0x48] sm:$0xff] %vm589, 0.0
          %600 = vst.msk [vmem:[#allocation4 + $0x50] sm:$0xff] %vm589, 0.0
          %601 = vst.msk [vmem:[#allocation4 + $0x58] sm:$0xff] %vm589, 0.0
          %602 = vst.msk [vmem:[#allocation4 + $0x60] sm:$0xff] %vm589, 0.0
          %603 = vst.msk [vmem:[#allocation4 + $0x68] sm:$0xff] %vm589, 0.0
          %604 = vst.msk [vmem:[#allocation4 + $0x70] sm:$0xff] %vm589, 0.0
          %605 = vst.msk [vmem:[#allocation4 + $0x78] sm:$0xff] %vm589, 0.0
          %606 = vst.msk [vmem:[#allocation4 + $0x80] sm:$0xff] %vm589, 0.0
          %607 = vst.msk [vmem:[#allocation4 + $0x88] sm:$0xff] %vm589, 0.0
          %608 = vst.msk [vmem:[#allocation4 + $0x90] sm:$0xff] %vm589, 0.0
          %609 = vst.msk [vmem:[#allocation4 + $0x98] sm:$0xff] %vm589, 0.0
          %610 = vst.msk [vmem:[#allocation4 + $0xa0] sm:$0xff] %vm589, 0.0
          %611 = vst.msk [vmem:[#allocation4 + $0xa8] sm:$0xff] %vm589, 0.0
          %612 = vst.msk [vmem:[#allocation4 + $0xb0] sm:$0xff] %vm589, 0.0
          %613 = vst.msk [vmem:[#allocation4 + $0xb8] sm:$0xff] %vm589, 0.0
          %614 = vst.msk [vmem:[#allocation4 + $0xc0] sm:$0xff] %vm589, 0.0
          %615 = vst.msk [vmem:[#allocation4 + $0xc8] sm:$0xff] %vm589, 0.0
          %616 = vst.msk [vmem:[#allocation4 + $0xd0] sm:$0xff] %vm589, 0.0
          %617 = vst.msk [vmem:[#allocation4 + $0xd8] sm:$0xff] %vm589, 0.0
          %618 = vst.msk [vmem:[#allocation4 + $0xe0] sm:$0xff] %vm589, 0.0
          %619 = vst.msk [vmem:[#allocation4 + $0xe8] sm:$0xff] %vm589, 0.0
          %620 = vst.msk [vmem:[#allocation4 + $0xf0] sm:$0xff] %vm589, 0.0
          %621 = vst.msk [vmem:[#allocation4 + $0xf8] sm:$0xff] %vm589, 0.0
        $region123: #{ugcn_forward.14} parent=110 // pred_fallthru
          _
        %v622 = vld [vmem:[%s456] sm:$0xff]
        %v623 = vld [vmem:[%s456 + $0x8] sm:$0xff]
        %v624 = vld [vmem:[%s456 + $0x10] sm:$0xff]
        %v625 = vld [vmem:[%s456 + $0x18] sm:$0xff]
        %v626 = vunpack.c.0.s8 %v622
        %v627 = vunpack.c.1.s8 %v622
        %v628 = vunpack.c.2.s8 %v622
        %v629 = vunpack.c.3.s8 %v622
        %v630 = vunpack.c.0.s8 %v623
        %v631 = vunpack.c.1.s8 %v623
        %v632 = vunpack.c.2.s8 %v623
        %v633 = vunpack.c.3.s8 %v623
        %v634 = vunpack.c.0.s8 %v624
        %v635 = vunpack.c.1.s8 %v624
        %v636 = vunpack.c.2.s8 %v624
        %v637 = vunpack.c.3.s8 %v624
        %v638 = vunpack.c.0.s8 %v625
        %v639 = vunpack.c.1.s8 %v625
        %v640 = vunpack.c.2.s8 %v625
        %v641 = vunpack.c.3.s8 %v625
        %v642 = vcvt.s32.f32 %v626
        %v643 = vcvt.s32.f32 %v627
        %v644 = vcvt.s32.f32 %v628
        %v645 = vcvt.s32.f32 %v629
        %v646 = vcvt.s32.f32 %v630
        %v647 = vcvt.s32.f32 %v631
        %v648 = vcvt.s32.f32 %v632
        %v649 = vcvt.s32.f32 %v633
        %v650 = vcvt.s32.f32 %v634
        %v651 = vcvt.s32.f32 %v635
        %v652 = vcvt.s32.f32 %v636
        %v653 = vcvt.s32.f32 %v637
        %v654 = vcvt.s32.f32 %v638
        %v655 = vcvt.s32.f32 %v639
        %v656 = vcvt.s32.f32 %v640
        %v657 = vcvt.s32.f32 %v641
        %v658 = vsub.f32 %v642, 1.0
        %v659 = vsub.f32 %v643, 1.0
        %v660 = vsub.f32 %v644, 1.0
        %v661 = vsub.f32 %v645, 1.0
        %v662 = vsub.f32 %v646, 1.0
        %v663 = vsub.f32 %v647, 1.0
        %v664 = vsub.f32 %v648, 1.0
        %v665 = vsub.f32 %v649, 1.0
        %v666 = vsub.f32 %v650, 1.0
        %v667 = vsub.f32 %v651, 1.0
        %v668 = vsub.f32 %v652, 1.0
        %v669 = vsub.f32 %v653, 1.0
        %v670 = vsub.f32 %v654, 1.0
        %v671 = vsub.f32 %v655, 1.0
        %v672 = vsub.f32 %v656, 1.0
        %v673 = vsub.f32 %v657, 1.0
        %v674 = vmul.f32 %v658, 1e+30
        %v675 = vmul.f32 %v659, 1e+30
        %v676 = vmul.f32 %v660, 1e+30
        %v677 = vmul.f32 %v661, 1e+30
        %v678 = vmul.f32 %v662, 1e+30
        %v679 = vmul.f32 %v663, 1e+30
        %v680 = vmul.f32 %v664, 1e+30
        %v681 = vmul.f32 %v665, 1e+30
        %v682 = vmul.f32 %v666, 1e+30
        %v683 = vmul.f32 %v667, 1e+30
        %v684 = vmul.f32 %v668, 1e+30
        %v685 = vmul.f32 %v669, 1e+30
        %v686 = vmul.f32 %v670, 1e+30
        %v687 = vmul.f32 %v671, 1e+30
        %v688 = vmul.f32 %v672, 1e+30
        %v689 = vmul.f32 %v673, 1e+30
        %v690 = vld [vmem:[%s511] sm:$0xff]
        %v691 = vld [vmem:[%s511 + $0x8] sm:$0xff]
        %v692 = vld [vmem:[%s511 + $0x10] sm:$0xff]
        %v693 = vld [vmem:[%s511 + $0x18] sm:$0xff]
        %v694 = vld [vmem:[%s511 + $0x20] sm:$0xff]
        %v695 = vld [vmem:[%s511 + $0x28] sm:$0xff]
        %v696 = vld [vmem:[%s511 + $0x30] sm:$0xff]
        %v697 = vld [vmem:[%s511 + $0x38] sm:$0xff]
        %v698 = vld [vmem:[%s511 + $0x40] sm:$0xff]
        %v699 = vld [vmem:[%s511 + $0x48] sm:$0xff]
        %v700 = vld [vmem:[%s511 + $0x50] sm:$0xff]
        %v701 = vld [vmem:[%s511 + $0x58] sm:$0xff]
        %v702 = vld [vmem:[%s511 + $0x60] sm:$0xff]
        %v703 = vld [vmem:[%s511 + $0x68] sm:$0xff]
        %v704 = vld [vmem:[%s511 + $0x70] sm:$0xff]
        %v705 = vld [vmem:[%s511 + $0x78] sm:$0xff]
        %v706 = vld [vmem:[%s506] sm:$0x3]
        %708 = vset.pattern.permute.xlu0 0
        %709 = vperm.xlu0 %708, %v690
        %v710 = vpop.permute.xlu0 %709
        %713 = vset.pattern.permute.xlu0 0
        %714 = vperm.xlu0 %713, %v691
        %v715 = vpop.permute.xlu0 %714
        %718 = vset.pattern.permute.xlu0 0
        %719 = vperm.xlu0 %718, %v692
        %v720 = vpop.permute.xlu0 %719
        %723 = vset.pattern.permute.xlu0 0
        %724 = vperm.xlu0 %723, %v693
        %v725 = vpop.permute.xlu0 %724
        %728 = vset.pattern.permute.xlu0 0
        %729 = vperm.xlu0 %728, %v694
        %v730 = vpop.permute.xlu0 %729
        %733 = vset.pattern.permute.xlu0 0
        %734 = vperm.xlu0 %733, %v695
        %v735 = vpop.permute.xlu0 %734
        %738 = vset.pattern.permute.xlu0 0
        %739 = vperm.xlu0 %738, %v696
        %v740 = vpop.permute.xlu0 %739
        %743 = vset.pattern.permute.xlu0 0
        %744 = vperm.xlu0 %743, %v697
        %v745 = vpop.permute.xlu0 %744
        %748 = vset.pattern.permute.xlu0 0
        %749 = vperm.xlu0 %748, %v698
        %v750 = vpop.permute.xlu0 %749
        %753 = vset.pattern.permute.xlu0 0
        %754 = vperm.xlu0 %753, %v699
        %v755 = vpop.permute.xlu0 %754
        %758 = vset.pattern.permute.xlu0 0
        %759 = vperm.xlu0 %758, %v700
        %v760 = vpop.permute.xlu0 %759
        %763 = vset.pattern.permute.xlu0 0
        %764 = vperm.xlu0 %763, %v701
        %v765 = vpop.permute.xlu0 %764
        %768 = vset.pattern.permute.xlu0 0
        %769 = vperm.xlu0 %768, %v702
        %v770 = vpop.permute.xlu0 %769
        %773 = vset.pattern.permute.xlu0 0
        %774 = vperm.xlu0 %773, %v703
        %v775 = vpop.permute.xlu0 %774
        %778 = vset.pattern.permute.xlu0 0
        %779 = vperm.xlu0 %778, %v704
        %v780 = vpop.permute.xlu0 %779
        %783 = vset.pattern.permute.xlu0 0
        %784 = vperm.xlu0 %783, %v705
        %v785 = vpop.permute.xlu0 %784
        %v787 = vlaneseq
        %v788 = vshrl.u32 %v787, 7
        %v789 = vsub.s32 0, %v788
        %v790 = vrot.slane %v706, %v789
        %v791 = vadd.f32 %v710, %v790
        %v792 = vadd.f32 %v715, %v790
        %v793 = vadd.f32 %v720, %v790
        %v794 = vadd.f32 %v725, %v790
        %v795 = vadd.f32 %v730, %v790
        %v796 = vadd.f32 %v735, %v790
        %v797 = vadd.f32 %v740, %v790
        %v798 = vadd.f32 %v745, %v790
        %v799 = vadd.f32 %v750, %v790
        %v800 = vadd.f32 %v755, %v790
        %v801 = vadd.f32 %v760, %v790
        %v802 = vadd.f32 %v765, %v790
        %v803 = vadd.f32 %v770, %v790
        %v804 = vadd.f32 %v775, %v790
        %v805 = vadd.f32 %v780, %v790
        %v806 = vadd.f32 %v785, %v790
        %v807 = vmul.f32 %v791, 0.2
        %v808 = vmul.f32 %v792, 0.2
        %v809 = vmul.f32 %v793, 0.2
        %v810 = vmul.f32 %v794, 0.2
        %v811 = vmul.f32 %v795, 0.2
        %v812 = vmul.f32 %v796, 0.2
        %v813 = vmul.f32 %v797, 0.2
        %v814 = vmul.f32 %v798, 0.2
        %v815 = vmul.f32 %v799, 0.2
        %v816 = vmul.f32 %v800, 0.2
        %v817 = vmul.f32 %v801, 0.2
        %v818 = vmul.f32 %v802, 0.2
        %v819 = vmul.f32 %v803, 0.2
        %v820 = vmul.f32 %v804, 0.2
        %v821 = vmul.f32 %v805, 0.2
        %v822 = vmul.f32 %v806, 0.2
        %v823 = vmax.f32 %v791, %v807
        %v824 = vmax.f32 %v792, %v808
        %v825 = vmax.f32 %v793, %v809
        %v826 = vmax.f32 %v794, %v810
        %v827 = vmax.f32 %v795, %v811
        %v828 = vmax.f32 %v796, %v812
        %v829 = vmax.f32 %v797, %v813
        %v830 = vmax.f32 %v798, %v814
        %v831 = vmax.f32 %v799, %v815
        %v832 = vmax.f32 %v800, %v816
        %v833 = vmax.f32 %v801, %v817
        %v834 = vmax.f32 %v802, %v818
        %v835 = vmax.f32 %v803, %v819
        %v836 = vmax.f32 %v804, %v820
        %v837 = vmax.f32 %v805, %v821
        %v838 = vmax.f32 %v806, %v822
        %v839 = vadd.f32 %v823, %v674
        %v840 = vadd.f32 %v824, %v675
        %v841 = vadd.f32 %v825, %v676
        %v842 = vadd.f32 %v826, %v677
        %v843 = vadd.f32 %v827, %v678
        %v844 = vadd.f32 %v828, %v679
        %v845 = vadd.f32 %v829, %v680
        %v846 = vadd.f32 %v830, %v681
        %v847 = vadd.f32 %v831, %v682
        %v848 = vadd.f32 %v832, %v683
        %v849 = vadd.f32 %v833, %v684
        %v850 = vadd.f32 %v834, %v685
        %v851 = vadd.f32 %v835, %v686
        %v852 = vadd.f32 %v836, %v687
        %v853 = vadd.f32 %v837, %v688
        %v854 = vadd.f32 %v838, %v689
        %v855 = vld [vmem:[#allocation2] sm:$0xff]
        %v856 = vld [vmem:[#allocation2 + $0x8] sm:$0xff]
        %v857 = vld [vmem:[#allocation2 + $0x10] sm:$0xff]
        %v858 = vld [vmem:[#allocation2 + $0x18] sm:$0xff]
        %v859 = vld [vmem:[#allocation2 + $0x20] sm:$0xff]
        %v860 = vld [vmem:[#allocation2 + $0x28] sm:$0xff]
        %v861 = vld [vmem:[#allocation2 + $0x30] sm:$0xff]
        %v862 = vld [vmem:[#allocation2 + $0x38] sm:$0xff]
        %v863 = vld [vmem:[#allocation2 + $0x40] sm:$0xff]
        %v864 = vld [vmem:[#allocation2 + $0x48] sm:$0xff]
        %v865 = vld [vmem:[#allocation2 + $0x50] sm:$0xff]
        %v866 = vld [vmem:[#allocation2 + $0x58] sm:$0xff]
        %v867 = vld [vmem:[#allocation2 + $0x60] sm:$0xff]
        %v868 = vld [vmem:[#allocation2 + $0x68] sm:$0xff]
        %v869 = vld [vmem:[#allocation2 + $0x70] sm:$0xff]
        %v870 = vld [vmem:[#allocation2 + $0x78] sm:$0xff]
        %871 = vmax.xlane.f32.xlu0 %v839
        %v872 = vpop.xlane.xlu0 %871
        %873 = vmax.xlane.f32.xlu0 %v840
        %v874 = vpop.xlane.xlu0 %873
        %875 = vmax.xlane.f32.xlu0 %v841
        %v876 = vpop.xlane.xlu0 %875
        %877 = vmax.xlane.f32.xlu0 %v842
        %v878 = vpop.xlane.xlu0 %877
        %879 = vmax.xlane.f32.xlu0 %v843
        %v880 = vpop.xlane.xlu0 %879
        %881 = vmax.xlane.f32.xlu0 %v844
        %v882 = vpop.xlane.xlu0 %881
        %883 = vmax.xlane.f32.xlu0 %v845
        %v884 = vpop.xlane.xlu0 %883
        %885 = vmax.xlane.f32.xlu0 %v846
        %v886 = vpop.xlane.xlu0 %885
        %887 = vmax.xlane.f32.xlu0 %v847
        %v888 = vpop.xlane.xlu0 %887
        %889 = vmax.xlane.f32.xlu0 %v848
        %v890 = vpop.xlane.xlu0 %889
        %891 = vmax.xlane.f32.xlu0 %v849
        %v892 = vpop.xlane.xlu0 %891
        %893 = vmax.xlane.f32.xlu0 %v850
        %v894 = vpop.xlane.xlu0 %893
        %895 = vmax.xlane.f32.xlu0 %v851
        %v896 = vpop.xlane.xlu0 %895
        %897 = vmax.xlane.f32.xlu0 %v852
        %v898 = vpop.xlane.xlu0 %897
        %899 = vmax.xlane.f32.xlu0 %v853
        %v900 = vpop.xlane.xlu0 %899
        %901 = vmax.xlane.f32.xlu0 %v854
        %v902 = vpop.xlane.xlu0 %901
        %v903 = vmax.f32 %v855, %v872
        %v904 = vmax.f32 %v856, %v874
        %v905 = vmax.f32 %v857, %v876
        %v906 = vmax.f32 %v858, %v878
        %v907 = vmax.f32 %v859, %v880
        %v908 = vmax.f32 %v860, %v882
        %v909 = vmax.f32 %v861, %v884
        %v910 = vmax.f32 %v862, %v886
        %v911 = vmax.f32 %v863, %v888
        %v912 = vmax.f32 %v864, %v890
        %v913 = vmax.f32 %v865, %v892
        %v914 = vmax.f32 %v866, %v894
        %v915 = vmax.f32 %v867, %v896
        %v916 = vmax.f32 %v868, %v898
        %v917 = vmax.f32 %v869, %v900
        %v918 = vmax.f32 %v870, %v902
        %v919 = vsub.f32 %v855, %v903
        %v920 = vsub.f32 %v856, %v904
        %v921 = vsub.f32 %v857, %v905
        %v922 = vsub.f32 %v858, %v906
        %v923 = vsub.f32 %v859, %v907
        %v924 = vsub.f32 %v860, %v908
        %v925 = vsub.f32 %v861, %v909
        %v926 = vsub.f32 %v862, %v910
        %v927 = vsub.f32 %v863, %v911
        %v928 = vsub.f32 %v864, %v912
        %v929 = vsub.f32 %v865, %v913
        %v930 = vsub.f32 %v866, %v914
        %v931 = vsub.f32 %v867, %v915
        %v932 = vsub.f32 %v868, %v916
        %v933 = vsub.f32 %v869, %v917
        %v934 = vsub.f32 %v870, %v918
        %v935 = vmul.f32 %v919, 1.442695
        %v936 = vpow.pop %v935
        %v937 = vmul.f32 %v920, 1.442695
        %v938 = vpow.pop %v937
        %v939 = vmul.f32 %v921, 1.442695
        %v940 = vpow.pop %v939
        %v941 = vmul.f32 %v922, 1.442695
        %v942 = vpow.pop %v941
        %v943 = vmul.f32 %v923, 1.442695
        %v944 = vpow.pop %v943
        %v945 = vmul.f32 %v924, 1.442695
        %v946 = vpow.pop %v945
        %v947 = vmul.f32 %v925, 1.442695
        %v948 = vpow.pop %v947
        %v949 = vmul.f32 %v926, 1.442695
        %v950 = vpow.pop %v949
        %v951 = vmul.f32 %v927, 1.442695
        %v952 = vpow.pop %v951
        %v953 = vmul.f32 %v928, 1.442695
        %v954 = vpow.pop %v953
        %v955 = vmul.f32 %v929, 1.442695
        %v956 = vpow.pop %v955
        %v957 = vmul.f32 %v930, 1.442695
        %v958 = vpow.pop %v957
        %v959 = vmul.f32 %v931, 1.442695
        %v960 = vpow.pop %v959
        %v961 = vmul.f32 %v932, 1.442695
        %v962 = vpow.pop %v961
        %v963 = vmul.f32 %v933, 1.442695
        %v964 = vpow.pop %v963
        %v965 = vmul.f32 %v934, 1.442695
        %v966 = vpow.pop %v965
        %968 = vset.pattern.permute.xlu0 0
        %969 = vperm.xlu0 %968, %v903
        %v970 = vpop.permute.xlu0 %969
        %973 = vset.pattern.permute.xlu0 0
        %974 = vperm.xlu0 %973, %v904
        %v975 = vpop.permute.xlu0 %974
        %978 = vset.pattern.permute.xlu0 0
        %979 = vperm.xlu0 %978, %v905
        %v980 = vpop.permute.xlu0 %979
        %983 = vset.pattern.permute.xlu0 0
        %984 = vperm.xlu0 %983, %v906
        %v985 = vpop.permute.xlu0 %984
        %988 = vset.pattern.permute.xlu0 0
        %989 = vperm.xlu0 %988, %v907
        %v990 = vpop.permute.xlu0 %989
        %993 = vset.pattern.permute.xlu0 0
        %994 = vperm.xlu0 %993, %v908
        %v995 = vpop.permute.xlu0 %994
        %998 = vset.pattern.permute.xlu0 0
        %999 = vperm.xlu0 %998, %v909
        %v1000 = vpop.permute.xlu0 %999
        %1003 = vset.pattern.permute.xlu0 0
        %1004 = vperm.xlu0 %1003, %v910
        %v1005 = vpop.permute.xlu0 %1004
        %1008 = vset.pattern.permute.xlu0 0
        %1009 = vperm.xlu0 %1008, %v911
        %v1010 = vpop.permute.xlu0 %1009
        %1013 = vset.pattern.permute.xlu0 0
        %1014 = vperm.xlu0 %1013, %v912
        %v1015 = vpop.permute.xlu0 %1014
        %1018 = vset.pattern.permute.xlu0 0
        %1019 = vperm.xlu0 %1018, %v913
        %v1020 = vpop.permute.xlu0 %1019
        %1023 = vset.pattern.permute.xlu0 0
        %1024 = vperm.xlu0 %1023, %v914
        %v1025 = vpop.permute.xlu0 %1024
        %1028 = vset.pattern.permute.xlu0 0
        %1029 = vperm.xlu0 %1028, %v915
        %v1030 = vpop.permute.xlu0 %1029
        %1033 = vset.pattern.permute.xlu0 0
        %1034 = vperm.xlu0 %1033, %v916
        %v1035 = vpop.permute.xlu0 %1034
        %1038 = vset.pattern.permute.xlu0 0
        %1039 = vperm.xlu0 %1038, %v917
        %v1040 = vpop.permute.xlu0 %1039
        %1043 = vset.pattern.permute.xlu0 0
        %1044 = vperm.xlu0 %1043, %v918
        %v1045 = vpop.permute.xlu0 %1044
        %v1047 = vsub.f32 %v839, %v970
        %v1048 = vsub.f32 %v840, %v975
        %v1049 = vsub.f32 %v841, %v980
        %v1050 = vsub.f32 %v842, %v985
        %v1051 = vsub.f32 %v843, %v990
        %v1052 = vsub.f32 %v844, %v995
        %v1053 = vsub.f32 %v845, %v1000
        %v1054 = vsub.f32 %v846, %v1005
        %v1055 = vsub.f32 %v847, %v1010
        %v1056 = vsub.f32 %v848, %v1015
        %v1057 = vsub.f32 %v849, %v1020
        %v1058 = vsub.f32 %v850, %v1025
        %v1059 = vsub.f32 %v851, %v1030
        %v1060 = vsub.f32 %v852, %v1035
        %v1061 = vsub.f32 %v853, %v1040
        %v1062 = vsub.f32 %v854, %v1045
        %v1063 = vpack.c.bf16 %v1048, %v1047
        %v1064 = vpack.c.bf16 %v1050, %v1049
        %v1065 = vpack.c.bf16 %v1052, %v1051
        %v1066 = vpack.c.bf16 %v1054, %v1053
        %v1067 = vpack.c.bf16 %v1056, %v1055
        %v1068 = vpack.c.bf16 %v1058, %v1057
        %v1069 = vpack.c.bf16 %v1060, %v1059
        %v1070 = vpack.c.bf16 %v1062, %v1061
        %v1072 = vmul.bf16 %v1063, 1069105081
        %v1073 = vpow.bf16.pop %v1072
        %v1075 = vmul.bf16 %v1064, 1069105081
        %v1076 = vpow.bf16.pop %v1075
        %v1078 = vmul.bf16 %v1065, 1069105081
        %v1079 = vpow.bf16.pop %v1078
        %v1081 = vmul.bf16 %v1066, 1069105081
        %v1082 = vpow.bf16.pop %v1081
        %v1084 = vmul.bf16 %v1067, 1069105081
        %v1085 = vpow.bf16.pop %v1084
        %v1087 = vmul.bf16 %v1068, 1069105081
        %v1088 = vpow.bf16.pop %v1087
        %v1090 = vmul.bf16 %v1069, 1069105081
        %v1091 = vpow.bf16.pop %v1090
        %v1093 = vmul.bf16 %v1070, 1069105081
        %v1094 = vpow.bf16.pop %v1093
        %v1095 = vld [vmem:[#allocation3] sm:$0xff]
        %v1096 = vld [vmem:[#allocation3 + $0x8] sm:$0xff]
        %v1097 = vld [vmem:[#allocation3 + $0x10] sm:$0xff]
        %v1098 = vld [vmem:[#allocation3 + $0x18] sm:$0xff]
        %v1099 = vld [vmem:[#allocation3 + $0x20] sm:$0xff]
        %v1100 = vld [vmem:[#allocation3 + $0x28] sm:$0xff]
        %v1101 = vld [vmem:[#allocation3 + $0x30] sm:$0xff]
        %v1102 = vld [vmem:[#allocation3 + $0x38] sm:$0xff]
        %v1103 = vld [vmem:[#allocation3 + $0x40] sm:$0xff]
        %v1104 = vld [vmem:[#allocation3 + $0x48] sm:$0xff]
        %v1105 = vld [vmem:[#allocation3 + $0x50] sm:$0xff]
        %v1106 = vld [vmem:[#allocation3 + $0x58] sm:$0xff]
        %v1107 = vld [vmem:[#allocation3 + $0x60] sm:$0xff]
        %v1108 = vld [vmem:[#allocation3 + $0x68] sm:$0xff]
        %v1109 = vld [vmem:[#allocation3 + $0x70] sm:$0xff]
        %v1110 = vld [vmem:[#allocation3 + $0x78] sm:$0xff]
        %v1111 = vmul.f32 %v936, %v1095
        %v1112 = vmul.f32 %v938, %v1096
        %v1113 = vmul.f32 %v940, %v1097
        %v1114 = vmul.f32 %v942, %v1098
        %v1115 = vmul.f32 %v944, %v1099
        %v1116 = vmul.f32 %v946, %v1100
        %v1117 = vmul.f32 %v948, %v1101
        %v1118 = vmul.f32 %v950, %v1102
        %v1119 = vmul.f32 %v952, %v1103
        %v1120 = vmul.f32 %v954, %v1104
        %v1121 = vmul.f32 %v956, %v1105
        %v1122 = vmul.f32 %v958, %v1106
        %v1123 = vmul.f32 %v960, %v1107
        %v1124 = vmul.f32 %v962, %v1108
        %v1125 = vmul.f32 %v964, %v1109
        %v1126 = vmul.f32 %v966, %v1110
        %v1127 = vunpack.c.l.bf16 %v1073
        %v1128 = vunpack.c.h.bf16 %v1073
        %v1129 = vunpack.c.l.bf16 %v1076
        %v1130 = vunpack.c.h.bf16 %v1076
        %v1131 = vunpack.c.l.bf16 %v1079
        %v1132 = vunpack.c.h.bf16 %v1079
        %v1133 = vunpack.c.l.bf16 %v1082
        %v1134 = vunpack.c.h.bf16 %v1082
        %v1135 = vunpack.c.l.bf16 %v1085
        %v1136 = vunpack.c.h.bf16 %v1085
        %v1137 = vunpack.c.l.bf16 %v1088
        %v1138 = vunpack.c.h.bf16 %v1088
        %v1139 = vunpack.c.l.bf16 %v1091
        %v1140 = vunpack.c.h.bf16 %v1091
        %v1141 = vunpack.c.l.bf16 %v1094
        %v1142 = vunpack.c.h.bf16 %v1094
        %1143 = vadd.xlane.f32.xlu0 %v1127
        %v1144 = vpop.xlane.xlu0 %1143
        %1145 = vadd.xlane.f32.xlu0 %v1128
        %v1146 = vpop.xlane.xlu0 %1145
        %1147 = vadd.xlane.f32.xlu0 %v1129
        %v1148 = vpop.xlane.xlu0 %1147
        %1149 = vadd.xlane.f32.xlu0 %v1130
        %v1150 = vpop.xlane.xlu0 %1149
        %1151 = vadd.xlane.f32.xlu0 %v1131
        %v1152 = vpop.xlane.xlu0 %1151
        %1153 = vadd.xlane.f32.xlu0 %v1132
        %v1154 = vpop.xlane.xlu0 %1153
        %1155 = vadd.xlane.f32.xlu0 %v1133
        %v1156 = vpop.xlane.xlu0 %1155
        %1157 = vadd.xlane.f32.xlu0 %v1134
        %v1158 = vpop.xlane.xlu0 %1157
        %1159 = vadd.xlane.f32.xlu0 %v1135
        %v1160 = vpop.xlane.xlu0 %1159
        %1161 = vadd.xlane.f32.xlu0 %v1136
        %v1162 = vpop.xlane.xlu0 %1161
        %1163 = vadd.xlane.f32.xlu0 %v1137
        %v1164 = vpop.xlane.xlu0 %1163
        %1165 = vadd.xlane.f32.xlu0 %v1138
        %v1166 = vpop.xlane.xlu0 %1165
        %1167 = vadd.xlane.f32.xlu0 %v1139
        %v1168 = vpop.xlane.xlu0 %1167
        %1169 = vadd.xlane.f32.xlu0 %v1140
        %v1170 = vpop.xlane.xlu0 %1169
        %1171 = vadd.xlane.f32.xlu0 %v1141
        %v1172 = vpop.xlane.xlu0 %1171
        %1173 = vadd.xlane.f32.xlu0 %v1142
        %v1174 = vpop.xlane.xlu0 %1173
        %v1175 = vadd.f32 %v1111, %v1144
        %v1176 = vadd.f32 %v1112, %v1146
        %v1177 = vadd.f32 %v1113, %v1148
        %v1178 = vadd.f32 %v1114, %v1150
        %v1179 = vadd.f32 %v1115, %v1152
        %v1180 = vadd.f32 %v1116, %v1154
        %v1181 = vadd.f32 %v1117, %v1156
        %v1182 = vadd.f32 %v1118, %v1158
        %v1183 = vadd.f32 %v1119, %v1160
        %v1184 = vadd.f32 %v1120, %v1162
        %v1185 = vadd.f32 %v1121, %v1164
        %v1186 = vadd.f32 %v1122, %v1166
        %v1187 = vadd.f32 %v1123, %v1168
        %v1188 = vadd.f32 %v1124, %v1170
        %v1189 = vadd.f32 %v1125, %v1172
        %v1190 = vadd.f32 %v1126, %v1174
        %vm1191 = vcmask 7168
        %1192 = vst.msk [vmem:[#allocation3] sm:$0xff] %vm1191, %v1175
        %1193 = vst.msk [vmem:[#allocation3 + $0x8] sm:$0xff] %vm1191, %v1176
        %1194 = vst.msk [vmem:[#allocation3 + $0x10] sm:$0xff] %vm1191, %v1177
        %1195 = vst.msk [vmem:[#allocation3 + $0x18] sm:$0xff] %vm1191, %v1178
        %1196 = vst.msk [vmem:[#allocation3 + $0x20] sm:$0xff] %vm1191, %v1179
        %1197 = vst.msk [vmem:[#allocation3 + $0x28] sm:$0xff] %vm1191, %v1180
        %1198 = vst.msk [vmem:[#allocation3 + $0x30] sm:$0xff] %vm1191, %v1181
        %1199 = vst.msk [vmem:[#allocation3 + $0x38] sm:$0xff] %vm1191, %v1182
        %1200 = vst.msk [vmem:[#allocation3 + $0x40] sm:$0xff] %vm1191, %v1183
        %1201 = vst.msk [vmem:[#allocation3 + $0x48] sm:$0xff] %vm1191, %v1184
        %1202 = vst.msk [vmem:[#allocation3 + $0x50] sm:$0xff] %vm1191, %v1185
        %1203 = vst.msk [vmem:[#allocation3 + $0x58] sm:$0xff] %vm1191, %v1186
        %1204 = vst.msk [vmem:[#allocation3 + $0x60] sm:$0xff] %vm1191, %v1187
        %1205 = vst.msk [vmem:[#allocation3 + $0x68] sm:$0xff] %vm1191, %v1188
        %1206 = vst.msk [vmem:[#allocation3 + $0x70] sm:$0xff] %vm1191, %v1189
        %1207 = vst.msk [vmem:[#allocation3 + $0x78] sm:$0xff] %vm1191, %v1190
        %v1208 = vld [vmem:[#allocation4] sm:$0xff]
        %v1209 = vld [vmem:[#allocation4 + $0x8] sm:$0xff]
        %v1210 = vld [vmem:[#allocation4 + $0x10] sm:$0xff]
        %v1211 = vld [vmem:[#allocation4 + $0x18] sm:$0xff]
        %v1212 = vld [vmem:[#allocation4 + $0x20] sm:$0xff]
        %v1213 = vld [vmem:[#allocation4 + $0x28] sm:$0xff]
        %v1214 = vld [vmem:[#allocation4 + $0x30] sm:$0xff]
        %v1215 = vld [vmem:[#allocation4 + $0x38] sm:$0xff]
        %v1216 = vld [vmem:[#allocation4 + $0x40] sm:$0xff]
        %v1217 = vld [vmem:[#allocation4 + $0x48] sm:$0xff]
        %v1218 = vld [vmem:[#allocation4 + $0x50] sm:$0xff]
        %v1219 = vld [vmem:[#allocation4 + $0x58] sm:$0xff]
        %v1220 = vld [vmem:[#allocation4 + $0x60] sm:$0xff]
        %v1221 = vld [vmem:[#allocation4 + $0x68] sm:$0xff]
        %v1222 = vld [vmem:[#allocation4 + $0x70] sm:$0xff]
        %v1223 = vld [vmem:[#allocation4 + $0x78] sm:$0xff]
        %1225 = vset.pattern.permute.xlu0 0
        %1226 = vperm.xlu0 %1225, %v936
        %v1227 = vpop.permute.xlu0 %1226
        %1230 = vset.pattern.permute.xlu0 0
        %1231 = vperm.xlu0 %1230, %v938
        %v1232 = vpop.permute.xlu0 %1231
        %1235 = vset.pattern.permute.xlu0 0
        %1236 = vperm.xlu0 %1235, %v940
        %v1237 = vpop.permute.xlu0 %1236
        %1240 = vset.pattern.permute.xlu0 0
        %1241 = vperm.xlu0 %1240, %v942
        %v1242 = vpop.permute.xlu0 %1241
        %1245 = vset.pattern.permute.xlu0 0
        %1246 = vperm.xlu0 %1245, %v944
        %v1247 = vpop.permute.xlu0 %1246
        %1250 = vset.pattern.permute.xlu0 0
        %1251 = vperm.xlu0 %1250, %v946
        %v1252 = vpop.permute.xlu0 %1251
        %1255 = vset.pattern.permute.xlu0 0
        %1256 = vperm.xlu0 %1255, %v948
        %v1257 = vpop.permute.xlu0 %1256
        %1260 = vset.pattern.permute.xlu0 0
        %1261 = vperm.xlu0 %1260, %v950
        %v1262 = vpop.permute.xlu0 %1261
        %1265 = vset.pattern.permute.xlu0 0
        %1266 = vperm.xlu0 %1265, %v952
        %v1267 = vpop.permute.xlu0 %1266
        %1270 = vset.pattern.permute.xlu0 0
        %1271 = vperm.xlu0 %1270, %v954
        %v1272 = vpop.permute.xlu0 %1271
        %1275 = vset.pattern.permute.xlu0 0
        %1276 = vperm.xlu0 %1275, %v956
        %v1277 = vpop.permute.xlu0 %1276
        %1280 = vset.pattern.permute.xlu0 0
        %1281 = vperm.xlu0 %1280, %v958
        %v1282 = vpop.permute.xlu0 %1281
        %1285 = vset.pattern.permute.xlu0 0
        %1286 = vperm.xlu0 %1285, %v960
        %v1287 = vpop.permute.xlu0 %1286
        %1290 = vset.pattern.permute.xlu0 0
        %1291 = vperm.xlu0 %1290, %v962
        %v1292 = vpop.permute.xlu0 %1291
        %1295 = vset.pattern.permute.xlu0 0
        %1296 = vperm.xlu0 %1295, %v964
        %v1297 = vpop.permute.xlu0 %1296
        %1300 = vset.pattern.permute.xlu0 0
        %1301 = vperm.xlu0 %1300, %v966
        %v1302 = vpop.permute.xlu0 %1301
        %v1304 = vmul.f32 %v1227, %v1208
        %v1305 = vmul.f32 %v1232, %v1209
        %v1306 = vmul.f32 %v1237, %v1210
        %v1307 = vmul.f32 %v1242, %v1211
        %v1308 = vmul.f32 %v1247, %v1212
        %v1309 = vmul.f32 %v1252, %v1213
        %v1310 = vmul.f32 %v1257, %v1214
        %v1311 = vmul.f32 %v1262, %v1215
        %v1312 = vmul.f32 %v1267, %v1216
        %v1313 = vmul.f32 %v1272, %v1217
        %v1314 = vmul.f32 %v1277, %v1218
        %v1315 = vmul.f32 %v1282, %v1219
        %v1316 = vmul.f32 %v1287, %v1220
        %v1317 = vmul.f32 %v1292, %v1221
        %v1318 = vmul.f32 %v1297, %v1222
        %v1319 = vmul.f32 %v1302, %v1223
        %v1320 = vld [vmem:[%s463] sm:$0xf]
        %v1321 = vld [vmem:[%s463 + $0x4] sm:$0xf]
        %v1322 = vld [vmem:[%s463 + $0x8] sm:$0xf]
        %v1323 = vld [vmem:[%s463 + $0xc] sm:$0xf]
        %v1324 = vld [vmem:[%s463 + $0x10] sm:$0xf]
        %v1325 = vld [vmem:[%s463 + $0x14] sm:$0xf]
        %v1326 = vld [vmem:[%s463 + $0x18] sm:$0xf]
        %v1327 = vld [vmem:[%s463 + $0x1c] sm:$0xf]
        %v1328 = vld [vmem:[%s463 + $0x20] sm:$0xf]
        %v1329 = vld [vmem:[%s463 + $0x24] sm:$0xf]
        %v1330 = vld [vmem:[%s463 + $0x28] sm:$0xf]
        %v1331 = vld [vmem:[%s463 + $0x2c] sm:$0xf]
        %v1332 = vld [vmem:[%s463 + $0x30] sm:$0xf]
        %v1333 = vld [vmem:[%s463 + $0x34] sm:$0xf]
        %v1334 = vld [vmem:[%s463 + $0x38] sm:$0xf]
        %v1335 = vld [vmem:[%s463 + $0x3c] sm:$0xf]
        %v1352 = vunpack.c.l.b16 %v1320
        %v1353 = vunpack.c.l.b16 %v1321
        %v1354 = vunpack.c.l.b16 %v1322
        %v1355 = vunpack.c.l.b16 %v1323
        %v1356 = vunpack.c.l.b16 %v1324
        %v1357 = vunpack.c.l.b16 %v1325
        %v1358 = vunpack.c.l.b16 %v1326
        %v1359 = vunpack.c.l.b16 %v1327
        %v1360 = vunpack.c.l.b16 %v1328
        %v1361 = vunpack.c.l.b16 %v1329
        %v1362 = vunpack.c.l.b16 %v1330
        %v1363 = vunpack.c.l.b16 %v1331
        %v1364 = vunpack.c.l.b16 %v1332
        %v1365 = vunpack.c.l.b16 %v1333
        %v1366 = vunpack.c.l.b16 %v1334
        %v1367 = vunpack.c.l.b16 %v1335
        %v1368 = vpack.c.b16 %v1353, %v1352
        %v1369 = vpack.c.b16 %v1355, %v1354
        %v1370 = vpack.c.b16 %v1357, %v1356
        %v1371 = vpack.c.b16 %v1359, %v1358
        %v1372 = vpack.c.b16 %v1361, %v1360
        %v1373 = vpack.c.b16 %v1363, %v1362
        %v1374 = vpack.c.b16 %v1365, %v1364
        %v1375 = vpack.c.b16 %v1367, %v1366
        %1384 = vmatprep.subr.bf16.mxu0 0
        %1385 = vmatpush1.bf16.msra.mxu0 %v1375
        %1386 = vmatprep.subr.bf16.mxu0 0
        %1387 = vmatpush1.bf16.msra.mxu0 %v1374
        %1388 = vmatprep.subr.bf16.mxu0 0
        %1389 = vmatpush1.bf16.msra.mxu0 %v1373
        %1390 = vmatprep.subr.bf16.mxu0 0
        %1391 = vmatpush1.bf16.msra.mxu0 %v1372
        %1392 = vmatprep.subr.bf16.mxu0 0
        %1393 = vmatpush1.bf16.msra.mxu0 %v1371
        %1394 = vmatprep.subr.bf16.mxu0 0
        %1395 = vmatpush1.bf16.msra.mxu0 %v1370
        %1396 = vmatprep.subr.bf16.mxu0 0
        %1397 = vmatpush1.bf16.msra.mxu0 %v1369
        %1398 = vmatprep.subr.bf16.mxu0 0
        %1399 = vmatpush1.bf16.msra.mxu0 %v1368
        %1400 = vmatprep.subr.bf16.mxu0 0
        %1401 = vmatpush2.bf16.msra.mxu0 0
        %1402 = vmatprep.subr.bf16.mxu0 0
        %1403 = vmatpush2.bf16.msra.mxu0 0
        %1404 = vmatprep.subr.bf16.mxu0 0
        %1405 = vmatpush2.bf16.msra.mxu0 0
        %1406 = vmatprep.subr.bf16.mxu0 0
        %1407 = vmatpush2.bf16.msra.mxu0 0
        %1408 = vmatprep.subr.bf16.mxu0 0
        %1409 = vmatpush2.bf16.msra.mxu0 0
        %1410 = vmatprep.subr.bf16.mxu0 0
        %1411 = vmatpush2.bf16.msra.mxu0 0
        %1412 = vmatprep.subr.bf16.mxu0 0
        %1413 = vmatpush2.bf16.msra.mxu0 0
        %1414 = vmatprep.subr.bf16.mxu0 0
        %1415 = vmatpush2.bf16.msra.mxu0 0
        %1416 = vmatprep.mubr.bf16.mxu0 0
        %1417 = vmatmul.mubr.bf16.gmra.mxu0 %v1073
        %v1418 = vpop.f32.mrf.mxu0
        %v1419 = vadd.f32 0.0, %v1418
        %v1420 = vpop.f32.mrf.mxu0
        %v1421 = vpop.f32.mrf.mxu0
        %v1422 = vadd.f32 0.0, %v1421
        %v1423 = vpop.f32.mrf.mxu0
        %1424 = vmatprep.mubr.bf16.mxu0 0
        %1425 = vmatmul.mubr.bf16.gmra.mxu0 %v1076
        %v1426 = vpop.f32.mrf.mxu0
        %v1427 = vadd.f32 0.0, %v1426
        %v1428 = vpop.f32.mrf.mxu0
        %v1429 = vpop.f32.mrf.mxu0
        %v1430 = vadd.f32 0.0, %v1429
        %v1431 = vpop.f32.mrf.mxu0
        %1432 = vmatprep.mubr.bf16.mxu0 0
        %1433 = vmatmul.mubr.bf16.gmra.mxu0 %v1079
        %v1434 = vpop.f32.mrf.mxu0
        %v1435 = vadd.f32 0.0, %v1434
        %v1436 = vpop.f32.mrf.mxu0
        %v1437 = vpop.f32.mrf.mxu0
        %v1438 = vadd.f32 0.0, %v1437
        %v1439 = vpop.f32.mrf.mxu0
        %1440 = vmatprep.mubr.bf16.mxu0 0
        %1441 = vmatmul.mubr.bf16.gmra.mxu0 %v1082
        %v1442 = vpop.f32.mrf.mxu0
        %v1443 = vadd.f32 0.0, %v1442
        %v1444 = vpop.f32.mrf.mxu0
        %v1445 = vpop.f32.mrf.mxu0
        %v1446 = vadd.f32 0.0, %v1445
        %v1447 = vpop.f32.mrf.mxu0
        %1448 = vmatprep.mubr.bf16.mxu0 0
        %1449 = vmatmul.mubr.bf16.gmra.mxu0 %v1085
        %v1450 = vpop.f32.mrf.mxu0
        %v1451 = vadd.f32 0.0, %v1450
        %v1452 = vpop.f32.mrf.mxu0
        %v1453 = vpop.f32.mrf.mxu0
        %v1454 = vadd.f32 0.0, %v1453
        %v1455 = vpop.f32.mrf.mxu0
        %1456 = vmatprep.mubr.bf16.mxu0 0
        %1457 = vmatmul.mubr.bf16.gmra.mxu0 %v1088
        %v1458 = vpop.f32.mrf.mxu0
        %v1459 = vadd.f32 0.0, %v1458
        %v1460 = vpop.f32.mrf.mxu0
        %v1461 = vpop.f32.mrf.mxu0
        %v1462 = vadd.f32 0.0, %v1461
        %v1463 = vpop.f32.mrf.mxu0
        %1464 = vmatprep.mubr.bf16.mxu0 0
        %1465 = vmatmul.mubr.bf16.gmra.mxu0 %v1091
        %v1466 = vpop.f32.mrf.mxu0
        %v1467 = vadd.f32 0.0, %v1466
        %v1468 = vpop.f32.mrf.mxu0
        %v1469 = vpop.f32.mrf.mxu0
        %v1470 = vadd.f32 0.0, %v1469
        %v1471 = vpop.f32.mrf.mxu0
        %1472 = vmatprep.mubr.bf16.mxu0 0
        %1473 = vmatmul.mubr.bf16.gmra.mxu0 %v1094
        %v1474 = vpop.f32.mrf.mxu0
        %v1475 = vadd.f32 0.0, %v1474
        %v1476 = vpop.f32.mrf.mxu0
        %v1477 = vpop.f32.mrf.mxu0
        %v1478 = vadd.f32 0.0, %v1477
        %v1479 = vpop.f32.mrf.mxu0
        %1480 = vdwg.mxu0
        %v1481 = vadd.f32 %v1304, %v1419
        %v1482 = vadd.f32 %v1305, %v1422
        %v1483 = vadd.f32 %v1306, %v1427
        %v1484 = vadd.f32 %v1307, %v1430
        %v1485 = vadd.f32 %v1308, %v1435
        %v1486 = vadd.f32 %v1309, %v1438
        %v1487 = vadd.f32 %v1310, %v1443
        %v1488 = vadd.f32 %v1311, %v1446
        %v1489 = vadd.f32 %v1312, %v1451
        %v1490 = vadd.f32 %v1313, %v1454
        %v1491 = vadd.f32 %v1314, %v1459
        %v1492 = vadd.f32 %v1315, %v1462
        %v1493 = vadd.f32 %v1316, %v1467
        %v1494 = vadd.f32 %v1317, %v1470
        %v1495 = vadd.f32 %v1318, %v1475
        %v1496 = vadd.f32 %v1319, %v1478
        %vm1497 = vcmask 261120
        %1498 = vst.msk [vmem:[#allocation4] sm:$0xff] %vm1497, %v1481
        %1499 = vst.msk [vmem:[#allocation4 + $0x8] sm:$0xff] %vm1497, %v1482
        %1500 = vst.msk [vmem:[#allocation4 + $0x10] sm:$0xff] %vm1497, %v1483
        %1501 = vst.msk [vmem:[#allocation4 + $0x18] sm:$0xff] %vm1497, %v1484
        %1502 = vst.msk [vmem:[#allocation4 + $0x20] sm:$0xff] %vm1497, %v1485
        %1503 = vst.msk [vmem:[#allocation4 + $0x28] sm:$0xff] %vm1497, %v1486
        %1504 = vst.msk [vmem:[#allocation4 + $0x30] sm:$0xff] %vm1497, %v1487
        %1505 = vst.msk [vmem:[#allocation4 + $0x38] sm:$0xff] %vm1497, %v1488
        %1506 = vst.msk [vmem:[#allocation4 + $0x40] sm:$0xff] %vm1497, %v1489
        %1507 = vst.msk [vmem:[#allocation4 + $0x48] sm:$0xff] %vm1497, %v1490
        %1508 = vst.msk [vmem:[#allocation4 + $0x50] sm:$0xff] %vm1497, %v1491
        %1509 = vst.msk [vmem:[#allocation4 + $0x58] sm:$0xff] %vm1497, %v1492
        %1510 = vst.msk [vmem:[#allocation4 + $0x60] sm:$0xff] %vm1497, %v1493
        %1511 = vst.msk [vmem:[#allocation4 + $0x68] sm:$0xff] %vm1497, %v1494
        %1512 = vst.msk [vmem:[#allocation4 + $0x70] sm:$0xff] %vm1497, %v1495
        %1513 = vst.msk [vmem:[#allocation4 + $0x78] sm:$0xff] %vm1497, %v1496
        %1514 = vst.msk [vmem:[#allocation2] sm:$0xff] %vm1191, %v903
        %1515 = vst.msk [vmem:[#allocation2 + $0x8] sm:$0xff] %vm1191, %v904
        %1516 = vst.msk [vmem:[#allocation2 + $0x10] sm:$0xff] %vm1191, %v905
        %1517 = vst.msk [vmem:[#allocation2 + $0x18] sm:$0xff] %vm1191, %v906
        %1518 = vst.msk [vmem:[#allocation2 + $0x20] sm:$0xff] %vm1191, %v907
        %1519 = vst.msk [vmem:[#allocation2 + $0x28] sm:$0xff] %vm1191, %v908
        %1520 = vst.msk [vmem:[#allocation2 + $0x30] sm:$0xff] %vm1191, %v909
        %1521 = vst.msk [vmem:[#allocation2 + $0x38] sm:$0xff] %vm1191, %v910
        %1522 = vst.msk [vmem:[#allocation2 + $0x40] sm:$0xff] %vm1191, %v911
        %1523 = vst.msk [vmem:[#allocation2 + $0x48] sm:$0xff] %vm1191, %v912
        %1524 = vst.msk [vmem:[#allocation2 + $0x50] sm:$0xff] %vm1191, %v913
        %1525 = vst.msk [vmem:[#allocation2 + $0x58] sm:$0xff] %vm1191, %v914
        %1526 = vst.msk [vmem:[#allocation2 + $0x60] sm:$0xff] %vm1191, %v915
        %1527 = vst.msk [vmem:[#allocation2 + $0x68] sm:$0xff] %vm1191, %v916
        %1528 = vst.msk [vmem:[#allocation2 + $0x70] sm:$0xff] %vm1191, %v917
        %1529 = vst.msk [vmem:[#allocation2 + $0x78] sm:$0xff] %vm1191, %v918
        %1530 = vset.pattern.permute.xlu0 1
        %1531 = vperm.xlu0 %1530, %v690
        %v1532 = vpop.permute.xlu0 %1531
        %1534 = vset.pattern.permute.xlu0 1
        %1535 = vperm.xlu0 %1534, %v691
        %v1536 = vpop.permute.xlu0 %1535
        %1538 = vset.pattern.permute.xlu0 1
        %1539 = vperm.xlu0 %1538, %v692
        %v1540 = vpop.permute.xlu0 %1539
        %1542 = vset.pattern.permute.xlu0 1
        %1543 = vperm.xlu0 %1542, %v693
        %v1544 = vpop.permute.xlu0 %1543
        %1546 = vset.pattern.permute.xlu0 1
        %1547 = vperm.xlu0 %1546, %v694
        %v1548 = vpop.permute.xlu0 %1547
        %1550 = vset.pattern.permute.xlu0 1
        %1551 = vperm.xlu0 %1550, %v695
        %v1552 = vpop.permute.xlu0 %1551
        %1554 = vset.pattern.permute.xlu0 1
        %1555 = vperm.xlu0 %1554, %v696
        %v1556 = vpop.permute.xlu0 %1555
        %1558 = vset.pattern.permute.xlu0 1
        %1559 = vperm.xlu0 %1558, %v697
        %v1560 = vpop.permute.xlu0 %1559
        %1562 = vset.pattern.permute.xlu0 1
        %1563 = vperm.xlu0 %1562, %v698
        %v1564 = vpop.permute.xlu0 %1563
        %1566 = vset.pattern.permute.xlu0 1
        %1567 = vperm.xlu0 %1566, %v699
        %v1568 = vpop.permute.xlu0 %1567
        %1570 = vset.pattern.permute.xlu0 1
        %1571 = vperm.xlu0 %1570, %v700
        %v1572 = vpop.permute.xlu0 %1571
        %1574 = vset.pattern.permute.xlu0 1
        %1575 = vperm.xlu0 %1574, %v701
        %v1576 = vpop.permute.xlu0 %1575
        %1578 = vset.pattern.permute.xlu0 1
        %1579 = vperm.xlu0 %1578, %v702
        %v1580 = vpop.permute.xlu0 %1579
        %1582 = vset.pattern.permute.xlu0 1
        %1583 = vperm.xlu0 %1582, %v703
        %v1584 = vpop.permute.xlu0 %1583
        %1586 = vset.pattern.permute.xlu0 1
        %1587 = vperm.xlu0 %1586, %v704
        %v1588 = vpop.permute.xlu0 %1587
        %1590 = vset.pattern.permute.xlu0 1
        %1591 = vperm.xlu0 %1590, %v705
        %v1592 = vpop.permute.xlu0 %1591
        %v1594 = vlaneseq
        %v1595 = vshrl.u32 %v1594, 7
        %v1596 = vsub.s32 1, %v1595
        %v1597 = vrot.slane %v706, %v1596
        %v1598 = vadd.f32 %v1532, %v1597
        %v1599 = vadd.f32 %v1536, %v1597
        %v1600 = vadd.f32 %v1540, %v1597
        %v1601 = vadd.f32 %v1544, %v1597
        %v1602 = vadd.f32 %v1548, %v1597
        %v1603 = vadd.f32 %v1552, %v1597
        %v1604 = vadd.f32 %v1556, %v1597
        %v1605 = vadd.f32 %v1560, %v1597
        %v1606 = vadd.f32 %v1564, %v1597
        %v1607 = vadd.f32 %v1568, %v1597
        %v1608 = vadd.f32 %v1572, %v1597
        %v1609 = vadd.f32 %v1576, %v1597
        %v1610 = vadd.f32 %v1580, %v1597
        %v1611 = vadd.f32 %v1584, %v1597
        %v1612 = vadd.f32 %v1588, %v1597
        %v1613 = vadd.f32 %v1592, %v1597
        %v1614 = vmul.f32 %v1598, 0.2
        %v1615 = vmul.f32 %v1599, 0.2
        %v1616 = vmul.f32 %v1600, 0.2
        %v1617 = vmul.f32 %v1601, 0.2
        %v1618 = vmul.f32 %v1602, 0.2
        %v1619 = vmul.f32 %v1603, 0.2
        %v1620 = vmul.f32 %v1604, 0.2
        %v1621 = vmul.f32 %v1605, 0.2
        %v1622 = vmul.f32 %v1606, 0.2
        %v1623 = vmul.f32 %v1607, 0.2
        %v1624 = vmul.f32 %v1608, 0.2
        %v1625 = vmul.f32 %v1609, 0.2
        %v1626 = vmul.f32 %v1610, 0.2
        %v1627 = vmul.f32 %v1611, 0.2
        %v1628 = vmul.f32 %v1612, 0.2
        %v1629 = vmul.f32 %v1613, 0.2
        %v1630 = vmax.f32 %v1598, %v1614
        %v1631 = vmax.f32 %v1599, %v1615
        %v1632 = vmax.f32 %v1600, %v1616
        %v1633 = vmax.f32 %v1601, %v1617
        %v1634 = vmax.f32 %v1602, %v1618
        %v1635 = vmax.f32 %v1603, %v1619
        %v1636 = vmax.f32 %v1604, %v1620
        %v1637 = vmax.f32 %v1605, %v1621
        %v1638 = vmax.f32 %v1606, %v1622
        %v1639 = vmax.f32 %v1607, %v1623
        %v1640 = vmax.f32 %v1608, %v1624
        %v1641 = vmax.f32 %v1609, %v1625
        %v1642 = vmax.f32 %v1610, %v1626
        %v1643 = vmax.f32 %v1611, %v1627
        %v1644 = vmax.f32 %v1612, %v1628
        %v1645 = vmax.f32 %v1613, %v1629
        %v1646 = vadd.f32 %v1630, %v674
        %v1647 = vadd.f32 %v1631, %v675
        %v1648 = vadd.f32 %v1632, %v676
        %v1649 = vadd.f32 %v1633, %v677
        %v1650 = vadd.f32 %v1634, %v678
        %v1651 = vadd.f32 %v1635, %v679
        %v1652 = vadd.f32 %v1636, %v680
        %v1653 = vadd.f32 %v1637, %v681
        %v1654 = vadd.f32 %v1638, %v682
        %v1655 = vadd.f32 %v1639, %v683
        %v1656 = vadd.f32 %v1640, %v684
        %v1657 = vadd.f32 %v1641, %v685
        %v1658 = vadd.f32 %v1642, %v686
        %v1659 = vadd.f32 %v1643, %v687
        %v1660 = vadd.f32 %v1644, %v688
        %v1661 = vadd.f32 %v1645, %v689
        %s1662 = scalar_lea.vmem [#allocation2], 128
        %v1663 = vld [vmem:[%s1662] sm:$0xff]
        %v1664 = vld [vmem:[%s1662 + $0x8] sm:$0xff]
        %v1665 = vld [vmem:[%s1662 + $0x10] sm:$0xff]
        %v1666 = vld [vmem:[%s1662 + $0x18] sm:$0xff]
        %v1667 = vld [vmem:[%s1662 + $0x20] sm:$0xff]
        %v1668 = vld [vmem:[%s1662 + $0x28] sm:$0xff]
        %v1669 = vld [vmem:[%s1662 + $0x30] sm:$0xff]
        %v1670 = vld [vmem:[%s1662 + $0x38] sm:$0xff]
        %v1671 = vld [vmem:[%s1662 + $0x40] sm:$0xff]
        %v1672 = vld [vmem:[%s1662 + $0x48] sm:$0xff]
        %v1673 = vld [vmem:[%s1662 + $0x50] sm:$0xff]
        %v1674 = vld [vmem:[%s1662 + $0x58] sm:$0xff]
        %v1675 = vld [vmem:[%s1662 + $0x60] sm:$0xff]
        %v1676 = vld [vmem:[%s1662 + $0x68] sm:$0xff]
        %v1677 = vld [vmem:[%s1662 + $0x70] sm:$0xff]
        %v1678 = vld [vmem:[%s1662 + $0x78] sm:$0xff]
        %1679 = vmax.xlane.f32.xlu0 %v1646
        %v1680 = vpop.xlane.xlu0 %1679
        %1681 = vmax.xlane.f32.xlu0 %v1647
        %v1682 = vpop.xlane.xlu0 %1681
        %1683 = vmax.xlane.f32.xlu0 %v1648
        %v1684 = vpop.xlane.xlu0 %1683
        %1685 = vmax.xlane.f32.xlu0 %v1649
        %v1686 = vpop.xlane.xlu0 %1685
        %1687 = vmax.xlane.f32.xlu0 %v1650
        %v1688 = vpop.xlane.xlu0 %1687
        %1689 = vmax.xlane.f32.xlu0 %v1651
        %v1690 = vpop.xlane.xlu0 %1689
        %1691 = vmax.xlane.f32.xlu0 %v1652
        %v1692 = vpop.xlane.xlu0 %1691
        %1693 = vmax.xlane.f32.xlu0 %v1653
        %v1694 = vpop.xlane.xlu0 %1693
        %1695 = vmax.xlane.f32.xlu0 %v1654
        %v1696 = vpop.xlane.xlu0 %1695
        %1697 = vmax.xlane.f32.xlu0 %v1655
        %v1698 = vpop.xlane.xlu0 %1697
        %1699 = vmax.xlane.f32.xlu0 %v1656
        %v1700 = vpop.xlane.xlu0 %1699
        %1701 = vmax.xlane.f32.xlu0 %v1657
        %v1702 = vpop.xlane.xlu0 %1701
        %1703 = vmax.xlane.f32.xlu0 %v1658
        %v1704 = vpop.xlane.xlu0 %1703
        %1705 = vmax.xlane.f32.xlu0 %v1659
        %v1706 = vpop.xlane.xlu0 %1705
        %1707 = vmax.xlane.f32.xlu0 %v1660
        %v1708 = vpop.xlane.xlu0 %1707
        %1709 = vmax.xlane.f32.xlu0 %v1661
        %v1710 = vpop.xlane.xlu0 %1709
        %v1711 = vmax.f32 %v1663, %v1680
        %v1712 = vmax.f32 %v1664, %v1682
        %v1713 = vmax.f32 %v1665, %v1684
        %v1714 = vmax.f32 %v1666, %v1686
        %v1715 = vmax.f32 %v1667, %v1688
        %v1716 = vmax.f32 %v1668, %v1690
        %v1717 = vmax.f32 %v1669, %v1692
        %v1718 = vmax.f32 %v1670, %v1694
        %v1719 = vmax.f32 %v1671, %v1696
        %v1720 = vmax.f32 %v1672, %v1698
        %v1721 = vmax.f32 %v1673, %v1700
        %v1722 = vmax.f32 %v1674, %v1702
        %v1723 = vmax.f32 %v1675, %v1704
        %v1724 = vmax.f32 %v1676, %v1706
        %v1725 = vmax.f32 %v1677, %v1708
        %v1726 = vmax.f32 %v1678, %v1710
        %v1727 = vsub.f32 %v1663, %v1711
        %v1728 = vsub.f32 %v1664, %v1712
        %v1729 = vsub.f32 %v1665, %v1713
        %v1730 = vsub.f32 %v1666, %v1714
        %v1731 = vsub.f32 %v1667, %v1715
        %v1732 = vsub.f32 %v1668, %v1716
        %v1733 = vsub.f32 %v1669, %v1717
        %v1734 = vsub.f32 %v1670, %v1718
        %v1735 = vsub.f32 %v1671, %v1719
        %v1736 = vsub.f32 %v1672, %v1720
        %v1737 = vsub.f32 %v1673, %v1721
        %v1738 = vsub.f32 %v1674, %v1722
        %v1739 = vsub.f32 %v1675, %v1723
        %v1740 = vsub.f32 %v1676, %v1724
        %v1741 = vsub.f32 %v1677, %v1725
        %v1742 = vsub.f32 %v1678, %v1726
        %v1743 = vmul.f32 %v1727, 1.442695
        %v1744 = vpow.pop %v1743
        %v1745 = vmul.f32 %v1728, 1.442695
        %v1746 = vpow.pop %v1745
        %v1747 = vmul.f32 %v1729, 1.442695
        %v1748 = vpow.pop %v1747
        %v1749 = vmul.f32 %v1730, 1.442695
        %v1750 = vpow.pop %v1749
        %v1751 = vmul.f32 %v1731, 1.442695
        %v1752 = vpow.pop %v1751
        %v1753 = vmul.f32 %v1732, 1.442695
        %v1754 = vpow.pop %v1753
        %v1755 = vmul.f32 %v1733, 1.442695
        %v1756 = vpow.pop %v1755
        %v1757 = vmul.f32 %v1734, 1.442695
        %v1758 = vpow.pop %v1757
        %v1759 = vmul.f32 %v1735, 1.442695
        %v1760 = vpow.pop %v1759
        %v1761 = vmul.f32 %v1736, 1.442695
        %v1762 = vpow.pop %v1761
        %v1763 = vmul.f32 %v1737, 1.442695
        %v1764 = vpow.pop %v1763
        %v1765 = vmul.f32 %v1738, 1.442695
        %v1766 = vpow.pop %v1765
        %v1767 = vmul.f32 %v1739, 1.442695
        %v1768 = vpow.pop %v1767
        %v1769 = vmul.f32 %v1740, 1.442695
        %v1770 = vpow.pop %v1769
        %v1771 = vmul.f32 %v1741, 1.442695
        %v1772 = vpow.pop %v1771
        %v1773 = vmul.f32 %v1742, 1.442695
        %v1774 = vpow.pop %v1773
        %1776 = vset.pattern.permute.xlu0 0
        %1777 = vperm.xlu0 %1776, %v1711
        %v1778 = vpop.permute.xlu0 %1777
        %1781 = vset.pattern.permute.xlu0 0
        %1782 = vperm.xlu0 %1781, %v1712
        %v1783 = vpop.permute.xlu0 %1782
        %1786 = vset.pattern.permute.xlu0 0
        %1787 = vperm.xlu0 %1786, %v1713
        %v1788 = vpop.permute.xlu0 %1787
        %1791 = vset.pattern.permute.xlu0 0
        %1792 = vperm.xlu0 %1791, %v1714
        %v1793 = vpop.permute.xlu0 %1792
        %1796 = vset.pattern.permute.xlu0 0
        %1797 = vperm.xlu0 %1796, %v1715
        %v1798 = vpop.permute.xlu0 %1797
        %1801 = vset.pattern.permute.xlu0 0
        %1802 = vperm.xlu0 %1801, %v1716
        %v1803 = vpop.permute.xlu0 %1802
        %1806 = vset.pattern.permute.xlu0 0
        %1807 = vperm.xlu0 %1806, %v1717
        %v1808 = vpop.permute.xlu0 %1807
        %1811 = vset.pattern.permute.xlu0 0
        %1812 = vperm.xlu0 %1811, %v1718
        %v1813 = vpop.permute.xlu0 %1812
        %1816 = vset.pattern.permute.xlu0 0
        %1817 = vperm.xlu0 %1816, %v1719
        %v1818 = vpop.permute.xlu0 %1817
        %1821 = vset.pattern.permute.xlu0 0
        %1822 = vperm.xlu0 %1821, %v1720
        %v1823 = vpop.permute.xlu0 %1822
        %1826 = vset.pattern.permute.xlu0 0
        %1827 = vperm.xlu0 %1826, %v1721
        %v1828 = vpop.permute.xlu0 %1827
        %1831 = vset.pattern.permute.xlu0 0
        %1832 = vperm.xlu0 %1831, %v1722
        %v1833 = vpop.permute.xlu0 %1832
        %1836 = vset.pattern.permute.xlu0 0
        %1837 = vperm.xlu0 %1836, %v1723
        %v1838 = vpop.permute.xlu0 %1837
        %1841 = vset.pattern.permute.xlu0 0
        %1842 = vperm.xlu0 %1841, %v1724
        %v1843 = vpop.permute.xlu0 %1842
        %1846 = vset.pattern.permute.xlu0 0
        %1847 = vperm.xlu0 %1846, %v1725
        %v1848 = vpop.permute.xlu0 %1847
        %1851 = vset.pattern.permute.xlu0 0
        %1852 = vperm.xlu0 %1851, %v1726
        %v1853 = vpop.permute.xlu0 %1852
        %v1855 = vsub.f32 %v1646, %v1778
        %v1856 = vsub.f32 %v1647, %v1783
        %v1857 = vsub.f32 %v1648, %v1788
        %v1858 = vsub.f32 %v1649, %v1793
        %v1859 = vsub.f32 %v1650, %v1798
        %v1860 = vsub.f32 %v1651, %v1803
        %v1861 = vsub.f32 %v1652, %v1808
        %v1862 = vsub.f32 %v1653, %v1813
        %v1863 = vsub.f32 %v1654, %v1818
        %v1864 = vsub.f32 %v1655, %v1823
        %v1865 = vsub.f32 %v1656, %v1828
        %v1866 = vsub.f32 %v1657, %v1833
        %v1867 = vsub.f32 %v1658, %v1838
        %v1868 = vsub.f32 %v1659, %v1843
        %v1869 = vsub.f32 %v1660, %v1848
        %v1870 = vsub.f32 %v1661, %v1853
        %v1871 = vpack.c.bf16 %v1856, %v1855
        %v1872 = vpack.c.bf16 %v1858, %v1857
        %v1873 = vpack.c.bf16 %v1860, %v1859
        %v1874 = vpack.c.bf16 %v1862, %v1861
        %v1875 = vpack.c.bf16 %v1864, %v1863
        %v1876 = vpack.c.bf16 %v1866, %v1865
        %v1877 = vpack.c.bf16 %v1868, %v1867
        %v1878 = vpack.c.bf16 %v1870, %v1869
        %v1880 = vmul.bf16 %v1871, 1069105081
        %v1881 = vpow.bf16.pop %v1880
        %v1883 = vmul.bf16 %v1872, 1069105081
        %v1884 = vpow.bf16.pop %v1883
        %v1886 = vmul.bf16 %v1873, 1069105081
        %v1887 = vpow.bf16.pop %v1886
        %v1889 = vmul.bf16 %v1874, 1069105081
        %v1890 = vpow.bf16.pop %v1889
        %v1892 = vmul.bf16 %v1875, 1069105081
        %v1893 = vpow.bf16.pop %v1892
        %v1895 = vmul.bf16 %v1876, 1069105081
        %v1896 = vpow.bf16.pop %v1895
        %v1898 = vmul.bf16 %v1877, 1069105081
        %v1899 = vpow.bf16.pop %v1898
        %v1901 = vmul.bf16 %v1878, 1069105081
        %v1902 = vpow.bf16.pop %v1901
        %s1903 = scalar_lea.vmem [#allocation3], 128
        %v1904 = vld [vmem:[%s1903] sm:$0xff]
        %v1905 = vld [vmem:[%s1903 + $0x8] sm:$0xff]
        %v1906 = vld [vmem:[%s1903 + $0x10] sm:$0xff]
        %v1907 = vld [vmem:[%s1903 + $0x18] sm:$0xff]
        %v1908 = vld [vmem:[%s1903 + $0x20] sm:$0xff]
        %v1909 = vld [vmem:[%s1903 + $0x28] sm:$0xff]
        %v1910 = vld [vmem:[%s1903 + $0x30] sm:$0xff]
        %v1911 = vld [vmem:[%s1903 + $0x38] sm:$0xff]
        %v1912 = vld [vmem:[%s1903 + $0x40] sm:$0xff]
        %v1913 = vld [vmem:[%s1903 + $0x48] sm:$0xff]
        %v1914 = vld [vmem:[%s1903 + $0x50] sm:$0xff]
        %v1915 = vld [vmem:[%s1903 + $0x58] sm:$0xff]
        %v1916 = vld [vmem:[%s1903 + $0x60] sm:$0xff]
        %v1917 = vld [vmem:[%s1903 + $0x68] sm:$0xff]
        %v1918 = vld [vmem:[%s1903 + $0x70] sm:$0xff]
        %v1919 = vld [vmem:[%s1903 + $0x78] sm:$0xff]
        %v1920 = vmul.f32 %v1744, %v1904
        %v1921 = vmul.f32 %v1746, %v1905
        %v1922 = vmul.f32 %v1748, %v1906
        %v1923 = vmul.f32 %v1750, %v1907
        %v1924 = vmul.f32 %v1752, %v1908
        %v1925 = vmul.f32 %v1754, %v1909
        %v1926 = vmul.f32 %v1756, %v1910
        %v1927 = vmul.f32 %v1758, %v1911
        %v1928 = vmul.f32 %v1760, %v1912
        %v1929 = vmul.f32 %v1762, %v1913
        %v1930 = vmul.f32 %v1764, %v1914
        %v1931 = vmul.f32 %v1766, %v1915
        %v1932 = vmul.f32 %v1768, %v1916
        %v1933 = vmul.f32 %v1770, %v1917
        %v1934 = vmul.f32 %v1772, %v1918
        %v1935 = vmul.f32 %v1774, %v1919
        %v1936 = vunpack.c.l.bf16 %v1881
        %v1937 = vunpack.c.h.bf16 %v1881
        %v1938 = vunpack.c.l.bf16 %v1884
        %v1939 = vunpack.c.h.bf16 %v1884
        %v1940 = vunpack.c.l.bf16 %v1887
        %v1941 = vunpack.c.h.bf16 %v1887
        %v1942 = vunpack.c.l.bf16 %v1890
        %v1943 = vunpack.c.h.bf16 %v1890
        %v1944 = vunpack.c.l.bf16 %v1893
        %v1945 = vunpack.c.h.bf16 %v1893
        %v1946 = vunpack.c.l.bf16 %v1896
        %v1947 = vunpack.c.h.bf16 %v1896
        %v1948 = vunpack.c.l.bf16 %v1899
        %v1949 = vunpack.c.h.bf16 %v1899
        %v1950 = vunpack.c.l.bf16 %v1902
        %v1951 = vunpack.c.h.bf16 %v1902
        %1952 = vadd.xlane.f32.xlu0 %v1936
        %v1953 = vpop.xlane.xlu0 %1952
        %1954 = vadd.xlane.f32.xlu0 %v1937
        %v1955 = vpop.xlane.xlu0 %1954
        %1956 = vadd.xlane.f32.xlu0 %v1938
        %v1957 = vpop.xlane.xlu0 %1956
        %1958 = vadd.xlane.f32.xlu0 %v1939
        %v1959 = vpop.xlane.xlu0 %1958
        %1960 = vadd.xlane.f32.xlu0 %v1940
        %v1961 = vpop.xlane.xlu0 %1960
        %1962 = vadd.xlane.f32.xlu0 %v1941
        %v1963 = vpop.xlane.xlu0 %1962
        %1964 = vadd.xlane.f32.xlu0 %v1942
        %v1965 = vpop.xlane.xlu0 %1964
        %1966 = vadd.xlane.f32.xlu0 %v1943
        %v1967 = vpop.xlane.xlu0 %1966
        %1968 = vadd.xlane.f32.xlu0 %v1944
        %v1969 = vpop.xlane.xlu0 %1968
        %1970 = vadd.xlane.f32.xlu0 %v1945
        %v1971 = vpop.xlane.xlu0 %1970
        %1972 = vadd.xlane.f32.xlu0 %v1946
        %v1973 = vpop.xlane.xlu0 %1972
        %1974 = vadd.xlane.f32.xlu0 %v1947
        %v1975 = vpop.xlane.xlu0 %1974
        %1976 = vadd.xlane.f32.xlu0 %v1948
        %v1977 = vpop.xlane.xlu0 %1976
        %1978 = vadd.xlane.f32.xlu0 %v1949
        %v1979 = vpop.xlane.xlu0 %1978
        %1980 = vadd.xlane.f32.xlu0 %v1950
        %v1981 = vpop.xlane.xlu0 %1980
        %1982 = vadd.xlane.f32.xlu0 %v1951
        %v1983 = vpop.xlane.xlu0 %1982
        %v1984 = vadd.f32 %v1920, %v1953
        %v1985 = vadd.f32 %v1921, %v1955
        %v1986 = vadd.f32 %v1922, %v1957
        %v1987 = vadd.f32 %v1923, %v1959
        %v1988 = vadd.f32 %v1924, %v1961
        %v1989 = vadd.f32 %v1925, %v1963
        %v1990 = vadd.f32 %v1926, %v1965
        %v1991 = vadd.f32 %v1927, %v1967
        %v1992 = vadd.f32 %v1928, %v1969
        %v1993 = vadd.f32 %v1929, %v1971
        %v1994 = vadd.f32 %v1930, %v1973
        %v1995 = vadd.f32 %v1931, %v1975
        %v1996 = vadd.f32 %v1932, %v1977
        %v1997 = vadd.f32 %v1933, %v1979
        %v1998 = vadd.f32 %v1934, %v1981
        %v1999 = vadd.f32 %v1935, %v1983
        %2000 = vst.msk [vmem:[%s1903] sm:$0xff] %vm1191, %v1984
        %2001 = vst.msk [vmem:[%s1903 + $0x8] sm:$0xff] %vm1191, %v1985
        %2002 = vst.msk [vmem:[%s1903 + $0x10] sm:$0xff] %vm1191, %v1986
        %2003 = vst.msk [vmem:[%s1903 + $0x18] sm:$0xff] %vm1191, %v1987
        %2004 = vst.msk [vmem:[%s1903 + $0x20] sm:$0xff] %vm1191, %v1988
        %2005 = vst.msk [vmem:[%s1903 + $0x28] sm:$0xff] %vm1191, %v1989
        %2006 = vst.msk [vmem:[%s1903 + $0x30] sm:$0xff] %vm1191, %v1990
        %2007 = vst.msk [vmem:[%s1903 + $0x38] sm:$0xff] %vm1191, %v1991
        %2008 = vst.msk [vmem:[%s1903 + $0x40] sm:$0xff] %vm1191, %v1992
        %2009 = vst.msk [vmem:[%s1903 + $0x48] sm:$0xff] %vm1191, %v1993
        %2010 = vst.msk [vmem:[%s1903 + $0x50] sm:$0xff] %vm1191, %v1994
        %2011 = vst.msk [vmem:[%s1903 + $0x58] sm:$0xff] %vm1191, %v1995
        %2012 = vst.msk [vmem:[%s1903 + $0x60] sm:$0xff] %vm1191, %v1996
        %2013 = vst.msk [vmem:[%s1903 + $0x68] sm:$0xff] %vm1191, %v1997
        %2014 = vst.msk [vmem:[%s1903 + $0x70] sm:$0xff] %vm1191, %v1998
        %2015 = vst.msk [vmem:[%s1903 + $0x78] sm:$0xff] %vm1191, %v1999
        %s2016 = scalar_lea.vmem [#allocation4], 128
        %v2017 = vld [vmem:[%s2016] sm:$0xff]
        %v2018 = vld [vmem:[%s2016 + $0x8] sm:$0xff]
        %v2019 = vld [vmem:[%s2016 + $0x10] sm:$0xff]
        %v2020 = vld [vmem:[%s2016 + $0x18] sm:$0xff]
        %v2021 = vld [vmem:[%s2016 + $0x20] sm:$0xff]
        %v2022 = vld [vmem:[%s2016 + $0x28] sm:$0xff]
        %v2023 = vld [vmem:[%s2016 + $0x30] sm:$0xff]
        %v2024 = vld [vmem:[%s2016 + $0x38] sm:$0xff]
        %v2025 = vld [vmem:[%s2016 + $0x40] sm:$0xff]
        %v2026 = vld [vmem:[%s2016 + $0x48] sm:$0xff]
        %v2027 = vld [vmem:[%s2016 + $0x50] sm:$0xff]
        %v2028 = vld [vmem:[%s2016 + $0x58] sm:$0xff]
        %v2029 = vld [vmem:[%s2016 + $0x60] sm:$0xff]
        %v2030 = vld [vmem:[%s2016 + $0x68] sm:$0xff]
        %v2031 = vld [vmem:[%s2016 + $0x70] sm:$0xff]
        %v2032 = vld [vmem:[%s2016 + $0x78] sm:$0xff]
        %2034 = vset.pattern.permute.xlu0 0
        %2035 = vperm.xlu0 %2034, %v1744
        %v2036 = vpop.permute.xlu0 %2035
        %2039 = vset.pattern.permute.xlu0 0
        %2040 = vperm.xlu0 %2039, %v1746
        %v2041 = vpop.permute.xlu0 %2040
        %2044 = vset.pattern.permute.xlu0 0
        %2045 = vperm.xlu0 %2044, %v1748
        %v2046 = vpop.permute.xlu0 %2045
        %2049 = vset.pattern.permute.xlu0 0
        %2050 = vperm.xlu0 %2049, %v1750
        %v2051 = vpop.permute.xlu0 %2050
        %2054 = vset.pattern.permute.xlu0 0
        %2055 = vperm.xlu0 %2054, %v1752
        %v2056 = vpop.permute.xlu0 %2055
        %2059 = vset.pattern.permute.xlu0 0
        %2060 = vperm.xlu0 %2059, %v1754
        %v2061 = vpop.permute.xlu0 %2060
        %2064 = vset.pattern.permute.xlu0 0
        %2065 = vperm.xlu0 %2064, %v1756
        %v2066 = vpop.permute.xlu0 %2065
        %2069 = vset.pattern.permute.xlu0 0
        %2070 = vperm.xlu0 %2069, %v1758
        %v2071 = vpop.permute.xlu0 %2070
        %2074 = vset.pattern.permute.xlu0 0
        %2075 = vperm.xlu0 %2074, %v1760
        %v2076 = vpop.permute.xlu0 %2075
        %2079 = vset.pattern.permute.xlu0 0
        %2080 = vperm.xlu0 %2079, %v1762
        %v2081 = vpop.permute.xlu0 %2080
        %2084 = vset.pattern.permute.xlu0 0
        %2085 = vperm.xlu0 %2084, %v1764
        %v2086 = vpop.permute.xlu0 %2085
        %2089 = vset.pattern.permute.xlu0 0
        %2090 = vperm.xlu0 %2089, %v1766
        %v2091 = vpop.permute.xlu0 %2090
        %2094 = vset.pattern.permute.xlu0 0
        %2095 = vperm.xlu0 %2094, %v1768
        %v2096 = vpop.permute.xlu0 %2095
        %2099 = vset.pattern.permute.xlu0 0
        %2100 = vperm.xlu0 %2099, %v1770
        %v2101 = vpop.permute.xlu0 %2100
        %2104 = vset.pattern.permute.xlu0 0
        %2105 = vperm.xlu0 %2104, %v1772
        %v2106 = vpop.permute.xlu0 %2105
        %2109 = vset.pattern.permute.xlu0 0
        %2110 = vperm.xlu0 %2109, %v1774
        %v2111 = vpop.permute.xlu0 %2110
        %v2113 = vmul.f32 %v2036, %v2017
        %v2114 = vmul.f32 %v2041, %v2018
        %v2115 = vmul.f32 %v2046, %v2019
        %v2116 = vmul.f32 %v2051, %v2020
        %v2117 = vmul.f32 %v2056, %v2021
        %v2118 = vmul.f32 %v2061, %v2022
        %v2119 = vmul.f32 %v2066, %v2023
        %v2120 = vmul.f32 %v2071, %v2024
        %v2121 = vmul.f32 %v2076, %v2025
        %v2122 = vmul.f32 %v2081, %v2026
        %v2123 = vmul.f32 %v2086, %v2027
        %v2124 = vmul.f32 %v2091, %v2028
        %v2125 = vmul.f32 %v2096, %v2029
        %v2126 = vmul.f32 %v2101, %v2030
        %v2127 = vmul.f32 %v2106, %v2031
        %v2128 = vmul.f32 %v2111, %v2032
        %s2129 = scalar_lea.vmem %s463, 64 [#allocation6]
        %v2130 = vld [vmem:[%s2129] sm:$0xf]
        %v2131 = vld [vmem:[%s2129 + $0x4] sm:$0xf]
        %v2132 = vld [vmem:[%s2129 + $0x8] sm:$0xf]
        %v2133 = vld [vmem:[%s2129 + $0xc] sm:$0xf]
        %v2134 = vld [vmem:[%s2129 + $0x10] sm:$0xf]
        %v2135 = vld [vmem:[%s2129 + $0x14] sm:$0xf]
        %v2136 = vld [vmem:[%s2129 + $0x18] sm:$0xf]
        %v2137 = vld [vmem:[%s2129 + $0x1c] sm:$0xf]
        %v2138 = vld [vmem:[%s2129 + $0x20] sm:$0xf]
        %v2139 = vld [vmem:[%s2129 + $0x24] sm:$0xf]
        %v2140 = vld [vmem:[%s2129 + $0x28] sm:$0xf]
        %v2141 = vld [vmem:[%s2129 + $0x2c] sm:$0xf]
        %v2142 = vld [vmem:[%s2129 + $0x30] sm:$0xf]
        %v2143 = vld [vmem:[%s2129 + $0x34] sm:$0xf]
        %v2144 = vld [vmem:[%s2129 + $0x38] sm:$0xf]
        %v2145 = vld [vmem:[%s2129 + $0x3c] sm:$0xf]
        %v2162 = vunpack.c.l.b16 %v2130
        %v2163 = vunpack.c.l.b16 %v2131
        %v2164 = vunpack.c.l.b16 %v2132
        %v2165 = vunpack.c.l.b16 %v2133
        %v2166 = vunpack.c.l.b16 %v2134
        %v2167 = vunpack.c.l.b16 %v2135
        %v2168 = vunpack.c.l.b16 %v2136
        %v2169 = vunpack.c.l.b16 %v2137
        %v2170 = vunpack.c.l.b16 %v2138
        %v2171 = vunpack.c.l.b16 %v2139
        %v2172 = vunpack.c.l.b16 %v2140
        %v2173 = vunpack.c.l.b16 %v2141
        %v2174 = vunpack.c.l.b16 %v2142
        %v2175 = vunpack.c.l.b16 %v2143
        %v2176 = vunpack.c.l.b16 %v2144
        %v2177 = vunpack.c.l.b16 %v2145
        %v2178 = vpack.c.b16 %v2163, %v2162
        %v2179 = vpack.c.b16 %v2165, %v2164
        %v2180 = vpack.c.b16 %v2167, %v2166
        %v2181 = vpack.c.b16 %v2169, %v2168
        %v2182 = vpack.c.b16 %v2171, %v2170
        %v2183 = vpack.c.b16 %v2173, %v2172
        %v2184 = vpack.c.b16 %v2175, %v2174
        %v2185 = vpack.c.b16 %v2177, %v2176
        %2194 = vmatprep.subr.bf16.mxu0 0
        %2195 = vmatpush1.bf16.msra.mxu0 %v2185
        %2196 = vmatprep.subr.bf16.mxu0 0
        %2197 = vmatpush1.bf16.msra.mxu0 %v2184
        %2198 = vmatprep.subr.bf16.mxu0 0
        %2199 = vmatpush1.bf16.msra.mxu0 %v2183
        %2200 = vmatprep.subr.bf16.mxu0 0
        %2201 = vmatpush1.bf16.msra.mxu0 %v2182
        %2202 = vmatprep.subr.bf16.mxu0 0
        %2203 = vmatpush1.bf16.msra.mxu0 %v2181
        %2204 = vmatprep.subr.bf16.mxu0 0
        %2205 = vmatpush1.bf16.msra.mxu0 %v2180
        %2206 = vmatprep.subr.bf16.mxu0 0
        %2207 = vmatpush1.bf16.msra.mxu0 %v2179
        %2208 = vmatprep.subr.bf16.mxu0 0
        %2209 = vmatpush1.bf16.msra.mxu0 %v2178
        %2210 = vmatprep.subr.bf16.mxu0 0
        %2211 = vmatpush2.bf16.msra.mxu0 0
        %2212 = vmatprep.subr.bf16.mxu0 0
        %2213 = vmatpush2.bf16.msra.mxu0 0
        %2214 = vmatprep.subr.bf16.mxu0 0
        %2215 = vmatpush2.bf16.msra.mxu0 0
        %2216 = vmatprep.subr.bf16.mxu0 0
        %2217 = vmatpush2.bf16.msra.mxu0 0
        %2218 = vmatprep.subr.bf16.mxu0 0
        %2219 = vmatpush2.bf16.msra.mxu0 0
        %2220 = vmatprep.subr.bf16.mxu0 0
        %2221 = vmatpush2.bf16.msra.mxu0 0
        %2222 = vmatprep.subr.bf16.mxu0 0
        %2223 = vmatpush2.bf16.msra.mxu0 0
        %2224 = vmatprep.subr.bf16.mxu0 0
        %2225 = vmatpush2.bf16.msra.mxu0 0
        %2226 = vmatprep.mubr.bf16.mxu0 0
        %2227 = vmatmul.mubr.bf16.gmra.mxu0 %v1881
        %v2228 = vpop.f32.mrf.mxu0
        %v2229 = vadd.f32 0.0, %v2228
        %v2230 = vpop.f32.mrf.mxu0
        %v2231 = vpop.f32.mrf.mxu0
        %v2232 = vadd.f32 0.0, %v2231
        %v2233 = vpop.f32.mrf.mxu0
        %2234 = vmatprep.mubr.bf16.mxu0 0
        %2235 = vmatmul.mubr.bf16.gmra.mxu0 %v1884
        %v2236 = vpop.f32.mrf.mxu0
        %v2237 = vadd.f32 0.0, %v2236
        %v2238 = vpop.f32.mrf.mxu0
        %v2239 = vpop.f32.mrf.mxu0
        %v2240 = vadd.f32 0.0, %v2239
        %v2241 = vpop.f32.mrf.mxu0
        %2242 = vmatprep.mubr.bf16.mxu0 0
        %2243 = vmatmul.mubr.bf16.gmra.mxu0 %v1887
        %v2244 = vpop.f32.mrf.mxu0
        %v2245 = vadd.f32 0.0, %v2244
        %v2246 = vpop.f32.mrf.mxu0
        %v2247 = vpop.f32.mrf.mxu0
        %v2248 = vadd.f32 0.0, %v2247
        %v2249 = vpop.f32.mrf.mxu0
        %2250 = vmatprep.mubr.bf16.mxu0 0
        %2251 = vmatmul.mubr.bf16.gmra.mxu0 %v1890
        %v2252 = vpop.f32.mrf.mxu0
        %v2253 = vadd.f32 0.0, %v2252
        %v2254 = vpop.f32.mrf.mxu0
        %v2255 = vpop.f32.mrf.mxu0
        %v2256 = vadd.f32 0.0, %v2255
        %v2257 = vpop.f32.mrf.mxu0
        %2258 = vmatprep.mubr.bf16.mxu0 0
        %2259 = vmatmul.mubr.bf16.gmra.mxu0 %v1893
        %v2260 = vpop.f32.mrf.mxu0
        %v2261 = vadd.f32 0.0, %v2260
        %v2262 = vpop.f32.mrf.mxu0
        %v2263 = vpop.f32.mrf.mxu0
        %v2264 = vadd.f32 0.0, %v2263
        %v2265 = vpop.f32.mrf.mxu0
        %2266 = vmatprep.mubr.bf16.mxu0 0
        %2267 = vmatmul.mubr.bf16.gmra.mxu0 %v1896
        %v2268 = vpop.f32.mrf.mxu0
        %v2269 = vadd.f32 0.0, %v2268
        %v2270 = vpop.f32.mrf.mxu0
        %v2271 = vpop.f32.mrf.mxu0
        %v2272 = vadd.f32 0.0, %v2271
        %v2273 = vpop.f32.mrf.mxu0
        %2274 = vmatprep.mubr.bf16.mxu0 0
        %2275 = vmatmul.mubr.bf16.gmra.mxu0 %v1899
        %v2276 = vpop.f32.mrf.mxu0
        %v2277 = vadd.f32 0.0, %v2276
        %v2278 = vpop.f32.mrf.mxu0
        %v2279 = vpop.f32.mrf.mxu0
        %v2280 = vadd.f32 0.0, %v2279
        %v2281 = vpop.f32.mrf.mxu0
        %2282 = vmatprep.mubr.bf16.mxu0 0
        %2283 = vmatmul.mubr.bf16.gmra.mxu0 %v1902
        %v2284 = vpop.f32.mrf.mxu0
        %v2285 = vadd.f32 0.0, %v2284
        %v2286 = vpop.f32.mrf.mxu0
        %v2287 = vpop.f32.mrf.mxu0
        %v2288 = vadd.f32 0.0, %v2287
        %v2289 = vpop.f32.mrf.mxu0
        %2290 = vdwg.mxu0
        %v2291 = vadd.f32 %v2113, %v2229
        %v2292 = vadd.f32 %v2114, %v2232
        %v2293 = vadd.f32 %v2115, %v2237
        %v2294 = vadd.f32 %v2116, %v2240
        %v2295 = vadd.f32 %v2117, %v2245
        %v2296 = vadd.f32 %v2118, %v2248
        %v2297 = vadd.f32 %v2119, %v2253
        %v2298 = vadd.f32 %v2120, %v2256
        %v2299 = vadd.f32 %v2121, %v2261
        %v2300 = vadd.f32 %v2122, %v2264
        %v2301 = vadd.f32 %v2123, %v2269
        %v2302 = vadd.f32 %v2124, %v2272
        %v2303 = vadd.f32 %v2125, %v2277
        %v2304 = vadd.f32 %v2126, %v2280
        %v2305 = vadd.f32 %v2127, %v2285
        %v2306 = vadd.f32 %v2128, %v2288
        %2307 = vst.msk [vmem:[%s2016] sm:$0xff] %vm1497, %v2291
        %2308 = vst.msk [vmem:[%s2016 + $0x8] sm:$0xff] %vm1497, %v2292
        %2309 = vst.msk [vmem:[%s2016 + $0x10] sm:$0xff] %vm1497, %v2293
        %2310 = vst.msk [vmem:[%s2016 + $0x18] sm:$0xff] %vm1497, %v2294
        %2311 = vst.msk [vmem:[%s2016 + $0x20] sm:$0xff] %vm1497, %v2295
        %2312 = vst.msk [vmem:[%s2016 + $0x28] sm:$0xff] %vm1497, %v2296
        %2313 = vst.msk [vmem:[%s2016 + $0x30] sm:$0xff] %vm1497, %v2297
        %2314 = vst.msk [vmem:[%s2016 + $0x38] sm:$0xff] %vm1497, %v2298
        %2315 = vst.msk [vmem:[%s2016 + $0x40] sm:$0xff] %vm1497, %v2299
        %2316 = vst.msk [vmem:[%s2016 + $0x48] sm:$0xff] %vm1497, %v2300
        %2317 = vst.msk [vmem:[%s2016 + $0x50] sm:$0xff] %vm1497, %v2301
        %2318 = vst.msk [vmem:[%s2016 + $0x58] sm:$0xff] %vm1497, %v2302
        %2319 = vst.msk [vmem:[%s2016 + $0x60] sm:$0xff] %vm1497, %v2303
        %2320 = vst.msk [vmem:[%s2016 + $0x68] sm:$0xff] %vm1497, %v2304
        %2321 = vst.msk [vmem:[%s2016 + $0x70] sm:$0xff] %vm1497, %v2305
        %2322 = vst.msk [vmem:[%s2016 + $0x78] sm:$0xff] %vm1497, %v2306
        %2323 = vst.msk [vmem:[%s1662] sm:$0xff] %vm1191, %v1711
        %2324 = vst.msk [vmem:[%s1662 + $0x8] sm:$0xff] %vm1191, %v1712
        %2325 = vst.msk [vmem:[%s1662 + $0x10] sm:$0xff] %vm1191, %v1713
        %2326 = vst.msk [vmem:[%s1662 + $0x18] sm:$0xff] %vm1191, %v1714
        %2327 = vst.msk [vmem:[%s1662 + $0x20] sm:$0xff] %vm1191, %v1715
        %2328 = vst.msk [vmem:[%s1662 + $0x28] sm:$0xff] %vm1191, %v1716
        %2329 = vst.msk [vmem:[%s1662 + $0x30] sm:$0xff] %vm1191, %v1717
        %2330 = vst.msk [vmem:[%s1662 + $0x38] sm:$0xff] %vm1191, %v1718
        %2331 = vst.msk [vmem:[%s1662 + $0x40] sm:$0xff] %vm1191, %v1719
        %2332 = vst.msk [vmem:[%s1662 + $0x48] sm:$0xff] %vm1191, %v1720
        %2333 = vst.msk [vmem:[%s1662 + $0x50] sm:$0xff] %vm1191, %v1721
        %2334 = vst.msk [vmem:[%s1662 + $0x58] sm:$0xff] %vm1191, %v1722
        %2335 = vst.msk [vmem:[%s1662 + $0x60] sm:$0xff] %vm1191, %v1723
        %2336 = vst.msk [vmem:[%s1662 + $0x68] sm:$0xff] %vm1191, %v1724
        %2337 = vst.msk [vmem:[%s1662 + $0x70] sm:$0xff] %vm1191, %v1725
        %2338 = vst.msk [vmem:[%s1662 + $0x78] sm:$0xff] %vm1191, %v1726
        %p2339 = scmp.eq.s32.totalorder %s21, 1
        // Predicated region
        $region124: #{ugcn_forward.14} parent=110 // pred_check
          %p2340 = pneg %p2339
        $region125: #{ugcn_forward.14} parent=110 // pred_check_branch
          %2342 = sbr.rel (%p2340) target = $region127
        $region126: #{ugcn_forward.14} parent=110 // pred_region
          %v2343 = vld [vmem:[#allocation3] sm:$0xff]
          %v2344 = vld [vmem:[#allocation3 + $0x8] sm:$0xff]
          %v2345 = vld [vmem:[#allocation3 + $0x10] sm:$0xff]
          %v2346 = vld [vmem:[#allocation3 + $0x18] sm:$0xff]
          %v2347 = vld [vmem:[#allocation3 + $0x20] sm:$0xff]
          %v2348 = vld [vmem:[#allocation3 + $0x28] sm:$0xff]
          %v2349 = vld [vmem:[#allocation3 + $0x30] sm:$0xff]
          %v2350 = vld [vmem:[#allocation3 + $0x38] sm:$0xff]
          %v2351 = vld [vmem:[#allocation3 + $0x40] sm:$0xff]
          %v2352 = vld [vmem:[#allocation3 + $0x48] sm:$0xff]
          %v2353 = vld [vmem:[#allocation3 + $0x50] sm:$0xff]
          %v2354 = vld [vmem:[#allocation3 + $0x58] sm:$0xff]
          %v2355 = vld [vmem:[#allocation3 + $0x60] sm:$0xff]
          %v2356 = vld [vmem:[#allocation3 + $0x68] sm:$0xff]
          %v2357 = vld [vmem:[#allocation3 + $0x70] sm:$0xff]
          %v2358 = vld [vmem:[#allocation3 + $0x78] sm:$0xff]
          %v2359 = vmax.f32 %v2343, 1e-30
          %v2360 = vmax.f32 %v2344, 1e-30
          %v2361 = vmax.f32 %v2345, 1e-30
          %v2362 = vmax.f32 %v2346, 1e-30
          %v2363 = vmax.f32 %v2347, 1e-30
          %v2364 = vmax.f32 %v2348, 1e-30
          %v2365 = vmax.f32 %v2349, 1e-30
          %v2366 = vmax.f32 %v2350, 1e-30
          %v2367 = vmax.f32 %v2351, 1e-30
          %v2368 = vmax.f32 %v2352, 1e-30
          %v2369 = vmax.f32 %v2353, 1e-30
          %v2370 = vmax.f32 %v2354, 1e-30
          %v2371 = vmax.f32 %v2355, 1e-30
          %v2372 = vmax.f32 %v2356, 1e-30
          %v2373 = vmax.f32 %v2357, 1e-30
          %v2374 = vmax.f32 %v2358, 1e-30
          %v2375 = vrcp.pop %v2359
          %v2376 = vrcp.pop %v2360
          %v2377 = vrcp.pop %v2361
          %v2378 = vrcp.pop %v2362
          %v2379 = vrcp.pop %v2363
          %v2380 = vrcp.pop %v2364
          %v2381 = vrcp.pop %v2365
          %v2382 = vrcp.pop %v2366
          %v2383 = vrcp.pop %v2367
          %v2384 = vrcp.pop %v2368
          %v2385 = vrcp.pop %v2369
          %v2386 = vrcp.pop %v2370
          %v2387 = vrcp.pop %v2371
          %v2388 = vrcp.pop %v2372
          %v2389 = vrcp.pop %v2373
          %v2390 = vrcp.pop %v2374
          %v2391 = vld [vmem:[#allocation4] sm:$0xff]
          %v2392 = vld [vmem:[#allocation4 + $0x8] sm:$0xff]
          %v2393 = vld [vmem:[#allocation4 + $0x10] sm:$0xff]
          %v2394 = vld [vmem:[#allocation4 + $0x18] sm:$0xff]
          %v2395 = vld [vmem:[#allocation4 + $0x20] sm:$0xff]
          %v2396 = vld [vmem:[#allocation4 + $0x28] sm:$0xff]
          %v2397 = vld [vmem:[#allocation4 + $0x30] sm:$0xff]
          %v2398 = vld [vmem:[#allocation4 + $0x38] sm:$0xff]
          %v2399 = vld [vmem:[#allocation4 + $0x40] sm:$0xff]
          %v2400 = vld [vmem:[#allocation4 + $0x48] sm:$0xff]
          %v2401 = vld [vmem:[#allocation4 + $0x50] sm:$0xff]
          %v2402 = vld [vmem:[#allocation4 + $0x58] sm:$0xff]
          %v2403 = vld [vmem:[#allocation4 + $0x60] sm:$0xff]
          %v2404 = vld [vmem:[#allocation4 + $0x68] sm:$0xff]
          %v2405 = vld [vmem:[#allocation4 + $0x70] sm:$0xff]
          %v2406 = vld [vmem:[#allocation4 + $0x78] sm:$0xff]
          %2408 = vset.pattern.permute.xlu0 0
          %2409 = vperm.xlu0 %2408, %v2375
          %v2410 = vpop.permute.xlu0 %2409
          %2413 = vset.pattern.permute.xlu0 0
          %2414 = vperm.xlu0 %2413, %v2376
          %v2415 = vpop.permute.xlu0 %2414
          %2418 = vset.pattern.permute.xlu0 0
          %2419 = vperm.xlu0 %2418, %v2377
          %v2420 = vpop.permute.xlu0 %2419
          %2423 = vset.pattern.permute.xlu0 0
          %2424 = vperm.xlu0 %2423, %v2378
          %v2425 = vpop.permute.xlu0 %2424
          %2428 = vset.pattern.permute.xlu0 0
          %2429 = vperm.xlu0 %2428, %v2379
          %v2430 = vpop.permute.xlu0 %2429
          %2433 = vset.pattern.permute.xlu0 0
          %2434 = vperm.xlu0 %2433, %v2380
          %v2435 = vpop.permute.xlu0 %2434
          %2438 = vset.pattern.permute.xlu0 0
          %2439 = vperm.xlu0 %2438, %v2381
          %v2440 = vpop.permute.xlu0 %2439
          %2443 = vset.pattern.permute.xlu0 0
          %2444 = vperm.xlu0 %2443, %v2382
          %v2445 = vpop.permute.xlu0 %2444
          %2448 = vset.pattern.permute.xlu0 0
          %2449 = vperm.xlu0 %2448, %v2383
          %v2450 = vpop.permute.xlu0 %2449
          %2453 = vset.pattern.permute.xlu0 0
          %2454 = vperm.xlu0 %2453, %v2384
          %v2455 = vpop.permute.xlu0 %2454
          %2458 = vset.pattern.permute.xlu0 0
          %2459 = vperm.xlu0 %2458, %v2385
          %v2460 = vpop.permute.xlu0 %2459
          %2463 = vset.pattern.permute.xlu0 0
          %2464 = vperm.xlu0 %2463, %v2386
          %v2465 = vpop.permute.xlu0 %2464
          %2468 = vset.pattern.permute.xlu0 0
          %2469 = vperm.xlu0 %2468, %v2387
          %v2470 = vpop.permute.xlu0 %2469
          %2473 = vset.pattern.permute.xlu0 0
          %2474 = vperm.xlu0 %2473, %v2388
          %v2475 = vpop.permute.xlu0 %2474
          %2478 = vset.pattern.permute.xlu0 0
          %2479 = vperm.xlu0 %2478, %v2389
          %v2480 = vpop.permute.xlu0 %2479
          %2483 = vset.pattern.permute.xlu0 0
          %2484 = vperm.xlu0 %2483, %v2390
          %v2485 = vpop.permute.xlu0 %2484
          %v2487 = vmul.f32 %v2391, %v2410
          %v2488 = vmul.f32 %v2392, %v2415
          %v2489 = vmul.f32 %v2393, %v2420
          %v2490 = vmul.f32 %v2394, %v2425
          %v2491 = vmul.f32 %v2395, %v2430
          %v2492 = vmul.f32 %v2396, %v2435
          %v2493 = vmul.f32 %v2397, %v2440
          %v2494 = vmul.f32 %v2398, %v2445
          %v2495 = vmul.f32 %v2399, %v2450
          %v2496 = vmul.f32 %v2400, %v2455
          %v2497 = vmul.f32 %v2401, %v2460
          %v2498 = vmul.f32 %v2402, %v2465
          %v2499 = vmul.f32 %v2403, %v2470
          %v2500 = vmul.f32 %v2404, %v2475
          %v2501 = vmul.f32 %v2405, %v2480
          %v2502 = vmul.f32 %v2406, %v2485
          %v2503 = vadd.f32 %v2487, 0.0
          %v2504 = vadd.f32 %v2488, 0.0
          %v2505 = vadd.f32 %v2489, 0.0
          %v2506 = vadd.f32 %v2490, 0.0
          %v2507 = vadd.f32 %v2491, 0.0
          %v2508 = vadd.f32 %v2492, 0.0
          %v2509 = vadd.f32 %v2493, 0.0
          %v2510 = vadd.f32 %v2494, 0.0
          %v2511 = vadd.f32 %v2495, 0.0
          %v2512 = vadd.f32 %v2496, 0.0
          %v2513 = vadd.f32 %v2497, 0.0
          %v2514 = vadd.f32 %v2498, 0.0
          %v2515 = vadd.f32 %v2499, 0.0
          %v2516 = vadd.f32 %v2500, 0.0
          %v2517 = vadd.f32 %v2501, 0.0
          %v2518 = vadd.f32 %v2502, 0.0
          %v2519 = vld [vmem:[%s1903] sm:$0xff]
          %v2520 = vld [vmem:[%s1903 + $0x8] sm:$0xff]
          %v2521 = vld [vmem:[%s1903 + $0x10] sm:$0xff]
          %v2522 = vld [vmem:[%s1903 + $0x18] sm:$0xff]
          %v2523 = vld [vmem:[%s1903 + $0x20] sm:$0xff]
          %v2524 = vld [vmem:[%s1903 + $0x28] sm:$0xff]
          %v2525 = vld [vmem:[%s1903 + $0x30] sm:$0xff]
          %v2526 = vld [vmem:[%s1903 + $0x38] sm:$0xff]
          %v2527 = vld [vmem:[%s1903 + $0x40] sm:$0xff]
          %v2528 = vld [vmem:[%s1903 + $0x48] sm:$0xff]
          %v2529 = vld [vmem:[%s1903 + $0x50] sm:$0xff]
          %v2530 = vld [vmem:[%s1903 + $0x58] sm:$0xff]
          %v2531 = vld [vmem:[%s1903 + $0x60] sm:$0xff]
          %v2532 = vld [vmem:[%s1903 + $0x68] sm:$0xff]
          %v2533 = vld [vmem:[%s1903 + $0x70] sm:$0xff]
          %v2534 = vld [vmem:[%s1903 + $0x78] sm:$0xff]
          %v2535 = vmax.f32 %v2519, 1e-30
          %v2536 = vmax.f32 %v2520, 1e-30
          %v2537 = vmax.f32 %v2521, 1e-30
          %v2538 = vmax.f32 %v2522, 1e-30
          %v2539 = vmax.f32 %v2523, 1e-30
          %v2540 = vmax.f32 %v2524, 1e-30
          %v2541 = vmax.f32 %v2525, 1e-30
          %v2542 = vmax.f32 %v2526, 1e-30
          %v2543 = vmax.f32 %v2527, 1e-30
          %v2544 = vmax.f32 %v2528, 1e-30
          %v2545 = vmax.f32 %v2529, 1e-30
          %v2546 = vmax.f32 %v2530, 1e-30
          %v2547 = vmax.f32 %v2531, 1e-30
          %v2548 = vmax.f32 %v2532, 1e-30
          %v2549 = vmax.f32 %v2533, 1e-30
          %v2550 = vmax.f32 %v2534, 1e-30
          %v2551 = vrcp.pop %v2535
          %v2552 = vrcp.pop %v2536
          %v2553 = vrcp.pop %v2537
          %v2554 = vrcp.pop %v2538
          %v2555 = vrcp.pop %v2539
          %v2556 = vrcp.pop %v2540
          %v2557 = vrcp.pop %v2541
          %v2558 = vrcp.pop %v2542
          %v2559 = vrcp.pop %v2543
          %v2560 = vrcp.pop %v2544
          %v2561 = vrcp.pop %v2545
          %v2562 = vrcp.pop %v2546
          %v2563 = vrcp.pop %v2547
          %v2564 = vrcp.pop %v2548
          %v2565 = vrcp.pop %v2549
          %v2566 = vrcp.pop %v2550
          %v2567 = vld [vmem:[%s2016] sm:$0xff]
          %v2568 = vld [vmem:[%s2016 + $0x8] sm:$0xff]
          %v2569 = vld [vmem:[%s2016 + $0x10] sm:$0xff]
          %v2570 = vld [vmem:[%s2016 + $0x18] sm:$0xff]
          %v2571 = vld [vmem:[%s2016 + $0x20] sm:$0xff]
          %v2572 = vld [vmem:[%s2016 + $0x28] sm:$0xff]
          %v2573 = vld [vmem:[%s2016 + $0x30] sm:$0xff]
          %v2574 = vld [vmem:[%s2016 + $0x38] sm:$0xff]
          %v2575 = vld [vmem:[%s2016 + $0x40] sm:$0xff]
          %v2576 = vld [vmem:[%s2016 + $0x48] sm:$0xff]
          %v2577 = vld [vmem:[%s2016 + $0x50] sm:$0xff]
          %v2578 = vld [vmem:[%s2016 + $0x58] sm:$0xff]
          %v2579 = vld [vmem:[%s2016 + $0x60] sm:$0xff]
          %v2580 = vld [vmem:[%s2016 + $0x68] sm:$0xff]
          %v2581 = vld [vmem:[%s2016 + $0x70] sm:$0xff]
          %v2582 = vld [vmem:[%s2016 + $0x78] sm:$0xff]
          %2584 = vset.pattern.permute.xlu0 0
          %2585 = vperm.xlu0 %2584, %v2551
          %v2586 = vpop.permute.xlu0 %2585
          %2589 = vset.pattern.permute.xlu0 0
          %2590 = vperm.xlu0 %2589, %v2552
          %v2591 = vpop.permute.xlu0 %2590
          %2594 = vset.pattern.permute.xlu0 0
          %2595 = vperm.xlu0 %2594, %v2553
          %v2596 = vpop.permute.xlu0 %2595
          %2599 = vset.pattern.permute.xlu0 0
          %2600 = vperm.xlu0 %2599, %v2554
          %v2601 = vpop.permute.xlu0 %2600
          %2604 = vset.pattern.permute.xlu0 0
          %2605 = vperm.xlu0 %2604, %v2555
          %v2606 = vpop.permute.xlu0 %2605
          %2609 = vset.pattern.permute.xlu0 0
          %2610 = vperm.xlu0 %2609, %v2556
          %v2611 = vpop.permute.xlu0 %2610
          %2614 = vset.pattern.permute.xlu0 0
          %2615 = vperm.xlu0 %2614, %v2557
          %v2616 = vpop.permute.xlu0 %2615
          %2619 = vset.pattern.permute.xlu0 0
          %2620 = vperm.xlu0 %2619, %v2558
          %v2621 = vpop.permute.xlu0 %2620
          %2624 = vset.pattern.permute.xlu0 0
          %2625 = vperm.xlu0 %2624, %v2559
          %v2626 = vpop.permute.xlu0 %2625
          %2629 = vset.pattern.permute.xlu0 0
          %2630 = vperm.xlu0 %2629, %v2560
          %v2631 = vpop.permute.xlu0 %2630
          %2634 = vset.pattern.permute.xlu0 0
          %2635 = vperm.xlu0 %2634, %v2561
          %v2636 = vpop.permute.xlu0 %2635
          %2639 = vset.pattern.permute.xlu0 0
          %2640 = vperm.xlu0 %2639, %v2562
          %v2641 = vpop.permute.xlu0 %2640
          %2644 = vset.pattern.permute.xlu0 0
          %2645 = vperm.xlu0 %2644, %v2563
          %v2646 = vpop.permute.xlu0 %2645
          %2649 = vset.pattern.permute.xlu0 0
          %2650 = vperm.xlu0 %2649, %v2564
          %v2651 = vpop.permute.xlu0 %2650
          %2654 = vset.pattern.permute.xlu0 0
          %2655 = vperm.xlu0 %2654, %v2565
          %v2656 = vpop.permute.xlu0 %2655
          %2659 = vset.pattern.permute.xlu0 0
          %2660 = vperm.xlu0 %2659, %v2566
          %v2661 = vpop.permute.xlu0 %2660
          %v2663 = vmul.f32 %v2567, %v2586
          %v2664 = vmul.f32 %v2568, %v2591
          %v2665 = vmul.f32 %v2569, %v2596
          %v2666 = vmul.f32 %v2570, %v2601
          %v2667 = vmul.f32 %v2571, %v2606
          %v2668 = vmul.f32 %v2572, %v2611
          %v2669 = vmul.f32 %v2573, %v2616
          %v2670 = vmul.f32 %v2574, %v2621
          %v2671 = vmul.f32 %v2575, %v2626
          %v2672 = vmul.f32 %v2576, %v2631
          %v2673 = vmul.f32 %v2577, %v2636
          %v2674 = vmul.f32 %v2578, %v2641
          %v2675 = vmul.f32 %v2579, %v2646
          %v2676 = vmul.f32 %v2580, %v2651
          %v2677 = vmul.f32 %v2581, %v2656
          %v2678 = vmul.f32 %v2582, %v2661
          %v2679 = vadd.f32 %v2503, %v2663
          %v2680 = vadd.f32 %v2504, %v2664
          %v2681 = vadd.f32 %v2505, %v2665
          %v2682 = vadd.f32 %v2506, %v2666
          %v2683 = vadd.f32 %v2507, %v2667
          %v2684 = vadd.f32 %v2508, %v2668
          %v2685 = vadd.f32 %v2509, %v2669
          %v2686 = vadd.f32 %v2510, %v2670
          %v2687 = vadd.f32 %v2511, %v2671
          %v2688 = vadd.f32 %v2512, %v2672
          %v2689 = vadd.f32 %v2513, %v2673
          %v2690 = vadd.f32 %v2514, %v2674
          %v2691 = vadd.f32 %v2515, %v2675
          %v2692 = vadd.f32 %v2516, %v2676
          %v2693 = vadd.f32 %v2517, %v2677
          %v2694 = vadd.f32 %v2518, %v2678
          %v2695 = vmul.f32 %v2679, 0.5
          %v2696 = vmul.f32 %v2680, 0.5
          %v2697 = vmul.f32 %v2681, 0.5
          %v2698 = vmul.f32 %v2682, 0.5
          %v2699 = vmul.f32 %v2683, 0.5
          %v2700 = vmul.f32 %v2684, 0.5
          %v2701 = vmul.f32 %v2685, 0.5
          %v2702 = vmul.f32 %v2686, 0.5
          %v2703 = vmul.f32 %v2687, 0.5
          %v2704 = vmul.f32 %v2688, 0.5
          %v2705 = vmul.f32 %v2689, 0.5
          %v2706 = vmul.f32 %v2690, 0.5
          %v2707 = vmul.f32 %v2691, 0.5
          %v2708 = vmul.f32 %v2692, 0.5
          %v2709 = vmul.f32 %v2693, 0.5
          %v2710 = vmul.f32 %v2694, 0.5
          %v2711 = vld [vmem:[%s4] sm:$0x1]
          %v2713 = vlaneseq
          %v2714 = vshrl.u32 %v2713, 7
          %v2715 = vsub.s32 0, %v2714
          %v2716 = vrot.slane %v2711, %v2715
          %v2718 = vadd.f32 %v2695, %v2716
          %v2719 = vadd.f32 %v2696, %v2716
          %v2720 = vadd.f32 %v2697, %v2716
          %v2721 = vadd.f32 %v2698, %v2716
          %v2722 = vadd.f32 %v2699, %v2716
          %v2723 = vadd.f32 %v2700, %v2716
          %v2724 = vadd.f32 %v2701, %v2716
          %v2725 = vadd.f32 %v2702, %v2716
          %v2726 = vadd.f32 %v2703, %v2716
          %v2727 = vadd.f32 %v2704, %v2716
          %v2728 = vadd.f32 %v2705, %v2716
          %v2729 = vadd.f32 %v2706, %v2716
          %v2730 = vadd.f32 %v2707, %v2716
          %v2731 = vadd.f32 %v2708, %v2716
          %v2732 = vadd.f32 %v2709, %v2716
          %v2733 = vadd.f32 %v2710, %v2716
          %2734 = vst.msk [vmem:[%s517] sm:$0xff] %vm1497, %v2718
          %2735 = vst.msk [vmem:[%s517 + $0x8] sm:$0xff] %vm1497, %v2719
          %2736 = vst.msk [vmem:[%s517 + $0x10] sm:$0xff] %vm1497, %v2720
          %2737 = vst.msk [vmem:[%s517 + $0x18] sm:$0xff] %vm1497, %v2721
          %2738 = vst.msk [vmem:[%s517 + $0x20] sm:$0xff] %vm1497, %v2722
          %2739 = vst.msk [vmem:[%s517 + $0x28] sm:$0xff] %vm1497, %v2723
          %2740 = vst.msk [vmem:[%s517 + $0x30] sm:$0xff] %vm1497, %v2724
          %2741 = vst.msk [vmem:[%s517 + $0x38] sm:$0xff] %vm1497, %v2725
          %2742 = vst.msk [vmem:[%s517 + $0x40] sm:$0xff] %vm1497, %v2726
          %2743 = vst.msk [vmem:[%s517 + $0x48] sm:$0xff] %vm1497, %v2727
          %2744 = vst.msk [vmem:[%s517 + $0x50] sm:$0xff] %vm1497, %v2728
          %2745 = vst.msk [vmem:[%s517 + $0x58] sm:$0xff] %vm1497, %v2729
          %2746 = vst.msk [vmem:[%s517 + $0x60] sm:$0xff] %vm1497, %v2730
          %2747 = vst.msk [vmem:[%s517 + $0x68] sm:$0xff] %vm1497, %v2731
          %2748 = vst.msk [vmem:[%s517 + $0x70] sm:$0xff] %vm1497, %v2732
          %2749 = vst.msk [vmem:[%s517 + $0x78] sm:$0xff] %vm1497, %v2733
        $region127: #{ugcn_forward.14} parent=110 // pred_fallthru
          _
        %s2750 = smul.u32 16, %s20
        %p2751 = scmp.lt.s32.totalorder %s2750, 31
        %s2752 = scalar_select %p2751, %s2750, 31
        %s2753 = smul.addr %s2752, 8
        %s2754 = scalar_lea.vmem %s5, %s2753
        // Predicated region
        $region128: #{ugcn_forward.14} parent=110 // pred_check
          %p2755 = pneg %p173
        $region129: #{ugcn_forward.14} parent=110 // pred_check_branch
          %2757 = sbr.rel (%p2755) target = $region131
        $region130: #{ugcn_forward.14} parent=110 // pred_region
          %s2758 = smul.u32 16, %s20
        $region131: #{ugcn_forward.14} parent=110 // pred_fallthru
          _
      $region111: #{ugcn_forward.14} parent=5 // pred_fallthru
        _
      %p2759 = scmp.le.s32.totalorder 2, %s11
      // Predicated region
      $region132: #{ugcn_forward.14} parent=5 // pred_check
        %p2760 = pneg %p2759
      $region133: #{ugcn_forward.14} parent=5 // pred_check_branch
        %2762 = sbr.rel (%p2760) target = $region135
      $region134: #{ugcn_forward.14} parent=5 // pred_region
        %s2763 = ssub.s32 %s11, 2
        // Predicated region
        $region136: #{ugcn_forward.14} parent=134 // pred_check
          %p2764 = pneg %p179
        $region137: #{ugcn_forward.14} parent=134 // pred_check_branch
          %2766 = sbr.rel (%p2764) target = $region139
        $region138: #{ugcn_forward.14} parent=134 // pred_region
          %s2767 = smul.u32 16, %s22
          %p2768 = scmp.lt.s32.totalorder %s2767, 31
          %s2769 = scalar_select %p2768, %s2767, 31
          %s2770 = smul.addr %s2769, 8
          %s2771 = scalar_lea.vmem %s5, %s2770
        $region139: #{ugcn_forward.14} parent=134 // pred_fallthru
          _
      $region135: #{ugcn_forward.14} parent=5 // pred_fallthru
        _
    $region6: #{ugcn_forward.14} parent=1 // loop_footer
      %s15 = sadd.s32 1, %s11
    $region7: #{ugcn_forward.14} parent=1 // loop_footer_branch
      %10 = sbr.rel target = $region3
    $region8: #{ugcn_forward.14} parent=1 // loop_exit
      _

// kernel: ugcn_forward.25
$region0: #{ugcn_forward.25}
  #allocation0 [shape = 'u32[]', space=smem, size = 0x4, offset = 0x4, fixed_abs, tag = 'smem constant byte address 0x4 - core index']
  #allocation1 [shape = 'u32[144,128]{1,0:T(1,128)}', space=vmem, size = 0x12000, scoped, tag = 'internal scratch']
  %s0 = inlined_call_operand.vmem [shape: f32[256,24], index: 0, kind: input, shape index: {}]
  %s1 = inlined_call_operand.vmem [shape: f32[24,24], index: 1, kind: input, shape index: {}]
  %s2 = inlined_call_operand.vmem [shape: f32[1,24], index: 2, kind: input, shape index: {}]
  %s3 = inlined_call_operand.vmem [shape: f32[24,3], index: 3, kind: input, shape index: {}]
  %s4 = inlined_call_operand.vmem [shape: f32[256,8], index: 4, kind: output, shape index: {}]
  %s5 = sld [smem:[#allocation0]]
  $region49: #{ugcn_forward.25} parent=0
    _
  %s7 = ssub.s32 1, %s5
  %s8 = scalar_select 0, %s7, %s5
  loop: start=0, step=1, limit=4
  $region2: #{ugcn_forward.25} parent=0 // loop_pre_header
    _
  $region3: #{ugcn_forward.25} parent=0 // loop_header
    %s10 = sphi 0, %s14
    %p11 = scmp.ge.s32.totalorder %s10, 4
    %s20 = sphi 0, %s22
    %s23 = sphi 0, %s20
    %s24 = sphi 0, %s23
    %s40 = sphi 0, %s24
    %s44 = sphi 0, %s44
    %s46 = sphi 0, %s44
    %s47 = sphi 0, %s46
    %s61 = sphi 0, %s47
    %s65 = sphi 0, %s65
    %s67 = sphi 0, %s65
    %s68 = sphi 0, %s67
    %s82 = sphi 0, %s68
    %s86 = sphi 0, %s86
    %s88 = sphi 0, %s86
    %s89 = sphi 0, %s88
    %s103 = sphi 0, %s89
    %s109 = sphi 0, %s111
    %s112 = sphi 0, %s109
    %s113 = sphi 0, %s112
    %s129 = sphi 0, %s113
  $region4: #{ugcn_forward.25} parent=0 // loop_header_branch
    %13 = sbr.rel (%p11) target = $region8
  $region5: #{ugcn_forward.25} parent=0 // loop_body
    %s15 = ssub.s32 %s10, 1
    %s16 = ssub.s32 %s10, 2
    %s17 = sadd.s32 %s10, 1
    %s18 = ssub.s32 %s10, %s17
    %p19 = scmp.eq.s32.totalorder %s18, 0
    %s21 = sadd.s32 %s20, 1
    %s22 = scalar_select %p19, %s20, %s21
    %p25 = pneg %p19
    %p26 = scmp.eq.s32.totalorder %s10, 1
    %p27 = por %p25, %p26
    %p28 = scmp.ne.s32.totalorder %s20, %s23
    %p29 = scmp.eq.s32.totalorder %s10, 0
    %p30 = por %p28, %p29
    %p31 = scmp.ne.s32.totalorder %s20, %s23
    %p32 = scmp.eq.s32.totalorder %s15, 1
    %p33 = por %p31, %p32
    %p34 = scmp.ne.s32.totalorder %s23, %s24
    %p35 = scmp.eq.s32.totalorder %s15, 0
    %p36 = por %p34, %p35
    %p37 = scmp.ne.s32.totalorder %s23, %s24
    %p38 = scmp.eq.s32.totalorder %s16, 1
    %p39 = por %p37, %p38
    %p41 = scmp.ne.s32.totalorder %s24, %s40
    %p42 = scmp.eq.s32.totalorder %s16, 0
    %p43 = por %p41, %p42
    %s45 = sadd.s32 %s44, 1
    %p48 = scmp.eq.s32.totalorder %s10, 1
    %p49 = scmp.ne.s32.totalorder %s44, %s46
    %p50 = scmp.eq.s32.totalorder %s10, 0
    %p51 = por %p49, %p50
    %p52 = scmp.ne.s32.totalorder %s44, %s46
    %p53 = scmp.eq.s32.totalorder %s15, 1
    %p54 = por %p52, %p53
    %p55 = scmp.ne.s32.totalorder %s46, %s47
    %p56 = scmp.eq.s32.totalorder %s15, 0
    %p57 = por %p55, %p56
    %p58 = scmp.ne.s32.totalorder %s46, %s47
    %p59 = scmp.eq.s32.totalorder %s16, 1
    %p60 = por %p58, %p59
    %p62 = scmp.ne.s32.totalorder %s47, %s61
    %p63 = scmp.eq.s32.totalorder %s16, 0
    %p64 = por %p62, %p63
    %s66 = sadd.s32 %s65, 1
    %p69 = scmp.eq.s32.totalorder %s10, 1
    %p70 = scmp.ne.s32.totalorder %s65, %s67
    %p71 = scmp.eq.s32.totalorder %s10, 0
    %p72 = por %p70, %p71
    %p73 = scmp.ne.s32.totalorder %s65, %s67
    %p74 = scmp.eq.s32.totalorder %s15, 1
    %p75 = por %p73, %p74
    %p76 = scmp.ne.s32.totalorder %s67, %s68
    %p77 = scmp.eq.s32.totalorder %s15, 0
    %p78 = por %p76, %p77
    %p79 = scmp.ne.s32.totalorder %s67, %s68
    %p80 = scmp.eq.s32.totalorder %s16, 1
    %p81 = por %p79, %p80
    %p83 = scmp.ne.s32.totalorder %s68, %s82
    %p84 = scmp.eq.s32.totalorder %s16, 0
    %p85 = por %p83, %p84
    %s87 = sadd.s32 %s86, 1
    %p90 = scmp.eq.s32.totalorder %s10, 1
    %p91 = scmp.ne.s32.totalorder %s86, %s88
    %p92 = scmp.eq.s32.totalorder %s10, 0
    %p93 = por %p91, %p92
    %p94 = scmp.ne.s32.totalorder %s86, %s88
    %p95 = scmp.eq.s32.totalorder %s15, 1
    %p96 = por %p94, %p95
    %p97 = scmp.ne.s32.totalorder %s88, %s89
    %p98 = scmp.eq.s32.totalorder %s15, 0
    %p99 = por %p97, %p98
    %p100 = scmp.ne.s32.totalorder %s88, %s89
    %p101 = scmp.eq.s32.totalorder %s16, 1
    %p102 = por %p100, %p101
    %p104 = scmp.ne.s32.totalorder %s89, %s103
    %p105 = scmp.eq.s32.totalorder %s16, 0
    %p106 = por %p104, %p105
    %s107 = ssub.s32 %s10, %s17
    %p108 = scmp.eq.s32.totalorder %s107, 0
    %s110 = sadd.s32 %s109, 1
    %s111 = scalar_select %p108, %s109, %s110
    %p114 = pneg %p108
    %p115 = scmp.eq.s32.totalorder %s10, 1
    %p116 = por %p114, %p115
    %p117 = scmp.ne.s32.totalorder %s109, %s112
    %p118 = scmp.eq.s32.totalorder %s10, 0
    %p119 = por %p117, %p118
    %p120 = scmp.ne.s32.totalorder %s109, %s112
    %p121 = scmp.eq.s32.totalorder %s15, 1
    %p122 = por %p120, %p121
    %p123 = scmp.ne.s32.totalorder %s112, %s113
    %p124 = scmp.eq.s32.totalorder %s15, 0
    %p125 = por %p123, %p124
    %p126 = scmp.ne.s32.totalorder %s112, %s113
    %p127 = scmp.eq.s32.totalorder %s16, 1
    %p128 = por %p126, %p127
    %p130 = scmp.ne.s32.totalorder %s113, %s129
    %p131 = scmp.eq.s32.totalorder %s16, 0
    %p132 = por %p130, %p131
    %p133 = scmp.le.s32.totalorder 1, %s10
    %p134 = scmp.lt.s32.totalorder %s10, 3
    %p135 = pnand %p133, %p134
    %p136 = pneg %p135
    // Predicated region
    $region9: #{ugcn_forward.25} parent=5 // pred_check
      _
    $region10: #{ugcn_forward.25} parent=5 // pred_check_branch
      %138 = sbr.rel (%p135) target = $region12
    $region11: #{ugcn_forward.25} parent=5 // pred_region
      %s139 = ssub.s32 %s10, 1
      // Predicated region
      $region13: #{ugcn_forward.25} parent=11 // pred_check
        %p140 = pneg %p57
      $region14: #{ugcn_forward.25} parent=11 // pred_check_branch
        %142 = sbr.rel (%p140) target = $region16
      $region15: #{ugcn_forward.25} parent=11 // pred_region
        _
      $region16: #{ugcn_forward.25} parent=11 // pred_fallthru
        _
      // Predicated region
      $region17: #{ugcn_forward.25} parent=11 // pred_check
        %p143 = pneg %p78
      $region18: #{ugcn_forward.25} parent=11 // pred_check_branch
        %145 = sbr.rel (%p143) target = $region20
      $region19: #{ugcn_forward.25} parent=11 // pred_region
        _
      $region20: #{ugcn_forward.25} parent=11 // pred_fallthru
        _
      // Predicated region
      $region21: #{ugcn_forward.25} parent=11 // pred_check
        %p146 = pneg %p99
      $region22: #{ugcn_forward.25} parent=11 // pred_check_branch
        %148 = sbr.rel (%p146) target = $region24
      $region23: #{ugcn_forward.25} parent=11 // pred_region
        _
      $region24: #{ugcn_forward.25} parent=11 // pred_fallthru
        _
    $region12: #{ugcn_forward.25} parent=5 // pred_fallthru
      _
    %p149 = scmp.lt.s32.totalorder %s10, 2
    // Predicated region
    $region25: #{ugcn_forward.25} parent=5 // pred_check
      %p150 = pneg %p149
    $region26: #{ugcn_forward.25} parent=5 // pred_check_branch
      %152 = sbr.rel (%p150) target = $region28
    $region27: #{ugcn_forward.25} parent=5 // pred_region
      // Predicated region
      $region29: #{ugcn_forward.25} parent=27 // pred_check
        %p153 = pneg %p30
      $region30: #{ugcn_forward.25} parent=27 // pred_check_branch
        %155 = sbr.rel (%p153) target = $region32
      $region31: #{ugcn_forward.25} parent=27 // pred_region
        %s156 = smul.u32 16, %s10
        %p157 = scmp.lt.s32.totalorder %s156, 31
        %s158 = scalar_select %p157, %s156, 31
        %s159 = smul.addr %s158, 8
        %s160 = scalar_lea.vmem %s0, %s159
        %s161 = smul.u32 16, %s10
      $region32: #{ugcn_forward.25} parent=27 // pred_fallthru
        _
    $region28: #{ugcn_forward.25} parent=5 // pred_fallthru
      _
    %p162 = scmp.le.s32.totalorder 1, %s10
    %p163 = scmp.lt.s32.totalorder %s10, 3
    %p164 = pnand %p162, %p163
    %p165 = pneg %p164
    // Predicated region
    $region33: #{ugcn_forward.25} parent=5 // pred_check
      _
    $region34: #{ugcn_forward.25} parent=5 // pred_check_branch
      %167 = sbr.rel (%p164) target = $region36
    $region35: #{ugcn_forward.25} parent=5 // pred_region
      %s168 = ssub.s32 %s10, 1
      %s169 = smul.u32 16, %s15
      %p170 = scmp.lt.s32.totalorder %s169, 31
      %s171 = scalar_select %p170, %s169, 31
      %s172 = smul.addr %s171, 8
      %s173 = scalar_lea.vmem %s0, %s172
      %p174 = pneg %p36
      %p175 = pneg %p33
      %p176 = pneg %p57
      %p177 = pneg %p54
      %p178 = pneg %p78
      %p179 = pneg %p75
      %p180 = pneg %p99
      %p181 = pneg %p96
      %p182 = pneg %p125
      %p183 = pneg %p122
      %s184 = smul.u32 16, %s15
      %p185 = scmp.lt.s32.totalorder %s184, 31
      %s186 = scalar_select %p185, %s184, 31
      %s187 = smul.addr %s186, 8
      %s188 = scalar_lea.vmem %s4, %s187
      %s189 = smul.u32 16, %s15
      %p190 = scmp.lt.s32.totalorder %s189, 31
      %s191 = scalar_select %p190, %s189, 31
      %s192 = smul.addr %s191, 8
      %s193 = scalar_lea.vmem %s0, %s192
      %s194 = smul.u32 16, %s15
      %s195 = smul.u32 16, %s15
      %p196 = scmp.lt.s32.totalorder %s195, 31
      %s197 = scalar_select %p196, %s195, 31
      %s198 = smul.addr %s197, 8
      %s199 = scalar_lea.vmem %s4, %s198
      %s200 = smul.u32 16, %s15
      %v201 = vld [vmem:[%s193] sm:$0xff]
      %v202 = vld [vmem:[%s193 + $0x8] sm:$0xff]
      %v203 = vld [vmem:[%s193 + $0x10] sm:$0xff]
      %v204 = vld [vmem:[%s193 + $0x18] sm:$0xff]
      %v205 = vld [vmem:[%s193 + $0x20] sm:$0xff]
      %v206 = vld [vmem:[%s193 + $0x28] sm:$0xff]
      %v207 = vld [vmem:[%s193 + $0x30] sm:$0xff]
      %v208 = vld [vmem:[%s193 + $0x38] sm:$0xff]
      %v209 = vld [vmem:[%s193 + $0x40] sm:$0xff]
      %v210 = vld [vmem:[%s193 + $0x48] sm:$0xff]
      %v211 = vld [vmem:[%s193 + $0x50] sm:$0xff]
      %v212 = vld [vmem:[%s193 + $0x58] sm:$0xff]
      %v213 = vld [vmem:[%s193 + $0x60] sm:$0xff]
      %v214 = vld [vmem:[%s193 + $0x68] sm:$0xff]
      %v215 = vld [vmem:[%s193 + $0x70] sm:$0xff]
      %v216 = vld [vmem:[%s193 + $0x78] sm:$0xff]
      %v217 = vld [vmem:[%s1] sm:$0xff]
      %v218 = vld [vmem:[%s1 + $0x8] sm:$0xff]
      %v219 = vld [vmem:[%s1 + $0x10] sm:$0xff]
      %v220 = vld [vmem:[%s2] sm:$0x1]
      %v222 = vlaneseq
      %v223 = vshrl.u32 %v222, 7
      %v224 = vsub.s32 0, %v223
      %v225 = vrot.slane %v220, %v224
      %vm227 = vcmask 195584
      %v229 = vsel %vm227, %v201, 0
      %v232 = vsel %vm227, %v202, 0
      %v235 = vsel %vm227, %v203, 0
      %v238 = vsel %vm227, %v204, 0
      %v241 = vsel %vm227, %v205, 0
      %v244 = vsel %vm227, %v206, 0
      %v247 = vsel %vm227, %v207, 0
      %v250 = vsel %vm227, %v208, 0
      %v253 = vsel %vm227, %v209, 0
      %v256 = vsel %vm227, %v210, 0
      %v259 = vsel %vm227, %v211, 0
      %v262 = vsel %vm227, %v212, 0
      %v265 = vsel %vm227, %v213, 0
      %v268 = vsel %vm227, %v214, 0
      %v271 = vsel %vm227, %v215, 0
      %v274 = vsel %vm227, %v216, 0
      %276 = vmatprep.subr.mxu0 0.0
      %277 = vmatpush1.msra.mxu0 0.0
      %278 = vmatprep.subr.mxu0 0.0
      %279 = vmatpush1.msra.mxu0 0.0
      %280 = vmatprep.subr.mxu0 0.0
      %281 = vmatpush1.msra.mxu0 0.0
      %282 = vmatprep.subr.mxu0 0.0
      %283 = vmatpush1.msra.mxu0 0.0
      %284 = vmatprep.subr.mxu0 0.0
      %285 = vmatpush1.msra.mxu0 0.0
      %286 = vmatprep.subr.mxu0 0.0
      %287 = vmatpush1.msra.mxu0 0.0
      %288 = vmatprep.subr.mxu0 0.0
      %289 = vmatpush1.msra.mxu0 0.0
      %290 = vmatprep.subr.mxu0 0.0
      %291 = vmatpush1.msra.mxu0 0.0
      %292 = vmatprep.subr.mxu0 0.0
      %293 = vmatpush1.msra.mxu0 0.0
      %294 = vmatprep.subr.mxu0 0.0
      %295 = vmatpush1.msra.mxu0 0.0
      %296 = vmatprep.subr.mxu0 0.0
      %297 = vmatpush1.msra.mxu0 0.0
      %298 = vmatprep.subr.mxu0 0.0
      %299 = vmatpush1.msra.mxu0 0.0
      %300 = vmatprep.subr.mxu0 0.0
      %301 = vmatpush1.msra.mxu0 0.0
      %302 = vmatprep.subr.mxu0 0.0
      %303 = vmatpush1.msra.mxu0 %v219
      %304 = vmatprep.subr.mxu0 0.0
      %305 = vmatpush1.msra.mxu0 %v218
      %306 = vmatprep.subr.mxu0 0.0
      %307 = vmatpush1.msra.mxu0 %v217
      %308 = vmatprep.subr.mxu0 0.0
      %309 = vmatpush2.msra.mxu0 0.0
      %310 = vmatprep.subr.mxu0 0.0
      %311 = vmatpush2.msra.mxu0 0.0
      %312 = vmatprep.subr.mxu0 0.0
      %313 = vmatpush2.msra.mxu0 0.0
      %314 = vmatprep.subr.mxu0 0.0
      %315 = vmatpush2.msra.mxu0 0.0
      %316 = vmatprep.subr.mxu0 0.0
      %317 = vmatpush2.msra.mxu0 0.0
      %318 = vmatprep.subr.mxu0 0.0
      %319 = vmatpush2.msra.mxu0 0.0
      %320 = vmatprep.subr.mxu0 0.0
      %321 = vmatpush2.msra.mxu0 0.0
      %322 = vmatprep.subr.mxu0 0.0
      %323 = vmatpush2.msra.mxu0 0.0
      %324 = vmatprep.subr.mxu0 0.0
      %325 = vmatpush2.msra.mxu0 0.0
      %326 = vmatprep.subr.mxu0 0.0
      %327 = vmatpush2.msra.mxu0 0.0
      %328 = vmatprep.subr.mxu0 0.0
      %329 = vmatpush2.msra.mxu0 0.0
      %330 = vmatprep.subr.mxu0 0.0
      %331 = vmatpush2.msra.mxu0 0.0
      %332 = vmatprep.subr.mxu0 0.0
      %333 = vmatpush2.msra.mxu0 0.0
      %334 = vmatprep.subr.mxu0 0.0
      %335 = vmatpush2.msra.mxu0 0.0
      %336 = vmatprep.subr.mxu0 0.0
      %337 = vmatpush2.msra.mxu0 0.0
      %338 = vmatprep.subr.mxu0 0.0
      %339 = vmatpush2.msra.mxu0 0.0
      %340 = vmatprep.mubr.f32.mxu0 0.0
      %341 = vmatmul.mubr.f32.gmra.mxu0 %v229
      %v342 = vpop.f32.mrf.mxu0
      %v343 = vadd.f32 %v225, %v342
      %v344 = vpop.f32.mrf.mxu0
      %345 = vmatprep.mubr.f32.mxu0 0.0
      %346 = vmatmul.mubr.f32.gmra.mxu0 %v232
      %v347 = vpop.f32.mrf.mxu0
      %v348 = vadd.f32 %v225, %v347
      %v349 = vpop.f32.mrf.mxu0
      %350 = vmatprep.mubr.f32.mxu0 0.0
      %351 = vmatmul.mubr.f32.gmra.mxu0 %v235
      %v352 = vpop.f32.mrf.mxu0
      %v353 = vadd.f32 %v225, %v352
      %v354 = vpop.f32.mrf.mxu0
      %355 = vmatprep.mubr.f32.mxu0 0.0
      %356 = vmatmul.mubr.f32.gmra.mxu0 %v238
      %v357 = vpop.f32.mrf.mxu0
      %v358 = vadd.f32 %v225, %v357
      %v359 = vpop.f32.mrf.mxu0
      %360 = vmatprep.mubr.f32.mxu0 0.0
      %361 = vmatmul.mubr.f32.gmra.mxu0 %v241
      %v362 = vpop.f32.mrf.mxu0
      %v363 = vadd.f32 %v225, %v362
      %v364 = vpop.f32.mrf.mxu0
      %365 = vmatprep.mubr.f32.mxu0 0.0
      %366 = vmatmul.mubr.f32.gmra.mxu0 %v244
      %v367 = vpop.f32.mrf.mxu0
      %v368 = vadd.f32 %v225, %v367
      %v369 = vpop.f32.mrf.mxu0
      %370 = vmatprep.mubr.f32.mxu0 0.0
      %371 = vmatmul.mubr.f32.gmra.mxu0 %v247
      %v372 = vpop.f32.mrf.mxu0
      %v373 = vadd.f32 %v225, %v372
      %v374 = vpop.f32.mrf.mxu0
      %375 = vmatprep.mubr.f32.mxu0 0.0
      %376 = vmatmul.mubr.f32.gmra.mxu0 %v250
      %v377 = vpop.f32.mrf.mxu0
      %v378 = vadd.f32 %v225, %v377
      %v379 = vpop.f32.mrf.mxu0
      %380 = vmatprep.mubr.f32.mxu0 0.0
      %381 = vmatmul.mubr.f32.gmra.mxu0 %v253
      %v382 = vpop.f32.mrf.mxu0
      %v383 = vadd.f32 %v225, %v382
      %v384 = vpop.f32.mrf.mxu0
      %385 = vmatprep.mubr.f32.mxu0 0.0
      %386 = vmatmul.mubr.f32.gmra.mxu0 %v256
      %v387 = vpop.f32.mrf.mxu0
      %v388 = vadd.f32 %v225, %v387
      %v389 = vpop.f32.mrf.mxu0
      %390 = vmatprep.mubr.f32.mxu0 0.0
      %391 = vmatmul.mubr.f32.gmra.mxu0 %v259
      %v392 = vpop.f32.mrf.mxu0
      %v393 = vadd.f32 %v225, %v392
      %v394 = vpop.f32.mrf.mxu0
      %395 = vmatprep.mubr.f32.mxu0 0.0
      %396 = vmatmul.mubr.f32.gmra.mxu0 %v262
      %v397 = vpop.f32.mrf.mxu0
      %v398 = vadd.f32 %v225, %v397
      %v399 = vpop.f32.mrf.mxu0
      %400 = vmatprep.mubr.f32.mxu0 0.0
      %401 = vmatmul.mubr.f32.gmra.mxu0 %v265
      %v402 = vpop.f32.mrf.mxu0
      %v403 = vadd.f32 %v225, %v402
      %v404 = vpop.f32.mrf.mxu0
      %405 = vmatprep.mubr.f32.mxu0 0.0
      %406 = vmatmul.mubr.f32.gmra.mxu0 %v268
      %v407 = vpop.f32.mrf.mxu0
      %v408 = vadd.f32 %v225, %v407
      %v409 = vpop.f32.mrf.mxu0
      %410 = vmatprep.mubr.f32.mxu0 0.0
      %411 = vmatmul.mubr.f32.gmra.mxu0 %v271
      %v412 = vpop.f32.mrf.mxu0
      %v413 = vadd.f32 %v225, %v412
      %v414 = vpop.f32.mrf.mxu0
      %415 = vmatprep.mubr.f32.mxu0 0.0
      %416 = vmatmul.mubr.f32.gmra.mxu0 %v274
      %v417 = vpop.f32.mrf.mxu0
      %v418 = vadd.f32 %v225, %v417
      %v419 = vpop.f32.mrf.mxu0
      %420 = vdwg.mxu0
      %v421 = vtanh.pop %v343
      %v422 = vtanh.pop %v348
      %v423 = vtanh.pop %v353
      %v424 = vtanh.pop %v358
      %v425 = vtanh.pop %v363
      %v426 = vtanh.pop %v368
      %v427 = vtanh.pop %v373
      %v428 = vtanh.pop %v378
      %v429 = vtanh.pop %v383
      %v430 = vtanh.pop %v388
      %v431 = vtanh.pop %v393
      %v432 = vtanh.pop %v398
      %v433 = vtanh.pop %v403
      %v434 = vtanh.pop %v408
      %v435 = vtanh.pop %v413
      %v436 = vtanh.pop %v418
      %v437 = vld [vmem:[%s3] sm:$0xff]
      %v438 = vld [vmem:[%s3 + $0x8] sm:$0xff]
      %v439 = vld [vmem:[%s3 + $0x10] sm:$0xff]
      %v441 = vsel %vm227, %v421, 0
      %v444 = vsel %vm227, %v422, 0
      %v447 = vsel %vm227, %v423, 0
      %v450 = vsel %vm227, %v424, 0
      %v453 = vsel %vm227, %v425, 0
      %v456 = vsel %vm227, %v426, 0
      %v459 = vsel %vm227, %v427, 0
      %v462 = vsel %vm227, %v428, 0
      %v465 = vsel %vm227, %v429, 0
      %v468 = vsel %vm227, %v430, 0
      %v471 = vsel %vm227, %v431, 0
      %v474 = vsel %vm227, %v432, 0
      %v477 = vsel %vm227, %v433, 0
      %v480 = vsel %vm227, %v434, 0
      %v483 = vsel %vm227, %v435, 0
      %v486 = vsel %vm227, %v436, 0
      %488 = vmatprep.subr.mxu0 0.0
      %489 = vmatpush1.msra.mxu0 0.0
      %490 = vmatprep.subr.mxu0 0.0
      %491 = vmatpush1.msra.mxu0 0.0
      %492 = vmatprep.subr.mxu0 0.0
      %493 = vmatpush1.msra.mxu0 0.0
      %494 = vmatprep.subr.mxu0 0.0
      %495 = vmatpush1.msra.mxu0 0.0
      %496 = vmatprep.subr.mxu0 0.0
      %497 = vmatpush1.msra.mxu0 0.0
      %498 = vmatprep.subr.mxu0 0.0
      %499 = vmatpush1.msra.mxu0 0.0
      %500 = vmatprep.subr.mxu0 0.0
      %501 = vmatpush1.msra.mxu0 0.0
      %502 = vmatprep.subr.mxu0 0.0
      %503 = vmatpush1.msra.mxu0 0.0
      %504 = vmatprep.subr.mxu0 0.0
      %505 = vmatpush1.msra.mxu0 0.0
      %506 = vmatprep.subr.mxu0 0.0
      %507 = vmatpush1.msra.mxu0 0.0
      %508 = vmatprep.subr.mxu0 0.0
      %509 = vmatpush1.msra.mxu0 0.0
      %510 = vmatprep.subr.mxu0 0.0
      %511 = vmatpush1.msra.mxu0 0.0
      %512 = vmatprep.subr.mxu0 0.0
      %513 = vmatpush1.msra.mxu0 0.0
      %514 = vmatprep.subr.mxu0 0.0
      %515 = vmatpush1.msra.mxu0 %v439
      %516 = vmatprep.subr.mxu0 0.0
      %517 = vmatpush1.msra.mxu0 %v438
      %518 = vmatprep.subr.mxu0 0.0
      %519 = vmatpush1.msra.mxu0 %v437
      %520 = vmatprep.subr.mxu0 0.0
      %521 = vmatpush2.msra.mxu0 0.0
      %522 = vmatprep.subr.mxu0 0.0
      %523 = vmatpush2.msra.mxu0 0.0
      %524 = vmatprep.subr.mxu0 0.0
      %525 = vmatpush2.msra.mxu0 0.0
      %526 = vmatprep.subr.mxu0 0.0
      %527 = vmatpush2.msra.mxu0 0.0
      %528 = vmatprep.subr.mxu0 0.0
      %529 = vmatpush2.msra.mxu0 0.0
      %530 = vmatprep.subr.mxu0 0.0
      %531 = vmatpush2.msra.mxu0 0.0
      %532 = vmatprep.subr.mxu0 0.0
      %533 = vmatpush2.msra.mxu0 0.0
      %534 = vmatprep.subr.mxu0 0.0
      %535 = vmatpush2.msra.mxu0 0.0
      %536 = vmatprep.subr.mxu0 0.0
      %537 = vmatpush2.msra.mxu0 0.0
      %538 = vmatprep.subr.mxu0 0.0
      %539 = vmatpush2.msra.mxu0 0.0
      %540 = vmatprep.subr.mxu0 0.0
      %541 = vmatpush2.msra.mxu0 0.0
      %542 = vmatprep.subr.mxu0 0.0
      %543 = vmatpush2.msra.mxu0 0.0
      %544 = vmatprep.subr.mxu0 0.0
      %545 = vmatpush2.msra.mxu0 0.0
      %546 = vmatprep.subr.mxu0 0.0
      %547 = vmatpush2.msra.mxu0 0.0
      %548 = vmatprep.subr.mxu0 0.0
      %549 = vmatpush2.msra.mxu0 0.0
      %550 = vmatprep.subr.mxu0 0.0
      %551 = vmatpush2.msra.mxu0 0.0
      %552 = vmatprep.mubr.f32.mxu0 0.0
      %553 = vmatmul.mubr.f32.gmra.mxu0 %v441
      %v554 = vpop.f32.mrf.mxu0
      %v555 = vadd.f32 0.0, %v554
      %v556 = vpop.f32.mrf.mxu0
      %557 = vmatprep.mubr.f32.mxu0 0.0
      %558 = vmatmul.mubr.f32.gmra.mxu0 %v444
      %v559 = vpop.f32.mrf.mxu0
      %v560 = vadd.f32 0.0, %v559
      %v561 = vpop.f32.mrf.mxu0
      %562 = vmatprep.mubr.f32.mxu0 0.0
      %563 = vmatmul.mubr.f32.gmra.mxu0 %v447
      %v564 = vpop.f32.mrf.mxu0
      %v565 = vadd.f32 0.0, %v564
      %v566 = vpop.f32.mrf.mxu0
      %567 = vmatprep.mubr.f32.mxu0 0.0
      %568 = vmatmul.mubr.f32.gmra.mxu0 %v450
      %v569 = vpop.f32.mrf.mxu0
      %v570 = vadd.f32 0.0, %v569
      %v571 = vpop.f32.mrf.mxu0
      %572 = vmatprep.mubr.f32.mxu0 0.0
      %573 = vmatmul.mubr.f32.gmra.mxu0 %v453
      %v574 = vpop.f32.mrf.mxu0
      %v575 = vadd.f32 0.0, %v574
      %v576 = vpop.f32.mrf.mxu0
      %577 = vmatprep.mubr.f32.mxu0 0.0
      %578 = vmatmul.mubr.f32.gmra.mxu0 %v456
      %v579 = vpop.f32.mrf.mxu0
      %v580 = vadd.f32 0.0, %v579
      %v581 = vpop.f32.mrf.mxu0
      %582 = vmatprep.mubr.f32.mxu0 0.0
      %583 = vmatmul.mubr.f32.gmra.mxu0 %v459
      %v584 = vpop.f32.mrf.mxu0
      %v585 = vadd.f32 0.0, %v584
      %v586 = vpop.f32.mrf.mxu0
      %587 = vmatprep.mubr.f32.mxu0 0.0
      %588 = vmatmul.mubr.f32.gmra.mxu0 %v462
      %v589 = vpop.f32.mrf.mxu0
      %v590 = vadd.f32 0.0, %v589
      %v591 = vpop.f32.mrf.mxu0
      %592 = vmatprep.mubr.f32.mxu0 0.0
      %593 = vmatmul.mubr.f32.gmra.mxu0 %v465
      %v594 = vpop.f32.mrf.mxu0
      %v595 = vadd.f32 0.0, %v594
      %v596 = vpop.f32.mrf.mxu0
      %597 = vmatprep.mubr.f32.mxu0 0.0
      %598 = vmatmul.mubr.f32.gmra.mxu0 %v468
      %v599 = vpop.f32.mrf.mxu0
      %v600 = vadd.f32 0.0, %v599
      %v601 = vpop.f32.mrf.mxu0
      %602 = vmatprep.mubr.f32.mxu0 0.0
      %603 = vmatmul.mubr.f32.gmra.mxu0 %v471
      %v604 = vpop.f32.mrf.mxu0
      %v605 = vadd.f32 0.0, %v604
      %v606 = vpop.f32.mrf.mxu0
      %607 = vmatprep.mubr.f32.mxu0 0.0
      %608 = vmatmul.mubr.f32.gmra.mxu0 %v474
      %v609 = vpop.f32.mrf.mxu0
      %v610 = vadd.f32 0.0, %v609
      %v611 = vpop.f32.mrf.mxu0
      %612 = vmatprep.mubr.f32.mxu0 0.0
      %613 = vmatmul.mubr.f32.gmra.mxu0 %v477
      %v614 = vpop.f32.mrf.mxu0
      %v615 = vadd.f32 0.0, %v614
      %v616 = vpop.f32.mrf.mxu0
      %617 = vmatprep.mubr.f32.mxu0 0.0
      %618 = vmatmul.mubr.f32.gmra.mxu0 %v480
      %v619 = vpop.f32.mrf.mxu0
      %v620 = vadd.f32 0.0, %v619
      %v621 = vpop.f32.mrf.mxu0
      %622 = vmatprep.mubr.f32.mxu0 0.0
      %623 = vmatmul.mubr.f32.gmra.mxu0 %v483
      %v624 = vpop.f32.mrf.mxu0
      %v625 = vadd.f32 0.0, %v624
      %v626 = vpop.f32.mrf.mxu0
      %627 = vmatprep.mubr.f32.mxu0 0.0
      %628 = vmatmul.mubr.f32.gmra.mxu0 %v486
      %v629 = vpop.f32.mrf.mxu0
      %v630 = vadd.f32 0.0, %v629
      %v631 = vpop.f32.mrf.mxu0
      %632 = vdwg.mxu0
      %vm633 = vcmask 23552
      %v634 = vsel %vm633, %v555, -inf
      %635 = vmax.xlane.f32.xlu0 %v634
      %v636 = vpop.xlane.xlu0 %635
      %v637 = vsel %vm633, %v560, -inf
      %638 = vmax.xlane.f32.xlu0 %v637
      %v639 = vpop.xlane.xlu0 %638
      %v640 = vsel %vm633, %v565, -inf
      %641 = vmax.xlane.f32.xlu0 %v640
      %v642 = vpop.xlane.xlu0 %641
      %v643 = vsel %vm633, %v570, -inf
      %644 = vmax.xlane.f32.xlu0 %v643
      %v645 = vpop.xlane.xlu0 %644
      %v646 = vsel %vm633, %v575, -inf
      %647 = vmax.xlane.f32.xlu0 %v646
      %v648 = vpop.xlane.xlu0 %647
      %v649 = vsel %vm633, %v580, -inf
      %650 = vmax.xlane.f32.xlu0 %v649
      %v651 = vpop.xlane.xlu0 %650
      %v652 = vsel %vm633, %v585, -inf
      %653 = vmax.xlane.f32.xlu0 %v652
      %v654 = vpop.xlane.xlu0 %653
      %v655 = vsel %vm633, %v590, -inf
      %656 = vmax.xlane.f32.xlu0 %v655
      %v657 = vpop.xlane.xlu0 %656
      %v658 = vsel %vm633, %v595, -inf
      %659 = vmax.xlane.f32.xlu0 %v658
      %v660 = vpop.xlane.xlu0 %659
      %v661 = vsel %vm633, %v600, -inf
      %662 = vmax.xlane.f32.xlu0 %v661
      %v663 = vpop.xlane.xlu0 %662
      %v664 = vsel %vm633, %v605, -inf
      %665 = vmax.xlane.f32.xlu0 %v664
      %v666 = vpop.xlane.xlu0 %665
      %v667 = vsel %vm633, %v610, -inf
      %668 = vmax.xlane.f32.xlu0 %v667
      %v669 = vpop.xlane.xlu0 %668
      %v670 = vsel %vm633, %v615, -inf
      %671 = vmax.xlane.f32.xlu0 %v670
      %v672 = vpop.xlane.xlu0 %671
      %v673 = vsel %vm633, %v620, -inf
      %674 = vmax.xlane.f32.xlu0 %v673
      %v675 = vpop.xlane.xlu0 %674
      %v676 = vsel %vm633, %v625, -inf
      %677 = vmax.xlane.f32.xlu0 %v676
      %v678 = vpop.xlane.xlu0 %677
      %v679 = vsel %vm633, %v630, -inf
      %680 = vmax.xlane.f32.xlu0 %v679
      %v681 = vpop.xlane.xlu0 %680
      %v682 = vsub.f32 %v555, %v636
      %v683 = vsub.f32 %v560, %v639
      %v684 = vsub.f32 %v565, %v642
      %v685 = vsub.f32 %v570, %v645
      %v686 = vsub.f32 %v575, %v648
      %v687 = vsub.f32 %v580, %v651
      %v688 = vsub.f32 %v585, %v654
      %v689 = vsub.f32 %v590, %v657
      %v690 = vsub.f32 %v595, %v660
      %v691 = vsub.f32 %v600, %v663
      %v692 = vsub.f32 %v605, %v666
      %v693 = vsub.f32 %v610, %v669
      %v694 = vsub.f32 %v615, %v672
      %v695 = vsub.f32 %v620, %v675
      %v696 = vsub.f32 %v625, %v678
      %v697 = vsub.f32 %v630, %v681
      %v698 = vmul.f32 %v682, 1.442695
      %v699 = vpow.pop %v698
      %v700 = vmul.f32 %v683, 1.442695
      %v701 = vpow.pop %v700
      %v702 = vmul.f32 %v684, 1.442695
      %v703 = vpow.pop %v702
      %v704 = vmul.f32 %v685, 1.442695
      %v705 = vpow.pop %v704
      %v706 = vmul.f32 %v686, 1.442695
      %v707 = vpow.pop %v706
      %v708 = vmul.f32 %v687, 1.442695
      %v709 = vpow.pop %v708
      %v710 = vmul.f32 %v688, 1.442695
      %v711 = vpow.pop %v710
      %v712 = vmul.f32 %v689, 1.442695
      %v713 = vpow.pop %v712
      %v714 = vmul.f32 %v690, 1.442695
      %v715 = vpow.pop %v714
      %v716 = vmul.f32 %v691, 1.442695
      %v717 = vpow.pop %v716
      %v718 = vmul.f32 %v692, 1.442695
      %v719 = vpow.pop %v718
      %v720 = vmul.f32 %v693, 1.442695
      %v721 = vpow.pop %v720
      %v722 = vmul.f32 %v694, 1.442695
      %v723 = vpow.pop %v722
      %v724 = vmul.f32 %v695, 1.442695
      %v725 = vpow.pop %v724
      %v726 = vmul.f32 %v696, 1.442695
      %v727 = vpow.pop %v726
      %v728 = vmul.f32 %v697, 1.442695
      %v729 = vpow.pop %v728
      %v730 = vsel %vm633, %v699, 0.0
      %731 = vadd.xlane.f32.xlu0 %v730
      %v732 = vpop.xlane.xlu0 %731
      %v733 = vsel %vm633, %v701, 0.0
      %734 = vadd.xlane.f32.xlu0 %v733
      %v735 = vpop.xlane.xlu0 %734
      %v736 = vsel %vm633, %v703, 0.0
      %737 = vadd.xlane.f32.xlu0 %v736
      %v738 = vpop.xlane.xlu0 %737
      %v739 = vsel %vm633, %v705, 0.0
      %740 = vadd.xlane.f32.xlu0 %v739
      %v741 = vpop.xlane.xlu0 %740
      %v742 = vsel %vm633, %v707, 0.0
      %743 = vadd.xlane.f32.xlu0 %v742
      %v744 = vpop.xlane.xlu0 %743
      %v745 = vsel %vm633, %v709, 0.0
      %746 = vadd.xlane.f32.xlu0 %v745
      %v747 = vpop.xlane.xlu0 %746
      %v748 = vsel %vm633, %v711, 0.0
      %749 = vadd.xlane.f32.xlu0 %v748
      %v750 = vpop.xlane.xlu0 %749
      %v751 = vsel %vm633, %v713, 0.0
      %752 = vadd.xlane.f32.xlu0 %v751
      %v753 = vpop.xlane.xlu0 %752
      %v754 = vsel %vm633, %v715, 0.0
      %755 = vadd.xlane.f32.xlu0 %v754
      %v756 = vpop.xlane.xlu0 %755
      %v757 = vsel %vm633, %v717, 0.0
      %758 = vadd.xlane.f32.xlu0 %v757
      %v759 = vpop.xlane.xlu0 %758
      %v760 = vsel %vm633, %v719, 0.0
      %761 = vadd.xlane.f32.xlu0 %v760
      %v762 = vpop.xlane.xlu0 %761
      %v763 = vsel %vm633, %v721, 0.0
      %764 = vadd.xlane.f32.xlu0 %v763
      %v765 = vpop.xlane.xlu0 %764
      %v766 = vsel %vm633, %v723, 0.0
      %767 = vadd.xlane.f32.xlu0 %v766
      %v768 = vpop.xlane.xlu0 %767
      %v769 = vsel %vm633, %v725, 0.0
      %770 = vadd.xlane.f32.xlu0 %v769
      %v771 = vpop.xlane.xlu0 %770
      %v772 = vsel %vm633, %v727, 0.0
      %773 = vadd.xlane.f32.xlu0 %v772
      %v774 = vpop.xlane.xlu0 %773
      %v775 = vsel %vm633, %v729, 0.0
      %776 = vadd.xlane.f32.xlu0 %v775
      %v777 = vpop.xlane.xlu0 %776
      %v778 = vrcp.pop %v732
      %v779 = vrcp.pop %v735
      %v780 = vrcp.pop %v738
      %v781 = vrcp.pop %v741
      %v782 = vrcp.pop %v744
      %v783 = vrcp.pop %v747
      %v784 = vrcp.pop %v750
      %v785 = vrcp.pop %v753
      %v786 = vrcp.pop %v756
      %v787 = vrcp.pop %v759
      %v788 = vrcp.pop %v762
      %v789 = vrcp.pop %v765
      %v790 = vrcp.pop %v768
      %v791 = vrcp.pop %v771
      %v792 = vrcp.pop %v774
      %v793 = vrcp.pop %v777
      %v794 = vmul.f32 %v699, %v778
      %v795 = vmul.f32 %v701, %v779
      %v796 = vmul.f32 %v703, %v780
      %v797 = vmul.f32 %v705, %v781
      %v798 = vmul.f32 %v707, %v782
      %v799 = vmul.f32 %v709, %v783
      %v800 = vmul.f32 %v711, %v784
      %v801 = vmul.f32 %v713, %v785
      %v802 = vmul.f32 %v715, %v786
      %v803 = vmul.f32 %v717, %v787
      %v804 = vmul.f32 %v719, %v788
      %v805 = vmul.f32 %v721, %v789
      %v806 = vmul.f32 %v723, %v790
      %v807 = vmul.f32 %v725, %v791
      %v808 = vmul.f32 %v727, %v792
      %v809 = vmul.f32 %v729, %v793
      %811 = vset.pattern.permute.xlu0 0
      %812 = vperm.xlu0 %811, %v794
      %v813 = vpop.permute.xlu0 %812
      %816 = vset.pattern.permute.xlu0 0
      %817 = vperm.xlu0 %816, %v795
      %v818 = vpop.permute.xlu0 %817
      %821 = vset.pattern.permute.xlu0 0
      %822 = vperm.xlu0 %821, %v796
      %v823 = vpop.permute.xlu0 %822
      %826 = vset.pattern.permute.xlu0 0
      %827 = vperm.xlu0 %826, %v797
      %v828 = vpop.permute.xlu0 %827
      %831 = vset.pattern.permute.xlu0 0
      %832 = vperm.xlu0 %831, %v798
      %v833 = vpop.permute.xlu0 %832
      %836 = vset.pattern.permute.xlu0 0
      %837 = vperm.xlu0 %836, %v799
      %v838 = vpop.permute.xlu0 %837
      %841 = vset.pattern.permute.xlu0 0
      %842 = vperm.xlu0 %841, %v800
      %v843 = vpop.permute.xlu0 %842
      %846 = vset.pattern.permute.xlu0 0
      %847 = vperm.xlu0 %846, %v801
      %v848 = vpop.permute.xlu0 %847
      %851 = vset.pattern.permute.xlu0 0
      %852 = vperm.xlu0 %851, %v802
      %v853 = vpop.permute.xlu0 %852
      %856 = vset.pattern.permute.xlu0 0
      %857 = vperm.xlu0 %856, %v803
      %v858 = vpop.permute.xlu0 %857
      %861 = vset.pattern.permute.xlu0 0
      %862 = vperm.xlu0 %861, %v804
      %v863 = vpop.permute.xlu0 %862
      %866 = vset.pattern.permute.xlu0 0
      %867 = vperm.xlu0 %866, %v805
      %v868 = vpop.permute.xlu0 %867
      %871 = vset.pattern.permute.xlu0 0
      %872 = vperm.xlu0 %871, %v806
      %v873 = vpop.permute.xlu0 %872
      %876 = vset.pattern.permute.xlu0 0
      %877 = vperm.xlu0 %876, %v807
      %v878 = vpop.permute.xlu0 %877
      %881 = vset.pattern.permute.xlu0 0
      %882 = vperm.xlu0 %881, %v808
      %v883 = vpop.permute.xlu0 %882
      %886 = vset.pattern.permute.xlu0 0
      %887 = vperm.xlu0 %886, %v809
      %v888 = vpop.permute.xlu0 %887
      %v890 = vmul.f32 %v813, %v201
      %v891 = vmul.f32 %v818, %v202
      %v892 = vmul.f32 %v823, %v203
      %v893 = vmul.f32 %v828, %v204
      %v894 = vmul.f32 %v833, %v205
      %v895 = vmul.f32 %v838, %v206
      %v896 = vmul.f32 %v843, %v207
      %v897 = vmul.f32 %v848, %v208
      %v898 = vmul.f32 %v853, %v209
      %v899 = vmul.f32 %v858, %v210
      %v900 = vmul.f32 %v863, %v211
      %v901 = vmul.f32 %v868, %v212
      %v902 = vmul.f32 %v873, %v213
      %v903 = vmul.f32 %v878, %v214
      %v904 = vmul.f32 %v883, %v215
      %v905 = vmul.f32 %v888, %v216
      %906 = vset.pattern.permute.xlu0 1
      %907 = vperm.xlu0 %906, %v794
      %v908 = vpop.permute.xlu0 %907
      %910 = vset.pattern.permute.xlu0 1
      %911 = vperm.xlu0 %910, %v795
      %v912 = vpop.permute.xlu0 %911
      %914 = vset.pattern.permute.xlu0 1
      %915 = vperm.xlu0 %914, %v796
      %v916 = vpop.permute.xlu0 %915
      %918 = vset.pattern.permute.xlu0 1
      %919 = vperm.xlu0 %918, %v797
      %v920 = vpop.permute.xlu0 %919
      %922 = vset.pattern.permute.xlu0 1
      %923 = vperm.xlu0 %922, %v798
      %v924 = vpop.permute.xlu0 %923
      %926 = vset.pattern.permute.xlu0 1
      %927 = vperm.xlu0 %926, %v799
      %v928 = vpop.permute.xlu0 %927
      %930 = vset.pattern.permute.xlu0 1
      %931 = vperm.xlu0 %930, %v800
      %v932 = vpop.permute.xlu0 %931
      %934 = vset.pattern.permute.xlu0 1
      %935 = vperm.xlu0 %934, %v801
      %v936 = vpop.permute.xlu0 %935
      %938 = vset.pattern.permute.xlu0 1
      %939 = vperm.xlu0 %938, %v802
      %v940 = vpop.permute.xlu0 %939
      %942 = vset.pattern.permute.xlu0 1
      %943 = vperm.xlu0 %942, %v803
      %v944 = vpop.permute.xlu0 %943
      %946 = vset.pattern.permute.xlu0 1
      %947 = vperm.xlu0 %946, %v804
      %v948 = vpop.permute.xlu0 %947
      %950 = vset.pattern.permute.xlu0 1
      %951 = vperm.xlu0 %950, %v805
      %v952 = vpop.permute.xlu0 %951
      %954 = vset.pattern.permute.xlu0 1
      %955 = vperm.xlu0 %954, %v806
      %v956 = vpop.permute.xlu0 %955
      %958 = vset.pattern.permute.xlu0 1
      %959 = vperm.xlu0 %958, %v807
      %v960 = vpop.permute.xlu0 %959
      %962 = vset.pattern.permute.xlu0 1
      %963 = vperm.xlu0 %962, %v808
      %v964 = vpop.permute.xlu0 %963
      %966 = vset.pattern.permute.xlu0 1
      %967 = vperm.xlu0 %966, %v809
      %v968 = vpop.permute.xlu0 %967
      %v970 = vmul.f32 %v908, %v201
      %v971 = vmul.f32 %v912, %v202
      %v972 = vmul.f32 %v916, %v203
      %v973 = vmul.f32 %v920, %v204
      %v974 = vmul.f32 %v924, %v205
      %v975 = vmul.f32 %v928, %v206
      %v976 = vmul.f32 %v932, %v207
      %v977 = vmul.f32 %v936, %v208
      %v978 = vmul.f32 %v940, %v209
      %v979 = vmul.f32 %v944, %v210
      %v980 = vmul.f32 %v948, %v211
      %v981 = vmul.f32 %v952, %v212
      %v982 = vmul.f32 %v956, %v213
      %v983 = vmul.f32 %v960, %v214
      %v984 = vmul.f32 %v964, %v215
      %v985 = vmul.f32 %v968, %v216
      %1002 = vrot.lane.b32.xlu0 %v970, 120
      %v1003 = vpop.permute.xlu0 %1002
      %1004 = vrot.lane.b32.xlu0 %v971, 120
      %v1005 = vpop.permute.xlu0 %1004
      %1006 = vrot.lane.b32.xlu0 %v972, 120
      %v1007 = vpop.permute.xlu0 %1006
      %1008 = vrot.lane.b32.xlu0 %v973, 120
      %v1009 = vpop.permute.xlu0 %1008
      %1010 = vrot.lane.b32.xlu0 %v974, 120
      %v1011 = vpop.permute.xlu0 %1010
      %1012 = vrot.lane.b32.xlu0 %v975, 120
      %v1013 = vpop.permute.xlu0 %1012
      %1014 = vrot.lane.b32.xlu0 %v976, 120
      %v1015 = vpop.permute.xlu0 %1014
      %1016 = vrot.lane.b32.xlu0 %v977, 120
      %v1017 = vpop.permute.xlu0 %1016
      %1018 = vrot.lane.b32.xlu0 %v978, 120
      %v1019 = vpop.permute.xlu0 %1018
      %1020 = vrot.lane.b32.xlu0 %v979, 120
      %v1021 = vpop.permute.xlu0 %1020
      %1022 = vrot.lane.b32.xlu0 %v980, 120
      %v1023 = vpop.permute.xlu0 %1022
      %1024 = vrot.lane.b32.xlu0 %v981, 120
      %v1025 = vpop.permute.xlu0 %1024
      %1026 = vrot.lane.b32.xlu0 %v982, 120
      %v1027 = vpop.permute.xlu0 %1026
      %1028 = vrot.lane.b32.xlu0 %v983, 120
      %v1029 = vpop.permute.xlu0 %1028
      %1030 = vrot.lane.b32.xlu0 %v984, 120
      %v1031 = vpop.permute.xlu0 %1030
      %1032 = vrot.lane.b32.xlu0 %v985, 120
      %v1033 = vpop.permute.xlu0 %1032
      %v1050 = vadd.f32 %v890, %v1003
      %v1051 = vadd.f32 %v891, %v1005
      %v1052 = vadd.f32 %v892, %v1007
      %v1053 = vadd.f32 %v893, %v1009
      %v1054 = vadd.f32 %v894, %v1011
      %v1055 = vadd.f32 %v895, %v1013
      %v1056 = vadd.f32 %v896, %v1015
      %v1057 = vadd.f32 %v897, %v1017
      %v1058 = vadd.f32 %v898, %v1019
      %v1059 = vadd.f32 %v899, %v1021
      %v1060 = vadd.f32 %v900, %v1023
      %v1061 = vadd.f32 %v901, %v1025
      %v1062 = vadd.f32 %v902, %v1027
      %v1063 = vadd.f32 %v903, %v1029
      %v1064 = vadd.f32 %v904, %v1031
      %v1065 = vadd.f32 %v905, %v1033
      %1066 = vset.pattern.permute.xlu0 2
      %1067 = vperm.xlu0 %1066, %v794
      %v1068 = vpop.permute.xlu0 %1067
      %1070 = vset.pattern.permute.xlu0 2
      %1071 = vperm.xlu0 %1070, %v795
      %v1072 = vpop.permute.xlu0 %1071
      %1074 = vset.pattern.permute.xlu0 2
      %1075 = vperm.xlu0 %1074, %v796
      %v1076 = vpop.permute.xlu0 %1075
      %1078 = vset.pattern.permute.xlu0 2
      %1079 = vperm.xlu0 %1078, %v797
      %v1080 = vpop.permute.xlu0 %1079
      %1082 = vset.pattern.permute.xlu0 2
      %1083 = vperm.xlu0 %1082, %v798
      %v1084 = vpop.permute.xlu0 %1083
      %1086 = vset.pattern.permute.xlu0 2
      %1087 = vperm.xlu0 %1086, %v799
      %v1088 = vpop.permute.xlu0 %1087
      %1090 = vset.pattern.permute.xlu0 2
      %1091 = vperm.xlu0 %1090, %v800
      %v1092 = vpop.permute.xlu0 %1091
      %1094 = vset.pattern.permute.xlu0 2
      %1095 = vperm.xlu0 %1094, %v801
      %v1096 = vpop.permute.xlu0 %1095
      %1098 = vset.pattern.permute.xlu0 2
      %1099 = vperm.xlu0 %1098, %v802
      %v1100 = vpop.permute.xlu0 %1099
      %1102 = vset.pattern.permute.xlu0 2
      %1103 = vperm.xlu0 %1102, %v803
      %v1104 = vpop.permute.xlu0 %1103
      %1106 = vset.pattern.permute.xlu0 2
      %1107 = vperm.xlu0 %1106, %v804
      %v1108 = vpop.permute.xlu0 %1107
      %1110 = vset.pattern.permute.xlu0 2
      %1111 = vperm.xlu0 %1110, %v805
      %v1112 = vpop.permute.xlu0 %1111
      %1114 = vset.pattern.permute.xlu0 2
      %1115 = vperm.xlu0 %1114, %v806
      %v1116 = vpop.permute.xlu0 %1115
      %1118 = vset.pattern.permute.xlu0 2
      %1119 = vperm.xlu0 %1118, %v807
      %v1120 = vpop.permute.xlu0 %1119
      %1122 = vset.pattern.permute.xlu0 2
      %1123 = vperm.xlu0 %1122, %v808
      %v1124 = vpop.permute.xlu0 %1123
      %1126 = vset.pattern.permute.xlu0 2
      %1127 = vperm.xlu0 %1126, %v809
      %v1128 = vpop.permute.xlu0 %1127
      %v1130 = vmul.f32 %v1068, %v201
      %v1131 = vmul.f32 %v1072, %v202
      %v1132 = vmul.f32 %v1076, %v203
      %v1133 = vmul.f32 %v1080, %v204
      %v1134 = vmul.f32 %v1084, %v205
      %v1135 = vmul.f32 %v1088, %v206
      %v1136 = vmul.f32 %v1092, %v207
      %v1137 = vmul.f32 %v1096, %v208
      %v1138 = vmul.f32 %v1100, %v209
      %v1139 = vmul.f32 %v1104, %v210
      %v1140 = vmul.f32 %v1108, %v211
      %v1141 = vmul.f32 %v1112, %v212
      %v1142 = vmul.f32 %v1116, %v213
      %v1143 = vmul.f32 %v1120, %v214
      %v1144 = vmul.f32 %v1124, %v215
      %v1145 = vmul.f32 %v1128, %v216
      %1162 = vrot.lane.b32.xlu0 %v1130, 112
      %v1163 = vpop.permute.xlu0 %1162
      %1164 = vrot.lane.b32.xlu0 %v1131, 112
      %v1165 = vpop.permute.xlu0 %1164
      %1166 = vrot.lane.b32.xlu0 %v1132, 112
      %v1167 = vpop.permute.xlu0 %1166
      %1168 = vrot.lane.b32.xlu0 %v1133, 112
      %v1169 = vpop.permute.xlu0 %1168
      %1170 = vrot.lane.b32.xlu0 %v1134, 112
      %v1171 = vpop.permute.xlu0 %1170
      %1172 = vrot.lane.b32.xlu0 %v1135, 112
      %v1173 = vpop.permute.xlu0 %1172
      %1174 = vrot.lane.b32.xlu0 %v1136, 112
      %v1175 = vpop.permute.xlu0 %1174
      %1176 = vrot.lane.b32.xlu0 %v1137, 112
      %v1177 = vpop.permute.xlu0 %1176
      %1178 = vrot.lane.b32.xlu0 %v1138, 112
      %v1179 = vpop.permute.xlu0 %1178
      %1180 = vrot.lane.b32.xlu0 %v1139, 112
      %v1181 = vpop.permute.xlu0 %1180
      %1182 = vrot.lane.b32.xlu0 %v1140, 112
      %v1183 = vpop.permute.xlu0 %1182
      %1184 = vrot.lane.b32.xlu0 %v1141, 112
      %v1185 = vpop.permute.xlu0 %1184
      %1186 = vrot.lane.b32.xlu0 %v1142, 112
      %v1187 = vpop.permute.xlu0 %1186
      %1188 = vrot.lane.b32.xlu0 %v1143, 112
      %v1189 = vpop.permute.xlu0 %1188
      %1190 = vrot.lane.b32.xlu0 %v1144, 112
      %v1191 = vpop.permute.xlu0 %1190
      %1192 = vrot.lane.b32.xlu0 %v1145, 112
      %v1193 = vpop.permute.xlu0 %1192
      %v1210 = vadd.f32 %v1050, %v1163
      %v1211 = vadd.f32 %v1051, %v1165
      %v1212 = vadd.f32 %v1052, %v1167
      %v1213 = vadd.f32 %v1053, %v1169
      %v1214 = vadd.f32 %v1054, %v1171
      %v1215 = vadd.f32 %v1055, %v1173
      %v1216 = vadd.f32 %v1056, %v1175
      %v1217 = vadd.f32 %v1057, %v1177
      %v1218 = vadd.f32 %v1058, %v1179
      %v1219 = vadd.f32 %v1059, %v1181
      %v1220 = vadd.f32 %v1060, %v1183
      %v1221 = vadd.f32 %v1061, %v1185
      %v1222 = vadd.f32 %v1062, %v1187
      %v1223 = vadd.f32 %v1063, %v1189
      %v1224 = vadd.f32 %v1064, %v1191
      %v1225 = vadd.f32 %v1065, %v1193
      %vm1226 = vcmask 64512
      %v1227 = vsel %vm1226, %v1210, -inf
      %1228 = vmax.xlane.f32.xlu0 %v1227
      %v1229 = vpop.xlane.xlu0 %1228
      %v1230 = vsel %vm1226, %v1211, -inf
      %1231 = vmax.xlane.f32.xlu0 %v1230
      %v1232 = vpop.xlane.xlu0 %1231
      %v1233 = vsel %vm1226, %v1212, -inf
      %1234 = vmax.xlane.f32.xlu0 %v1233
      %v1235 = vpop.xlane.xlu0 %1234
      %v1236 = vsel %vm1226, %v1213, -inf
      %1237 = vmax.xlane.f32.xlu0 %v1236
      %v1238 = vpop.xlane.xlu0 %1237
      %v1239 = vsel %vm1226, %v1214, -inf
      %1240 = vmax.xlane.f32.xlu0 %v1239
      %v1241 = vpop.xlane.xlu0 %1240
      %v1242 = vsel %vm1226, %v1215, -inf
      %1243 = vmax.xlane.f32.xlu0 %v1242
      %v1244 = vpop.xlane.xlu0 %1243
      %v1245 = vsel %vm1226, %v1216, -inf
      %1246 = vmax.xlane.f32.xlu0 %v1245
      %v1247 = vpop.xlane.xlu0 %1246
      %v1248 = vsel %vm1226, %v1217, -inf
      %1249 = vmax.xlane.f32.xlu0 %v1248
      %v1250 = vpop.xlane.xlu0 %1249
      %v1251 = vsel %vm1226, %v1218, -inf
      %1252 = vmax.xlane.f32.xlu0 %v1251
      %v1253 = vpop.xlane.xlu0 %1252
      %v1254 = vsel %vm1226, %v1219, -inf
      %1255 = vmax.xlane.f32.xlu0 %v1254
      %v1256 = vpop.xlane.xlu0 %1255
      %v1257 = vsel %vm1226, %v1220, -inf
      %1258 = vmax.xlane.f32.xlu0 %v1257
      %v1259 = vpop.xlane.xlu0 %1258
      %v1260 = vsel %vm1226, %v1221, -inf
      %1261 = vmax.xlane.f32.xlu0 %v1260
      %v1262 = vpop.xlane.xlu0 %1261
      %v1263 = vsel %vm1226, %v1222, -inf
      %1264 = vmax.xlane.f32.xlu0 %v1263
      %v1265 = vpop.xlane.xlu0 %1264
      %v1266 = vsel %vm1226, %v1223, -inf
      %1267 = vmax.xlane.f32.xlu0 %v1266
      %v1268 = vpop.xlane.xlu0 %1267
      %v1269 = vsel %vm1226, %v1224, -inf
      %1270 = vmax.xlane.f32.xlu0 %v1269
      %v1271 = vpop.xlane.xlu0 %1270
      %v1272 = vsel %vm1226, %v1225, -inf
      %1273 = vmax.xlane.f32.xlu0 %v1272
      %v1274 = vpop.xlane.xlu0 %1273
      %v1275 = vsub.f32 %v1210, %v1229
      %v1276 = vsub.f32 %v1211, %v1232
      %v1277 = vsub.f32 %v1212, %v1235
      %v1278 = vsub.f32 %v1213, %v1238
      %v1279 = vsub.f32 %v1214, %v1241
      %v1280 = vsub.f32 %v1215, %v1244
      %v1281 = vsub.f32 %v1216, %v1247
      %v1282 = vsub.f32 %v1217, %v1250
      %v1283 = vsub.f32 %v1218, %v1253
      %v1284 = vsub.f32 %v1219, %v1256
      %v1285 = vsub.f32 %v1220, %v1259
      %v1286 = vsub.f32 %v1221, %v1262
      %v1287 = vsub.f32 %v1222, %v1265
      %v1288 = vsub.f32 %v1223, %v1268
      %v1289 = vsub.f32 %v1224, %v1271
      %v1290 = vsub.f32 %v1225, %v1274
      %v1291 = vmul.f32 %v1275, 1.442695
      %v1292 = vpow.pop %v1291
      %v1293 = vmul.f32 %v1276, 1.442695
      %v1294 = vpow.pop %v1293
      %v1295 = vmul.f32 %v1277, 1.442695
      %v1296 = vpow.pop %v1295
      %v1297 = vmul.f32 %v1278, 1.442695
      %v1298 = vpow.pop %v1297
      %v1299 = vmul.f32 %v1279, 1.442695
      %v1300 = vpow.pop %v1299
      %v1301 = vmul.f32 %v1280, 1.442695
      %v1302 = vpow.pop %v1301
      %v1303 = vmul.f32 %v1281, 1.442695
      %v1304 = vpow.pop %v1303
      %v1305 = vmul.f32 %v1282, 1.442695
      %v1306 = vpow.pop %v1305
      %v1307 = vmul.f32 %v1283, 1.442695
      %v1308 = vpow.pop %v1307
      %v1309 = vmul.f32 %v1284, 1.442695
      %v1310 = vpow.pop %v1309
      %v1311 = vmul.f32 %v1285, 1.442695
      %v1312 = vpow.pop %v1311
      %v1313 = vmul.f32 %v1286, 1.442695
      %v1314 = vpow.pop %v1313
      %v1315 = vmul.f32 %v1287, 1.442695
      %v1316 = vpow.pop %v1315
      %v1317 = vmul.f32 %v1288, 1.442695
      %v1318 = vpow.pop %v1317
      %v1319 = vmul.f32 %v1289, 1.442695
      %v1320 = vpow.pop %v1319
      %v1321 = vmul.f32 %v1290, 1.442695
      %v1322 = vpow.pop %v1321
      %v1323 = vsel %vm1226, %v1292, 0.0
      %1324 = vadd.xlane.f32.xlu0 %v1323
      %v1325 = vpop.xlane.xlu0 %1324
      %v1326 = vsel %vm1226, %v1294, 0.0
      %1327 = vadd.xlane.f32.xlu0 %v1326
      %v1328 = vpop.xlane.xlu0 %1327
      %v1329 = vsel %vm1226, %v1296, 0.0
      %1330 = vadd.xlane.f32.xlu0 %v1329
      %v1331 = vpop.xlane.xlu0 %1330
      %v1332 = vsel %vm1226, %v1298, 0.0
      %1333 = vadd.xlane.f32.xlu0 %v1332
      %v1334 = vpop.xlane.xlu0 %1333
      %v1335 = vsel %vm1226, %v1300, 0.0
      %1336 = vadd.xlane.f32.xlu0 %v1335
      %v1337 = vpop.xlane.xlu0 %1336
      %v1338 = vsel %vm1226, %v1302, 0.0
      %1339 = vadd.xlane.f32.xlu0 %v1338
      %v1340 = vpop.xlane.xlu0 %1339
      %v1341 = vsel %vm1226, %v1304, 0.0
      %1342 = vadd.xlane.f32.xlu0 %v1341
      %v1343 = vpop.xlane.xlu0 %1342
      %v1344 = vsel %vm1226, %v1306, 0.0
      %1345 = vadd.xlane.f32.xlu0 %v1344
      %v1346 = vpop.xlane.xlu0 %1345
      %v1347 = vsel %vm1226, %v1308, 0.0
      %1348 = vadd.xlane.f32.xlu0 %v1347
      %v1349 = vpop.xlane.xlu0 %1348
      %v1350 = vsel %vm1226, %v1310, 0.0
      %1351 = vadd.xlane.f32.xlu0 %v1350
      %v1352 = vpop.xlane.xlu0 %1351
      %v1353 = vsel %vm1226, %v1312, 0.0
      %1354 = vadd.xlane.f32.xlu0 %v1353
      %v1355 = vpop.xlane.xlu0 %1354
      %v1356 = vsel %vm1226, %v1314, 0.0
      %1357 = vadd.xlane.f32.xlu0 %v1356
      %v1358 = vpop.xlane.xlu0 %1357
      %v1359 = vsel %vm1226, %v1316, 0.0
      %1360 = vadd.xlane.f32.xlu0 %v1359
      %v1361 = vpop.xlane.xlu0 %1360
      %v1362 = vsel %vm1226, %v1318, 0.0
      %1363 = vadd.xlane.f32.xlu0 %v1362
      %v1364 = vpop.xlane.xlu0 %1363
      %v1365 = vsel %vm1226, %v1320, 0.0
      %1366 = vadd.xlane.f32.xlu0 %v1365
      %v1367 = vpop.xlane.xlu0 %1366
      %v1368 = vsel %vm1226, %v1322, 0.0
      %1369 = vadd.xlane.f32.xlu0 %v1368
      %v1370 = vpop.xlane.xlu0 %1369
      %v1371 = vlog2.pop %v1325
      %v1372 = vmul.f32 %v1371, 0.6931472
      %v1373 = vlog2.pop %v1328
      %v1374 = vmul.f32 %v1373, 0.6931472
      %v1375 = vlog2.pop %v1331
      %v1376 = vmul.f32 %v1375, 0.6931472
      %v1377 = vlog2.pop %v1334
      %v1378 = vmul.f32 %v1377, 0.6931472
      %v1379 = vlog2.pop %v1337
      %v1380 = vmul.f32 %v1379, 0.6931472
      %v1381 = vlog2.pop %v1340
      %v1382 = vmul.f32 %v1381, 0.6931472
      %v1383 = vlog2.pop %v1343
      %v1384 = vmul.f32 %v1383, 0.6931472
      %v1385 = vlog2.pop %v1346
      %v1386 = vmul.f32 %v1385, 0.6931472
      %v1387 = vlog2.pop %v1349
      %v1388 = vmul.f32 %v1387, 0.6931472
      %v1389 = vlog2.pop %v1352
      %v1390 = vmul.f32 %v1389, 0.6931472
      %v1391 = vlog2.pop %v1355
      %v1392 = vmul.f32 %v1391, 0.6931472
      %v1393 = vlog2.pop %v1358
      %v1394 = vmul.f32 %v1393, 0.6931472
      %v1395 = vlog2.pop %v1361
      %v1396 = vmul.f32 %v1395, 0.6931472
      %v1397 = vlog2.pop %v1364
      %v1398 = vmul.f32 %v1397, 0.6931472
      %v1399 = vlog2.pop %v1367
      %v1400 = vmul.f32 %v1399, 0.6931472
      %v1401 = vlog2.pop %v1370
      %v1402 = vmul.f32 %v1401, 0.6931472
      %v1403 = vadd.f32 %v1372, %v1229
      %v1404 = vadd.f32 %v1374, %v1232
      %v1405 = vadd.f32 %v1376, %v1235
      %v1406 = vadd.f32 %v1378, %v1238
      %v1407 = vadd.f32 %v1380, %v1241
      %v1408 = vadd.f32 %v1382, %v1244
      %v1409 = vadd.f32 %v1384, %v1247
      %v1410 = vadd.f32 %v1386, %v1250
      %v1411 = vadd.f32 %v1388, %v1253
      %v1412 = vadd.f32 %v1390, %v1256
      %v1413 = vadd.f32 %v1392, %v1259
      %v1414 = vadd.f32 %v1394, %v1262
      %v1415 = vadd.f32 %v1396, %v1265
      %v1416 = vadd.f32 %v1398, %v1268
      %v1417 = vadd.f32 %v1400, %v1271
      %v1418 = vadd.f32 %v1402, %v1274
      %v1419 = vsub.f32 %v1210, %v1403
      %v1420 = vsub.f32 %v1211, %v1404
      %v1421 = vsub.f32 %v1212, %v1405
      %v1422 = vsub.f32 %v1213, %v1406
      %v1423 = vsub.f32 %v1214, %v1407
      %v1424 = vsub.f32 %v1215, %v1408
      %v1425 = vsub.f32 %v1216, %v1409
      %v1426 = vsub.f32 %v1217, %v1410
      %v1427 = vsub.f32 %v1218, %v1411
      %v1428 = vsub.f32 %v1219, %v1412
      %v1429 = vsub.f32 %v1220, %v1413
      %v1430 = vsub.f32 %v1221, %v1414
      %v1431 = vsub.f32 %v1222, %v1415
      %v1432 = vsub.f32 %v1223, %v1416
      %v1433 = vsub.f32 %v1224, %v1417
      %v1434 = vsub.f32 %v1225, %v1418
      %1435 = vst.msk [vmem:[%s199] sm:$0xff] %vm1226, %v1419
      %1436 = vst.msk [vmem:[%s199 + $0x8] sm:$0xff] %vm1226, %v1420
      %1437 = vst.msk [vmem:[%s199 + $0x10] sm:$0xff] %vm1226, %v1421
      %1438 = vst.msk [vmem:[%s199 + $0x18] sm:$0xff] %vm1226, %v1422
      %1439 = vst.msk [vmem:[%s199 + $0x20] sm:$0xff] %vm1226, %v1423
      %1440 = vst.msk [vmem:[%s199 + $0x28] sm:$0xff] %vm1226, %v1424
      %1441 = vst.msk [vmem:[%s199 + $0x30] sm:$0xff] %vm1226, %v1425
      %1442 = vst.msk [vmem:[%s199 + $0x38] sm:$0xff] %vm1226, %v1426
      %1443 = vst.msk [vmem:[%s199 + $0x40] sm:$0xff] %vm1226, %v1427
      %1444 = vst.msk [vmem:[%s199 + $0x48] sm:$0xff] %vm1226, %v1428
      %1445 = vst.msk [vmem:[%s199 + $0x50] sm:$0xff] %vm1226, %v1429
      %1446 = vst.msk [vmem:[%s199 + $0x58] sm:$0xff] %vm1226, %v1430
      %1447 = vst.msk [vmem:[%s199 + $0x60] sm:$0xff] %vm1226, %v1431
      %1448 = vst.msk [vmem:[%s199 + $0x68] sm:$0xff] %vm1226, %v1432
      %1449 = vst.msk [vmem:[%s199 + $0x70] sm:$0xff] %vm1226, %v1433
      %1450 = vst.msk [vmem:[%s199 + $0x78] sm:$0xff] %vm1226, %v1434
      %s1451 = smul.u32 16, %s15
      %p1452 = scmp.lt.s32.totalorder %s1451, 31
      %s1453 = scalar_select %p1452, %s1451, 31
      %s1454 = smul.addr %s1453, 8
      %s1455 = scalar_lea.vmem %s4, %s1454
      // Predicated region
      $region37: #{ugcn_forward.25} parent=35 // pred_check
        %p1456 = pneg %p122
      $region38: #{ugcn_forward.25} parent=35 // pred_check_branch
        %1458 = sbr.rel (%p1456) target = $region40
      $region39: #{ugcn_forward.25} parent=35 // pred_region
        %s1459 = smul.u32 16, %s15
      $region40: #{ugcn_forward.25} parent=35 // pred_fallthru
        _
    $region36: #{ugcn_forward.25} parent=5 // pred_fallthru
      _
    %p1460 = scmp.le.s32.totalorder 2, %s10
    // Predicated region
    $region41: #{ugcn_forward.25} parent=5 // pred_check
      %p1461 = pneg %p1460
    $region42: #{ugcn_forward.25} parent=5 // pred_check_branch
      %1463 = sbr.rel (%p1461) target = $region44
    $region43: #{ugcn_forward.25} parent=5 // pred_region
      %s1464 = ssub.s32 %s10, 2
      // Predicated region
      $region45: #{ugcn_forward.25} parent=43 // pred_check
        %p1465 = pneg %p128
      $region46: #{ugcn_forward.25} parent=43 // pred_check_branch
        %1467 = sbr.rel (%p1465) target = $region48
      $region47: #{ugcn_forward.25} parent=43 // pred_region
        %s1468 = smul.u32 16, %s16
        %p1469 = scmp.lt.s32.totalorder %s1468, 31
        %s1470 = scalar_select %p1469, %s1468, 31
        %s1471 = smul.addr %s1470, 8
        %s1472 = scalar_lea.vmem %s4, %s1471
      $region48: #{ugcn_forward.25} parent=43 // pred_fallthru
        _
    $region44: #{ugcn_forward.25} parent=5 // pred_fallthru
      _
  $region6: #{ugcn_forward.25} parent=0 // loop_footer
    %s14 = sadd.s32 1, %s10
  $region7: #{ugcn_forward.25} parent=0 // loop_footer_branch
    %9 = sbr.rel target = $region3
  $region8: #{ugcn_forward.25} parent=0 // loop_exit
    _

</llo_original>
